<compile_context>
chip_gen: v6e
topology: v6e:2x2x1
jax: 0.10.0
libtpu: 0.0.40
codegen_flags: <defaults>
</compile_context>

<pallas_src>
import functools

import jax
import jax.numpy as jnp
from jax.experimental import pallas as pl
from jax.experimental.pallas import tpu as pltpu


def _round_up(x: int, m: int) -> int:
    return (x + m - 1) // m * m


def _pointer_generator_kernel(presence_ref, idx_ref, attn_ref, out_ref):
    # presence_ref: (nB*nV*nL,) int32 in SMEM (scalar prefetch)
    # idx_ref:      (TB, TL) int32   attn_ref: (TB, TL) f32
    # out_ref:      (TB, TV) f32  -- same block across the seq-chunk grid axis
    TB, TL = idx_ref.shape
    TV = out_ref.shape[-1]

    bi = pl.program_id(0)
    vi = pl.program_id(1)
    li = pl.program_id(2)
    nV = pl.num_programs(1)
    nL = pl.num_programs(2)

    # Zero the accumulator tile at the first seq chunk.
    @pl.when(li == 0)
    def _init():
        out_ref[...] = jnp.zeros_like(out_ref)

    # Skip vocab tiles that contain no token from this (batch block, seq chunk).
    hit = presence_ref[(bi * nV + vi) * nL + li]

    @pl.when(hit != 0)
    def _accumulate():
        # Column ids of this vocab tile (row vector, broadcast across TB rows).
        cols = vi * TV + jax.lax.broadcasted_iota(jnp.int32, (1, TV), 1)

        # Single full-tile loads (one vreg each) instead of 2*TL narrow loads.
        ids = idx_ref[...]     # (TB, TL) int32
        attn = attn_ref[...]   # (TB, TL) f32

        # Two accumulators (even/odd tokens) halve the sequential add chain.
        acc0 = jnp.zeros((TB, TV), jnp.float32)
        acc1 = jnp.zeros((TB, TV), jnp.float32)
        # VPU compare-select-accumulate over the seq chunk (no one-hot, no MXU).
        for j in range(0, TL, 2):
            acc0 = acc0 + jnp.where(ids[:, j:j + 1] == cols,
                                    attn[:, j:j + 1], 0.0)
            acc1 = acc1 + jnp.where(ids[:, j + 1:j + 2] == cols,
                                    attn[:, j + 1:j + 2], 0.0)

        out_ref[...] += acc0 + acc1


@functools.partial(jax.jit, static_argnums=(2, 3, 4, 5))
def pointer_generator_distribution(encoder_inputs, attention_weight, vocab_size,
                                   tb: int = 8, tv: int = 1024, tl: int = 128):
    """encoder_inputs: [B, L] int, attention_weight: [B, L] float -> [B, V] f32."""
    if vocab_size <= 0:
        raise ValueError(
            '"vocab_size" must be a positive integer, got {}'.format(vocab_size))
    assert tl % 2 == 0, "tl must be even (dual-accumulator unroll)"

    B, L = encoder_inputs.shape
    assert attention_weight.shape == (B, L)

    ids = encoder_inputs.astype(jnp.int32)
    attn = attention_weight.astype(jnp.float32)

    # Pad to tile multiples. Padded positions use id=-1 / weight=0.0, which can
    # never match a (non-negative) column id and contribute nothing.
    Bp = _round_up(B, tb)
    Lp = _round_up(L, tl)
    Vp = _round_up(vocab_size, tv)
    nB, nV, nL = Bp // tb, Vp // tv, Lp // tl

    ids_p = jnp.full((Bp, Lp), -1, dtype=jnp.int32).at[:B, :L].set(ids)
    attn_p = jnp.zeros((Bp, Lp), dtype=jnp.float32).at[:B, :L].set(attn)

    # presence[(b_blk * nV + v_blk) * nL + l_blk] != 0  <=>  some token of that
    # (batch block, seq chunk) falls inside vocab tile v_blk.
    tile_ids = ids_p // tv                                     # (Bp, Lp), -1 for padding
    hits = jax.nn.one_hot(tile_ids, nV, dtype=jnp.int32)       # (Bp, Lp, nV)
    hits = hits.reshape(nB, tb, nL, tl, nV).sum(axis=(1, 3))   # (nB, nL, nV)
    presence = (hits > 0).astype(jnp.int32)
    presence = jnp.transpose(presence, (0, 2, 1)).reshape(-1)  # (nB*nV*nL,)

    cost = pl.CostEstimate(
        flops=3 * Bp * Lp * Vp,               # compare + select + add per pair
        transcendentals=0,
        bytes_accessed=ids_p.size * 4 + attn_p.size * 4 + Bp * Vp * 4,
    )

    out_p = pl.pallas_call(
        _pointer_generator_kernel,
        out_shape=jax.ShapeDtypeStruct((Bp, Vp), jnp.float32),
        grid_spec=pltpu.PrefetchScalarGridSpec(
            num_scalar_prefetch=1,
            grid=(nB, nV, nL),
            in_specs=[
                pl.BlockSpec((tb, tl), lambda b, v, l, presence: (b, l)),
                pl.BlockSpec((tb, tl), lambda b, v, l, presence: (b, l)),
            ],
            out_specs=pl.BlockSpec((tb, tv), lambda b, v, l, presence: (b, v)),
        ),
        compiler_params=pltpu.CompilerParams(
            dimension_semantics=("parallel", "parallel", "arbitrary"),
            vmem_limit_bytes=32 * 1024 * 1024,
        ),
        cost_estimate=cost,
    )(presence, ids_p, attn_p)

    return out_p[:B, :vocab_size]


if __name__ == "__main__":
    # Small deterministic example with non-tile-aligned shapes to exercise padding.
    B, L, V = 6, 200, 2000
    key = jax.random.PRNGKey(0)
    k_idx, k_attn = jax.random.split(key)

    encoder_inputs = jax.random.randint(k_idx, (B, L), 0, V, dtype=jnp.int32)
    logits = jax.random.normal(k_attn, (B, L), dtype=jnp.float32)
    attention_weight = jax.nn.softmax(logits, axis=-1)  # rows sum to 1

    out = pointer_generator_distribution(encoder_inputs, attention_weight, V)
    out = jax.block_until_ready(out)

    # Pure-JAX scatter-add reference.
    ref = jnp.zeros((B, V), jnp.float32).at[
        jnp.arange(B)[:, None], encoder_inputs].add(attention_weight)

    assert out.shape == (B, V)
    assert jnp.allclose(out, ref, atol=1e-5), "mismatch vs reference"
    assert jnp.allclose(out.sum(axis=-1), 1.0, atol=1e-5), "rows should sum to 1"

    print("KERNEL_OK")
</pallas_src>

<mosaic_0001>
module attributes {stable_mosaic.version = 11 : i64} {
  func.func @_pointer_generator_kernel(%arg0: i32, %arg1: i32, %arg2: i32, %arg3: memref<4xi32, #tpu.memory_space<smem>>, %arg4: memref<8x128xi32, #tpu.memory_space<vmem>>, %arg5: memref<8x128xf32, #tpu.memory_space<vmem>>, %arg6: memref<8x1024xf32, #tpu.memory_space<vmem>>) attributes {dimension_semantics = [#tpu.dimension_semantics<parallel>, #tpu.dimension_semantics<parallel>, #tpu.dimension_semantics<arbitrary>], iteration_bounds = array<i64: 1, 2, 2>, scalar_prefetch = 1 : i64, scratch_operands = 0 : i64, tpu.core_type = #tpu.core_type<tc>, window_params = [{transform_indices = @transform_0, window_bounds = array<i64: 8, 128>}, {transform_indices = @transform_1, window_bounds = array<i64: 8, 128>}, {transform_indices = @transform_2, window_bounds = array<i64: 8, 1024>}]} {
    %c0_i32 = arith.constant 0 : i32
    %0 = arith.cmpi eq, %arg2, %c0_i32 : i32
    %1 = arith.extui %0 : i1 to i32
    %c0_i32_0 = arith.constant 0 : i32
    %2 = arith.cmpi ne, %1, %c0_i32_0 : i32
    scf.if %2 {
      %cst = arith.constant 0.000000e+00 : f32
      %12 = vector.broadcast %cst : f32 to vector<8x1024xf32>
      %c0 = arith.constant 0 : index
      %c0_4 = arith.constant 0 : index
      %13 = vector.load %arg6[%c0, %c0_4] : memref<8x1024xf32, #tpu.memory_space<vmem>>, vector<8x1024xf32>
      tpu.vector_store %arg6[%c0, %c0_4], %12 {strides = array<i32>} : memref<8x1024xf32, #tpu.memory_space<vmem>>, vector<8x1024xf32>,
    } else {
    }
    %c2_i32 = arith.constant 2 : i32
    %3 = arith.muli %arg0, %c2_i32 : i32
    %4 = arith.addi %3, %arg1 : i32
    %c2_i32_1 = arith.constant 2 : i32
    %5 = arith.muli %4, %c2_i32_1 : i32
    %6 = arith.addi %5, %arg2 : i32
    %7 = arith.index_cast %6 : i32 to index
    %8 = memref.load %arg3[%7] : memref<4xi32, #tpu.memory_space<smem>>
    %c0_i32_2 = arith.constant 0 : i32
    %9 = arith.cmpi ne, %8, %c0_i32_2 : i32
    %10 = arith.extui %9 : i1 to i32
    %c0_i32_3 = arith.constant 0 : i32
    %11 = arith.cmpi ne, %10, %c0_i32_3 : i32
    scf.if %11 {
      %c1024_i32 = arith.constant 1024 : i32
      %12 = arith.muli %arg1, %c1024_i32 : i32
      %13 = tpu.iota {dimensions = array<i32: 1>} : vector<1x1024xi32>
      %14 = vector.broadcast %12 : i32 to vector<1x1024xi32>
      %15 = arith.addi %14, %13 : vector<1x1024xi32>
      %c0 = arith.constant 0 : index
      %c0_4 = arith.constant 0 : index
      %16 = vector.load %arg4[%c0, %c0_4] : memref<8x128xi32, #tpu.memory_space<vmem>>, vector<8x128xi32>
      %c0_5 = arith.constant 0 : index
      %c0_6 = arith.constant 0 : index
      %17 = vector.load %arg5[%c0_5, %c0_6] : memref<8x128xf32, #tpu.memory_space<vmem>>, vector<8x128xf32>
      %cst = arith.constant 0.000000e+00 : f32
      %18 = vector.broadcast %cst : f32 to vector<8x1024xf32>
      %cst_7 = arith.constant 0.000000e+00 : f32
      %19 = vector.broadcast %cst_7 : f32 to vector<8x1024xf32>
      %20 = vector.extract_strided_slice %16 {offsets = [0, 0], sizes = [8, 1], strides = [1, 1]} : vector<8x128xi32> to vector<8x1xi32>
      %21 = vector.broadcast %20 : vector<8x1xi32> to vector<8x1024xi32>
      %22 = vector.broadcast %15 : vector<1x1024xi32> to vector<8x1024xi32>
      %23 = arith.cmpi eq, %21, %22 : vector<8x1024xi32>
      %24 = vector.extract_strided_slice %17 {offsets = [0, 0], sizes = [8, 1], strides = [1, 1]} : vector<8x128xf32> to vector<8x1xf32>
      %cst_8 = arith.constant 0.000000e+00 : f32
      %25 = vector.shape_cast %24 : vector<8x1xf32> to vector<8x1xf32>
      %26 = vector.broadcast %25 : vector<8x1xf32> to vector<8x1024xf32>
      %27 = vector.broadcast %cst_8 : f32 to vector<8x1024xf32>
      %28 = arith.select %23, %26, %27 : vector<8x1024xi1>, vector<8x1024xf32>
      %29 = arith.addf %18, %28 : vector<8x1024xf32>
      %30 = vector.extract_strided_slice %16 {offsets = [0, 1], sizes = [8, 1], strides = [1, 1]} : vector<8x128xi32> to vector<8x1xi32>
      %31 = vector.broadcast %30 : vector<8x1xi32> to vector<8x1024xi32>
      %32 = vector.broadcast %15 : vector<1x1024xi32> to vector<8x1024xi32>
      %33 = arith.cmpi eq, %31, %32 : vector<8x1024xi32>
      %34 = vector.extract_strided_slice %17 {offsets = [0, 1], sizes = [8, 1], strides = [1, 1]} : vector<8x128xf32> to vector<8x1xf32>
      %cst_9 = arith.constant 0.000000e+00 : f32
      %35 = vector.shape_cast %34 : vector<8x1xf32> to vector<8x1xf32>
      %36 = vector.broadcast %35 : vector<8x1xf32> to vector<8x1024xf32>
      %37 = vector.broadcast %cst_9 : f32 to vector<8x1024xf32>
      %38 = arith.select %33, %36, %37 : vector<8x1024xi1>, vector<8x1024xf32>
      %39 = arith.addf %19, %38 : vector<8x1024xf32>
      %40 = vector.extract_strided_slice %16 {offsets = [0, 2], sizes = [8, 1], strides = [1, 1]} : vector<8x128xi32> to vector<8x1xi32>
      %41 = vector.broadcast %40 : vector<8x1xi32> to vector<8x1024xi32>
      %42 = vector.broadcast %15 : vector<1x1024xi32> to vector<8x1024xi32>
      %43 = arith.cmpi eq, %41, %42 : vector<8x1024xi32>
      %44 = vector.extract_strided_slice %17 {offsets = [0, 2], sizes = [8, 1], strides = [1, 1]} : vector<8x128xf32> to vector<8x1xf32>
      %cst_10 = arith.constant 0.000000e+00 : f32
      %45 = vector.shape_cast %44 : vector<8x1xf32> to vector<8x1xf32>
      %46 = vector.broadcast %45 : vector<8x1xf32> to vector<8x1024xf32>
      %47 = vector.broadcast %cst_10 : f32 to vector<8x1024xf32>
      %48 = arith.select %43, %46, %47 : vector<8x1024xi1>, vector<8x1024xf32>
      %49 = arith.addf %29, %48 : vector<8x1024xf32>
      %50 = vector.extract_strided_slice %16 {offsets = [0, 3], sizes = [8, 1], strides = [1, 1]} : vector<8x128xi32> to vector<8x1xi32>
      %51 = vector.broadcast %50 : vector<8x1xi32> to vector<8x1024xi32>
      %52 = vector.broadcast %15 : vector<1x1024xi32> to vector<8x1024xi32>
      %53 = arith.cmpi eq, %51, %52 : vector<8x1024xi32>
      %54 = vector.extract_strided_slice %17 {offsets = [0, 3], sizes = [8, 1], strides = [1, 1]} : vector<8x128xf32> to vector<8x1xf32>
      %cst_11 = arith.constant 0.000000e+00 : f32
      %55 = vector.shape_cast %54 : vector<8x1xf32> to vector<8x1xf32>
      %56 = vector.broadcast %55 : vector<8x1xf32> to vector<8x1024xf32>
      %57 = vector.broadcast %cst_11 : f32 to vector<8x1024xf32>
      %58 = arith.select %53, %56, %57 : vector<8x1024xi1>, vector<8x1024xf32>
      %59 = arith.addf %39, %58 : vector<8x1024xf32>
      %60 = vector.extract_strided_slice %16 {offsets = [0, 4], sizes = [8, 1], strides = [1, 1]} : vector<8x128xi32> to vector<8x1xi32>
      %61 = vector.broadcast %60 : vector<8x1xi32> to vector<8x1024xi32>
      %62 = vector.broadcast %15 : vector<1x1024xi32> to vector<8x1024xi32>
      %63 = arith.cmpi eq, %61, %62 : vector<8x1024xi32>
      %64 = vector.extract_strided_slice %17 {offsets = [0, 4], sizes = [8, 1], strides = [1, 1]} : vector<8x128xf32> to vector<8x1xf32>
      %cst_12 = arith.constant 0.000000e+00 : f32
      %65 = vector.shape_cast %64 : vector<8x1xf32> to vector<8x1xf32>
      %66 = vector.broadcast %65 : vector<8x1xf32> to vector<8x1024xf32>
      %67 = vector.broadcast %cst_12 : f32 to vector<8x1024xf32>
      %68 = arith.select %63, %66, %67 : vector<8x1024xi1>, vector<8x1024xf32>
      %69 = arith.addf %49, %68 : vector<8x1024xf32>
      %70 = vector.extract_strided_slice %16 {offsets = [0, 5], sizes = [8, 1], strides = [1, 1]} : vector<8x128xi32> to vector<8x1xi32>
      %71 = vector.broadcast %70 : vector<8x1xi32> to vector<8x1024xi32>
      %72 = vector.broadcast %15 : vector<1x1024xi32> to vector<8x1024xi32>
      %73 = arith.cmpi eq, %71, %72 : vector<8x1024xi32>
      %74 = vector.extract_strided_slice %17 {offsets = [0, 5], sizes = [8, 1], strides = [1, 1]} : vector<8x128xf32> to vector<8x1xf32>
      %cst_13 = arith.constant 0.000000e+00 : f32
      %75 = vector.shape_cast %74 : vector<8x1xf32> to vector<8x1xf32>
      %76 = vector.broadcast %75 : vector<8x1xf32> to vector<8x1024xf32>
      %77 = vector.broadcast %cst_13 : f32 to vector<8x1024xf32>
      %78 = arith.select %73, %76, %77 : vector<8x1024xi1>, vector<8x1024xf32>
      %79 = arith.addf %59, %78 : vector<8x1024xf32>
      %80 = vector.extract_strided_slice %16 {offsets = [0, 6], sizes = [8, 1], strides = [1, 1]} : vector<8x128xi32> to vector<8x1xi32>
      %81 = vector.broadcast %80 : vector<8x1xi32> to vector<8x1024xi32>
      %82 = vector.broadcast %15 : vector<1x1024xi32> to vector<8x1024xi32>
      %83 = arith.cmpi eq, %81, %82 : vector<8x1024xi32>
      %84 = vector.extract_strided_slice %17 {offsets = [0, 6], sizes = [8, 1], strides = [1, 1]} : vector<8x128xf32> to vector<8x1xf32>
      %cst_14 = arith.constant 0.000000e+00 : f32
      %85 = vector.shape_cast %84 : vector<8x1xf32> to vector<8x1xf32>
      %86 = vector.broadcast %85 : vector<8x1xf32> to vector<8x1024xf32>
      %87 = vector.broadcast %cst_14 : f32 to vector<8x1024xf32>
      %88 = arith.select %83, %86, %87 : vector<8x1024xi1>, vector<8x1024xf32>
      %89 = arith.addf %69, %88 : vector<8x1024xf32>
      %90 = vector.extract_strided_slice %16 {offsets = [0, 7], sizes = [8, 1], strides = [1, 1]} : vector<8x128xi32> to vector<8x1xi32>
      %91 = vector.broadcast %90 : vector<8x1xi32> to vector<8x1024xi32>
      %92 = vector.broadcast %15 : vector<1x1024xi32> to vector<8x1024xi32>
      %93 = arith.cmpi eq, %91, %92 : vector<8x1024xi32>
      %94 = vector.extract_strided_slice %17 {offsets = [0, 7], sizes = [8, 1], strides = [1, 1]} : vector<8x128xf32> to vector<8x1xf32>
      %cst_15 = arith.constant 0.000000e+00 : f32
      %95 = vector.shape_cast %94 : vector<8x1xf32> to vector<8x1xf32>
      %96 = vector.broadcast %95 : vector<8x1xf32> to vector<8x1024xf32>
      %97 = vector.broadcast %cst_15 : f32 to vector<8x1024xf32>
      %98 = arith.select %93, %96, %97 : vector<8x1024xi1>, vector<8x1024xf32>
      %99 = arith.addf %79, %98 : vector<8x1024xf32>
      %100 = vector.extract_strided_slice %16 {offsets = [0, 8], sizes = [8, 1], strides = [1, 1]} : vector<8x128xi32> to vector<8x1xi32>
      %101 = vector.broadcast %100 : vector<8x1xi32> to vector<8x1024xi32>
      %102 = vector.broadcast %15 : vector<1x1024xi32> to vector<8x1024xi32>
      %103 = arith.cmpi eq, %101, %102 : vector<8x1024xi32>
      %104 = vector.extract_strided_slice %17 {offsets = [0, 8], sizes = [8, 1], strides = [1, 1]} : vector<8x128xf32> to vector<8x1xf32>
      %cst_16 = arith.constant 0.000000e+00 : f32
      %105 = vector.shape_cast %104 : vector<8x1xf32> to vector<8x1xf32>
      %106 = vector.broadcast %105 : vector<8x1xf32> to vector<8x1024xf32>
      %107 = vector.broadcast %cst_16 : f32 to vector<8x1024xf32>
      %108 = arith.select %103, %106, %107 : vector<8x1024xi1>, vector<8x1024xf32>
      %109 = arith.addf %89, %108 : vector<8x1024xf32>
      %110 = vector.extract_strided_slice %16 {offsets = [0, 9], sizes = [8, 1], strides = [1, 1]} : vector<8x128xi32> to vector<8x1xi32>
      %111 = vector.broadcast %110 : vector<8x1xi32> to vector<8x1024xi32>
      %112 = vector.broadcast %15 : vector<1x1024xi32> to vector<8x1024xi32>
      %113 = arith.cmpi eq, %111, %112 : vector<8x1024xi32>
      %114 = vector.extract_strided_slice %17 {offsets = [0, 9], sizes = [8, 1], strides = [1, 1]} : vector<8x128xf32> to vector<8x1xf32>
      %cst_17 = arith.constant 0.000000e+00 : f32
      %115 = vector.shape_cast %114 : vector<8x1xf32> to vector<8x1xf32>
      %116 = vector.broadcast %115 : vector<8x1xf32> to vector<8x1024xf32>
      %117 = vector.broadcast %cst_17 : f32 to vector<8x1024xf32>
      %118 = arith.select %113, %116, %117 : vector<8x1024xi1>, vector<8x1024xf32>
      %119 = arith.addf %99, %118 : vector<8x1024xf32>
      %120 = vector.extract_strided_slice %16 {offsets = [0, 10], sizes = [8, 1], strides = [1, 1]} : vector<8x128xi32> to vector<8x1xi32>
      %121 = vector.broadcast %120 : vector<8x1xi32> to vector<8x1024xi32>
      %122 = vector.broadcast %15 : vector<1x1024xi32> to vector<8x1024xi32>
      %123 = arith.cmpi eq, %121, %122 : vector<8x1024xi32>
      %124 = vector.extract_strided_slice %17 {offsets = [0, 10], sizes = [8, 1], strides = [1, 1]} : vector<8x128xf32> to vector<8x1xf32>
      %cst_18 = arith.constant 0.000000e+00 : f32
      %125 = vector.shape_cast %124 : vector<8x1xf32> to vector<8x1xf32>
      %126 = vector.broadcast %125 : vector<8x1xf32> to vector<8x1024xf32>
      %127 = vector.broadcast %cst_18 : f32 to vector<8x1024xf32>
      %128 = arith.select %123, %126, %127 : vector<8x1024xi1>, vector<8x1024xf32>
      %129 = arith.addf %109, %128 : vector<8x1024xf32>
      %130 = vector.extract_strided_slice %16 {offsets = [0, 11], sizes = [8, 1], strides = [1, 1]} : vector<8x128xi32> to vector<8x1xi32>
      %131 = vector.broadcast %130 : vector<8x1xi32> to vector<8x1024xi32>
      %132 = vector.broadcast %15 : vector<1x1024xi32> to vector<8x1024xi32>
      %133 = arith.cmpi eq, %131, %132 : vector<8x1024xi32>
      %134 = vector.extract_strided_slice %17 {offsets = [0, 11], sizes = [8, 1], strides = [1, 1]} : vector<8x128xf32> to vector<8x1xf32>
      %cst_19 = arith.constant 0.000000e+00 : f32
      %135 = vector.shape_cast %134 : vector<8x1xf32> to vector<8x1xf32>
      %136 = vector.broadcast %135 : vector<8x1xf32> to vector<8x1024xf32>
      %137 = vector.broadcast %cst_19 : f32 to vector<8x1024xf32>
      %138 = arith.select %133, %136, %137 : vector<8x1024xi1>, vector<8x1024xf32>
      %139 = arith.addf %119, %138 : vector<8x1024xf32>
      %140 = vector.extract_strided_slice %16 {offsets = [0, 12], sizes = [8, 1], strides = [1, 1]} : vector<8x128xi32> to vector<8x1xi32>
      %141 = vector.broadcast %140 : vector<8x1xi32> to vector<8x1024xi32>
      %142 = vector.broadcast %15 : vector<1x1024xi32> to vector<8x1024xi32>
      %143 = arith.cmpi eq, %141, %142 : vector<8x1024xi32>
      %144 = vector.extract_strided_slice %17 {offsets = [0, 12], sizes = [8, 1], strides = [1, 1]} : vector<8x128xf32> to vector<8x1xf32>
      %cst_20 = arith.constant 0.000000e+00 : f32
      %145 = vector.shape_cast %144 : vector<8x1xf32> to vector<8x1xf32>
      %146 = vector.broadcast %145 : vector<8x1xf32> to vector<8x1024xf32>
      %147 = vector.broadcast %cst_20 : f32 to vector<8x1024xf32>
      %148 = arith.select %143, %146, %147 : vector<8x1024xi1>, vector<8x1024xf32>
      %149 = arith.addf %129, %148 : vector<8x1024xf32>
      %150 = vector.extract_strided_slice %16 {offsets = [0, 13], sizes = [8, 1], strides = [1, 1]} : vector<8x128xi32> to vector<8x1xi32>
      %151 = vector.broadcast %150 : vector<8x1xi32> to vector<8x1024xi32>
      %152 = vector.broadcast %15 : vector<1x1024xi32> to vector<8x1024xi32>
      %153 = arith.cmpi eq, %151, %152 : vector<8x1024xi32>
      %154 = vector.extract_strided_slice %17 {offsets = [0, 13], sizes = [8, 1], strides = [1, 1]} : vector<8x128xf32> to vector<8x1xf32>
      %cst_21 = arith.constant 0.000000e+00 : f32
      %155 = vector.shape_cast %154 : vector<8x1xf32> to vector<8x1xf32>
      %156 = vector.broadcast %155 : vector<8x1xf32> to vector<8x1024xf32>
      %157 = vector.broadcast %cst_21 : f32 to vector<8x1024xf32>
      %158 = arith.select %153, %156, %157 : vector<8x1024xi1>, vector<8x1024xf32>
      %159 = arith.addf %139, %158 : vector<8x1024xf32>
      %160 = vector.extract_strided_slice %16 {offsets = [0, 14], sizes = [8, 1], strides = [1, 1]} : vector<8x128xi32> to vector<8x1xi32>
      %161 = vector.broadcast %160 : vector<8x1xi32> to vector<8x1024xi32>
      %162 = vector.broadcast %15 : vector<1x1024xi32> to vector<8x1024xi32>
      %163 = arith.cmpi eq, %161, %162 : vector<8x1024xi32>
      %164 = vector.extract_strided_slice %17 {offsets = [0, 14], sizes = [8, 1], strides = [1, 1]} : vector<8x128xf32> to vector<8x1xf32>
      %cst_22 = arith.constant 0.000000e+00 : f32
      %165 = vector.shape_cast %164 : vector<8x1xf32> to vector<8x1xf32>
      %166 = vector.broadcast %165 : vector<8x1xf32> to vector<8x1024xf32>
      %167 = vector.broadcast %cst_22 : f32 to vector<8x1024xf32>
      %168 = arith.select %163, %166, %167 : vector<8x1024xi1>, vector<8x1024xf32>
      %169 = arith.addf %149, %168 : vector<8x1024xf32>
      %170 = vector.extract_strided_slice %16 {offsets = [0, 15], sizes = [8, 1], strides = [1, 1]} : vector<8x128xi32> to vector<8x1xi32>
      %171 = vector.broadcast %170 : vector<8x1xi32> to vector<8x1024xi32>
      %172 = vector.broadcast %15 : vector<1x1024xi32> to vector<8x1024xi32>
      %173 = arith.cmpi eq, %171, %172 : vector<8x1024xi32>
      %174 = vector.extract_strided_slice %17 {offsets = [0, 15], sizes = [8, 1], strides = [1, 1]} : vector<8x128xf32> to vector<8x1xf32>
      %cst_23 = arith.constant 0.000000e+00 : f32
      %175 = vector.shape_cast %174 : vector<8x1xf32> to vector<8x1xf32>
      %176 = vector.broadcast %175 : vector<8x1xf32> to vector<8x1024xf32>
      %177 = vector.broadcast %cst_23 : f32 to vector<8x1024xf32>
      %178 = arith.select %173, %176, %177 : vector<8x1024xi1>, vector<8x1024xf32>
      %179 = arith.addf %159, %178 : vector<8x1024xf32>
      %180 = vector.extract_strided_slice %16 {offsets = [0, 16], sizes = [8, 1], strides = [1, 1]} : vector<8x128xi32> to vector<8x1xi32>
      %181 = vector.broadcast %180 : vector<8x1xi32> to vector<8x1024xi32>
      %182 = vector.broadcast %15 : vector<1x1024xi32> to vector<8x1024xi32>
      %183 = arith.cmpi eq, %181, %182 : vector<8x1024xi32>
      %184 = vector.extract_strided_slice %17 {offsets = [0, 16], sizes = [8, 1], strides = [1, 1]} : vector<8x128xf32> to vector<8x1xf32>
      %cst_24 = arith.constant 0.000000e+00 : f32
      %185 = vector.shape_cast %184 : vector<8x1xf32> to vector<8x1xf32>
      %186 = vector.broadcast %185 : vector<8x1xf32> to vector<8x1024xf32>
      %187 = vector.broadcast %cst_24 : f32 to vector<8x1024xf32>
      %188 = arith.select %183, %186, %187 : vector<8x1024xi1>, vector<8x1024xf32>
      %189 = arith.addf %169, %188 : vector<8x1024xf32>
      %190 = vector.extract_strided_slice %16 {offsets = [0, 17], sizes = [8, 1], strides = [1, 1]} : vector<8x128xi32> to vector<8x1xi32>
      %191 = vector.broadcast %190 : vector<8x1xi32> to vector<8x1024xi32>
      %192 = vector.broadcast %15 : vector<1x1024xi32> to vector<8x1024xi32>
      %193 = arith.cmpi eq, %191, %192 : vector<8x1024xi32>
      %194 = vector.extract_strided_slice %17 {offsets = [0, 17], sizes = [8, 1], strides = [1, 1]} : vector<8x128xf32> to vector<8x1xf32>
      %cst_25 = arith.constant 0.000000e+00 : f32
      %195 = vector.shape_cast %194 : vector<8x1xf32> to vector<8x1xf32>
      %196 = vector.broadcast %195 : vector<8x1xf32> to vector<8x1024xf32>
      %197 = vector.broadcast %cst_25 : f32 to vector<8x1024xf32>
      %198 = arith.select %193, %196, %197 : vector<8x1024xi1>, vector<8x1024xf32>
      %199 = arith.addf %179, %198 : vector<8x1024xf32>
      %200 = vector.extract_strided_slice %16 {offsets = [0, 18], sizes = [8, 1], strides = [1, 1]} : vector<8x128xi32> to vector<8x1xi32>
      %201 = vector.broadcast %200 : vector<8x1xi32> to vector<8x1024xi32>
      %202 = vector.broadcast %15 : vector<1x1024xi32> to vector<8x1024xi32>
      %203 = arith.cmpi eq, %201, %202 : vector<8x1024xi32>
      %204 = vector.extract_strided_slice %17 {offsets = [0, 18], sizes = [8, 1], strides = [1, 1]} : vector<8x128xf32> to vector<8x1xf32>
      %cst_26 = arith.constant 0.000000e+00 : f32
      %205 = vector.shape_cast %204 : vector<8x1xf32> to vector<8x1xf32>
      %206 = vector.broadcast %205 : vector<8x1xf32> to vector<8x1024xf32>
      %207 = vector.broadcast %cst_26 : f32 to vector<8x1024xf32>
      %208 = arith.select %203, %206, %207 : vector<8x1024xi1>, vector<8x1024xf32>
      %209 = arith.addf %189, %208 : vector<8x1024xf32>
      %210 = vector.extract_strided_slice %16 {offsets = [0, 19], sizes = [8, 1], strides = [1, 1]} : vector<8x128xi32> to vector<8x1xi32>
      %211 = vector.broadcast %210 : vector<8x1xi32> to vector<8x1024xi32>
      %212 = vector.broadcast %15 : vector<1x1024xi32> to vector<8x1024xi32>
      %213 = arith.cmpi eq, %211, %212 : vector<8x1024xi32>
      %214 = vector.extract_strided_slice %17 {offsets = [0, 19], sizes = [8, 1], strides = [1, 1]} : vector<8x128xf32> to vector<8x1xf32>
      %cst_27 = arith.constant 0.000000e+00 : f32
      %215 = vector.shape_cast %214 : vector<8x1xf32> to vector<8x1xf32>
      %216 = vector.broadcast %215 : vector<8x1xf32> to vector<8x1024xf32>
      %217 = vector.broadcast %cst_27 : f32 to vector<8x1024xf32>
      %218 = arith.select %213, %216, %217 : vector<8x1024xi1>, vector<8x1024xf32>
      %219 = arith.addf %199, %218 : vector<8x1024xf32>
      %220 = vector.extract_strided_slice %16 {offsets = [0, 20], sizes = [8, 1], strides = [1, 1]} : vector<8x128xi32> to vector<8x1xi32>
      %221 = vector.broadcast %220 : vector<8x1xi32> to vector<8x1024xi32>
      %222 = vector.broadcast %15 : vector<1x1024xi32> to vector<8x1024xi32>
      %223 = arith.cmpi eq, %221, %222 : vector<8x1024xi32>
      %224 = vector.extract_strided_slice %17 {offsets = [0, 20], sizes = [8, 1], strides = [1, 1]} : vector<8x128xf32> to vector<8x1xf32>
      %cst_28 = arith.constant 0.000000e+00 : f32
      %225 = vector.shape_cast %224 : vector<8x1xf32> to vector<8x1xf32>
      %226 = vector.broadcast %225 : vector<8x1xf32> to vector<8x1024xf32>
      %227 = vector.broadcast %cst_28 : f32 to vector<8x1024xf32>
      %228 = arith.select %223, %226, %227 : vector<8x1024xi1>, vector<8x1024xf32>
      %229 = arith.addf %209, %228 : vector<8x1024xf32>
      %230 = vector.extract_strided_slice %16 {offsets = [0, 21], sizes = [8, 1], strides = [1, 1]} : vector<8x128xi32> to vector<8x1xi32>
      %231 = vector.broadcast %230 : vector<8x1xi32> to vector<8x1024xi32>
      %232 = vector.broadcast %15 : vector<1x1024xi32> to vector<8x1024xi32>
      %233 = arith.cmpi eq, %231, %232 : vector<8x1024xi32>
      %234 = vector.extract_strided_slice %17 {offsets = [0, 21], sizes = [8, 1], strides = [1, 1]} : vector<8x128xf32> to vector<8x1xf32>
      %cst_29 = arith.constant 0.000000e+00 : f32
      %235 = vector.shape_cast %234 : vector<8x1xf32> to vector<8x1xf32>
      %236 = vector.broadcast %235 : vector<8x1xf32> to vector<8x1024xf32>
      %237 = vector.broadcast %cst_29 : f32 to vector<8x1024xf32>
      %238 = arith.select %233, %236, %237 : vector<8x1024xi1>, vector<8x1024xf32>
      %239 = arith.addf %219, %238 : vector<8x1024xf32>
      %240 = vector.extract_strided_slice %16 {offsets = [0, 22], sizes = [8, 1], strides = [1, 1]} : vector<8x128xi32> to vector<8x1xi32>
      %241 = vector.broadcast %240 : vector<8x1xi32> to vector<8x1024xi32>
      %242 = vector.broadcast %15 : vector<1x1024xi32> to vector<8x1024xi32>
      %243 = arith.cmpi eq, %241, %242 : vector<8x1024xi32>
      %244 = vector.extract_strided_slice %17 {offsets = [0, 22], sizes = [8, 1], strides = [1, 1]} : vector<8x128xf32> to vector<8x1xf32>
      %cst_30 = arith.constant 0.000000e+00 : f32
      %245 = vector.shape_cast %244 : vector<8x1xf32> to vector<8x1xf32>
      %246 = vector.broadcast %245 : vector<8x1xf32> to vector<8x1024xf32>
      %247 = vector.broadcast %cst_30 : f32 to vector<8x1024xf32>
      %248 = arith.select %243, %246, %247 : vector<8x1024xi1>, vector<8x1024xf32>
      %249 = arith.addf %229, %248 : vector<8x1024xf32>
      %250 = vector.extract_strided_slice %16 {offsets = [0, 23], sizes = [8, 1], strides = [1, 1]} : vector<8x128xi32> to vector<8x1xi32>
      %251 = vector.broadcast %250 : vector<8x1xi32> to vector<8x1024xi32>
      %252 = vector.broadcast %15 : vector<1x1024xi32> to vector<8x1024xi32>
      %253 = arith.cmpi eq, %251, %252 : vector<8x1024xi32>
      %254 = vector.extract_strided_slice %17 {offsets = [0, 23], sizes = [8, 1], strides = [1, 1]} : vector<8x128xf32> to vector<8x1xf32>
      %cst_31 = arith.constant 0.000000e+00 : f32
      %255 = vector.shape_cast %254 : vector<8x1xf32> to vector<8x1xf32>
      %256 = vector.broadcast %255 : vector<8x1xf32> to vector<8x1024xf32>
      %257 = vector.broadcast %cst_31 : f32 to vector<8x1024xf32>
      %258 = arith.select %253, %256, %257 : vector<8x1024xi1>, vector<8x1024xf32>
      %259 = arith.addf %239, %258 : vector<8x1024xf32>
      %260 = vector.extract_strided_slice %16 {offsets = [0, 24], sizes = [8, 1], strides = [1, 1]} : vector<8x128xi32> to vector<8x1xi32>
      %261 = vector.broadcast %260 : vector<8x1xi32> to vector<8x1024xi32>
      %262 = vector.broadcast %15 : vector<1x1024xi32> to vector<8x1024xi32>
      %263 = arith.cmpi eq, %261, %262 : vector<8x1024xi32>
      %264 = vector.extract_strided_slice %17 {offsets = [0, 24], sizes = [8, 1], strides = [1, 1]} : vector<8x128xf32> to vector<8x1xf32>
      %cst_32 = arith.constant 0.000000e+00 : f32
      %265 = vector.shape_cast %264 : vector<8x1xf32> to vector<8x1xf32>
      %266 = vector.broadcast %265 : vector<8x1xf32> to vector<8x1024xf32>
      %267 = vector.broadcast %cst_32 : f32 to vector<8x1024xf32>
      %268 = arith.select %263, %266, %267 : vector<8x1024xi1>, vector<8x1024xf32>
      %269 = arith.addf %249, %268 : vector<8x1024xf32>
      %270 = vector.extract_strided_slice %16 {offsets = [0, 25], sizes = [8, 1], strides = [1, 1]} : vector<8x128xi32> to vector<8x1xi32>
      %271 = vector.broadcast %270 : vector<8x1xi32> to vector<8x1024xi32>
      %272 = vector.broadcast %15 : vector<1x1024xi32> to vector<8x1024xi32>
      %273 = arith.cmpi eq, %271, %272 : vector<8x1024xi32>
      %274 = vector.extract_strided_slice %17 {offsets = [0, 25], sizes = [8, 1], strides = [1, 1]} : vector<8x128xf32> to vector<8x1xf32>
      %cst_33 = arith.constant 0.000000e+00 : f32
      %275 = vector.shape_cast %274 : vector<8x1xf32> to vector<8x1xf32>
      %276 = vector.broadcast %275 : vector<8x1xf32> to vector<8x1024xf32>
      %277 = vector.broadcast %cst_33 : f32 to vector<8x1024xf32>
      %278 = arith.select %273, %276, %277 : vector<8x1024xi1>, vector<8x1024xf32>
      %279 = arith.addf %259, %278 : vector<8x1024xf32>
      %280 = vector.extract_strided_slice %16 {offsets = [0, 26], sizes = [8, 1], strides = [1, 1]} : vector<8x128xi32> to vector<8x1xi32>
      %281 = vector.broadcast %280 : vector<8x1xi32> to vector<8x1024xi32>
      %282 = vector.broadcast %15 : vector<1x1024xi32> to vector<8x1024xi32>
      %283 = arith.cmpi eq, %281, %282 : vector<8x1024xi32>
      %284 = vector.extract_strided_slice %17 {offsets = [0, 26], sizes = [8, 1], strides = [1, 1]} : vector<8x128xf32> to vector<8x1xf32>
      %cst_34 = arith.constant 0.000000e+00 : f32
      %285 = vector.shape_cast %284 : vector<8x1xf32> to vector<8x1xf32>
      %286 = vector.broadcast %285 : vector<8x1xf32> to vector<8x1024xf32>
      %287 = vector.broadcast %cst_34 : f32 to vector<8x1024xf32>
      %288 = arith.select %283, %286, %287 : vector<8x1024xi1>, vector<8x1024xf32>
      %289 = arith.addf %269, %288 : vector<8x1024xf32>
      %290 = vector.extract_strided_slice %16 {offsets = [0, 27], sizes = [8, 1], strides = [1, 1]} : vector<8x128xi32> to vector<8x1xi32>
      %291 = vector.broadcast %290 : vector<8x1xi32> to vector<8x1024xi32>
      %292 = vector.broadcast %15 : vector<1x1024xi32> to vector<8x1024xi32>
      %293 = arith.cmpi eq, %291, %292 : vector<8x1024xi32>
      %294 = vector.extract_strided_slice %17 {offsets = [0, 27], sizes = [8, 1], strides = [1, 1]} : vector<8x128xf32> to vector<8x1xf32>
      %cst_35 = arith.constant 0.000000e+00 : f32
      %295 = vector.shape_cast %294 : vector<8x1xf32> to vector<8x1xf32>
      %296 = vector.broadcast %295 : vector<8x1xf32> to vector<8x1024xf32>
      %297 = vector.broadcast %cst_35 : f32 to vector<8x1024xf32>
      %298 = arith.select %293, %296, %297 : vector<8x1024xi1>, vector<8x1024xf32>
      %299 = arith.addf %279, %298 : vector<8x1024xf32>
      %300 = vector.extract_strided_slice %16 {offsets = [0, 28], sizes = [8, 1], strides = [1, 1]} : vector<8x128xi32> to vector<8x1xi32>
      %301 = vector.broadcast %300 : vector<8x1xi32> to vector<8x1024xi32>
      %302 = vector.broadcast %15 : vector<1x1024xi32> to vector<8x1024xi32>
      %303 = arith.cmpi eq, %301, %302 : vector<8x1024xi32>
      %304 = vector.extract_strided_slice %17 {offsets = [0, 28], sizes = [8, 1], strides = [1, 1]} : vector<8x128xf32> to vector<8x1xf32>
      %cst_36 = arith.constant 0.000000e+00 : f32
      %305 = vector.shape_cast %304 : vector<8x1xf32> to vector<8x1xf32>
      %306 = vector.broadcast %305 : vector<8x1xf32> to vector<8x1024xf32>
      %307 = vector.broadcast %cst_36 : f32 to vector<8x1024xf32>
      %308 = arith.select %303, %306, %307 : vector<8x1024xi1>, vector<8x1024xf32>
      %309 = arith.addf %289, %308 : vector<8x1024xf32>
      %310 = vector.extract_strided_slice %16 {offsets = [0, 29], sizes = [8, 1], strides = [1, 1]} : vector<8x128xi32> to vector<8x1xi32>
      %311 = vector.broadcast %310 : vector<8x1xi32> to vector<8x1024xi32>
      %312 = vector.broadcast %15 : vector<1x1024xi32> to vector<8x1024xi32>
      %313 = arith.cmpi eq, %311, %312 : vector<8x1024xi32>
      %314 = vector.extract_strided_slice %17 {offsets = [0, 29], sizes = [8, 1], strides = [1, 1]} : vector<8x128xf32> to vector<8x1xf32>
      %cst_37 = arith.constant 0.000000e+00 : f32
      %315 = vector.shape_cast %314 : vector<8x1xf32> to vector<8x1xf32>
      %316 = vector.broadcast %315 : vector<8x1xf32> to vector<8x1024xf32>
      %317 = vector.broadcast %cst_37 : f32 to vector<8x1024xf32>
      %318 = arith.select %313, %316, %317 : vector<8x1024xi1>, vector<8x1024xf32>
      %319 = arith.addf %299, %318 : vector<8x1024xf32>
      %320 = vector.extract_strided_slice %16 {offsets = [0, 30], sizes = [8, 1], strides = [1, 1]} : vector<8x128xi32> to vector<8x1xi32>
      %321 = vector.broadcast %320 : vector<8x1xi32> to vector<8x1024xi32>
      %322 = vector.broadcast %15 : vector<1x1024xi32> to vector<8x1024xi32>
      %323 = arith.cmpi eq, %321, %322 : vector<8x1024xi32>
      %324 = vector.extract_strided_slice %17 {offsets = [0, 30], sizes = [8, 1], strides = [1, 1]} : vector<8x128xf32> to vector<8x1xf32>
      %cst_38 = arith.constant 0.000000e+00 : f32
      %325 = vector.shape_cast %324 : vector<8x1xf32> to vector<8x1xf32>
      %326 = vector.broadcast %325 : vector<8x1xf32> to vector<8x1024xf32>
      %327 = vector.broadcast %cst_38 : f32 to vector<8x1024xf32>
      %328 = arith.select %323, %326, %327 : vector<8x1024xi1>, vector<8x1024xf32>
      %329 = arith.addf %309, %328 : vector<8x1024xf32>
      %330 = vector.extract_strided_slice %16 {offsets = [0, 31], sizes = [8, 1], strides = [1, 1]} : vector<8x128xi32> to vector<8x1xi32>
      %331 = vector.broadcast %330 : vector<8x1xi32> to vector<8x1024xi32>
      %332 = vector.broadcast %15 : vector<1x1024xi32> to vector<8x1024xi32>
      %333 = arith.cmpi eq, %331, %332 : vector<8x1024xi32>
      %334 = vector.extract_strided_slice %17 {offsets = [0, 31], sizes = [8, 1], strides = [1, 1]} : vector<8x128xf32> to vector<8x1xf32>
      %cst_39 = arith.constant 0.000000e+00 : f32
      %335 = vector.shape_cast %334 : vector<8x1xf32> to vector<8x1xf32>
      %336 = vector.broadcast %335 : vector<8x1xf32> to vector<8x1024xf32>
      %337 = vector.broadcast %cst_39 : f32 to vector<8x1024xf32>
      %338 = arith.select %333, %336, %337 : vector<8x1024xi1>, vector<8x1024xf32>
      %339 = arith.addf %319, %338 : vector<8x1024xf32>
      %340 = vector.extract_strided_slice %16 {offsets = [0, 32], sizes = [8, 1], strides = [1, 1]} : vector<8x128xi32> to vector<8x1xi32>
      %341 = vector.broadcast %340 : vector<8x1xi32> to vector<8x1024xi32>
      %342 = vector.broadcast %15 : vector<1x1024xi32> to vector<8x1024xi32>
      %343 = arith.cmpi eq, %341, %342 : vector<8x1024xi32>
      %344 = vector.extract_strided_slice %17 {offsets = [0, 32], sizes = [8, 1], strides = [1, 1]} : vector<8x128xf32> to vector<8x1xf32>
      %cst_40 = arith.constant 0.000000e+00 : f32
      %345 = vector.shape_cast %344 : vector<8x1xf32> to vector<8x1xf32>
      %346 = vector.broadcast %345 : vector<8x1xf32> to vector<8x1024xf32>
      %347 = vector.broadcast %cst_40 : f32 to vector<8x1024xf32>
      %348 = arith.select %343, %346, %347 : vector<8x1024xi1>, vector<8x1024xf32>
      %349 = arith.addf %329, %348 : vector<8x1024xf32>
      %350 = vector.extract_strided_slice %16 {offsets = [0, 33], sizes = [8, 1], strides = [1, 1]} : vector<8x128xi32> to vector<8x1xi32>
      %351 = vector.broadcast %350 : vector<8x1xi32> to vector<8x1024xi32>
      %352 = vector.broadcast %15 : vector<1x1024xi32> to vector<8x1024xi32>
      %353 = arith.cmpi eq, %351, %352 : vector<8x1024xi32>
      %354 = vector.extract_strided_slice %17 {offsets = [0, 33], sizes = [8, 1], strides = [1, 1]} : vector<8x128xf32> to vector<8x1xf32>
      %cst_41 = arith.constant 0.000000e+00 : f32
      %355 = vector.shape_cast %354 : vector<8x1xf32> to vector<8x1xf32>
      %356 = vector.broadcast %355 : vector<8x1xf32> to vector<8x1024xf32>
      %357 = vector.broadcast %cst_41 : f32 to vector<8x1024xf32>
      %358 = arith.select %353, %356, %357 : vector<8x1024xi1>, vector<8x1024xf32>
      %359 = arith.addf %339, %358 : vector<8x1024xf32>
      %360 = vector.extract_strided_slice %16 {offsets = [0, 34], sizes = [8, 1], strides = [1, 1]} : vector<8x128xi32> to vector<8x1xi32>
      %361 = vector.broadcast %360 : vector<8x1xi32> to vector<8x1024xi32>
      %362 = vector.broadcast %15 : vector<1x1024xi32> to vector<8x1024xi32>
      %363 = arith.cmpi eq, %361, %362 : vector<8x1024xi32>
      %364 = vector.extract_strided_slice %17 {offsets = [0, 34], sizes = [8, 1], strides = [1, 1]} : vector<8x128xf32> to vector<8x1xf32>
      %cst_42 = arith.constant 0.000000e+00 : f32
      %365 = vector.shape_cast %364 : vector<8x1xf32> to vector<8x1xf32>
      %366 = vector.broadcast %365 : vector<8x1xf32> to vector<8x1024xf32>
      %367 = vector.broadcast %cst_42 : f32 to vector<8x1024xf32>
      %368 = arith.select %363, %366, %367 : vector<8x1024xi1>, vector<8x1024xf32>
      %369 = arith.addf %349, %368 : vector<8x1024xf32>
      %370 = vector.extract_strided_slice %16 {offsets = [0, 35], sizes = [8, 1], strides = [1, 1]} : vector<8x128xi32> to vector<8x1xi32>
      %371 = vector.broadcast %370 : vector<8x1xi32> to vector<8x1024xi32>
      %372 = vector.broadcast %15 : vector<1x1024xi32> to vector<8x1024xi32>
      %373 = arith.cmpi eq, %371, %372 : vector<8x1024xi32>
      %374 = vector.extract_strided_slice %17 {offsets = [0, 35], sizes = [8, 1], strides = [1, 1]} : vector<8x128xf32> to vector<8x1xf32>
      %cst_43 = arith.constant 0.000000e+00 : f32
      %375 = vector.shape_cast %374 : vector<8x1xf32> to vector<8x1xf32>
      %376 = vector.broadcast %375 : vector<8x1xf32> to vector<8x1024xf32>
      %377 = vector.broadcast %cst_43 : f32 to vector<8x1024xf32>
      %378 = arith.select %373, %376, %377 : vector<8x1024xi1>, vector<8x1024xf32>
      %379 = arith.addf %359, %378 : vector<8x1024xf32>
      %380 = vector.extract_strided_slice %16 {offsets = [0, 36], sizes = [8, 1], strides = [1, 1]} : vector<8x128xi32> to vector<8x1xi32>
      %381 = vector.broadcast %380 : vector<8x1xi32> to vector<8x1024xi32>
      %382 = vector.broadcast %15 : vector<1x1024xi32> to vector<8x1024xi32>
      %383 = arith.cmpi eq, %381, %382 : vector<8x1024xi32>
      %384 = vector.extract_strided_slice %17 {offsets = [0, 36], sizes = [8, 1], strides = [1, 1]} : vector<8x128xf32> to vector<8x1xf32>
      %cst_44 = arith.constant 0.000000e+00 : f32
      %385 = vector.shape_cast %384 : vector<8x1xf32> to vector<8x1xf32>
      %386 = vector.broadcast %385 : vector<8x1xf32> to vector<8x1024xf32>
      %387 = vector.broadcast %cst_44 : f32 to vector<8x1024xf32>
      %388 = arith.select %383, %386, %387 : vector<8x1024xi1>, vector<8x1024xf32>
      %389 = arith.addf %369, %388 : vector<8x1024xf32>
      %390 = vector.extract_strided_slice %16 {offsets = [0, 37], sizes = [8, 1], strides = [1, 1]} : vector<8x128xi32> to vector<8x1xi32>
      %391 = vector.broadcast %390 : vector<8x1xi32> to vector<8x1024xi32>
      %392 = vector.broadcast %15 : vector<1x1024xi32> to vector<8x1024xi32>
      %393 = arith.cmpi eq, %391, %392 : vector<8x1024xi32>
      %394 = vector.extract_strided_slice %17 {offsets = [0, 37], sizes = [8, 1], strides = [1, 1]} : vector<8x128xf32> to vector<8x1xf32>
      %cst_45 = arith.constant 0.000000e+00 : f32
      %395 = vector.shape_cast %394 : vector<8x1xf32> to vector<8x1xf32>
      %396 = vector.broadcast %395 : vector<8x1xf32> to vector<8x1024xf32>
      %397 = vector.broadcast %cst_45 : f32 to vector<8x1024xf32>
      %398 = arith.select %393, %396, %397 : vector<8x1024xi1>, vector<8x1024xf32>
      %399 = arith.addf %379, %398 : vector<8x1024xf32>
      %400 = vector.extract_strided_slice %16 {offsets = [0, 38], sizes = [8, 1], strides = [1, 1]} : vector<8x128xi32> to vector<8x1xi32>
      %401 = vector.broadcast %400 : vector<8x1xi32> to vector<8x1024xi32>
      %402 = vector.broadcast %15 : vector<1x1024xi32> to vector<8x1024xi32>
      %403 = arith.cmpi eq, %401, %402 : vector<8x1024xi32>
      %404 = vector.extract_strided_slice %17 {offsets = [0, 38], sizes = [8, 1], strides = [1, 1]} : vector<8x128xf32> to vector<8x1xf32>
      %cst_46 = arith.constant 0.000000e+00 : f32
      %405 = vector.shape_cast %404 : vector<8x1xf32> to vector<8x1xf32>
      %406 = vector.broadcast %405 : vector<8x1xf32> to vector<8x1024xf32>
      %407 = vector.broadcast %cst_46 : f32 to vector<8x1024xf32>
      %408 = arith.select %403, %406, %407 : vector<8x1024xi1>, vector<8x1024xf32>
      %409 = arith.addf %389, %408 : vector<8x1024xf32>
      %410 = vector.extract_strided_slice %16 {offsets = [0, 39], sizes = [8, 1], strides = [1, 1]} : vector<8x128xi32> to vector<8x1xi32>
      %411 = vector.broadcast %410 : vector<8x1xi32> to vector<8x1024xi32>
      %412 = vector.broadcast %15 : vector<1x1024xi32> to vector<8x1024xi32>
      %413 = arith.cmpi eq, %411, %412 : vector<8x1024xi32>
      %414 = vector.extract_strided_slice %17 {offsets = [0, 39], sizes = [8, 1], strides = [1, 1]} : vector<8x128xf32> to vector<8x1xf32>
      %cst_47 = arith.constant 0.000000e+00 : f32
      %415 = vector.shape_cast %414 : vector<8x1xf32> to vector<8x1xf32>
      %416 = vector.broadcast %415 : vector<8x1xf32> to vector<8x1024xf32>
      %417 = vector.broadcast %cst_47 : f32 to vector<8x1024xf32>
      %418 = arith.select %413, %416, %417 : vector<8x1024xi1>, vector<8x1024xf32>
      %419 = arith.addf %399, %418 : vector<8x1024xf32>
      %420 = vector.extract_strided_slice %16 {offsets = [0, 40], sizes = [8, 1], strides = [1, 1]} : vector<8x128xi32> to vector<8x1xi32>
      %421 = vector.broadcast %420 : vector<8x1xi32> to vector<8x1024xi32>
      %422 = vector.broadcast %15 : vector<1x1024xi32> to vector<8x1024xi32>
      %423 = arith.cmpi eq, %421, %422 : vector<8x1024xi32>
      %424 = vector.extract_strided_slice %17 {offsets = [0, 40], sizes = [8, 1], strides = [1, 1]} : vector<8x128xf32> to vector<8x1xf32>
      %cst_48 = arith.constant 0.000000e+00 : f32
      %425 = vector.shape_cast %424 : vector<8x1xf32> to vector<8x1xf32>
      %426 = vector.broadcast %425 : vector<8x1xf32> to vector<8x1024xf32>
      %427 = vector.broadcast %cst_48 : f32 to vector<8x1024xf32>
      %428 = arith.select %423, %426, %427 : vector<8x1024xi1>, vector<8x1024xf32>
      %429 = arith.addf %409, %428 : vector<8x1024xf32>
      %430 = vector.extract_strided_slice %16 {offsets = [0, 41], sizes = [8, 1], strides = [1, 1]} : vector<8x128xi32> to vector<8x1xi32>
      %431 = vector.broadcast %430 : vector<8x1xi32> to vector<8x1024xi32>
      %432 = vector.broadcast %15 : vector<1x1024xi32> to vector<8x1024xi32>
      %433 = arith.cmpi eq, %431, %432 : vector<8x1024xi32>
      %434 = vector.extract_strided_slice %17 {offsets = [0, 41], sizes = [8, 1], strides = [1, 1]} : vector<8x128xf32> to vector<8x1xf32>
      %cst_49 = arith.constant 0.000000e+00 : f32
      %435 = vector.shape_cast %434 : vector<8x1xf32> to vector<8x1xf32>
      %436 = vector.broadcast %435 : vector<8x1xf32> to vector<8x1024xf32>
      %437 = vector.broadcast %cst_49 : f32 to vector<8x1024xf32>
      %438 = arith.select %433, %436, %437 : vector<8x1024xi1>, vector<8x1024xf32>
      %439 = arith.addf %419, %438 : vector<8x1024xf32>
      %440 = vector.extract_strided_slice %16 {offsets = [0, 42], sizes = [8, 1], strides = [1, 1]} : vector<8x128xi32> to vector<8x1xi32>
      %441 = vector.broadcast %440 : vector<8x1xi32> to vector<8x1024xi32>
      %442 = vector.broadcast %15 : vector<1x1024xi32> to vector<8x1024xi32>
      %443 = arith.cmpi eq, %441, %442 : vector<8x1024xi32>
      %444 = vector.extract_strided_slice %17 {offsets = [0, 42], sizes = [8, 1], strides = [1, 1]} : vector<8x128xf32> to vector<8x1xf32>
      %cst_50 = arith.constant 0.000000e+00 : f32
      %445 = vector.shape_cast %444 : vector<8x1xf32> to vector<8x1xf32>
      %446 = vector.broadcast %445 : vector<8x1xf32> to vector<8x1024xf32>
      %447 = vector.broadcast %cst_50 : f32 to vector<8x1024xf32>
      %448 = arith.select %443, %446, %447 : vector<8x1024xi1>, vector<8x1024xf32>
      %449 = arith.addf %429, %448 : vector<8x1024xf32>
      %450 = vector.extract_strided_slice %16 {offsets = [0, 43], sizes = [8, 1], strides = [1, 1]} : vector<8x128xi32> to vector<8x1xi32>
      %451 = vector.broadcast %450 : vector<8x1xi32> to vector<8x1024xi32>
      %452 = vector.broadcast %15 : vector<1x1024xi32> to vector<8x1024xi32>
      %453 = arith.cmpi eq, %451, %452 : vector<8x1024xi32>
      %454 = vector.extract_strided_slice %17 {offsets = [0, 43], sizes = [8, 1], strides = [1, 1]} : vector<8x128xf32> to vector<8x1xf32>
      %cst_51 = arith.constant 0.000000e+00 : f32
      %455 = vector.shape_cast %454 : vector<8x1xf32> to vector<8x1xf32>
      %456 = vector.broadcast %455 : vector<8x1xf32> to vector<8x1024xf32>
      %457 = vector.broadcast %cst_51 : f32 to vector<8x1024xf32>
      %458 = arith.select %453, %456, %457 : vector<8x1024xi1>, vector<8x1024xf32>
      %459 = arith.addf %439, %458 : vector<8x1024xf32>
      %460 = vector.extract_strided_slice %16 {offsets = [0, 44], sizes = [8, 1], strides = [1, 1]} : vector<8x128xi32> to vector<8x1xi32>
      %461 = vector.broadcast %460 : vector<8x1xi32> to vector<8x1024xi32>
      %462 = vector.broadcast %15 : vector<1x1024xi32> to vector<8x1024xi32>
      %463 = arith.cmpi eq, %461, %462 : vector<8x1024xi32>
      %464 = vector.extract_strided_slice %17 {offsets = [0, 44], sizes = [8, 1], strides = [1, 1]} : vector<8x128xf32> to vector<8x1xf32>
      %cst_52 = arith.constant 0.000000e+00 : f32
      %465 = vector.shape_cast %464 : vector<8x1xf32> to vector<8x1xf32>
      %466 = vector.broadcast %465 : vector<8x1xf32> to vector<8x1024xf32>
      %467 = vector.broadcast %cst_52 : f32 to vector<8x1024xf32>
      %468 = arith.select %463, %466, %467 : vector<8x1024xi1>, vector<8x1024xf32>
      %469 = arith.addf %449, %468 : vector<8x1024xf32>
      %470 = vector.extract_strided_slice %16 {offsets = [0, 45], sizes = [8, 1], strides = [1, 1]} : vector<8x128xi32> to vector<8x1xi32>
      %471 = vector.broadcast %470 : vector<8x1xi32> to vector<8x1024xi32>
      %472 = vector.broadcast %15 : vector<1x1024xi32> to vector<8x1024xi32>
      %473 = arith.cmpi eq, %471, %472 : vector<8x1024xi32>
      %474 = vector.extract_strided_slice %17 {offsets = [0, 45], sizes = [8, 1], strides = [1, 1]} : vector<8x128xf32> to vector<8x1xf32>
      %cst_53 = arith.constant 0.000000e+00 : f32
      %475 = vector.shape_cast %474 : vector<8x1xf32> to vector<8x1xf32>
      %476 = vector.broadcast %475 : vector<8x1xf32> to vector<8x1024xf32>
      %477 = vector.broadcast %cst_53 : f32 to vector<8x1024xf32>
      %478 = arith.select %473, %476, %477 : vector<8x1024xi1>, vector<8x1024xf32>
      %479 = arith.addf %459, %478 : vector<8x1024xf32>
      %480 = vector.extract_strided_slice %16 {offsets = [0, 46], sizes = [8, 1], strides = [1, 1]} : vector<8x128xi32> to vector<8x1xi32>
      %481 = vector.broadcast %480 : vector<8x1xi32> to vector<8x1024xi32>
      %482 = vector.broadcast %15 : vector<1x1024xi32> to vector<8x1024xi32>
      %483 = arith.cmpi eq, %481, %482 : vector<8x1024xi32>
      %484 = vector.extract_strided_slice %17 {offsets = [0, 46], sizes = [8, 1], strides = [1, 1]} : vector<8x128xf32> to vector<8x1xf32>
      %cst_54 = arith.constant 0.000000e+00 : f32
      %485 = vector.shape_cast %484 : vector<8x1xf32> to vector<8x1xf32>
      %486 = vector.broadcast %485 : vector<8x1xf32> to vector<8x1024xf32>
      %487 = vector.broadcast %cst_54 : f32 to vector<8x1024xf32>
      %488 = arith.select %483, %486, %487 : vector<8x1024xi1>, vector<8x1024xf32>
      %489 = arith.addf %469, %488 : vector<8x1024xf32>
      %490 = vector.extract_strided_slice %16 {offsets = [0, 47], sizes = [8, 1], strides = [1, 1]} : vector<8x128xi32> to vector<8x1xi32>
      %491 = vector.broadcast %490 : vector<8x1xi32> to vector<8x1024xi32>
      %492 = vector.broadcast %15 : vector<1x1024xi32> to vector<8x1024xi32>
      %493 = arith.cmpi eq, %491, %492 : vector<8x1024xi32>
      %494 = vector.extract_strided_slice %17 {offsets = [0, 47], sizes = [8, 1], strides = [1, 1]} : vector<8x128xf32> to vector<8x1xf32>
      %cst_55 = arith.constant 0.000000e+00 : f32
      %495 = vector.shape_cast %494 : vector<8x1xf32> to vector<8x1xf32>
      %496 = vector.broadcast %495 : vector<8x1xf32> to vector<8x1024xf32>
      %497 = vector.broadcast %cst_55 : f32 to vector<8x1024xf32>
      %498 = arith.select %493, %496, %497 : vector<8x1024xi1>, vector<8x1024xf32>
      %499 = arith.addf %479, %498 : vector<8x1024xf32>
      %500 = vector.extract_strided_slice %16 {offsets = [0, 48], sizes = [8, 1], strides = [1, 1]} : vector<8x128xi32> to vector<8x1xi32>
      %501 = vector.broadcast %500 : vector<8x1xi32> to vector<8x1024xi32>
      %502 = vector.broadcast %15 : vector<1x1024xi32> to vector<8x1024xi32>
      %503 = arith.cmpi eq, %501, %502 : vector<8x1024xi32>
      %504 = vector.extract_strided_slice %17 {offsets = [0, 48], sizes = [8, 1], strides = [1, 1]} : vector<8x128xf32> to vector<8x1xf32>
      %cst_56 = arith.constant 0.000000e+00 : f32
      %505 = vector.shape_cast %504 : vector<8x1xf32> to vector<8x1xf32>
      %506 = vector.broadcast %505 : vector<8x1xf32> to vector<8x1024xf32>
      %507 = vector.broadcast %cst_56 : f32 to vector<8x1024xf32>
      %508 = arith.select %503, %506, %507 : vector<8x1024xi1>, vector<8x1024xf32>
      %509 = arith.addf %489, %508 : vector<8x1024xf32>
      %510 = vector.extract_strided_slice %16 {offsets = [0, 49], sizes = [8, 1], strides = [1, 1]} : vector<8x128xi32> to vector<8x1xi32>
      %511 = vector.broadcast %510 : vector<8x1xi32> to vector<8x1024xi32>
      %512 = vector.broadcast %15 : vector<1x1024xi32> to vector<8x1024xi32>
      %513 = arith.cmpi eq, %511, %512 : vector<8x1024xi32>
      %514 = vector.extract_strided_slice %17 {offsets = [0, 49], sizes = [8, 1], strides = [1, 1]} : vector<8x128xf32> to vector<8x1xf32>
      %cst_57 = arith.constant 0.000000e+00 : f32
      %515 = vector.shape_cast %514 : vector<8x1xf32> to vector<8x1xf32>
      %516 = vector.broadcast %515 : vector<8x1xf32> to vector<8x1024xf32>
      %517 = vector.broadcast %cst_57 : f32 to vector<8x1024xf32>
      %518 = arith.select %513, %516, %517 : vector<8x1024xi1>, vector<8x1024xf32>
      %519 = arith.addf %499, %518 : vector<8x1024xf32>
      %520 = vector.extract_strided_slice %16 {offsets = [0, 50], sizes = [8, 1], strides = [1, 1]} : vector<8x128xi32> to vector<8x1xi32>
      %521 = vector.broadcast %520 : vector<8x1xi32> to vector<8x1024xi32>
      %522 = vector.broadcast %15 : vector<1x1024xi32> to vector<8x1024xi32>
      %523 = arith.cmpi eq, %521, %522 : vector<8x1024xi32>
      %524 = vector.extract_strided_slice %17 {offsets = [0, 50], sizes = [8, 1], strides = [1, 1]} : vector<8x128xf32> to vector<8x1xf32>
      %cst_58 = arith.constant 0.000000e+00 : f32
      %525 = vector.shape_cast %524 : vector<8x1xf32> to vector<8x1xf32>
      %526 = vector.broadcast %525 : vector<8x1xf32> to vector<8x1024xf32>
      %527 = vector.broadcast %cst_58 : f32 to vector<8x1024xf32>
      %528 = arith.select %523, %526, %527 : vector<8x1024xi1>, vector<8x1024xf32>
      %529 = arith.addf %509, %528 : vector<8x1024xf32>
      %530 = vector.extract_strided_slice %16 {offsets = [0, 51], sizes = [8, 1], strides = [1, 1]} : vector<8x128xi32> to vector<8x1xi32>
      %531 = vector.broadcast %530 : vector<8x1xi32> to vector<8x1024xi32>
      %532 = vector.broadcast %15 : vector<1x1024xi32> to vector<8x1024xi32>
      %533 = arith.cmpi eq, %531, %532 : vector<8x1024xi32>
      %534 = vector.extract_strided_slice %17 {offsets = [0, 51], sizes = [8, 1], strides = [1, 1]} : vector<8x128xf32> to vector<8x1xf32>
      %cst_59 = arith.constant 0.000000e+00 : f32
      %535 = vector.shape_cast %534 : vector<8x1xf32> to vector<8x1xf32>
      %536 = vector.broadcast %535 : vector<8x1xf32> to vector<8x1024xf32>
      %537 = vector.broadcast %cst_59 : f32 to vector<8x1024xf32>
      %538 = arith.select %533, %536, %537 : vector<8x1024xi1>, vector<8x1024xf32>
      %539 = arith.addf %519, %538 : vector<8x1024xf32>
      %540 = vector.extract_strided_slice %16 {offsets = [0, 52], sizes = [8, 1], strides = [1, 1]} : vector<8x128xi32> to vector<8x1xi32>
      %541 = vector.broadcast %540 : vector<8x1xi32> to vector<8x1024xi32>
      %542 = vector.broadcast %15 : vector<1x1024xi32> to vector<8x1024xi32>
      %543 = arith.cmpi eq, %541, %542 : vector<8x1024xi32>
      %544 = vector.extract_strided_slice %17 {offsets = [0, 52], sizes = [8, 1], strides = [1, 1]} : vector<8x128xf32> to vector<8x1xf32>
      %cst_60 = arith.constant 0.000000e+00 : f32
      %545 = vector.shape_cast %544 : vector<8x1xf32> to vector<8x1xf32>
      %546 = vector.broadcast %545 : vector<8x1xf32> to vector<8x1024xf32>
      %547 = vector.broadcast %cst_60 : f32 to vector<8x1024xf32>
      %548 = arith.select %543, %546, %547 : vector<8x1024xi1>, vector<8x1024xf32>
      %549 = arith.addf %529, %548 : vector<8x1024xf32>
      %550 = vector.extract_strided_slice %16 {offsets = [0, 53], sizes = [8, 1], strides = [1, 1]} : vector<8x128xi32> to vector<8x1xi32>
      %551 = vector.broadcast %550 : vector<8x1xi32> to vector<8x1024xi32>
      %552 = vector.broadcast %15 : vector<1x1024xi32> to vector<8x1024xi32>
      %553 = arith.cmpi eq, %551, %552 : vector<8x1024xi32>
      %554 = vector.extract_strided_slice %17 {offsets = [0, 53], sizes = [8, 1], strides = [1, 1]} : vector<8x128xf32> to vector<8x1xf32>
      %cst_61 = arith.constant 0.000000e+00 : f32
      %555 = vector.shape_cast %554 : vector<8x1xf32> to vector<8x1xf32>
      %556 = vector.broadcast %555 : vector<8x1xf32> to vector<8x1024xf32>
      %557 = vector.broadcast %cst_61 : f32 to vector<8x1024xf32>
      %558 = arith.select %553, %556, %557 : vector<8x1024xi1>, vector<8x1024xf32>
      %559 = arith.addf %539, %558 : vector<8x1024xf32>
      %560 = vector.extract_strided_slice %16 {offsets = [0, 54], sizes = [8, 1], strides = [1, 1]} : vector<8x128xi32> to vector<8x1xi32>
      %561 = vector.broadcast %560 : vector<8x1xi32> to vector<8x1024xi32>
      %562 = vector.broadcast %15 : vector<1x1024xi32> to vector<8x1024xi32>
      %563 = arith.cmpi eq, %561, %562 : vector<8x1024xi32>
      %564 = vector.extract_strided_slice %17 {offsets = [0, 54], sizes = [8, 1], strides = [1, 1]} : vector<8x128xf32> to vector<8x1xf32>
      %cst_62 = arith.constant 0.000000e+00 : f32
      %565 = vector.shape_cast %564 : vector<8x1xf32> to vector<8x1xf32>
      %566 = vector.broadcast %565 : vector<8x1xf32> to vector<8x1024xf32>
      %567 = vector.broadcast %cst_62 : f32 to vector<8x1024xf32>
      %568 = arith.select %563, %566, %567 : vector<8x1024xi1>, vector<8x1024xf32>
      %569 = arith.addf %549, %568 : vector<8x1024xf32>
      %570 = vector.extract_strided_slice %16 {offsets = [0, 55], sizes = [8, 1], strides = [1, 1]} : vector<8x128xi32> to vector<8x1xi32>
      %571 = vector.broadcast %570 : vector<8x1xi32> to vector<8x1024xi32>
      %572 = vector.broadcast %15 : vector<1x1024xi32> to vector<8x1024xi32>
      %573 = arith.cmpi eq, %571, %572 : vector<8x1024xi32>
      %574 = vector.extract_strided_slice %17 {offsets = [0, 55], sizes = [8, 1], strides = [1, 1]} : vector<8x128xf32> to vector<8x1xf32>
      %cst_63 = arith.constant 0.000000e+00 : f32
      %575 = vector.shape_cast %574 : vector<8x1xf32> to vector<8x1xf32>
      %576 = vector.broadcast %575 : vector<8x1xf32> to vector<8x1024xf32>
      %577 = vector.broadcast %cst_63 : f32 to vector<8x1024xf32>
      %578 = arith.select %573, %576, %577 : vector<8x1024xi1>, vector<8x1024xf32>
      %579 = arith.addf %559, %578 : vector<8x1024xf32>
      %580 = vector.extract_strided_slice %16 {offsets = [0, 56], sizes = [8, 1], strides = [1, 1]} : vector<8x128xi32> to vector<8x1xi32>
      %581 = vector.broadcast %580 : vector<8x1xi32> to vector<8x1024xi32>
      %582 = vector.broadcast %15 : vector<1x1024xi32> to vector<8x1024xi32>
      %583 = arith.cmpi eq, %581, %582 : vector<8x1024xi32>
      %584 = vector.extract_strided_slice %17 {offsets = [0, 56], sizes = [8, 1], strides = [1, 1]} : vector<8x128xf32> to vector<8x1xf32>
      %cst_64 = arith.constant 0.000000e+00 : f32
      %585 = vector.shape_cast %584 : vector<8x1xf32> to vector<8x1xf32>
      %586 = vector.broadcast %585 : vector<8x1xf32> to vector<8x1024xf32>
      %587 = vector.broadcast %cst_64 : f32 to vector<8x1024xf32>
      %588 = arith.select %583, %586, %587 : vector<8x1024xi1>, vector<8x1024xf32>
      %589 = arith.addf %569, %588 : vector<8x1024xf32>
      %590 = vector.extract_strided_slice %16 {offsets = [0, 57], sizes = [8, 1], strides = [1, 1]} : vector<8x128xi32> to vector<8x1xi32>
      %591 = vector.broadcast %590 : vector<8x1xi32> to vector<8x1024xi32>
      %592 = vector.broadcast %15 : vector<1x1024xi32> to vector<8x1024xi32>
      %593 = arith.cmpi eq, %591, %592 : vector<8x1024xi32>
      %594 = vector.extract_strided_slice %17 {offsets = [0, 57], sizes = [8, 1], strides = [1, 1]} : vector<8x128xf32> to vector<8x1xf32>
      %cst_65 = arith.constant 0.000000e+00 : f32
      %595 = vector.shape_cast %594 : vector<8x1xf32> to vector<8x1xf32>
      %596 = vector.broadcast %595 : vector<8x1xf32> to vector<8x1024xf32>
      %597 = vector.broadcast %cst_65 : f32 to vector<8x1024xf32>
      %598 = arith.select %593, %596, %597 : vector<8x1024xi1>, vector<8x1024xf32>
      %599 = arith.addf %579, %598 : vector<8x1024xf32>
      %600 = vector.extract_strided_slice %16 {offsets = [0, 58], sizes = [8, 1], strides = [1, 1]} : vector<8x128xi32> to vector<8x1xi32>
      %601 = vector.broadcast %600 : vector<8x1xi32> to vector<8x1024xi32>
      %602 = vector.broadcast %15 : vector<1x1024xi32> to vector<8x1024xi32>
      %603 = arith.cmpi eq, %601, %602 : vector<8x1024xi32>
      %604 = vector.extract_strided_slice %17 {offsets = [0, 58], sizes = [8, 1], strides = [1, 1]} : vector<8x128xf32> to vector<8x1xf32>
      %cst_66 = arith.constant 0.000000e+00 : f32
      %605 = vector.shape_cast %604 : vector<8x1xf32> to vector<8x1xf32>
      %606 = vector.broadcast %605 : vector<8x1xf32> to vector<8x1024xf32>
      %607 = vector.broadcast %cst_66 : f32 to vector<8x1024xf32>
      %608 = arith.select %603, %606, %607 : vector<8x1024xi1>, vector<8x1024xf32>
      %609 = arith.addf %589, %608 : vector<8x1024xf32>
      %610 = vector.extract_strided_slice %16 {offsets = [0, 59], sizes = [8, 1], strides = [1, 1]} : vector<8x128xi32> to vector<8x1xi32>
      %611 = vector.broadcast %610 : vector<8x1xi32> to vector<8x1024xi32>
      %612 = vector.broadcast %15 : vector<1x1024xi32> to vector<8x1024xi32>
      %613 = arith.cmpi eq, %611, %612 : vector<8x1024xi32>
      %614 = vector.extract_strided_slice %17 {offsets = [0, 59], sizes = [8, 1], strides = [1, 1]} : vector<8x128xf32> to vector<8x1xf32>
      %cst_67 = arith.constant 0.000000e+00 : f32
      %615 = vector.shape_cast %614 : vector<8x1xf32> to vector<8x1xf32>
      %616 = vector.broadcast %615 : vector<8x1xf32> to vector<8x1024xf32>
      %617 = vector.broadcast %cst_67 : f32 to vector<8x1024xf32>
      %618 = arith.select %613, %616, %617 : vector<8x1024xi1>, vector<8x1024xf32>
      %619 = arith.addf %599, %618 : vector<8x1024xf32>
      %620 = vector.extract_strided_slice %16 {offsets = [0, 60], sizes = [8, 1], strides = [1, 1]} : vector<8x128xi32> to vector<8x1xi32>
      %621 = vector.broadcast %620 : vector<8x1xi32> to vector<8x1024xi32>
      %622 = vector.broadcast %15 : vector<1x1024xi32> to vector<8x1024xi32>
      %623 = arith.cmpi eq, %621, %622 : vector<8x1024xi32>
      %624 = vector.extract_strided_slice %17 {offsets = [0, 60], sizes = [8, 1], strides = [1, 1]} : vector<8x128xf32> to vector<8x1xf32>
      %cst_68 = arith.constant 0.000000e+00 : f32
      %625 = vector.shape_cast %624 : vector<8x1xf32> to vector<8x1xf32>
      %626 = vector.broadcast %625 : vector<8x1xf32> to vector<8x1024xf32>
      %627 = vector.broadcast %cst_68 : f32 to vector<8x1024xf32>
      %628 = arith.select %623, %626, %627 : vector<8x1024xi1>, vector<8x1024xf32>
      %629 = arith.addf %609, %628 : vector<8x1024xf32>
      %630 = vector.extract_strided_slice %16 {offsets = [0, 61], sizes = [8, 1], strides = [1, 1]} : vector<8x128xi32> to vector<8x1xi32>
      %631 = vector.broadcast %630 : vector<8x1xi32> to vector<8x1024xi32>
      %632 = vector.broadcast %15 : vector<1x1024xi32> to vector<8x1024xi32>
      %633 = arith.cmpi eq, %631, %632 : vector<8x1024xi32>
      %634 = vector.extract_strided_slice %17 {offsets = [0, 61], sizes = [8, 1], strides = [1, 1]} : vector<8x128xf32> to vector<8x1xf32>
      %cst_69 = arith.constant 0.000000e+00 : f32
      %635 = vector.shape_cast %634 : vector<8x1xf32> to vector<8x1xf32>
      %636 = vector.broadcast %635 : vector<8x1xf32> to vector<8x1024xf32>
      %637 = vector.broadcast %cst_69 : f32 to vector<8x1024xf32>
      %638 = arith.select %633, %636, %637 : vector<8x1024xi1>, vector<8x1024xf32>
      %639 = arith.addf %619, %638 : vector<8x1024xf32>
      %640 = vector.extract_strided_slice %16 {offsets = [0, 62], sizes = [8, 1], strides = [1, 1]} : vector<8x128xi32> to vector<8x1xi32>
      %641 = vector.broadcast %640 : vector<8x1xi32> to vector<8x1024xi32>
      %642 = vector.broadcast %15 : vector<1x1024xi32> to vector<8x1024xi32>
      %643 = arith.cmpi eq, %641, %642 : vector<8x1024xi32>
      %644 = vector.extract_strided_slice %17 {offsets = [0, 62], sizes = [8, 1], strides = [1, 1]} : vector<8x128xf32> to vector<8x1xf32>
      %cst_70 = arith.constant 0.000000e+00 : f32
      %645 = vector.shape_cast %644 : vector<8x1xf32> to vector<8x1xf32>
      %646 = vector.broadcast %645 : vector<8x1xf32> to vector<8x1024xf32>
      %647 = vector.broadcast %cst_70 : f32 to vector<8x1024xf32>
      %648 = arith.select %643, %646, %647 : vector<8x1024xi1>, vector<8x1024xf32>
      %649 = arith.addf %629, %648 : vector<8x1024xf32>
      %650 = vector.extract_strided_slice %16 {offsets = [0, 63], sizes = [8, 1], strides = [1, 1]} : vector<8x128xi32> to vector<8x1xi32>
      %651 = vector.broadcast %650 : vector<8x1xi32> to vector<8x1024xi32>
      %652 = vector.broadcast %15 : vector<1x1024xi32> to vector<8x1024xi32>
      %653 = arith.cmpi eq, %651, %652 : vector<8x1024xi32>
      %654 = vector.extract_strided_slice %17 {offsets = [0, 63], sizes = [8, 1], strides = [1, 1]} : vector<8x128xf32> to vector<8x1xf32>
      %cst_71 = arith.constant 0.000000e+00 : f32
      %655 = vector.shape_cast %654 : vector<8x1xf32> to vector<8x1xf32>
      %656 = vector.broadcast %655 : vector<8x1xf32> to vector<8x1024xf32>
      %657 = vector.broadcast %cst_71 : f32 to vector<8x1024xf32>
      %658 = arith.select %653, %656, %657 : vector<8x1024xi1>, vector<8x1024xf32>
      %659 = arith.addf %639, %658 : vector<8x1024xf32>
      %660 = vector.extract_strided_slice %16 {offsets = [0, 64], sizes = [8, 1], strides = [1, 1]} : vector<8x128xi32> to vector<8x1xi32>
      %661 = vector.broadcast %660 : vector<8x1xi32> to vector<8x1024xi32>
      %662 = vector.broadcast %15 : vector<1x1024xi32> to vector<8x1024xi32>
      %663 = arith.cmpi eq, %661, %662 : vector<8x1024xi32>
      %664 = vector.extract_strided_slice %17 {offsets = [0, 64], sizes = [8, 1], strides = [1, 1]} : vector<8x128xf32> to vector<8x1xf32>
      %cst_72 = arith.constant 0.000000e+00 : f32
      %665 = vector.shape_cast %664 : vector<8x1xf32> to vector<8x1xf32>
      %666 = vector.broadcast %665 : vector<8x1xf32> to vector<8x1024xf32>
      %667 = vector.broadcast %cst_72 : f32 to vector<8x1024xf32>
      %668 = arith.select %663, %666, %667 : vector<8x1024xi1>, vector<8x1024xf32>
      %669 = arith.addf %649, %668 : vector<8x1024xf32>
      %670 = vector.extract_strided_slice %16 {offsets = [0, 65], sizes = [8, 1], strides = [1, 1]} : vector<8x128xi32> to vector<8x1xi32>
      %671 = vector.broadcast %670 : vector<8x1xi32> to vector<8x1024xi32>
      %672 = vector.broadcast %15 : vector<1x1024xi32> to vector<8x1024xi32>
      %673 = arith.cmpi eq, %671, %672 : vector<8x1024xi32>
      %674 = vector.extract_strided_slice %17 {offsets = [0, 65], sizes = [8, 1], strides = [1, 1]} : vector<8x128xf32> to vector<8x1xf32>
      %cst_73 = arith.constant 0.000000e+00 : f32
      %675 = vector.shape_cast %674 : vector<8x1xf32> to vector<8x1xf32>
      %676 = vector.broadcast %675 : vector<8x1xf32> to vector<8x1024xf32>
      %677 = vector.broadcast %cst_73 : f32 to vector<8x1024xf32>
      %678 = arith.select %673, %676, %677 : vector<8x1024xi1>, vector<8x1024xf32>
      %679 = arith.addf %659, %678 : vector<8x1024xf32>
      %680 = vector.extract_strided_slice %16 {offsets = [0, 66], sizes = [8, 1], strides = [1, 1]} : vector<8x128xi32> to vector<8x1xi32>
      %681 = vector.broadcast %680 : vector<8x1xi32> to vector<8x1024xi32>
      %682 = vector.broadcast %15 : vector<1x1024xi32> to vector<8x1024xi32>
      %683 = arith.cmpi eq, %681, %682 : vector<8x1024xi32>
      %684 = vector.extract_strided_slice %17 {offsets = [0, 66], sizes = [8, 1], strides = [1, 1]} : vector<8x128xf32> to vector<8x1xf32>
      %cst_74 = arith.constant 0.000000e+00 : f32
      %685 = vector.shape_cast %684 : vector<8x1xf32> to vector<8x1xf32>
      %686 = vector.broadcast %685 : vector<8x1xf32> to vector<8x1024xf32>
      %687 = vector.broadcast %cst_74 : f32 to vector<8x1024xf32>
      %688 = arith.select %683, %686, %687 : vector<8x1024xi1>, vector<8x1024xf32>
      %689 = arith.addf %669, %688 : vector<8x1024xf32>
      %690 = vector.extract_strided_slice %16 {offsets = [0, 67], sizes = [8, 1], strides = [1, 1]} : vector<8x128xi32> to vector<8x1xi32>
      %691 = vector.broadcast %690 : vector<8x1xi32> to vector<8x1024xi32>
      %692 = vector.broadcast %15 : vector<1x1024xi32> to vector<8x1024xi32>
      %693 = arith.cmpi eq, %691, %692 : vector<8x1024xi32>
      %694 = vector.extract_strided_slice %17 {offsets = [0, 67], sizes = [8, 1], strides = [1, 1]} : vector<8x128xf32> to vector<8x1xf32>
      %cst_75 = arith.constant 0.000000e+00 : f32
      %695 = vector.shape_cast %694 : vector<8x1xf32> to vector<8x1xf32>
      %696 = vector.broadcast %695 : vector<8x1xf32> to vector<8x1024xf32>
      %697 = vector.broadcast %cst_75 : f32 to vector<8x1024xf32>
      %698 = arith.select %693, %696, %697 : vector<8x1024xi1>, vector<8x1024xf32>
      %699 = arith.addf %679, %698 : vector<8x1024xf32>
      %700 = vector.extract_strided_slice %16 {offsets = [0, 68], sizes = [8, 1], strides = [1, 1]} : vector<8x128xi32> to vector<8x1xi32>
      %701 = vector.broadcast %700 : vector<8x1xi32> to vector<8x1024xi32>
      %702 = vector.broadcast %15 : vector<1x1024xi32> to vector<8x1024xi32>
      %703 = arith.cmpi eq, %701, %702 : vector<8x1024xi32>
      %704 = vector.extract_strided_slice %17 {offsets = [0, 68], sizes = [8, 1], strides = [1, 1]} : vector<8x128xf32> to vector<8x1xf32>
      %cst_76 = arith.constant 0.000000e+00 : f32
      %705 = vector.shape_cast %704 : vector<8x1xf32> to vector<8x1xf32>
      %706 = vector.broadcast %705 : vector<8x1xf32> to vector<8x1024xf32>
      %707 = vector.broadcast %cst_76 : f32 to vector<8x1024xf32>
      %708 = arith.select %703, %706, %707 : vector<8x1024xi1>, vector<8x1024xf32>
      %709 = arith.addf %689, %708 : vector<8x1024xf32>
      %710 = vector.extract_strided_slice %16 {offsets = [0, 69], sizes = [8, 1], strides = [1, 1]} : vector<8x128xi32> to vector<8x1xi32>
      %711 = vector.broadcast %710 : vector<8x1xi32> to vector<8x1024xi32>
      %712 = vector.broadcast %15 : vector<1x1024xi32> to vector<8x1024xi32>
      %713 = arith.cmpi eq, %711, %712 : vector<8x1024xi32>
      %714 = vector.extract_strided_slice %17 {offsets = [0, 69], sizes = [8, 1], strides = [1, 1]} : vector<8x128xf32> to vector<8x1xf32>
      %cst_77 = arith.constant 0.000000e+00 : f32
      %715 = vector.shape_cast %714 : vector<8x1xf32> to vector<8x1xf32>
      %716 = vector.broadcast %715 : vector<8x1xf32> to vector<8x1024xf32>
      %717 = vector.broadcast %cst_77 : f32 to vector<8x1024xf32>
      %718 = arith.select %713, %716, %717 : vector<8x1024xi1>, vector<8x1024xf32>
      %719 = arith.addf %699, %718 : vector<8x1024xf32>
      %720 = vector.extract_strided_slice %16 {offsets = [0, 70], sizes = [8, 1], strides = [1, 1]} : vector<8x128xi32> to vector<8x1xi32>
      %721 = vector.broadcast %720 : vector<8x1xi32> to vector<8x1024xi32>
      %722 = vector.broadcast %15 : vector<1x1024xi32> to vector<8x1024xi32>
      %723 = arith.cmpi eq, %721, %722 : vector<8x1024xi32>
      %724 = vector.extract_strided_slice %17 {offsets = [0, 70], sizes = [8, 1], strides = [1, 1]} : vector<8x128xf32> to vector<8x1xf32>
      %cst_78 = arith.constant 0.000000e+00 : f32
      %725 = vector.shape_cast %724 : vector<8x1xf32> to vector<8x1xf32>
      %726 = vector.broadcast %725 : vector<8x1xf32> to vector<8x1024xf32>
      %727 = vector.broadcast %cst_78 : f32 to vector<8x1024xf32>
      %728 = arith.select %723, %726, %727 : vector<8x1024xi1>, vector<8x1024xf32>
      %729 = arith.addf %709, %728 : vector<8x1024xf32>
      %730 = vector.extract_strided_slice %16 {offsets = [0, 71], sizes = [8, 1], strides = [1, 1]} : vector<8x128xi32> to vector<8x1xi32>
      %731 = vector.broadcast %730 : vector<8x1xi32> to vector<8x1024xi32>
      %732 = vector.broadcast %15 : vector<1x1024xi32> to vector<8x1024xi32>
      %733 = arith.cmpi eq, %731, %732 : vector<8x1024xi32>
      %734 = vector.extract_strided_slice %17 {offsets = [0, 71], sizes = [8, 1], strides = [1, 1]} : vector<8x128xf32> to vector<8x1xf32>
      %cst_79 = arith.constant 0.000000e+00 : f32
      %735 = vector.shape_cast %734 : vector<8x1xf32> to vector<8x1xf32>
      %736 = vector.broadcast %735 : vector<8x1xf32> to vector<8x1024xf32>
      %737 = vector.broadcast %cst_79 : f32 to vector<8x1024xf32>
      %738 = arith.select %733, %736, %737 : vector<8x1024xi1>, vector<8x1024xf32>
      %739 = arith.addf %719, %738 : vector<8x1024xf32>
      %740 = vector.extract_strided_slice %16 {offsets = [0, 72], sizes = [8, 1], strides = [1, 1]} : vector<8x128xi32> to vector<8x1xi32>
      %741 = vector.broadcast %740 : vector<8x1xi32> to vector<8x1024xi32>
      %742 = vector.broadcast %15 : vector<1x1024xi32> to vector<8x1024xi32>
      %743 = arith.cmpi eq, %741, %742 : vector<8x1024xi32>
      %744 = vector.extract_strided_slice %17 {offsets = [0, 72], sizes = [8, 1], strides = [1, 1]} : vector<8x128xf32> to vector<8x1xf32>
      %cst_80 = arith.constant 0.000000e+00 : f32
      %745 = vector.shape_cast %744 : vector<8x1xf32> to vector<8x1xf32>
      %746 = vector.broadcast %745 : vector<8x1xf32> to vector<8x1024xf32>
      %747 = vector.broadcast %cst_80 : f32 to vector<8x1024xf32>
      %748 = arith.select %743, %746, %747 : vector<8x1024xi1>, vector<8x1024xf32>
      %749 = arith.addf %729, %748 : vector<8x1024xf32>
      %750 = vector.extract_strided_slice %16 {offsets = [0, 73], sizes = [8, 1], strides = [1, 1]} : vector<8x128xi32> to vector<8x1xi32>
      %751 = vector.broadcast %750 : vector<8x1xi32> to vector<8x1024xi32>
      %752 = vector.broadcast %15 : vector<1x1024xi32> to vector<8x1024xi32>
      %753 = arith.cmpi eq, %751, %752 : vector<8x1024xi32>
      %754 = vector.extract_strided_slice %17 {offsets = [0, 73], sizes = [8, 1], strides = [1, 1]} : vector<8x128xf32> to vector<8x1xf32>
      %cst_81 = arith.constant 0.000000e+00 : f32
      %755 = vector.shape_cast %754 : vector<8x1xf32> to vector<8x1xf32>
      %756 = vector.broadcast %755 : vector<8x1xf32> to vector<8x1024xf32>
      %757 = vector.broadcast %cst_81 : f32 to vector<8x1024xf32>
      %758 = arith.select %753, %756, %757 : vector<8x1024xi1>, vector<8x1024xf32>
      %759 = arith.addf %739, %758 : vector<8x1024xf32>
      %760 = vector.extract_strided_slice %16 {offsets = [0, 74], sizes = [8, 1], strides = [1, 1]} : vector<8x128xi32> to vector<8x1xi32>
      %761 = vector.broadcast %760 : vector<8x1xi32> to vector<8x1024xi32>
      %762 = vector.broadcast %15 : vector<1x1024xi32> to vector<8x1024xi32>
      %763 = arith.cmpi eq, %761, %762 : vector<8x1024xi32>
      %764 = vector.extract_strided_slice %17 {offsets = [0, 74], sizes = [8, 1], strides = [1, 1]} : vector<8x128xf32> to vector<8x1xf32>
      %cst_82 = arith.constant 0.000000e+00 : f32
      %765 = vector.shape_cast %764 : vector<8x1xf32> to vector<8x1xf32>
      %766 = vector.broadcast %765 : vector<8x1xf32> to vector<8x1024xf32>
      %767 = vector.broadcast %cst_82 : f32 to vector<8x1024xf32>
      %768 = arith.select %763, %766, %767 : vector<8x1024xi1>, vector<8x1024xf32>
      %769 = arith.addf %749, %768 : vector<8x1024xf32>
      %770 = vector.extract_strided_slice %16 {offsets = [0, 75], sizes = [8, 1], strides = [1, 1]} : vector<8x128xi32> to vector<8x1xi32>
      %771 = vector.broadcast %770 : vector<8x1xi32> to vector<8x1024xi32>
      %772 = vector.broadcast %15 : vector<1x1024xi32> to vector<8x1024xi32>
      %773 = arith.cmpi eq, %771, %772 : vector<8x1024xi32>
      %774 = vector.extract_strided_slice %17 {offsets = [0, 75], sizes = [8, 1], strides = [1, 1]} : vector<8x128xf32> to vector<8x1xf32>
      %cst_83 = arith.constant 0.000000e+00 : f32
      %775 = vector.shape_cast %774 : vector<8x1xf32> to vector<8x1xf32>
      %776 = vector.broadcast %775 : vector<8x1xf32> to vector<8x1024xf32>
      %777 = vector.broadcast %cst_83 : f32 to vector<8x1024xf32>
      %778 = arith.select %773, %776, %777 : vector<8x1024xi1>, vector<8x1024xf32>
      %779 = arith.addf %759, %778 : vector<8x1024xf32>
      %780 = vector.extract_strided_slice %16 {offsets = [0, 76], sizes = [8, 1], strides = [1, 1]} : vector<8x128xi32> to vector<8x1xi32>
      %781 = vector.broadcast %780 : vector<8x1xi32> to vector<8x1024xi32>
      %782 = vector.broadcast %15 : vector<1x1024xi32> to vector<8x1024xi32>
      %783 = arith.cmpi eq, %781, %782 : vector<8x1024xi32>
      %784 = vector.extract_strided_slice %17 {offsets = [0, 76], sizes = [8, 1], strides = [1, 1]} : vector<8x128xf32> to vector<8x1xf32>
      %cst_84 = arith.constant 0.000000e+00 : f32
      %785 = vector.shape_cast %784 : vector<8x1xf32> to vector<8x1xf32>
      %786 = vector.broadcast %785 : vector<8x1xf32> to vector<8x1024xf32>
      %787 = vector.broadcast %cst_84 : f32 to vector<8x1024xf32>
      %788 = arith.select %783, %786, %787 : vector<8x1024xi1>, vector<8x1024xf32>
      %789 = arith.addf %769, %788 : vector<8x1024xf32>
      %790 = vector.extract_strided_slice %16 {offsets = [0, 77], sizes = [8, 1], strides = [1, 1]} : vector<8x128xi32> to vector<8x1xi32>
      %791 = vector.broadcast %790 : vector<8x1xi32> to vector<8x1024xi32>
      %792 = vector.broadcast %15 : vector<1x1024xi32> to vector<8x1024xi32>
      %793 = arith.cmpi eq, %791, %792 : vector<8x1024xi32>
      %794 = vector.extract_strided_slice %17 {offsets = [0, 77], sizes = [8, 1], strides = [1, 1]} : vector<8x128xf32> to vector<8x1xf32>
      %cst_85 = arith.constant 0.000000e+00 : f32
      %795 = vector.shape_cast %794 : vector<8x1xf32> to vector<8x1xf32>
      %796 = vector.broadcast %795 : vector<8x1xf32> to vector<8x1024xf32>
      %797 = vector.broadcast %cst_85 : f32 to vector<8x1024xf32>
      %798 = arith.select %793, %796, %797 : vector<8x1024xi1>, vector<8x1024xf32>
      %799 = arith.addf %779, %798 : vector<8x1024xf32>
      %800 = vector.extract_strided_slice %16 {offsets = [0, 78], sizes = [8, 1], strides = [1, 1]} : vector<8x128xi32> to vector<8x1xi32>
      %801 = vector.broadcast %800 : vector<8x1xi32> to vector<8x1024xi32>
      %802 = vector.broadcast %15 : vector<1x1024xi32> to vector<8x1024xi32>
      %803 = arith.cmpi eq, %801, %802 : vector<8x1024xi32>
      %804 = vector.extract_strided_slice %17 {offsets = [0, 78], sizes = [8, 1], strides = [1, 1]} : vector<8x128xf32> to vector<8x1xf32>
      %cst_86 = arith.constant 0.000000e+00 : f32
      %805 = vector.shape_cast %804 : vector<8x1xf32> to vector<8x1xf32>
      %806 = vector.broadcast %805 : vector<8x1xf32> to vector<8x1024xf32>
      %807 = vector.broadcast %cst_86 : f32 to vector<8x1024xf32>
      %808 = arith.select %803, %806, %807 : vector<8x1024xi1>, vector<8x1024xf32>
      %809 = arith.addf %789, %808 : vector<8x1024xf32>
      %810 = vector.extract_strided_slice %16 {offsets = [0, 79], sizes = [8, 1], strides = [1, 1]} : vector<8x128xi32> to vector<8x1xi32>
      %811 = vector.broadcast %810 : vector<8x1xi32> to vector<8x1024xi32>
      %812 = vector.broadcast %15 : vector<1x1024xi32> to vector<8x1024xi32>
      %813 = arith.cmpi eq, %811, %812 : vector<8x1024xi32>
      %814 = vector.extract_strided_slice %17 {offsets = [0, 79], sizes = [8, 1], strides = [1, 1]} : vector<8x128xf32> to vector<8x1xf32>
      %cst_87 = arith.constant 0.000000e+00 : f32
      %815 = vector.shape_cast %814 : vector<8x1xf32> to vector<8x1xf32>
      %816 = vector.broadcast %815 : vector<8x1xf32> to vector<8x1024xf32>
      %817 = vector.broadcast %cst_87 : f32 to vector<8x1024xf32>
      %818 = arith.select %813, %816, %817 : vector<8x1024xi1>, vector<8x1024xf32>
      %819 = arith.addf %799, %818 : vector<8x1024xf32>
      %820 = vector.extract_strided_slice %16 {offsets = [0, 80], sizes = [8, 1], strides = [1, 1]} : vector<8x128xi32> to vector<8x1xi32>
      %821 = vector.broadcast %820 : vector<8x1xi32> to vector<8x1024xi32>
      %822 = vector.broadcast %15 : vector<1x1024xi32> to vector<8x1024xi32>
      %823 = arith.cmpi eq, %821, %822 : vector<8x1024xi32>
      %824 = vector.extract_strided_slice %17 {offsets = [0, 80], sizes = [8, 1], strides = [1, 1]} : vector<8x128xf32> to vector<8x1xf32>
      %cst_88 = arith.constant 0.000000e+00 : f32
      %825 = vector.shape_cast %824 : vector<8x1xf32> to vector<8x1xf32>
      %826 = vector.broadcast %825 : vector<8x1xf32> to vector<8x1024xf32>
      %827 = vector.broadcast %cst_88 : f32 to vector<8x1024xf32>
      %828 = arith.select %823, %826, %827 : vector<8x1024xi1>, vector<8x1024xf32>
      %829 = arith.addf %809, %828 : vector<8x1024xf32>
      %830 = vector.extract_strided_slice %16 {offsets = [0, 81], sizes = [8, 1], strides = [1, 1]} : vector<8x128xi32> to vector<8x1xi32>
      %831 = vector.broadcast %830 : vector<8x1xi32> to vector<8x1024xi32>
      %832 = vector.broadcast %15 : vector<1x1024xi32> to vector<8x1024xi32>
      %833 = arith.cmpi eq, %831, %832 : vector<8x1024xi32>
      %834 = vector.extract_strided_slice %17 {offsets = [0, 81], sizes = [8, 1], strides = [1, 1]} : vector<8x128xf32> to vector<8x1xf32>
      %cst_89 = arith.constant 0.000000e+00 : f32
      %835 = vector.shape_cast %834 : vector<8x1xf32> to vector<8x1xf32>
      %836 = vector.broadcast %835 : vector<8x1xf32> to vector<8x1024xf32>
      %837 = vector.broadcast %cst_89 : f32 to vector<8x1024xf32>
      %838 = arith.select %833, %836, %837 : vector<8x1024xi1>, vector<8x1024xf32>
      %839 = arith.addf %819, %838 : vector<8x1024xf32>
      %840 = vector.extract_strided_slice %16 {offsets = [0, 82], sizes = [8, 1], strides = [1, 1]} : vector<8x128xi32> to vector<8x1xi32>
      %841 = vector.broadcast %840 : vector<8x1xi32> to vector<8x1024xi32>
      %842 = vector.broadcast %15 : vector<1x1024xi32> to vector<8x1024xi32>
      %843 = arith.cmpi eq, %841, %842 : vector<8x1024xi32>
      %844 = vector.extract_strided_slice %17 {offsets = [0, 82], sizes = [8, 1], strides = [1, 1]} : vector<8x128xf32> to vector<8x1xf32>
      %cst_90 = arith.constant 0.000000e+00 : f32
      %845 = vector.shape_cast %844 : vector<8x1xf32> to vector<8x1xf32>
      %846 = vector.broadcast %845 : vector<8x1xf32> to vector<8x1024xf32>
      %847 = vector.broadcast %cst_90 : f32 to vector<8x1024xf32>
      %848 = arith.select %843, %846, %847 : vector<8x1024xi1>, vector<8x1024xf32>
      %849 = arith.addf %829, %848 : vector<8x1024xf32>
      %850 = vector.extract_strided_slice %16 {offsets = [0, 83], sizes = [8, 1], strides = [1, 1]} : vector<8x128xi32> to vector<8x1xi32>
      %851 = vector.broadcast %850 : vector<8x1xi32> to vector<8x1024xi32>
      %852 = vector.broadcast %15 : vector<1x1024xi32> to vector<8x1024xi32>
      %853 = arith.cmpi eq, %851, %852 : vector<8x1024xi32>
      %854 = vector.extract_strided_slice %17 {offsets = [0, 83], sizes = [8, 1], strides = [1, 1]} : vector<8x128xf32> to vector<8x1xf32>
      %cst_91 = arith.constant 0.000000e+00 : f32
      %855 = vector.shape_cast %854 : vector<8x1xf32> to vector<8x1xf32>
      %856 = vector.broadcast %855 : vector<8x1xf32> to vector<8x1024xf32>
      %857 = vector.broadcast %cst_91 : f32 to vector<8x1024xf32>
      %858 = arith.select %853, %856, %857 : vector<8x1024xi1>, vector<8x1024xf32>
      %859 = arith.addf %839, %858 : vector<8x1024xf32>
      %860 = vector.extract_strided_slice %16 {offsets = [0, 84], sizes = [8, 1], strides = [1, 1]} : vector<8x128xi32> to vector<8x1xi32>
      %861 = vector.broadcast %860 : vector<8x1xi32> to vector<8x1024xi32>
      %862 = vector.broadcast %15 : vector<1x1024xi32> to vector<8x1024xi32>
      %863 = arith.cmpi eq, %861, %862 : vector<8x1024xi32>
      %864 = vector.extract_strided_slice %17 {offsets = [0, 84], sizes = [8, 1], strides = [1, 1]} : vector<8x128xf32> to vector<8x1xf32>
      %cst_92 = arith.constant 0.000000e+00 : f32
      %865 = vector.shape_cast %864 : vector<8x1xf32> to vector<8x1xf32>
      %866 = vector.broadcast %865 : vector<8x1xf32> to vector<8x1024xf32>
      %867 = vector.broadcast %cst_92 : f32 to vector<8x1024xf32>
      %868 = arith.select %863, %866, %867 : vector<8x1024xi1>, vector<8x1024xf32>
      %869 = arith.addf %849, %868 : vector<8x1024xf32>
      %870 = vector.extract_strided_slice %16 {offsets = [0, 85], sizes = [8, 1], strides = [1, 1]} : vector<8x128xi32> to vector<8x1xi32>
      %871 = vector.broadcast %870 : vector<8x1xi32> to vector<8x1024xi32>
      %872 = vector.broadcast %15 : vector<1x1024xi32> to vector<8x1024xi32>
      %873 = arith.cmpi eq, %871, %872 : vector<8x1024xi32>
      %874 = vector.extract_strided_slice %17 {offsets = [0, 85], sizes = [8, 1], strides = [1, 1]} : vector<8x128xf32> to vector<8x1xf32>
      %cst_93 = arith.constant 0.000000e+00 : f32
      %875 = vector.shape_cast %874 : vector<8x1xf32> to vector<8x1xf32>
      %876 = vector.broadcast %875 : vector<8x1xf32> to vector<8x1024xf32>
      %877 = vector.broadcast %cst_93 : f32 to vector<8x1024xf32>
      %878 = arith.select %873, %876, %877 : vector<8x1024xi1>, vector<8x1024xf32>
      %879 = arith.addf %859, %878 : vector<8x1024xf32>
      %880 = vector.extract_strided_slice %16 {offsets = [0, 86], sizes = [8, 1], strides = [1, 1]} : vector<8x128xi32> to vector<8x1xi32>
      %881 = vector.broadcast %880 : vector<8x1xi32> to vector<8x1024xi32>
      %882 = vector.broadcast %15 : vector<1x1024xi32> to vector<8x1024xi32>
      %883 = arith.cmpi eq, %881, %882 : vector<8x1024xi32>
      %884 = vector.extract_strided_slice %17 {offsets = [0, 86], sizes = [8, 1], strides = [1, 1]} : vector<8x128xf32> to vector<8x1xf32>
      %cst_94 = arith.constant 0.000000e+00 : f32
      %885 = vector.shape_cast %884 : vector<8x1xf32> to vector<8x1xf32>
      %886 = vector.broadcast %885 : vector<8x1xf32> to vector<8x1024xf32>
      %887 = vector.broadcast %cst_94 : f32 to vector<8x1024xf32>
      %888 = arith.select %883, %886, %887 : vector<8x1024xi1>, vector<8x1024xf32>
      %889 = arith.addf %869, %888 : vector<8x1024xf32>
      %890 = vector.extract_strided_slice %16 {offsets = [0, 87], sizes = [8, 1], strides = [1, 1]} : vector<8x128xi32> to vector<8x1xi32>
      %891 = vector.broadcast %890 : vector<8x1xi32> to vector<8x1024xi32>
      %892 = vector.broadcast %15 : vector<1x1024xi32> to vector<8x1024xi32>
      %893 = arith.cmpi eq, %891, %892 : vector<8x1024xi32>
      %894 = vector.extract_strided_slice %17 {offsets = [0, 87], sizes = [8, 1], strides = [1, 1]} : vector<8x128xf32> to vector<8x1xf32>
      %cst_95 = arith.constant 0.000000e+00 : f32
      %895 = vector.shape_cast %894 : vector<8x1xf32> to vector<8x1xf32>
      %896 = vector.broadcast %895 : vector<8x1xf32> to vector<8x1024xf32>
      %897 = vector.broadcast %cst_95 : f32 to vector<8x1024xf32>
      %898 = arith.select %893, %896, %897 : vector<8x1024xi1>, vector<8x1024xf32>
      %899 = arith.addf %879, %898 : vector<8x1024xf32>
      %900 = vector.extract_strided_slice %16 {offsets = [0, 88], sizes = [8, 1], strides = [1, 1]} : vector<8x128xi32> to vector<8x1xi32>
      %901 = vector.broadcast %900 : vector<8x1xi32> to vector<8x1024xi32>
      %902 = vector.broadcast %15 : vector<1x1024xi32> to vector<8x1024xi32>
      %903 = arith.cmpi eq, %901, %902 : vector<8x1024xi32>
      %904 = vector.extract_strided_slice %17 {offsets = [0, 88], sizes = [8, 1], strides = [1, 1]} : vector<8x128xf32> to vector<8x1xf32>
      %cst_96 = arith.constant 0.000000e+00 : f32
      %905 = vector.shape_cast %904 : vector<8x1xf32> to vector<8x1xf32>
      %906 = vector.broadcast %905 : vector<8x1xf32> to vector<8x1024xf32>
      %907 = vector.broadcast %cst_96 : f32 to vector<8x1024xf32>
      %908 = arith.select %903, %906, %907 : vector<8x1024xi1>, vector<8x1024xf32>
      %909 = arith.addf %889, %908 : vector<8x1024xf32>
      %910 = vector.extract_strided_slice %16 {offsets = [0, 89], sizes = [8, 1], strides = [1, 1]} : vector<8x128xi32> to vector<8x1xi32>
      %911 = vector.broadcast %910 : vector<8x1xi32> to vector<8x1024xi32>
      %912 = vector.broadcast %15 : vector<1x1024xi32> to vector<8x1024xi32>
      %913 = arith.cmpi eq, %911, %912 : vector<8x1024xi32>
      %914 = vector.extract_strided_slice %17 {offsets = [0, 89], sizes = [8, 1], strides = [1, 1]} : vector<8x128xf32> to vector<8x1xf32>
      %cst_97 = arith.constant 0.000000e+00 : f32
      %915 = vector.shape_cast %914 : vector<8x1xf32> to vector<8x1xf32>
      %916 = vector.broadcast %915 : vector<8x1xf32> to vector<8x1024xf32>
      %917 = vector.broadcast %cst_97 : f32 to vector<8x1024xf32>
      %918 = arith.select %913, %916, %917 : vector<8x1024xi1>, vector<8x1024xf32>
      %919 = arith.addf %899, %918 : vector<8x1024xf32>
      %920 = vector.extract_strided_slice %16 {offsets = [0, 90], sizes = [8, 1], strides = [1, 1]} : vector<8x128xi32> to vector<8x1xi32>
      %921 = vector.broadcast %920 : vector<8x1xi32> to vector<8x1024xi32>
      %922 = vector.broadcast %15 : vector<1x1024xi32> to vector<8x1024xi32>
      %923 = arith.cmpi eq, %921, %922 : vector<8x1024xi32>
      %924 = vector.extract_strided_slice %17 {offsets = [0, 90], sizes = [8, 1], strides = [1, 1]} : vector<8x128xf32> to vector<8x1xf32>
      %cst_98 = arith.constant 0.000000e+00 : f32
      %925 = vector.shape_cast %924 : vector<8x1xf32> to vector<8x1xf32>
      %926 = vector.broadcast %925 : vector<8x1xf32> to vector<8x1024xf32>
      %927 = vector.broadcast %cst_98 : f32 to vector<8x1024xf32>
      %928 = arith.select %923, %926, %927 : vector<8x1024xi1>, vector<8x1024xf32>
      %929 = arith.addf %909, %928 : vector<8x1024xf32>
      %930 = vector.extract_strided_slice %16 {offsets = [0, 91], sizes = [8, 1], strides = [1, 1]} : vector<8x128xi32> to vector<8x1xi32>
      %931 = vector.broadcast %930 : vector<8x1xi32> to vector<8x1024xi32>
      %932 = vector.broadcast %15 : vector<1x1024xi32> to vector<8x1024xi32>
      %933 = arith.cmpi eq, %931, %932 : vector<8x1024xi32>
      %934 = vector.extract_strided_slice %17 {offsets = [0, 91], sizes = [8, 1], strides = [1, 1]} : vector<8x128xf32> to vector<8x1xf32>
      %cst_99 = arith.constant 0.000000e+00 : f32
      %935 = vector.shape_cast %934 : vector<8x1xf32> to vector<8x1xf32>
      %936 = vector.broadcast %935 : vector<8x1xf32> to vector<8x1024xf32>
      %937 = vector.broadcast %cst_99 : f32 to vector<8x1024xf32>
      %938 = arith.select %933, %936, %937 : vector<8x1024xi1>, vector<8x1024xf32>
      %939 = arith.addf %919, %938 : vector<8x1024xf32>
      %940 = vector.extract_strided_slice %16 {offsets = [0, 92], sizes = [8, 1], strides = [1, 1]} : vector<8x128xi32> to vector<8x1xi32>
      %941 = vector.broadcast %940 : vector<8x1xi32> to vector<8x1024xi32>
      %942 = vector.broadcast %15 : vector<1x1024xi32> to vector<8x1024xi32>
      %943 = arith.cmpi eq, %941, %942 : vector<8x1024xi32>
      %944 = vector.extract_strided_slice %17 {offsets = [0, 92], sizes = [8, 1], strides = [1, 1]} : vector<8x128xf32> to vector<8x1xf32>
      %cst_100 = arith.constant 0.000000e+00 : f32
      %945 = vector.shape_cast %944 : vector<8x1xf32> to vector<8x1xf32>
      %946 = vector.broadcast %945 : vector<8x1xf32> to vector<8x1024xf32>
      %947 = vector.broadcast %cst_100 : f32 to vector<8x1024xf32>
      %948 = arith.select %943, %946, %947 : vector<8x1024xi1>, vector<8x1024xf32>
      %949 = arith.addf %929, %948 : vector<8x1024xf32>
      %950 = vector.extract_strided_slice %16 {offsets = [0, 93], sizes = [8, 1], strides = [1, 1]} : vector<8x128xi32> to vector<8x1xi32>
      %951 = vector.broadcast %950 : vector<8x1xi32> to vector<8x1024xi32>
      %952 = vector.broadcast %15 : vector<1x1024xi32> to vector<8x1024xi32>
      %953 = arith.cmpi eq, %951, %952 : vector<8x1024xi32>
      %954 = vector.extract_strided_slice %17 {offsets = [0, 93], sizes = [8, 1], strides = [1, 1]} : vector<8x128xf32> to vector<8x1xf32>
      %cst_101 = arith.constant 0.000000e+00 : f32
      %955 = vector.shape_cast %954 : vector<8x1xf32> to vector<8x1xf32>
      %956 = vector.broadcast %955 : vector<8x1xf32> to vector<8x1024xf32>
      %957 = vector.broadcast %cst_101 : f32 to vector<8x1024xf32>
      %958 = arith.select %953, %956, %957 : vector<8x1024xi1>, vector<8x1024xf32>
      %959 = arith.addf %939, %958 : vector<8x1024xf32>
      %960 = vector.extract_strided_slice %16 {offsets = [0, 94], sizes = [8, 1], strides = [1, 1]} : vector<8x128xi32> to vector<8x1xi32>
      %961 = vector.broadcast %960 : vector<8x1xi32> to vector<8x1024xi32>
      %962 = vector.broadcast %15 : vector<1x1024xi32> to vector<8x1024xi32>
      %963 = arith.cmpi eq, %961, %962 : vector<8x1024xi32>
      %964 = vector.extract_strided_slice %17 {offsets = [0, 94], sizes = [8, 1], strides = [1, 1]} : vector<8x128xf32> to vector<8x1xf32>
      %cst_102 = arith.constant 0.000000e+00 : f32
      %965 = vector.shape_cast %964 : vector<8x1xf32> to vector<8x1xf32>
      %966 = vector.broadcast %965 : vector<8x1xf32> to vector<8x1024xf32>
      %967 = vector.broadcast %cst_102 : f32 to vector<8x1024xf32>
      %968 = arith.select %963, %966, %967 : vector<8x1024xi1>, vector<8x1024xf32>
      %969 = arith.addf %949, %968 : vector<8x1024xf32>
      %970 = vector.extract_strided_slice %16 {offsets = [0, 95], sizes = [8, 1], strides = [1, 1]} : vector<8x128xi32> to vector<8x1xi32>
      %971 = vector.broadcast %970 : vector<8x1xi32> to vector<8x1024xi32>
      %972 = vector.broadcast %15 : vector<1x1024xi32> to vector<8x1024xi32>
      %973 = arith.cmpi eq, %971, %972 : vector<8x1024xi32>
      %974 = vector.extract_strided_slice %17 {offsets = [0, 95], sizes = [8, 1], strides = [1, 1]} : vector<8x128xf32> to vector<8x1xf32>
      %cst_103 = arith.constant 0.000000e+00 : f32
      %975 = vector.shape_cast %974 : vector<8x1xf32> to vector<8x1xf32>
      %976 = vector.broadcast %975 : vector<8x1xf32> to vector<8x1024xf32>
      %977 = vector.broadcast %cst_103 : f32 to vector<8x1024xf32>
      %978 = arith.select %973, %976, %977 : vector<8x1024xi1>, vector<8x1024xf32>
      %979 = arith.addf %959, %978 : vector<8x1024xf32>
      %980 = vector.extract_strided_slice %16 {offsets = [0, 96], sizes = [8, 1], strides = [1, 1]} : vector<8x128xi32> to vector<8x1xi32>
      %981 = vector.broadcast %980 : vector<8x1xi32> to vector<8x1024xi32>
      %982 = vector.broadcast %15 : vector<1x1024xi32> to vector<8x1024xi32>
      %983 = arith.cmpi eq, %981, %982 : vector<8x1024xi32>
      %984 = vector.extract_strided_slice %17 {offsets = [0, 96], sizes = [8, 1], strides = [1, 1]} : vector<8x128xf32> to vector<8x1xf32>
      %cst_104 = arith.constant 0.000000e+00 : f32
      %985 = vector.shape_cast %984 : vector<8x1xf32> to vector<8x1xf32>
      %986 = vector.broadcast %985 : vector<8x1xf32> to vector<8x1024xf32>
      %987 = vector.broadcast %cst_104 : f32 to vector<8x1024xf32>
      %988 = arith.select %983, %986, %987 : vector<8x1024xi1>, vector<8x1024xf32>
      %989 = arith.addf %969, %988 : vector<8x1024xf32>
      %990 = vector.extract_strided_slice %16 {offsets = [0, 97], sizes = [8, 1], strides = [1, 1]} : vector<8x128xi32> to vector<8x1xi32>
      %991 = vector.broadcast %990 : vector<8x1xi32> to vector<8x1024xi32>
      %992 = vector.broadcast %15 : vector<1x1024xi32> to vector<8x1024xi32>
      %993 = arith.cmpi eq, %991, %992 : vector<8x1024xi32>
      %994 = vector.extract_strided_slice %17 {offsets = [0, 97], sizes = [8, 1], strides = [1, 1]} : vector<8x128xf32> to vector<8x1xf32>
      %cst_105 = arith.constant 0.000000e+00 : f32
      %995 = vector.shape_cast %994 : vector<8x1xf32> to vector<8x1xf32>
      %996 = vector.broadcast %995 : vector<8x1xf32> to vector<8x1024xf32>
      %997 = vector.broadcast %cst_105 : f32 to vector<8x1024xf32>
      %998 = arith.select %993, %996, %997 : vector<8x1024xi1>, vector<8x1024xf32>
      %999 = arith.addf %979, %998 : vector<8x1024xf32>
      %1000 = vector.extract_strided_slice %16 {offsets = [0, 98], sizes = [8, 1], strides = [1, 1]} : vector<8x128xi32> to vector<8x1xi32>
      %1001 = vector.broadcast %1000 : vector<8x1xi32> to vector<8x1024xi32>
      %1002 = vector.broadcast %15 : vector<1x1024xi32> to vector<8x1024xi32>
      %1003 = arith.cmpi eq, %1001, %1002 : vector<8x1024xi32>
      %1004 = vector.extract_strided_slice %17 {offsets = [0, 98], sizes = [8, 1], strides = [1, 1]} : vector<8x128xf32> to vector<8x1xf32>
      %cst_106 = arith.constant 0.000000e+00 : f32
      %1005 = vector.shape_cast %1004 : vector<8x1xf32> to vector<8x1xf32>
      %1006 = vector.broadcast %1005 : vector<8x1xf32> to vector<8x1024xf32>
      %1007 = vector.broadcast %cst_106 : f32 to vector<8x1024xf32>
      %1008 = arith.select %1003, %1006, %1007 : vector<8x1024xi1>, vector<8x1024xf32>
      %1009 = arith.addf %989, %1008 : vector<8x1024xf32>
      %1010 = vector.extract_strided_slice %16 {offsets = [0, 99], sizes = [8, 1], strides = [1, 1]} : vector<8x128xi32> to vector<8x1xi32>
      %1011 = vector.broadcast %1010 : vector<8x1xi32> to vector<8x1024xi32>
      %1012 = vector.broadcast %15 : vector<1x1024xi32> to vector<8x1024xi32>
      %1013 = arith.cmpi eq, %1011, %1012 : vector<8x1024xi32>
      %1014 = vector.extract_strided_slice %17 {offsets = [0, 99], sizes = [8, 1], strides = [1, 1]} : vector<8x128xf32> to vector<8x1xf32>
      %cst_107 = arith.constant 0.000000e+00 : f32
      %1015 = vector.shape_cast %1014 : vector<8x1xf32> to vector<8x1xf32>
      %1016 = vector.broadcast %1015 : vector<8x1xf32> to vector<8x1024xf32>
      %1017 = vector.broadcast %cst_107 : f32 to vector<8x1024xf32>
      %1018 = arith.select %1013, %1016, %1017 : vector<8x1024xi1>, vector<8x1024xf32>
      %1019 = arith.addf %999, %1018 : vector<8x1024xf32>
      %1020 = vector.extract_strided_slice %16 {offsets = [0, 100], sizes = [8, 1], strides = [1, 1]} : vector<8x128xi32> to vector<8x1xi32>
      %1021 = vector.broadcast %1020 : vector<8x1xi32> to vector<8x1024xi32>
      %1022 = vector.broadcast %15 : vector<1x1024xi32> to vector<8x1024xi32>
      %1023 = arith.cmpi eq, %1021, %1022 : vector<8x1024xi32>
      %1024 = vector.extract_strided_slice %17 {offsets = [0, 100], sizes = [8, 1], strides = [1, 1]} : vector<8x128xf32> to vector<8x1xf32>
      %cst_108 = arith.constant 0.000000e+00 : f32
      %1025 = vector.shape_cast %1024 : vector<8x1xf32> to vector<8x1xf32>
      %1026 = vector.broadcast %1025 : vector<8x1xf32> to vector<8x1024xf32>
      %1027 = vector.broadcast %cst_108 : f32 to vector<8x1024xf32>
      %1028 = arith.select %1023, %1026, %1027 : vector<8x1024xi1>, vector<8x1024xf32>
      %1029 = arith.addf %1009, %1028 : vector<8x1024xf32>
      %1030 = vector.extract_strided_slice %16 {offsets = [0, 101], sizes = [8, 1], strides = [1, 1]} : vector<8x128xi32> to vector<8x1xi32>
      %1031 = vector.broadcast %1030 : vector<8x1xi32> to vector<8x1024xi32>
      %1032 = vector.broadcast %15 : vector<1x1024xi32> to vector<8x1024xi32>
      %1033 = arith.cmpi eq, %1031, %1032 : vector<8x1024xi32>
      %1034 = vector.extract_strided_slice %17 {offsets = [0, 101], sizes = [8, 1], strides = [1, 1]} : vector<8x128xf32> to vector<8x1xf32>
      %cst_109 = arith.constant 0.000000e+00 : f32
      %1035 = vector.shape_cast %1034 : vector<8x1xf32> to vector<8x1xf32>
      %1036 = vector.broadcast %1035 : vector<8x1xf32> to vector<8x1024xf32>
      %1037 = vector.broadcast %cst_109 : f32 to vector<8x1024xf32>
      %1038 = arith.select %1033, %1036, %1037 : vector<8x1024xi1>, vector<8x1024xf32>
      %1039 = arith.addf %1019, %1038 : vector<8x1024xf32>
      %1040 = vector.extract_strided_slice %16 {offsets = [0, 102], sizes = [8, 1], strides = [1, 1]} : vector<8x128xi32> to vector<8x1xi32>
      %1041 = vector.broadcast %1040 : vector<8x1xi32> to vector<8x1024xi32>
      %1042 = vector.broadcast %15 : vector<1x1024xi32> to vector<8x1024xi32>
      %1043 = arith.cmpi eq, %1041, %1042 : vector<8x1024xi32>
      %1044 = vector.extract_strided_slice %17 {offsets = [0, 102], sizes = [8, 1], strides = [1, 1]} : vector<8x128xf32> to vector<8x1xf32>
      %cst_110 = arith.constant 0.000000e+00 : f32
      %1045 = vector.shape_cast %1044 : vector<8x1xf32> to vector<8x1xf32>
      %1046 = vector.broadcast %1045 : vector<8x1xf32> to vector<8x1024xf32>
      %1047 = vector.broadcast %cst_110 : f32 to vector<8x1024xf32>
      %1048 = arith.select %1043, %1046, %1047 : vector<8x1024xi1>, vector<8x1024xf32>
      %1049 = arith.addf %1029, %1048 : vector<8x1024xf32>
      %1050 = vector.extract_strided_slice %16 {offsets = [0, 103], sizes = [8, 1], strides = [1, 1]} : vector<8x128xi32> to vector<8x1xi32>
      %1051 = vector.broadcast %1050 : vector<8x1xi32> to vector<8x1024xi32>
      %1052 = vector.broadcast %15 : vector<1x1024xi32> to vector<8x1024xi32>
      %1053 = arith.cmpi eq, %1051, %1052 : vector<8x1024xi32>
      %1054 = vector.extract_strided_slice %17 {offsets = [0, 103], sizes = [8, 1], strides = [1, 1]} : vector<8x128xf32> to vector<8x1xf32>
      %cst_111 = arith.constant 0.000000e+00 : f32
      %1055 = vector.shape_cast %1054 : vector<8x1xf32> to vector<8x1xf32>
      %1056 = vector.broadcast %1055 : vector<8x1xf32> to vector<8x1024xf32>
      %1057 = vector.broadcast %cst_111 : f32 to vector<8x1024xf32>
      %1058 = arith.select %1053, %1056, %1057 : vector<8x1024xi1>, vector<8x1024xf32>
      %1059 = arith.addf %1039, %1058 : vector<8x1024xf32>
      %1060 = vector.extract_strided_slice %16 {offsets = [0, 104], sizes = [8, 1], strides = [1, 1]} : vector<8x128xi32> to vector<8x1xi32>
      %1061 = vector.broadcast %1060 : vector<8x1xi32> to vector<8x1024xi32>
      %1062 = vector.broadcast %15 : vector<1x1024xi32> to vector<8x1024xi32>
      %1063 = arith.cmpi eq, %1061, %1062 : vector<8x1024xi32>
      %1064 = vector.extract_strided_slice %17 {offsets = [0, 104], sizes = [8, 1], strides = [1, 1]} : vector<8x128xf32> to vector<8x1xf32>
      %cst_112 = arith.constant 0.000000e+00 : f32
      %1065 = vector.shape_cast %1064 : vector<8x1xf32> to vector<8x1xf32>
      %1066 = vector.broadcast %1065 : vector<8x1xf32> to vector<8x1024xf32>
      %1067 = vector.broadcast %cst_112 : f32 to vector<8x1024xf32>
      %1068 = arith.select %1063, %1066, %1067 : vector<8x1024xi1>, vector<8x1024xf32>
      %1069 = arith.addf %1049, %1068 : vector<8x1024xf32>
      %1070 = vector.extract_strided_slice %16 {offsets = [0, 105], sizes = [8, 1], strides = [1, 1]} : vector<8x128xi32> to vector<8x1xi32>
      %1071 = vector.broadcast %1070 : vector<8x1xi32> to vector<8x1024xi32>
      %1072 = vector.broadcast %15 : vector<1x1024xi32> to vector<8x1024xi32>
      %1073 = arith.cmpi eq, %1071, %1072 : vector<8x1024xi32>
      %1074 = vector.extract_strided_slice %17 {offsets = [0, 105], sizes = [8, 1], strides = [1, 1]} : vector<8x128xf32> to vector<8x1xf32>
      %cst_113 = arith.constant 0.000000e+00 : f32
      %1075 = vector.shape_cast %1074 : vector<8x1xf32> to vector<8x1xf32>
      %1076 = vector.broadcast %1075 : vector<8x1xf32> to vector<8x1024xf32>
      %1077 = vector.broadcast %cst_113 : f32 to vector<8x1024xf32>
      %1078 = arith.select %1073, %1076, %1077 : vector<8x1024xi1>, vector<8x1024xf32>
      %1079 = arith.addf %1059, %1078 : vector<8x1024xf32>
      %1080 = vector.extract_strided_slice %16 {offsets = [0, 106], sizes = [8, 1], strides = [1, 1]} : vector<8x128xi32> to vector<8x1xi32>
      %1081 = vector.broadcast %1080 : vector<8x1xi32> to vector<8x1024xi32>
      %1082 = vector.broadcast %15 : vector<1x1024xi32> to vector<8x1024xi32>
      %1083 = arith.cmpi eq, %1081, %1082 : vector<8x1024xi32>
      %1084 = vector.extract_strided_slice %17 {offsets = [0, 106], sizes = [8, 1], strides = [1, 1]} : vector<8x128xf32> to vector<8x1xf32>
      %cst_114 = arith.constant 0.000000e+00 : f32
      %1085 = vector.shape_cast %1084 : vector<8x1xf32> to vector<8x1xf32>
      %1086 = vector.broadcast %1085 : vector<8x1xf32> to vector<8x1024xf32>
      %1087 = vector.broadcast %cst_114 : f32 to vector<8x1024xf32>
      %1088 = arith.select %1083, %1086, %1087 : vector<8x1024xi1>, vector<8x1024xf32>
      %1089 = arith.addf %1069, %1088 : vector<8x1024xf32>
      %1090 = vector.extract_strided_slice %16 {offsets = [0, 107], sizes = [8, 1], strides = [1, 1]} : vector<8x128xi32> to vector<8x1xi32>
      %1091 = vector.broadcast %1090 : vector<8x1xi32> to vector<8x1024xi32>
      %1092 = vector.broadcast %15 : vector<1x1024xi32> to vector<8x1024xi32>
      %1093 = arith.cmpi eq, %1091, %1092 : vector<8x1024xi32>
      %1094 = vector.extract_strided_slice %17 {offsets = [0, 107], sizes = [8, 1], strides = [1, 1]} : vector<8x128xf32> to vector<8x1xf32>
      %cst_115 = arith.constant 0.000000e+00 : f32
      %1095 = vector.shape_cast %1094 : vector<8x1xf32> to vector<8x1xf32>
      %1096 = vector.broadcast %1095 : vector<8x1xf32> to vector<8x1024xf32>
      %1097 = vector.broadcast %cst_115 : f32 to vector<8x1024xf32>
      %1098 = arith.select %1093, %1096, %1097 : vector<8x1024xi1>, vector<8x1024xf32>
      %1099 = arith.addf %1079, %1098 : vector<8x1024xf32>
      %1100 = vector.extract_strided_slice %16 {offsets = [0, 108], sizes = [8, 1], strides = [1, 1]} : vector<8x128xi32> to vector<8x1xi32>
      %1101 = vector.broadcast %1100 : vector<8x1xi32> to vector<8x1024xi32>
      %1102 = vector.broadcast %15 : vector<1x1024xi32> to vector<8x1024xi32>
      %1103 = arith.cmpi eq, %1101, %1102 : vector<8x1024xi32>
      %1104 = vector.extract_strided_slice %17 {offsets = [0, 108], sizes = [8, 1], strides = [1, 1]} : vector<8x128xf32> to vector<8x1xf32>
      %cst_116 = arith.constant 0.000000e+00 : f32
      %1105 = vector.shape_cast %1104 : vector<8x1xf32> to vector<8x1xf32>
      %1106 = vector.broadcast %1105 : vector<8x1xf32> to vector<8x1024xf32>
      %1107 = vector.broadcast %cst_116 : f32 to vector<8x1024xf32>
      %1108 = arith.select %1103, %1106, %1107 : vector<8x1024xi1>, vector<8x1024xf32>
      %1109 = arith.addf %1089, %1108 : vector<8x1024xf32>
      %1110 = vector.extract_strided_slice %16 {offsets = [0, 109], sizes = [8, 1], strides = [1, 1]} : vector<8x128xi32> to vector<8x1xi32>
      %1111 = vector.broadcast %1110 : vector<8x1xi32> to vector<8x1024xi32>
      %1112 = vector.broadcast %15 : vector<1x1024xi32> to vector<8x1024xi32>
      %1113 = arith.cmpi eq, %1111, %1112 : vector<8x1024xi32>
      %1114 = vector.extract_strided_slice %17 {offsets = [0, 109], sizes = [8, 1], strides = [1, 1]} : vector<8x128xf32> to vector<8x1xf32>
      %cst_117 = arith.constant 0.000000e+00 : f32
      %1115 = vector.shape_cast %1114 : vector<8x1xf32> to vector<8x1xf32>
      %1116 = vector.broadcast %1115 : vector<8x1xf32> to vector<8x1024xf32>
      %1117 = vector.broadcast %cst_117 : f32 to vector<8x1024xf32>
      %1118 = arith.select %1113, %1116, %1117 : vector<8x1024xi1>, vector<8x1024xf32>
      %1119 = arith.addf %1099, %1118 : vector<8x1024xf32>
      %1120 = vector.extract_strided_slice %16 {offsets = [0, 110], sizes = [8, 1], strides = [1, 1]} : vector<8x128xi32> to vector<8x1xi32>
      %1121 = vector.broadcast %1120 : vector<8x1xi32> to vector<8x1024xi32>
      %1122 = vector.broadcast %15 : vector<1x1024xi32> to vector<8x1024xi32>
      %1123 = arith.cmpi eq, %1121, %1122 : vector<8x1024xi32>
      %1124 = vector.extract_strided_slice %17 {offsets = [0, 110], sizes = [8, 1], strides = [1, 1]} : vector<8x128xf32> to vector<8x1xf32>
      %cst_118 = arith.constant 0.000000e+00 : f32
      %1125 = vector.shape_cast %1124 : vector<8x1xf32> to vector<8x1xf32>
      %1126 = vector.broadcast %1125 : vector<8x1xf32> to vector<8x1024xf32>
      %1127 = vector.broadcast %cst_118 : f32 to vector<8x1024xf32>
      %1128 = arith.select %1123, %1126, %1127 : vector<8x1024xi1>, vector<8x1024xf32>
      %1129 = arith.addf %1109, %1128 : vector<8x1024xf32>
      %1130 = vector.extract_strided_slice %16 {offsets = [0, 111], sizes = [8, 1], strides = [1, 1]} : vector<8x128xi32> to vector<8x1xi32>
      %1131 = vector.broadcast %1130 : vector<8x1xi32> to vector<8x1024xi32>
      %1132 = vector.broadcast %15 : vector<1x1024xi32> to vector<8x1024xi32>
      %1133 = arith.cmpi eq, %1131, %1132 : vector<8x1024xi32>
      %1134 = vector.extract_strided_slice %17 {offsets = [0, 111], sizes = [8, 1], strides = [1, 1]} : vector<8x128xf32> to vector<8x1xf32>
      %cst_119 = arith.constant 0.000000e+00 : f32
      %1135 = vector.shape_cast %1134 : vector<8x1xf32> to vector<8x1xf32>
      %1136 = vector.broadcast %1135 : vector<8x1xf32> to vector<8x1024xf32>
      %1137 = vector.broadcast %cst_119 : f32 to vector<8x1024xf32>
      %1138 = arith.select %1133, %1136, %1137 : vector<8x1024xi1>, vector<8x1024xf32>
      %1139 = arith.addf %1119, %1138 : vector<8x1024xf32>
      %1140 = vector.extract_strided_slice %16 {offsets = [0, 112], sizes = [8, 1], strides = [1, 1]} : vector<8x128xi32> to vector<8x1xi32>
      %1141 = vector.broadcast %1140 : vector<8x1xi32> to vector<8x1024xi32>
      %1142 = vector.broadcast %15 : vector<1x1024xi32> to vector<8x1024xi32>
      %1143 = arith.cmpi eq, %1141, %1142 : vector<8x1024xi32>
      %1144 = vector.extract_strided_slice %17 {offsets = [0, 112], sizes = [8, 1], strides = [1, 1]} : vector<8x128xf32> to vector<8x1xf32>
      %cst_120 = arith.constant 0.000000e+00 : f32
      %1145 = vector.shape_cast %1144 : vector<8x1xf32> to vector<8x1xf32>
      %1146 = vector.broadcast %1145 : vector<8x1xf32> to vector<8x1024xf32>
      %1147 = vector.broadcast %cst_120 : f32 to vector<8x1024xf32>
      %1148 = arith.select %1143, %1146, %1147 : vector<8x1024xi1>, vector<8x1024xf32>
      %1149 = arith.addf %1129, %1148 : vector<8x1024xf32>
      %1150 = vector.extract_strided_slice %16 {offsets = [0, 113], sizes = [8, 1], strides = [1, 1]} : vector<8x128xi32> to vector<8x1xi32>
      %1151 = vector.broadcast %1150 : vector<8x1xi32> to vector<8x1024xi32>
      %1152 = vector.broadcast %15 : vector<1x1024xi32> to vector<8x1024xi32>
      %1153 = arith.cmpi eq, %1151, %1152 : vector<8x1024xi32>
      %1154 = vector.extract_strided_slice %17 {offsets = [0, 113], sizes = [8, 1], strides = [1, 1]} : vector<8x128xf32> to vector<8x1xf32>
      %cst_121 = arith.constant 0.000000e+00 : f32
      %1155 = vector.shape_cast %1154 : vector<8x1xf32> to vector<8x1xf32>
      %1156 = vector.broadcast %1155 : vector<8x1xf32> to vector<8x1024xf32>
      %1157 = vector.broadcast %cst_121 : f32 to vector<8x1024xf32>
      %1158 = arith.select %1153, %1156, %1157 : vector<8x1024xi1>, vector<8x1024xf32>
      %1159 = arith.addf %1139, %1158 : vector<8x1024xf32>
      %1160 = vector.extract_strided_slice %16 {offsets = [0, 114], sizes = [8, 1], strides = [1, 1]} : vector<8x128xi32> to vector<8x1xi32>
      %1161 = vector.broadcast %1160 : vector<8x1xi32> to vector<8x1024xi32>
      %1162 = vector.broadcast %15 : vector<1x1024xi32> to vector<8x1024xi32>
      %1163 = arith.cmpi eq, %1161, %1162 : vector<8x1024xi32>
      %1164 = vector.extract_strided_slice %17 {offsets = [0, 114], sizes = [8, 1], strides = [1, 1]} : vector<8x128xf32> to vector<8x1xf32>
      %cst_122 = arith.constant 0.000000e+00 : f32
      %1165 = vector.shape_cast %1164 : vector<8x1xf32> to vector<8x1xf32>
      %1166 = vector.broadcast %1165 : vector<8x1xf32> to vector<8x1024xf32>
      %1167 = vector.broadcast %cst_122 : f32 to vector<8x1024xf32>
      %1168 = arith.select %1163, %1166, %1167 : vector<8x1024xi1>, vector<8x1024xf32>
      %1169 = arith.addf %1149, %1168 : vector<8x1024xf32>
      %1170 = vector.extract_strided_slice %16 {offsets = [0, 115], sizes = [8, 1], strides = [1, 1]} : vector<8x128xi32> to vector<8x1xi32>
      %1171 = vector.broadcast %1170 : vector<8x1xi32> to vector<8x1024xi32>
      %1172 = vector.broadcast %15 : vector<1x1024xi32> to vector<8x1024xi32>
      %1173 = arith.cmpi eq, %1171, %1172 : vector<8x1024xi32>
      %1174 = vector.extract_strided_slice %17 {offsets = [0, 115], sizes = [8, 1], strides = [1, 1]} : vector<8x128xf32> to vector<8x1xf32>
      %cst_123 = arith.constant 0.000000e+00 : f32
      %1175 = vector.shape_cast %1174 : vector<8x1xf32> to vector<8x1xf32>
      %1176 = vector.broadcast %1175 : vector<8x1xf32> to vector<8x1024xf32>
      %1177 = vector.broadcast %cst_123 : f32 to vector<8x1024xf32>
      %1178 = arith.select %1173, %1176, %1177 : vector<8x1024xi1>, vector<8x1024xf32>
      %1179 = arith.addf %1159, %1178 : vector<8x1024xf32>
      %1180 = vector.extract_strided_slice %16 {offsets = [0, 116], sizes = [8, 1], strides = [1, 1]} : vector<8x128xi32> to vector<8x1xi32>
      %1181 = vector.broadcast %1180 : vector<8x1xi32> to vector<8x1024xi32>
      %1182 = vector.broadcast %15 : vector<1x1024xi32> to vector<8x1024xi32>
      %1183 = arith.cmpi eq, %1181, %1182 : vector<8x1024xi32>
      %1184 = vector.extract_strided_slice %17 {offsets = [0, 116], sizes = [8, 1], strides = [1, 1]} : vector<8x128xf32> to vector<8x1xf32>
      %cst_124 = arith.constant 0.000000e+00 : f32
      %1185 = vector.shape_cast %1184 : vector<8x1xf32> to vector<8x1xf32>
      %1186 = vector.broadcast %1185 : vector<8x1xf32> to vector<8x1024xf32>
      %1187 = vector.broadcast %cst_124 : f32 to vector<8x1024xf32>
      %1188 = arith.select %1183, %1186, %1187 : vector<8x1024xi1>, vector<8x1024xf32>
      %1189 = arith.addf %1169, %1188 : vector<8x1024xf32>
      %1190 = vector.extract_strided_slice %16 {offsets = [0, 117], sizes = [8, 1], strides = [1, 1]} : vector<8x128xi32> to vector<8x1xi32>
      %1191 = vector.broadcast %1190 : vector<8x1xi32> to vector<8x1024xi32>
      %1192 = vector.broadcast %15 : vector<1x1024xi32> to vector<8x1024xi32>
      %1193 = arith.cmpi eq, %1191, %1192 : vector<8x1024xi32>
      %1194 = vector.extract_strided_slice %17 {offsets = [0, 117], sizes = [8, 1], strides = [1, 1]} : vector<8x128xf32> to vector<8x1xf32>
      %cst_125 = arith.constant 0.000000e+00 : f32
      %1195 = vector.shape_cast %1194 : vector<8x1xf32> to vector<8x1xf32>
      %1196 = vector.broadcast %1195 : vector<8x1xf32> to vector<8x1024xf32>
      %1197 = vector.broadcast %cst_125 : f32 to vector<8x1024xf32>
      %1198 = arith.select %1193, %1196, %1197 : vector<8x1024xi1>, vector<8x1024xf32>
      %1199 = arith.addf %1179, %1198 : vector<8x1024xf32>
      %1200 = vector.extract_strided_slice %16 {offsets = [0, 118], sizes = [8, 1], strides = [1, 1]} : vector<8x128xi32> to vector<8x1xi32>
      %1201 = vector.broadcast %1200 : vector<8x1xi32> to vector<8x1024xi32>
      %1202 = vector.broadcast %15 : vector<1x1024xi32> to vector<8x1024xi32>
      %1203 = arith.cmpi eq, %1201, %1202 : vector<8x1024xi32>
      %1204 = vector.extract_strided_slice %17 {offsets = [0, 118], sizes = [8, 1], strides = [1, 1]} : vector<8x128xf32> to vector<8x1xf32>
      %cst_126 = arith.constant 0.000000e+00 : f32
      %1205 = vector.shape_cast %1204 : vector<8x1xf32> to vector<8x1xf32>
      %1206 = vector.broadcast %1205 : vector<8x1xf32> to vector<8x1024xf32>
      %1207 = vector.broadcast %cst_126 : f32 to vector<8x1024xf32>
      %1208 = arith.select %1203, %1206, %1207 : vector<8x1024xi1>, vector<8x1024xf32>
      %1209 = arith.addf %1189, %1208 : vector<8x1024xf32>
      %1210 = vector.extract_strided_slice %16 {offsets = [0, 119], sizes = [8, 1], strides = [1, 1]} : vector<8x128xi32> to vector<8x1xi32>
      %1211 = vector.broadcast %1210 : vector<8x1xi32> to vector<8x1024xi32>
      %1212 = vector.broadcast %15 : vector<1x1024xi32> to vector<8x1024xi32>
      %1213 = arith.cmpi eq, %1211, %1212 : vector<8x1024xi32>
      %1214 = vector.extract_strided_slice %17 {offsets = [0, 119], sizes = [8, 1], strides = [1, 1]} : vector<8x128xf32> to vector<8x1xf32>
      %cst_127 = arith.constant 0.000000e+00 : f32
      %1215 = vector.shape_cast %1214 : vector<8x1xf32> to vector<8x1xf32>
      %1216 = vector.broadcast %1215 : vector<8x1xf32> to vector<8x1024xf32>
      %1217 = vector.broadcast %cst_127 : f32 to vector<8x1024xf32>
      %1218 = arith.select %1213, %1216, %1217 : vector<8x1024xi1>, vector<8x1024xf32>
      %1219 = arith.addf %1199, %1218 : vector<8x1024xf32>
      %1220 = vector.extract_strided_slice %16 {offsets = [0, 120], sizes = [8, 1], strides = [1, 1]} : vector<8x128xi32> to vector<8x1xi32>
      %1221 = vector.broadcast %1220 : vector<8x1xi32> to vector<8x1024xi32>
      %1222 = vector.broadcast %15 : vector<1x1024xi32> to vector<8x1024xi32>
      %1223 = arith.cmpi eq, %1221, %1222 : vector<8x1024xi32>
      %1224 = vector.extract_strided_slice %17 {offsets = [0, 120], sizes = [8, 1], strides = [1, 1]} : vector<8x128xf32> to vector<8x1xf32>
      %cst_128 = arith.constant 0.000000e+00 : f32
      %1225 = vector.shape_cast %1224 : vector<8x1xf32> to vector<8x1xf32>
      %1226 = vector.broadcast %1225 : vector<8x1xf32> to vector<8x1024xf32>
      %1227 = vector.broadcast %cst_128 : f32 to vector<8x1024xf32>
      %1228 = arith.select %1223, %1226, %1227 : vector<8x1024xi1>, vector<8x1024xf32>
      %1229 = arith.addf %1209, %1228 : vector<8x1024xf32>
      %1230 = vector.extract_strided_slice %16 {offsets = [0, 121], sizes = [8, 1], strides = [1, 1]} : vector<8x128xi32> to vector<8x1xi32>
      %1231 = vector.broadcast %1230 : vector<8x1xi32> to vector<8x1024xi32>
      %1232 = vector.broadcast %15 : vector<1x1024xi32> to vector<8x1024xi32>
      %1233 = arith.cmpi eq, %1231, %1232 : vector<8x1024xi32>
      %1234 = vector.extract_strided_slice %17 {offsets = [0, 121], sizes = [8, 1], strides = [1, 1]} : vector<8x128xf32> to vector<8x1xf32>
      %cst_129 = arith.constant 0.000000e+00 : f32
      %1235 = vector.shape_cast %1234 : vector<8x1xf32> to vector<8x1xf32>
      %1236 = vector.broadcast %1235 : vector<8x1xf32> to vector<8x1024xf32>
      %1237 = vector.broadcast %cst_129 : f32 to vector<8x1024xf32>
      %1238 = arith.select %1233, %1236, %1237 : vector<8x1024xi1>, vector<8x1024xf32>
      %1239 = arith.addf %1219, %1238 : vector<8x1024xf32>
      %1240 = vector.extract_strided_slice %16 {offsets = [0, 122], sizes = [8, 1], strides = [1, 1]} : vector<8x128xi32> to vector<8x1xi32>
      %1241 = vector.broadcast %1240 : vector<8x1xi32> to vector<8x1024xi32>
      %1242 = vector.broadcast %15 : vector<1x1024xi32> to vector<8x1024xi32>
      %1243 = arith.cmpi eq, %1241, %1242 : vector<8x1024xi32>
      %1244 = vector.extract_strided_slice %17 {offsets = [0, 122], sizes = [8, 1], strides = [1, 1]} : vector<8x128xf32> to vector<8x1xf32>
      %cst_130 = arith.constant 0.000000e+00 : f32
      %1245 = vector.shape_cast %1244 : vector<8x1xf32> to vector<8x1xf32>
      %1246 = vector.broadcast %1245 : vector<8x1xf32> to vector<8x1024xf32>
      %1247 = vector.broadcast %cst_130 : f32 to vector<8x1024xf32>
      %1248 = arith.select %1243, %1246, %1247 : vector<8x1024xi1>, vector<8x1024xf32>
      %1249 = arith.addf %1229, %1248 : vector<8x1024xf32>
      %1250 = vector.extract_strided_slice %16 {offsets = [0, 123], sizes = [8, 1], strides = [1, 1]} : vector<8x128xi32> to vector<8x1xi32>
      %1251 = vector.broadcast %1250 : vector<8x1xi32> to vector<8x1024xi32>
      %1252 = vector.broadcast %15 : vector<1x1024xi32> to vector<8x1024xi32>
      %1253 = arith.cmpi eq, %1251, %1252 : vector<8x1024xi32>
      %1254 = vector.extract_strided_slice %17 {offsets = [0, 123], sizes = [8, 1], strides = [1, 1]} : vector<8x128xf32> to vector<8x1xf32>
      %cst_131 = arith.constant 0.000000e+00 : f32
      %1255 = vector.shape_cast %1254 : vector<8x1xf32> to vector<8x1xf32>
      %1256 = vector.broadcast %1255 : vector<8x1xf32> to vector<8x1024xf32>
      %1257 = vector.broadcast %cst_131 : f32 to vector<8x1024xf32>
      %1258 = arith.select %1253, %1256, %1257 : vector<8x1024xi1>, vector<8x1024xf32>
      %1259 = arith.addf %1239, %1258 : vector<8x1024xf32>
      %1260 = vector.extract_strided_slice %16 {offsets = [0, 124], sizes = [8, 1], strides = [1, 1]} : vector<8x128xi32> to vector<8x1xi32>
      %1261 = vector.broadcast %1260 : vector<8x1xi32> to vector<8x1024xi32>
      %1262 = vector.broadcast %15 : vector<1x1024xi32> to vector<8x1024xi32>
      %1263 = arith.cmpi eq, %1261, %1262 : vector<8x1024xi32>
      %1264 = vector.extract_strided_slice %17 {offsets = [0, 124], sizes = [8, 1], strides = [1, 1]} : vector<8x128xf32> to vector<8x1xf32>
      %cst_132 = arith.constant 0.000000e+00 : f32
      %1265 = vector.shape_cast %1264 : vector<8x1xf32> to vector<8x1xf32>
      %1266 = vector.broadcast %1265 : vector<8x1xf32> to vector<8x1024xf32>
      %1267 = vector.broadcast %cst_132 : f32 to vector<8x1024xf32>
      %1268 = arith.select %1263, %1266, %1267 : vector<8x1024xi1>, vector<8x1024xf32>
      %1269 = arith.addf %1249, %1268 : vector<8x1024xf32>
      %1270 = vector.extract_strided_slice %16 {offsets = [0, 125], sizes = [8, 1], strides = [1, 1]} : vector<8x128xi32> to vector<8x1xi32>
      %1271 = vector.broadcast %1270 : vector<8x1xi32> to vector<8x1024xi32>
      %1272 = vector.broadcast %15 : vector<1x1024xi32> to vector<8x1024xi32>
      %1273 = arith.cmpi eq, %1271, %1272 : vector<8x1024xi32>
      %1274 = vector.extract_strided_slice %17 {offsets = [0, 125], sizes = [8, 1], strides = [1, 1]} : vector<8x128xf32> to vector<8x1xf32>
      %cst_133 = arith.constant 0.000000e+00 : f32
      %1275 = vector.shape_cast %1274 : vector<8x1xf32> to vector<8x1xf32>
      %1276 = vector.broadcast %1275 : vector<8x1xf32> to vector<8x1024xf32>
      %1277 = vector.broadcast %cst_133 : f32 to vector<8x1024xf32>
      %1278 = arith.select %1273, %1276, %1277 : vector<8x1024xi1>, vector<8x1024xf32>
      %1279 = arith.addf %1259, %1278 : vector<8x1024xf32>
      %1280 = vector.extract_strided_slice %16 {offsets = [0, 126], sizes = [8, 1], strides = [1, 1]} : vector<8x128xi32> to vector<8x1xi32>
      %1281 = vector.broadcast %1280 : vector<8x1xi32> to vector<8x1024xi32>
      %1282 = vector.broadcast %15 : vector<1x1024xi32> to vector<8x1024xi32>
      %1283 = arith.cmpi eq, %1281, %1282 : vector<8x1024xi32>
      %1284 = vector.extract_strided_slice %17 {offsets = [0, 126], sizes = [8, 1], strides = [1, 1]} : vector<8x128xf32> to vector<8x1xf32>
      %cst_134 = arith.constant 0.000000e+00 : f32
      %1285 = vector.shape_cast %1284 : vector<8x1xf32> to vector<8x1xf32>
      %1286 = vector.broadcast %1285 : vector<8x1xf32> to vector<8x1024xf32>
      %1287 = vector.broadcast %cst_134 : f32 to vector<8x1024xf32>
      %1288 = arith.select %1283, %1286, %1287 : vector<8x1024xi1>, vector<8x1024xf32>
      %1289 = arith.addf %1269, %1288 : vector<8x1024xf32>
      %1290 = vector.extract_strided_slice %16 {offsets = [0, 127], sizes = [8, 1], strides = [1, 1]} : vector<8x128xi32> to vector<8x1xi32>
      %1291 = vector.broadcast %1290 : vector<8x1xi32> to vector<8x1024xi32>
      %1292 = vector.broadcast %15 : vector<1x1024xi32> to vector<8x1024xi32>
      %1293 = arith.cmpi eq, %1291, %1292 : vector<8x1024xi32>
      %1294 = vector.extract_strided_slice %17 {offsets = [0, 127], sizes = [8, 1], strides = [1, 1]} : vector<8x128xf32> to vector<8x1xf32>
      %cst_135 = arith.constant 0.000000e+00 : f32
      %1295 = vector.shape_cast %1294 : vector<8x1xf32> to vector<8x1xf32>
      %1296 = vector.broadcast %1295 : vector<8x1xf32> to vector<8x1024xf32>
      %1297 = vector.broadcast %cst_135 : f32 to vector<8x1024xf32>
      %1298 = arith.select %1293, %1296, %1297 : vector<8x1024xi1>, vector<8x1024xf32>
      %1299 = arith.addf %1279, %1298 : vector<8x1024xf32>
      %c0_136 = arith.constant 0 : index
      %c0_137 = arith.constant 0 : index
      %1300 = vector.load %arg6[%c0_136, %c0_137] : memref<8x1024xf32, #tpu.memory_space<vmem>>, vector<8x1024xf32>
      %1301 = arith.addf %1289, %1299 : vector<8x1024xf32>
      %1302 = arith.addf %1300, %1301 : vector<8x1024xf32>
      %c0_138 = arith.constant 0 : index
      %c0_139 = arith.constant 0 : index
      %1303 = vector.load %arg6[%c0_138, %c0_139] : memref<8x1024xf32, #tpu.memory_space<vmem>>, vector<8x1024xf32>
      tpu.vector_store %arg6[%c0_138, %c0_139], %1302 {strides = array<i32>} : memref<8x1024xf32, #tpu.memory_space<vmem>>, vector<8x1024xf32>,
    } else {
    }
    return
  }
  func.func @transform_0(%arg0: i32, %arg1: i32, %arg2: i32, %arg3: memref<4xi32, #tpu.memory_space<smem>>) -> (i32, i32) {
    %c0_i32 = arith.constant 0 : i32
    return %arg0, %arg2 : i32, i32
  }
  func.func @transform_1(%arg0: i32, %arg1: i32, %arg2: i32, %arg3: memref<4xi32, #tpu.memory_space<smem>>) -> (i32, i32) {
    %c0_i32 = arith.constant 0 : i32
    return %arg0, %arg2 : i32, i32
  }
  func.func @transform_2(%arg0: i32, %arg1: i32, %arg2: i32, %arg3: memref<4xi32, #tpu.memory_space<smem>>) -> (i32, i32) {
    %c0_i32 = arith.constant 0 : i32
    return %arg0, %arg1 : i32, i32
  }
}

</mosaic_0001>

<llo_original>
// kernel: pointer_generator_distribution.1
$region0: #{pointer_generator_distribution.1}
  #allocation0 [shape = 'u32[]', space=smem, size = 0x4, offset = 0x4, fixed_abs, tag = 'smem constant byte address 0x4 - core index']
  #allocation1 [shape = 'u32[144,128]{1,0:T(1,128)}', space=vmem, size = 0x12000, scoped, tag = 'internal scratch']
  #allocation2 [shape = 's32[1]{0}', space=sflag, size = 0x4, scoped, tag = 'scoped memory for pointer_generator_distribution.1']
  #allocation3 [shape = 'u8[512]{0}', space=smem, size = 0x200, scoped, tag = 'prefetched SMEM operand 0']
  %s0 = inlined_call_operand.vmem [shape: s32[4], index: 0, kind: input, shape index: {}]
  %s1 = inlined_call_operand.vmem [shape: s32[8,256], index: 1, kind: input, shape index: {}]
  %s2 = inlined_call_operand.vmem [shape: f32[8,256], index: 2, kind: input, shape index: {}]
  %s3 = inlined_call_operand.hbm [shape: f32[8,2048], index: 3, kind: output, shape index: {}]
  %s4 = sld [smem:[#allocation0]]
  $region49: #{pointer_generator_distribution.1} parent=0
    _
  %s6 = ssub.s32 1, %s4
  %s7 = scalar_select 0, %s6, %s4
  %s8 = sshll.u32 %s0, 4
  %s9 = int_to_ptr.vmem [resolvable:$true] %s8
  %11 = dma.vmem_to_smem %s9, 16, [#allocation3], [#allocation2]
  %12 = dma.done [#allocation2], 16
  %13 = sfence
  $region1: #{pointer_generator_distribution.1} parent=0
    #allocation4 [shape = 'u8[65536]{0}', space=vmem, size = 0x10000, scoped, tag = 'output window, operand 0']
    #allocation5 [shape = 's32[2]{0}', space=sflag, size = 0x8, scoped, tag = 'scoped memory for pointer_generator_distribution.1']
    %14 = vsyncpa [#allocation5], 0
    %s15 = scalar_lea.sflag [#allocation5], 1
    %16 = vsyncpa %s15, 0
    loop: start=0, step=1, limit=6
    $region2: #{pointer_generator_distribution.1} parent=1 // loop_pre_header
      _
    $region3: #{pointer_generator_distribution.1} parent=1 // loop_header
      %s18 = sphi 0, %s22
      %p19 = scmp.ge.s32.totalorder %s18, 6
      %s25 = sphi 0, %s44
      %s26 = sphi 0, %s40
      %s27 = sphi 0, %s36
      %s28 = sphi 0, %s25
      %s29 = sphi 0, %s26
      %s30 = sphi 0, %s27
      %s31 = sphi 0, %s28
      %s32 = sphi 0, %s29
      %s33 = sphi 0, %s30
      %s49 = sphi 0, %s51
      %s52 = sphi 0, %s49
      %s53 = sphi 0, %s52
      %s69 = sphi 0, %s53
      %s77 = sphi 0, %s79
      %s80 = sphi 0, %s77
      %s81 = sphi 0, %s80
      %s97 = sphi 0, %s81
      %s105 = sphi 0, %s107
      %s108 = sphi 0, %s105
      %s109 = sphi 0, %s108
      %s125 = sphi 0, %s109
    $region4: #{pointer_generator_distribution.1} parent=1 // loop_header_branch
      %21 = sbr.rel (%p19) target = $region8
    $region5: #{pointer_generator_distribution.1} parent=1 // loop_body
      %s23 = ssub.s32 %s18, 1
      %s24 = ssub.s32 %s18, 2
      %s34 = sadd.s32 1, %s27
      %p35 = scmp.ge.s32.totalorder %s34, 2
      %s36 = scalar_select %p35, 0, %s34
      %s37 = sadd.s32 1, %s26
      %s38 = scalar_select %p35, %s37, %s26
      %p39 = scmp.ge.s32.totalorder %s38, 2
      %s40 = scalar_select %p39, 0, %s38
      %s41 = sadd.s32 1, %s25
      %s42 = scalar_select %p39, %s41, %s25
      %p43 = scmp.ge.s32.totalorder %s42, 1
      %s44 = scalar_select %p43, 0, %s42
      %s45 = ssub.s32 %s25, %s44
      %s46 = ssub.s32 %s27, %s36
      %s47 = sor.u32 %s45, %s46
      %p48 = scmp.eq.s32.totalorder %s47, 0
      %s50 = sadd.s32 %s49, 1
      %s51 = scalar_select %p48, %s49, %s50
      %p54 = pneg %p48
      %p55 = scmp.eq.s32.totalorder %s18, 3
      %p56 = por %p54, %p55
      %p57 = scmp.ne.s32.totalorder %s49, %s52
      %p58 = scmp.eq.s32.totalorder %s18, 0
      %p59 = por %p57, %p58
      %p60 = scmp.ne.s32.totalorder %s49, %s52
      %p61 = scmp.eq.s32.totalorder %s23, 3
      %p62 = por %p60, %p61
      %p63 = scmp.ne.s32.totalorder %s52, %s53
      %p64 = scmp.eq.s32.totalorder %s23, 0
      %p65 = por %p63, %p64
      %p66 = scmp.ne.s32.totalorder %s52, %s53
      %p67 = scmp.eq.s32.totalorder %s24, 3
      %p68 = por %p66, %p67
      %p70 = scmp.ne.s32.totalorder %s53, %s69
      %p71 = scmp.eq.s32.totalorder %s24, 0
      %p72 = por %p70, %p71
      %s73 = ssub.s32 %s25, %s44
      %s74 = ssub.s32 %s27, %s36
      %s75 = sor.u32 %s73, %s74
      %p76 = scmp.eq.s32.totalorder %s75, 0
      %s78 = sadd.s32 %s77, 1
      %s79 = scalar_select %p76, %s77, %s78
      %p82 = pneg %p76
      %p83 = scmp.eq.s32.totalorder %s18, 3
      %p84 = por %p82, %p83
      %p85 = scmp.ne.s32.totalorder %s77, %s80
      %p86 = scmp.eq.s32.totalorder %s18, 0
      %p87 = por %p85, %p86
      %p88 = scmp.ne.s32.totalorder %s77, %s80
      %p89 = scmp.eq.s32.totalorder %s23, 3
      %p90 = por %p88, %p89
      %p91 = scmp.ne.s32.totalorder %s80, %s81
      %p92 = scmp.eq.s32.totalorder %s23, 0
      %p93 = por %p91, %p92
      %p94 = scmp.ne.s32.totalorder %s80, %s81
      %p95 = scmp.eq.s32.totalorder %s24, 3
      %p96 = por %p94, %p95
      %p98 = scmp.ne.s32.totalorder %s81, %s97
      %p99 = scmp.eq.s32.totalorder %s24, 0
      %p100 = por %p98, %p99
      %s101 = ssub.s32 %s25, %s44
      %s102 = ssub.s32 %s26, %s40
      %s103 = sor.u32 %s101, %s102
      %p104 = scmp.eq.s32.totalorder %s103, 0
      %s106 = sadd.s32 %s105, 1
      %s107 = scalar_select %p104, %s105, %s106
      %p110 = pneg %p104
      %p111 = scmp.eq.s32.totalorder %s18, 3
      %p112 = por %p110, %p111
      %p113 = scmp.ne.s32.totalorder %s105, %s108
      %p114 = scmp.eq.s32.totalorder %s18, 0
      %p115 = por %p113, %p114
      %p116 = scmp.ne.s32.totalorder %s105, %s108
      %p117 = scmp.eq.s32.totalorder %s23, 3
      %p118 = por %p116, %p117
      %p119 = scmp.ne.s32.totalorder %s108, %s109
      %p120 = scmp.eq.s32.totalorder %s23, 0
      %p121 = por %p119, %p120
      %p122 = scmp.ne.s32.totalorder %s108, %s109
      %p123 = scmp.eq.s32.totalorder %s24, 3
      %p124 = por %p122, %p123
      %p126 = scmp.ne.s32.totalorder %s109, %s125
      %p127 = scmp.eq.s32.totalorder %s24, 0
      %p128 = por %p126, %p127
      %p129 = scmp.le.s32.totalorder 1, %s18
      %p130 = scmp.lt.s32.totalorder %s18, 5
      %p131 = pnand %p129, %p130
      %p132 = pneg %p131
      // Predicated region
      $region9: #{pointer_generator_distribution.1} parent=5 // pred_check
        _
      $region10: #{pointer_generator_distribution.1} parent=5 // pred_check_branch
        %134 = sbr.rel (%p131) target = $region12
      $region11: #{pointer_generator_distribution.1} parent=5 // pred_region
        %s135 = ssub.s32 %s18, 1
      $region12: #{pointer_generator_distribution.1} parent=5 // pred_fallthru
        _
      %p136 = scmp.lt.s32.totalorder %s18, 4
      // Predicated region
      $region13: #{pointer_generator_distribution.1} parent=5 // pred_check
        %p137 = pneg %p136
      $region14: #{pointer_generator_distribution.1} parent=5 // pred_check_branch
        %139 = sbr.rel (%p137) target = $region16
      $region15: #{pointer_generator_distribution.1} parent=5 // pred_region
        // Predicated region
        $region17: #{pointer_generator_distribution.1} parent=15 // pred_check
          %p140 = pneg %p59
        $region18: #{pointer_generator_distribution.1} parent=15 // pred_check_branch
          %142 = sbr.rel (%p140) target = $region20
        $region19: #{pointer_generator_distribution.1} parent=15 // pred_region
          %p143 = scmp.lt.s32.totalorder %s25, 0
          %s144 = scalar_select %p143, %s25, 0
          %p145 = scmp.lt.s32.totalorder %s27, 1
          %s146 = scalar_select %p145, %s27, 1
          %s147 = smul.addr %s144, 2
          %s148 = sadd.s32 %s146, %s147
          %s149 = smul.addr %s148, 8
          %s150 = scalar_lea.vmem %s1, %s149
        $region20: #{pointer_generator_distribution.1} parent=15 // pred_fallthru
          _
        // Predicated region
        $region21: #{pointer_generator_distribution.1} parent=15 // pred_check
          %p151 = pneg %p87
        $region22: #{pointer_generator_distribution.1} parent=15 // pred_check_branch
          %153 = sbr.rel (%p151) target = $region24
        $region23: #{pointer_generator_distribution.1} parent=15 // pred_region
          %p154 = scmp.lt.s32.totalorder %s25, 0
          %s155 = scalar_select %p154, %s25, 0
          %p156 = scmp.lt.s32.totalorder %s27, 1
          %s157 = scalar_select %p156, %s27, 1
          %s158 = smul.addr %s155, 2
          %s159 = sadd.s32 %s157, %s158
          %s160 = smul.addr %s159, 8
          %s161 = scalar_lea.vmem %s2, %s160
        $region24: #{pointer_generator_distribution.1} parent=15 // pred_fallthru
          _
      $region16: #{pointer_generator_distribution.1} parent=5 // pred_fallthru
        _
      %p162 = scmp.le.s32.totalorder 1, %s18
      %p163 = scmp.lt.s32.totalorder %s18, 5
      %p164 = pnand %p162, %p163
      %p165 = pneg %p164
      // Predicated region
      $region25: #{pointer_generator_distribution.1} parent=5 // pred_check
        _
      $region26: #{pointer_generator_distribution.1} parent=5 // pred_check_branch
        %167 = sbr.rel (%p164) target = $region28
      $region27: #{pointer_generator_distribution.1} parent=5 // pred_region
        %s168 = ssub.s32 %s18, 1
        %p169 = scmp.lt.s32.totalorder %s28, 0
        %s170 = scalar_select %p169, %s28, 0
        %p171 = scmp.lt.s32.totalorder %s30, 1
        %s172 = scalar_select %p171, %s30, 1
        %s173 = smul.addr %s170, 2
        %s174 = sadd.s32 %s172, %s173
        %s175 = smul.addr %s174, 8
        %s176 = scalar_lea.vmem %s1, %s175
        %p177 = pneg %p65
        %p178 = pneg %p62
        %p179 = scmp.lt.s32.totalorder %s28, 0
        %s180 = scalar_select %p179, %s28, 0
        %p181 = scmp.lt.s32.totalorder %s30, 1
        %s182 = scalar_select %p181, %s30, 1
        %s183 = smul.addr %s180, 2
        %s184 = sadd.s32 %s182, %s183
        %s185 = smul.addr %s184, 8
        %s186 = scalar_lea.vmem %s2, %s185
        %p187 = pneg %p93
        %p188 = pneg %p90
        %p189 = pneg %p121
        %p190 = pneg %p118
        %s191 = sand.u32 %s108, 1
        %s192 = scalar_lea.sflag [#allocation5], %s191
        %s193 = sand.u32 %s108, 1
        %s194 = smul.addr %s193, 64
        %s195 = scalar_lea.vmem [#allocation4], %s194
        %p196 = scmp.lt.s32.totalorder %s28, 0
        %s197 = scalar_select %p196, %s28, 0
        %p198 = scmp.lt.s32.totalorder %s30, 1
        %s199 = scalar_select %p198, %s30, 1
        %s200 = smul.addr %s197, 2
        %s201 = sadd.s32 %s199, %s200
        %s202 = smul.addr %s201, 8
        %s203 = scalar_lea.vmem %s1, %s202
        %p204 = scmp.lt.s32.totalorder %s28, 0
        %s205 = scalar_select %p204, %s28, 0
        %p206 = scmp.lt.s32.totalorder %s30, 1
        %s207 = scalar_select %p206, %s30, 1
        %s208 = smul.addr %s205, 2
        %s209 = sadd.s32 %s207, %s208
        %s210 = smul.addr %s209, 8
        %s211 = scalar_lea.vmem %s2, %s210
        %s212 = smul.u32 8, %s29
        %p213 = scmp.eq.s32.totalorder %s30, 0
        // Predicated region
        $region29: #{pointer_generator_distribution.1} parent=27 // pred_check
          %p214 = pneg %p213
        $region30: #{pointer_generator_distribution.1} parent=27 // pred_check_branch
          %216 = sbr.rel (%p214) target = $region32
        $region31: #{pointer_generator_distribution.1} parent=27 // pred_region
          %217 = vst [vmem:[%s195] sm:$0xff] 0.0
          %218 = vst [vmem:[%s195 + $0x8] sm:$0xff] 0.0
          %219 = vst [vmem:[%s195 + $0x10] sm:$0xff] 0.0
          %220 = vst [vmem:[%s195 + $0x18] sm:$0xff] 0.0
          %221 = vst [vmem:[%s195 + $0x20] sm:$0xff] 0.0
          %222 = vst [vmem:[%s195 + $0x28] sm:$0xff] 0.0
          %223 = vst [vmem:[%s195 + $0x30] sm:$0xff] 0.0
          %224 = vst [vmem:[%s195 + $0x38] sm:$0xff] 0.0
        $region32: #{pointer_generator_distribution.1} parent=27 // pred_fallthru
          _
        %s225 = smul.u32 %s28, 2
        %s226 = sadd.s32 %s225, %s29
        %s227 = smul.u32 %s226, 2
        %s228 = sadd.s32 %s227, %s30
        %s229 = sld [smem:[#allocation3 + %s228]]
        %p230 = scmp.ne.s32.totalorder %s229, 0
        // Predicated region
        $region33: #{pointer_generator_distribution.1} parent=27 // pred_check
          %p231 = pneg %p230
        $region34: #{pointer_generator_distribution.1} parent=27 // pred_check_branch
          %233 = sbr.rel (%p231) target = $region36
        $region35: #{pointer_generator_distribution.1} parent=27 // pred_region
          %s234 = smul.u32 %s29, 1024
          %v235 = vlaneseq
          %v236 = vand.u32 %v235, 127
          %v237 = vadd.s32 %v236, 128
          %v238 = vadd.s32 %v236, 256
          %v239 = vadd.s32 %v236, 384
          %v240 = vadd.s32 %v236, 512
          %v241 = vadd.s32 %v236, 640
          %v242 = vadd.s32 %v236, 768
          %v243 = vadd.s32 %v236, 896
          %v244 = vstv %s234
          %v245 = vadd.s32 %v244, %v236
          %v246 = vadd.s32 %v244, %v237
          %v247 = vadd.s32 %v244, %v238
          %v248 = vadd.s32 %v244, %v239
          %v249 = vadd.s32 %v244, %v240
          %v250 = vadd.s32 %v244, %v241
          %v251 = vadd.s32 %v244, %v242
          %v252 = vadd.s32 %v244, %v243
          %v253 = vld [vmem:[%s203] sm:$0xff]
          %v254 = vld [vmem:[%s211] sm:$0xff]
          %255 = vset.pattern.permute.xlu0 0
          %256 = vperm.xlu0 %255, %v253
          %v257 = vpop.permute.xlu0 %256
          %vm258 = vcmp.eq.s32.totalorder %v257, %v245
          %vm259 = vcmp.eq.s32.totalorder %v257, %v246
          %vm260 = vcmp.eq.s32.totalorder %v257, %v247
          %vm261 = vcmp.eq.s32.totalorder %v257, %v248
          %vm262 = vcmp.eq.s32.totalorder %v257, %v249
          %vm263 = vcmp.eq.s32.totalorder %v257, %v250
          %vm264 = vcmp.eq.s32.totalorder %v257, %v251
          %vm265 = vcmp.eq.s32.totalorder %v257, %v252
          %267 = vset.pattern.permute.xlu0 0
          %268 = vperm.xlu0 %267, %v254
          %v269 = vpop.permute.xlu0 %268
          %v271 = vsel %vm258, %v269, 0.0
          %v272 = vsel %vm259, %v269, 0.0
          %v273 = vsel %vm260, %v269, 0.0
          %v274 = vsel %vm261, %v269, 0.0
          %v275 = vsel %vm262, %v269, 0.0
          %v276 = vsel %vm263, %v269, 0.0
          %v277 = vsel %vm264, %v269, 0.0
          %v278 = vsel %vm265, %v269, 0.0
          %v279 = vadd.f32 %v271, 0.0
          %v280 = vadd.f32 %v272, 0.0
          %v281 = vadd.f32 %v273, 0.0
          %v282 = vadd.f32 %v274, 0.0
          %v283 = vadd.f32 %v275, 0.0
          %v284 = vadd.f32 %v276, 0.0
          %v285 = vadd.f32 %v277, 0.0
          %v286 = vadd.f32 %v278, 0.0
          %287 = vset.pattern.permute.xlu0 1
          %288 = vperm.xlu0 %287, %v253
          %v289 = vpop.permute.xlu0 %288
          %vm290 = vcmp.eq.s32.totalorder %v289, %v245
          %vm291 = vcmp.eq.s32.totalorder %v289, %v246
          %vm292 = vcmp.eq.s32.totalorder %v289, %v247
          %vm293 = vcmp.eq.s32.totalorder %v289, %v248
          %vm294 = vcmp.eq.s32.totalorder %v289, %v249
          %vm295 = vcmp.eq.s32.totalorder %v289, %v250
          %vm296 = vcmp.eq.s32.totalorder %v289, %v251
          %vm297 = vcmp.eq.s32.totalorder %v289, %v252
          %298 = vset.pattern.permute.xlu0 1
          %299 = vperm.xlu0 %298, %v254
          %v300 = vpop.permute.xlu0 %299
          %v302 = vsel %vm290, %v300, 0.0
          %v303 = vsel %vm291, %v300, 0.0
          %v304 = vsel %vm292, %v300, 0.0
          %v305 = vsel %vm293, %v300, 0.0
          %v306 = vsel %vm294, %v300, 0.0
          %v307 = vsel %vm295, %v300, 0.0
          %v308 = vsel %vm296, %v300, 0.0
          %v309 = vsel %vm297, %v300, 0.0
          %v310 = vadd.f32 %v302, 0.0
          %v311 = vadd.f32 %v303, 0.0
          %v312 = vadd.f32 %v304, 0.0
          %v313 = vadd.f32 %v305, 0.0
          %v314 = vadd.f32 %v306, 0.0
          %v315 = vadd.f32 %v307, 0.0
          %v316 = vadd.f32 %v308, 0.0
          %v317 = vadd.f32 %v309, 0.0
          %318 = vset.pattern.permute.xlu0 2
          %319 = vperm.xlu0 %318, %v253
          %v320 = vpop.permute.xlu0 %319
          %vm321 = vcmp.eq.s32.totalorder %v320, %v245
          %vm322 = vcmp.eq.s32.totalorder %v320, %v246
          %vm323 = vcmp.eq.s32.totalorder %v320, %v247
          %vm324 = vcmp.eq.s32.totalorder %v320, %v248
          %vm325 = vcmp.eq.s32.totalorder %v320, %v249
          %vm326 = vcmp.eq.s32.totalorder %v320, %v250
          %vm327 = vcmp.eq.s32.totalorder %v320, %v251
          %vm328 = vcmp.eq.s32.totalorder %v320, %v252
          %329 = vset.pattern.permute.xlu0 2
          %330 = vperm.xlu0 %329, %v254
          %v331 = vpop.permute.xlu0 %330
          %v333 = vsel %vm321, %v331, 0.0
          %v334 = vsel %vm322, %v331, 0.0
          %v335 = vsel %vm323, %v331, 0.0
          %v336 = vsel %vm324, %v331, 0.0
          %v337 = vsel %vm325, %v331, 0.0
          %v338 = vsel %vm326, %v331, 0.0
          %v339 = vsel %vm327, %v331, 0.0
          %v340 = vsel %vm328, %v331, 0.0
          %v341 = vadd.f32 %v279, %v333
          %v342 = vadd.f32 %v280, %v334
          %v343 = vadd.f32 %v281, %v335
          %v344 = vadd.f32 %v282, %v336
          %v345 = vadd.f32 %v283, %v337
          %v346 = vadd.f32 %v284, %v338
          %v347 = vadd.f32 %v285, %v339
          %v348 = vadd.f32 %v286, %v340
          %349 = vset.pattern.permute.xlu0 3
          %350 = vperm.xlu0 %349, %v253
          %v351 = vpop.permute.xlu0 %350
          %vm352 = vcmp.eq.s32.totalorder %v351, %v245
          %vm353 = vcmp.eq.s32.totalorder %v351, %v246
          %vm354 = vcmp.eq.s32.totalorder %v351, %v247
          %vm355 = vcmp.eq.s32.totalorder %v351, %v248
          %vm356 = vcmp.eq.s32.totalorder %v351, %v249
          %vm357 = vcmp.eq.s32.totalorder %v351, %v250
          %vm358 = vcmp.eq.s32.totalorder %v351, %v251
          %vm359 = vcmp.eq.s32.totalorder %v351, %v252
          %360 = vset.pattern.permute.xlu0 3
          %361 = vperm.xlu0 %360, %v254
          %v362 = vpop.permute.xlu0 %361
          %v364 = vsel %vm352, %v362, 0.0
          %v365 = vsel %vm353, %v362, 0.0
          %v366 = vsel %vm354, %v362, 0.0
          %v367 = vsel %vm355, %v362, 0.0
          %v368 = vsel %vm356, %v362, 0.0
          %v369 = vsel %vm357, %v362, 0.0
          %v370 = vsel %vm358, %v362, 0.0
          %v371 = vsel %vm359, %v362, 0.0
          %v372 = vadd.f32 %v310, %v364
          %v373 = vadd.f32 %v311, %v365
          %v374 = vadd.f32 %v312, %v366
          %v375 = vadd.f32 %v313, %v367
          %v376 = vadd.f32 %v314, %v368
          %v377 = vadd.f32 %v315, %v369
          %v378 = vadd.f32 %v316, %v370
          %v379 = vadd.f32 %v317, %v371
          %380 = vset.pattern.permute.xlu0 4
          %381 = vperm.xlu0 %380, %v253
          %v382 = vpop.permute.xlu0 %381
          %vm383 = vcmp.eq.s32.totalorder %v382, %v245
          %vm384 = vcmp.eq.s32.totalorder %v382, %v246
          %vm385 = vcmp.eq.s32.totalorder %v382, %v247
          %vm386 = vcmp.eq.s32.totalorder %v382, %v248
          %vm387 = vcmp.eq.s32.totalorder %v382, %v249
          %vm388 = vcmp.eq.s32.totalorder %v382, %v250
          %vm389 = vcmp.eq.s32.totalorder %v382, %v251
          %vm390 = vcmp.eq.s32.totalorder %v382, %v252
          %391 = vset.pattern.permute.xlu0 4
          %392 = vperm.xlu0 %391, %v254
          %v393 = vpop.permute.xlu0 %392
          %v395 = vsel %vm383, %v393, 0.0
          %v396 = vsel %vm384, %v393, 0.0
          %v397 = vsel %vm385, %v393, 0.0
          %v398 = vsel %vm386, %v393, 0.0
          %v399 = vsel %vm387, %v393, 0.0
          %v400 = vsel %vm388, %v393, 0.0
          %v401 = vsel %vm389, %v393, 0.0
          %v402 = vsel %vm390, %v393, 0.0
          %v403 = vadd.f32 %v341, %v395
          %v404 = vadd.f32 %v342, %v396
          %v405 = vadd.f32 %v343, %v397
          %v406 = vadd.f32 %v344, %v398
          %v407 = vadd.f32 %v345, %v399
          %v408 = vadd.f32 %v346, %v400
          %v409 = vadd.f32 %v347, %v401
          %v410 = vadd.f32 %v348, %v402
          %411 = vset.pattern.permute.xlu0 5
          %412 = vperm.xlu0 %411, %v253
          %v413 = vpop.permute.xlu0 %412
          %vm414 = vcmp.eq.s32.totalorder %v413, %v245
          %vm415 = vcmp.eq.s32.totalorder %v413, %v246
          %vm416 = vcmp.eq.s32.totalorder %v413, %v247
          %vm417 = vcmp.eq.s32.totalorder %v413, %v248
          %vm418 = vcmp.eq.s32.totalorder %v413, %v249
          %vm419 = vcmp.eq.s32.totalorder %v413, %v250
          %vm420 = vcmp.eq.s32.totalorder %v413, %v251
          %vm421 = vcmp.eq.s32.totalorder %v413, %v252
          %422 = vset.pattern.permute.xlu0 5
          %423 = vperm.xlu0 %422, %v254
          %v424 = vpop.permute.xlu0 %423
          %v426 = vsel %vm414, %v424, 0.0
          %v427 = vsel %vm415, %v424, 0.0
          %v428 = vsel %vm416, %v424, 0.0
          %v429 = vsel %vm417, %v424, 0.0
          %v430 = vsel %vm418, %v424, 0.0
          %v431 = vsel %vm419, %v424, 0.0
          %v432 = vsel %vm420, %v424, 0.0
          %v433 = vsel %vm421, %v424, 0.0
          %v434 = vadd.f32 %v372, %v426
          %v435 = vadd.f32 %v373, %v427
          %v436 = vadd.f32 %v374, %v428
          %v437 = vadd.f32 %v375, %v429
          %v438 = vadd.f32 %v376, %v430
          %v439 = vadd.f32 %v377, %v431
          %v440 = vadd.f32 %v378, %v432
          %v441 = vadd.f32 %v379, %v433
          %442 = vset.pattern.permute.xlu0 6
          %443 = vperm.xlu0 %442, %v253
          %v444 = vpop.permute.xlu0 %443
          %vm445 = vcmp.eq.s32.totalorder %v444, %v245
          %vm446 = vcmp.eq.s32.totalorder %v444, %v246
          %vm447 = vcmp.eq.s32.totalorder %v444, %v247
          %vm448 = vcmp.eq.s32.totalorder %v444, %v248
          %vm449 = vcmp.eq.s32.totalorder %v444, %v249
          %vm450 = vcmp.eq.s32.totalorder %v444, %v250
          %vm451 = vcmp.eq.s32.totalorder %v444, %v251
          %vm452 = vcmp.eq.s32.totalorder %v444, %v252
          %453 = vset.pattern.permute.xlu0 6
          %454 = vperm.xlu0 %453, %v254
          %v455 = vpop.permute.xlu0 %454
          %v457 = vsel %vm445, %v455, 0.0
          %v458 = vsel %vm446, %v455, 0.0
          %v459 = vsel %vm447, %v455, 0.0
          %v460 = vsel %vm448, %v455, 0.0
          %v461 = vsel %vm449, %v455, 0.0
          %v462 = vsel %vm450, %v455, 0.0
          %v463 = vsel %vm451, %v455, 0.0
          %v464 = vsel %vm452, %v455, 0.0
          %v465 = vadd.f32 %v403, %v457
          %v466 = vadd.f32 %v404, %v458
          %v467 = vadd.f32 %v405, %v459
          %v468 = vadd.f32 %v406, %v460
          %v469 = vadd.f32 %v407, %v461
          %v470 = vadd.f32 %v408, %v462
          %v471 = vadd.f32 %v409, %v463
          %v472 = vadd.f32 %v410, %v464
          %473 = vset.pattern.permute.xlu0 7
          %474 = vperm.xlu0 %473, %v253
          %v475 = vpop.permute.xlu0 %474
          %vm476 = vcmp.eq.s32.totalorder %v475, %v245
          %vm477 = vcmp.eq.s32.totalorder %v475, %v246
          %vm478 = vcmp.eq.s32.totalorder %v475, %v247
          %vm479 = vcmp.eq.s32.totalorder %v475, %v248
          %vm480 = vcmp.eq.s32.totalorder %v475, %v249
          %vm481 = vcmp.eq.s32.totalorder %v475, %v250
          %vm482 = vcmp.eq.s32.totalorder %v475, %v251
          %vm483 = vcmp.eq.s32.totalorder %v475, %v252
          %484 = vset.pattern.permute.xlu0 7
          %485 = vperm.xlu0 %484, %v254
          %v486 = vpop.permute.xlu0 %485
          %v488 = vsel %vm476, %v486, 0.0
          %v489 = vsel %vm477, %v486, 0.0
          %v490 = vsel %vm478, %v486, 0.0
          %v491 = vsel %vm479, %v486, 0.0
          %v492 = vsel %vm480, %v486, 0.0
          %v493 = vsel %vm481, %v486, 0.0
          %v494 = vsel %vm482, %v486, 0.0
          %v495 = vsel %vm483, %v486, 0.0
          %v496 = vadd.f32 %v434, %v488
          %v497 = vadd.f32 %v435, %v489
          %v498 = vadd.f32 %v436, %v490
          %v499 = vadd.f32 %v437, %v491
          %v500 = vadd.f32 %v438, %v492
          %v501 = vadd.f32 %v439, %v493
          %v502 = vadd.f32 %v440, %v494
          %v503 = vadd.f32 %v441, %v495
          %504 = vset.pattern.permute.xlu0 8
          %505 = vperm.xlu0 %504, %v253
          %v506 = vpop.permute.xlu0 %505
          %vm507 = vcmp.eq.s32.totalorder %v506, %v245
          %vm508 = vcmp.eq.s32.totalorder %v506, %v246
          %vm509 = vcmp.eq.s32.totalorder %v506, %v247
          %vm510 = vcmp.eq.s32.totalorder %v506, %v248
          %vm511 = vcmp.eq.s32.totalorder %v506, %v249
          %vm512 = vcmp.eq.s32.totalorder %v506, %v250
          %vm513 = vcmp.eq.s32.totalorder %v506, %v251
          %vm514 = vcmp.eq.s32.totalorder %v506, %v252
          %515 = vset.pattern.permute.xlu0 8
          %516 = vperm.xlu0 %515, %v254
          %v517 = vpop.permute.xlu0 %516
          %v519 = vsel %vm507, %v517, 0.0
          %v520 = vsel %vm508, %v517, 0.0
          %v521 = vsel %vm509, %v517, 0.0
          %v522 = vsel %vm510, %v517, 0.0
          %v523 = vsel %vm511, %v517, 0.0
          %v524 = vsel %vm512, %v517, 0.0
          %v525 = vsel %vm513, %v517, 0.0
          %v526 = vsel %vm514, %v517, 0.0
          %v527 = vadd.f32 %v465, %v519
          %v528 = vadd.f32 %v466, %v520
          %v529 = vadd.f32 %v467, %v521
          %v530 = vadd.f32 %v468, %v522
          %v531 = vadd.f32 %v469, %v523
          %v532 = vadd.f32 %v470, %v524
          %v533 = vadd.f32 %v471, %v525
          %v534 = vadd.f32 %v472, %v526
          %535 = vset.pattern.permute.xlu0 9
          %536 = vperm.xlu0 %535, %v253
          %v537 = vpop.permute.xlu0 %536
          %vm538 = vcmp.eq.s32.totalorder %v537, %v245
          %vm539 = vcmp.eq.s32.totalorder %v537, %v246
          %vm540 = vcmp.eq.s32.totalorder %v537, %v247
          %vm541 = vcmp.eq.s32.totalorder %v537, %v248
          %vm542 = vcmp.eq.s32.totalorder %v537, %v249
          %vm543 = vcmp.eq.s32.totalorder %v537, %v250
          %vm544 = vcmp.eq.s32.totalorder %v537, %v251
          %vm545 = vcmp.eq.s32.totalorder %v537, %v252
          %546 = vset.pattern.permute.xlu0 9
          %547 = vperm.xlu0 %546, %v254
          %v548 = vpop.permute.xlu0 %547
          %v550 = vsel %vm538, %v548, 0.0
          %v551 = vsel %vm539, %v548, 0.0
          %v552 = vsel %vm540, %v548, 0.0
          %v553 = vsel %vm541, %v548, 0.0
          %v554 = vsel %vm542, %v548, 0.0
          %v555 = vsel %vm543, %v548, 0.0
          %v556 = vsel %vm544, %v548, 0.0
          %v557 = vsel %vm545, %v548, 0.0
          %v558 = vadd.f32 %v496, %v550
          %v559 = vadd.f32 %v497, %v551
          %v560 = vadd.f32 %v498, %v552
          %v561 = vadd.f32 %v499, %v553
          %v562 = vadd.f32 %v500, %v554
          %v563 = vadd.f32 %v501, %v555
          %v564 = vadd.f32 %v502, %v556
          %v565 = vadd.f32 %v503, %v557
          %566 = vset.pattern.permute.xlu0 10
          %567 = vperm.xlu0 %566, %v253
          %v568 = vpop.permute.xlu0 %567
          %vm569 = vcmp.eq.s32.totalorder %v568, %v245
          %vm570 = vcmp.eq.s32.totalorder %v568, %v246
          %vm571 = vcmp.eq.s32.totalorder %v568, %v247
          %vm572 = vcmp.eq.s32.totalorder %v568, %v248
          %vm573 = vcmp.eq.s32.totalorder %v568, %v249
          %vm574 = vcmp.eq.s32.totalorder %v568, %v250
          %vm575 = vcmp.eq.s32.totalorder %v568, %v251
          %vm576 = vcmp.eq.s32.totalorder %v568, %v252
          %577 = vset.pattern.permute.xlu0 10
          %578 = vperm.xlu0 %577, %v254
          %v579 = vpop.permute.xlu0 %578
          %v581 = vsel %vm569, %v579, 0.0
          %v582 = vsel %vm570, %v579, 0.0
          %v583 = vsel %vm571, %v579, 0.0
          %v584 = vsel %vm572, %v579, 0.0
          %v585 = vsel %vm573, %v579, 0.0
          %v586 = vsel %vm574, %v579, 0.0
          %v587 = vsel %vm575, %v579, 0.0
          %v588 = vsel %vm576, %v579, 0.0
          %v589 = vadd.f32 %v527, %v581
          %v590 = vadd.f32 %v528, %v582
          %v591 = vadd.f32 %v529, %v583
          %v592 = vadd.f32 %v530, %v584
          %v593 = vadd.f32 %v531, %v585
          %v594 = vadd.f32 %v532, %v586
          %v595 = vadd.f32 %v533, %v587
          %v596 = vadd.f32 %v534, %v588
          %597 = vset.pattern.permute.xlu0 11
          %598 = vperm.xlu0 %597, %v253
          %v599 = vpop.permute.xlu0 %598
          %vm600 = vcmp.eq.s32.totalorder %v599, %v245
          %vm601 = vcmp.eq.s32.totalorder %v599, %v246
          %vm602 = vcmp.eq.s32.totalorder %v599, %v247
          %vm603 = vcmp.eq.s32.totalorder %v599, %v248
          %vm604 = vcmp.eq.s32.totalorder %v599, %v249
          %vm605 = vcmp.eq.s32.totalorder %v599, %v250
          %vm606 = vcmp.eq.s32.totalorder %v599, %v251
          %vm607 = vcmp.eq.s32.totalorder %v599, %v252
          %608 = vset.pattern.permute.xlu0 11
          %609 = vperm.xlu0 %608, %v254
          %v610 = vpop.permute.xlu0 %609
          %v612 = vsel %vm600, %v610, 0.0
          %v613 = vsel %vm601, %v610, 0.0
          %v614 = vsel %vm602, %v610, 0.0
          %v615 = vsel %vm603, %v610, 0.0
          %v616 = vsel %vm604, %v610, 0.0
          %v617 = vsel %vm605, %v610, 0.0
          %v618 = vsel %vm606, %v610, 0.0
          %v619 = vsel %vm607, %v610, 0.0
          %v620 = vadd.f32 %v558, %v612
          %v621 = vadd.f32 %v559, %v613
          %v622 = vadd.f32 %v560, %v614
          %v623 = vadd.f32 %v561, %v615
          %v624 = vadd.f32 %v562, %v616
          %v625 = vadd.f32 %v563, %v617
          %v626 = vadd.f32 %v564, %v618
          %v627 = vadd.f32 %v565, %v619
          %628 = vset.pattern.permute.xlu0 12
          %629 = vperm.xlu0 %628, %v253
          %v630 = vpop.permute.xlu0 %629
          %vm631 = vcmp.eq.s32.totalorder %v630, %v245
          %vm632 = vcmp.eq.s32.totalorder %v630, %v246
          %vm633 = vcmp.eq.s32.totalorder %v630, %v247
          %vm634 = vcmp.eq.s32.totalorder %v630, %v248
          %vm635 = vcmp.eq.s32.totalorder %v630, %v249
          %vm636 = vcmp.eq.s32.totalorder %v630, %v250
          %vm637 = vcmp.eq.s32.totalorder %v630, %v251
          %vm638 = vcmp.eq.s32.totalorder %v630, %v252
          %639 = vset.pattern.permute.xlu0 12
          %640 = vperm.xlu0 %639, %v254
          %v641 = vpop.permute.xlu0 %640
          %v643 = vsel %vm631, %v641, 0.0
          %v644 = vsel %vm632, %v641, 0.0
          %v645 = vsel %vm633, %v641, 0.0
          %v646 = vsel %vm634, %v641, 0.0
          %v647 = vsel %vm635, %v641, 0.0
          %v648 = vsel %vm636, %v641, 0.0
          %v649 = vsel %vm637, %v641, 0.0
          %v650 = vsel %vm638, %v641, 0.0
          %v651 = vadd.f32 %v589, %v643
          %v652 = vadd.f32 %v590, %v644
          %v653 = vadd.f32 %v591, %v645
          %v654 = vadd.f32 %v592, %v646
          %v655 = vadd.f32 %v593, %v647
          %v656 = vadd.f32 %v594, %v648
          %v657 = vadd.f32 %v595, %v649
          %v658 = vadd.f32 %v596, %v650
          %659 = vset.pattern.permute.xlu0 13
          %660 = vperm.xlu0 %659, %v253
          %v661 = vpop.permute.xlu0 %660
          %vm662 = vcmp.eq.s32.totalorder %v661, %v245
          %vm663 = vcmp.eq.s32.totalorder %v661, %v246
          %vm664 = vcmp.eq.s32.totalorder %v661, %v247
          %vm665 = vcmp.eq.s32.totalorder %v661, %v248
          %vm666 = vcmp.eq.s32.totalorder %v661, %v249
          %vm667 = vcmp.eq.s32.totalorder %v661, %v250
          %vm668 = vcmp.eq.s32.totalorder %v661, %v251
          %vm669 = vcmp.eq.s32.totalorder %v661, %v252
          %670 = vset.pattern.permute.xlu0 13
          %671 = vperm.xlu0 %670, %v254
          %v672 = vpop.permute.xlu0 %671
          %v674 = vsel %vm662, %v672, 0.0
          %v675 = vsel %vm663, %v672, 0.0
          %v676 = vsel %vm664, %v672, 0.0
          %v677 = vsel %vm665, %v672, 0.0
          %v678 = vsel %vm666, %v672, 0.0
          %v679 = vsel %vm667, %v672, 0.0
          %v680 = vsel %vm668, %v672, 0.0
          %v681 = vsel %vm669, %v672, 0.0
          %v682 = vadd.f32 %v620, %v674
          %v683 = vadd.f32 %v621, %v675
          %v684 = vadd.f32 %v622, %v676
          %v685 = vadd.f32 %v623, %v677
          %v686 = vadd.f32 %v624, %v678
          %v687 = vadd.f32 %v625, %v679
          %v688 = vadd.f32 %v626, %v680
          %v689 = vadd.f32 %v627, %v681
          %690 = vset.pattern.permute.xlu0 14
          %691 = vperm.xlu0 %690, %v253
          %v692 = vpop.permute.xlu0 %691
          %vm693 = vcmp.eq.s32.totalorder %v692, %v245
          %vm694 = vcmp.eq.s32.totalorder %v692, %v246
          %vm695 = vcmp.eq.s32.totalorder %v692, %v247
          %vm696 = vcmp.eq.s32.totalorder %v692, %v248
          %vm697 = vcmp.eq.s32.totalorder %v692, %v249
          %vm698 = vcmp.eq.s32.totalorder %v692, %v250
          %vm699 = vcmp.eq.s32.totalorder %v692, %v251
          %vm700 = vcmp.eq.s32.totalorder %v692, %v252
          %701 = vset.pattern.permute.xlu0 14
          %702 = vperm.xlu0 %701, %v254
          %v703 = vpop.permute.xlu0 %702
          %v705 = vsel %vm693, %v703, 0.0
          %v706 = vsel %vm694, %v703, 0.0
          %v707 = vsel %vm695, %v703, 0.0
          %v708 = vsel %vm696, %v703, 0.0
          %v709 = vsel %vm697, %v703, 0.0
          %v710 = vsel %vm698, %v703, 0.0
          %v711 = vsel %vm699, %v703, 0.0
          %v712 = vsel %vm700, %v703, 0.0
          %v713 = vadd.f32 %v651, %v705
          %v714 = vadd.f32 %v652, %v706
          %v715 = vadd.f32 %v653, %v707
          %v716 = vadd.f32 %v654, %v708
          %v717 = vadd.f32 %v655, %v709
          %v718 = vadd.f32 %v656, %v710
          %v719 = vadd.f32 %v657, %v711
          %v720 = vadd.f32 %v658, %v712
          %721 = vset.pattern.permute.xlu0 15
          %722 = vperm.xlu0 %721, %v253
          %v723 = vpop.permute.xlu0 %722
          %vm724 = vcmp.eq.s32.totalorder %v723, %v245
          %vm725 = vcmp.eq.s32.totalorder %v723, %v246
          %vm726 = vcmp.eq.s32.totalorder %v723, %v247
          %vm727 = vcmp.eq.s32.totalorder %v723, %v248
          %vm728 = vcmp.eq.s32.totalorder %v723, %v249
          %vm729 = vcmp.eq.s32.totalorder %v723, %v250
          %vm730 = vcmp.eq.s32.totalorder %v723, %v251
          %vm731 = vcmp.eq.s32.totalorder %v723, %v252
          %732 = vset.pattern.permute.xlu0 15
          %733 = vperm.xlu0 %732, %v254
          %v734 = vpop.permute.xlu0 %733
          %v736 = vsel %vm724, %v734, 0.0
          %v737 = vsel %vm725, %v734, 0.0
          %v738 = vsel %vm726, %v734, 0.0
          %v739 = vsel %vm727, %v734, 0.0
          %v740 = vsel %vm728, %v734, 0.0
          %v741 = vsel %vm729, %v734, 0.0
          %v742 = vsel %vm730, %v734, 0.0
          %v743 = vsel %vm731, %v734, 0.0
          %v744 = vadd.f32 %v682, %v736
          %v745 = vadd.f32 %v683, %v737
          %v746 = vadd.f32 %v684, %v738
          %v747 = vadd.f32 %v685, %v739
          %v748 = vadd.f32 %v686, %v740
          %v749 = vadd.f32 %v687, %v741
          %v750 = vadd.f32 %v688, %v742
          %v751 = vadd.f32 %v689, %v743
          %752 = vset.pattern.permute.xlu0 16
          %753 = vperm.xlu0 %752, %v253
          %v754 = vpop.permute.xlu0 %753
          %vm755 = vcmp.eq.s32.totalorder %v754, %v245
          %vm756 = vcmp.eq.s32.totalorder %v754, %v246
          %vm757 = vcmp.eq.s32.totalorder %v754, %v247
          %vm758 = vcmp.eq.s32.totalorder %v754, %v248
          %vm759 = vcmp.eq.s32.totalorder %v754, %v249
          %vm760 = vcmp.eq.s32.totalorder %v754, %v250
          %vm761 = vcmp.eq.s32.totalorder %v754, %v251
          %vm762 = vcmp.eq.s32.totalorder %v754, %v252
          %763 = vset.pattern.permute.xlu0 16
          %764 = vperm.xlu0 %763, %v254
          %v765 = vpop.permute.xlu0 %764
          %v767 = vsel %vm755, %v765, 0.0
          %v768 = vsel %vm756, %v765, 0.0
          %v769 = vsel %vm757, %v765, 0.0
          %v770 = vsel %vm758, %v765, 0.0
          %v771 = vsel %vm759, %v765, 0.0
          %v772 = vsel %vm760, %v765, 0.0
          %v773 = vsel %vm761, %v765, 0.0
          %v774 = vsel %vm762, %v765, 0.0
          %v775 = vadd.f32 %v713, %v767
          %v776 = vadd.f32 %v714, %v768
          %v777 = vadd.f32 %v715, %v769
          %v778 = vadd.f32 %v716, %v770
          %v779 = vadd.f32 %v717, %v771
          %v780 = vadd.f32 %v718, %v772
          %v781 = vadd.f32 %v719, %v773
          %v782 = vadd.f32 %v720, %v774
          %783 = vset.pattern.permute.xlu0 17
          %784 = vperm.xlu0 %783, %v253
          %v785 = vpop.permute.xlu0 %784
          %vm786 = vcmp.eq.s32.totalorder %v785, %v245
          %vm787 = vcmp.eq.s32.totalorder %v785, %v246
          %vm788 = vcmp.eq.s32.totalorder %v785, %v247
          %vm789 = vcmp.eq.s32.totalorder %v785, %v248
          %vm790 = vcmp.eq.s32.totalorder %v785, %v249
          %vm791 = vcmp.eq.s32.totalorder %v785, %v250
          %vm792 = vcmp.eq.s32.totalorder %v785, %v251
          %vm793 = vcmp.eq.s32.totalorder %v785, %v252
          %794 = vset.pattern.permute.xlu0 17
          %795 = vperm.xlu0 %794, %v254
          %v796 = vpop.permute.xlu0 %795
          %v798 = vsel %vm786, %v796, 0.0
          %v799 = vsel %vm787, %v796, 0.0
          %v800 = vsel %vm788, %v796, 0.0
          %v801 = vsel %vm789, %v796, 0.0
          %v802 = vsel %vm790, %v796, 0.0
          %v803 = vsel %vm791, %v796, 0.0
          %v804 = vsel %vm792, %v796, 0.0
          %v805 = vsel %vm793, %v796, 0.0
          %v806 = vadd.f32 %v744, %v798
          %v807 = vadd.f32 %v745, %v799
          %v808 = vadd.f32 %v746, %v800
          %v809 = vadd.f32 %v747, %v801
          %v810 = vadd.f32 %v748, %v802
          %v811 = vadd.f32 %v749, %v803
          %v812 = vadd.f32 %v750, %v804
          %v813 = vadd.f32 %v751, %v805
          %814 = vset.pattern.permute.xlu0 18
          %815 = vperm.xlu0 %814, %v253
          %v816 = vpop.permute.xlu0 %815
          %vm817 = vcmp.eq.s32.totalorder %v816, %v245
          %vm818 = vcmp.eq.s32.totalorder %v816, %v246
          %vm819 = vcmp.eq.s32.totalorder %v816, %v247
          %vm820 = vcmp.eq.s32.totalorder %v816, %v248
          %vm821 = vcmp.eq.s32.totalorder %v816, %v249
          %vm822 = vcmp.eq.s32.totalorder %v816, %v250
          %vm823 = vcmp.eq.s32.totalorder %v816, %v251
          %vm824 = vcmp.eq.s32.totalorder %v816, %v252
          %825 = vset.pattern.permute.xlu0 18
          %826 = vperm.xlu0 %825, %v254
          %v827 = vpop.permute.xlu0 %826
          %v829 = vsel %vm817, %v827, 0.0
          %v830 = vsel %vm818, %v827, 0.0
          %v831 = vsel %vm819, %v827, 0.0
          %v832 = vsel %vm820, %v827, 0.0
          %v833 = vsel %vm821, %v827, 0.0
          %v834 = vsel %vm822, %v827, 0.0
          %v835 = vsel %vm823, %v827, 0.0
          %v836 = vsel %vm824, %v827, 0.0
          %v837 = vadd.f32 %v775, %v829
          %v838 = vadd.f32 %v776, %v830
          %v839 = vadd.f32 %v777, %v831
          %v840 = vadd.f32 %v778, %v832
          %v841 = vadd.f32 %v779, %v833
          %v842 = vadd.f32 %v780, %v834
          %v843 = vadd.f32 %v781, %v835
          %v844 = vadd.f32 %v782, %v836
          %845 = vset.pattern.permute.xlu0 19
          %846 = vperm.xlu0 %845, %v253
          %v847 = vpop.permute.xlu0 %846
          %vm848 = vcmp.eq.s32.totalorder %v847, %v245
          %vm849 = vcmp.eq.s32.totalorder %v847, %v246
          %vm850 = vcmp.eq.s32.totalorder %v847, %v247
          %vm851 = vcmp.eq.s32.totalorder %v847, %v248
          %vm852 = vcmp.eq.s32.totalorder %v847, %v249
          %vm853 = vcmp.eq.s32.totalorder %v847, %v250
          %vm854 = vcmp.eq.s32.totalorder %v847, %v251
          %vm855 = vcmp.eq.s32.totalorder %v847, %v252
          %856 = vset.pattern.permute.xlu0 19
          %857 = vperm.xlu0 %856, %v254
          %v858 = vpop.permute.xlu0 %857
          %v860 = vsel %vm848, %v858, 0.0
          %v861 = vsel %vm849, %v858, 0.0
          %v862 = vsel %vm850, %v858, 0.0
          %v863 = vsel %vm851, %v858, 0.0
          %v864 = vsel %vm852, %v858, 0.0
          %v865 = vsel %vm853, %v858, 0.0
          %v866 = vsel %vm854, %v858, 0.0
          %v867 = vsel %vm855, %v858, 0.0
          %v868 = vadd.f32 %v806, %v860
          %v869 = vadd.f32 %v807, %v861
          %v870 = vadd.f32 %v808, %v862
          %v871 = vadd.f32 %v809, %v863
          %v872 = vadd.f32 %v810, %v864
          %v873 = vadd.f32 %v811, %v865
          %v874 = vadd.f32 %v812, %v866
          %v875 = vadd.f32 %v813, %v867
          %876 = vset.pattern.permute.xlu0 20
          %877 = vperm.xlu0 %876, %v253
          %v878 = vpop.permute.xlu0 %877
          %vm879 = vcmp.eq.s32.totalorder %v878, %v245
          %vm880 = vcmp.eq.s32.totalorder %v878, %v246
          %vm881 = vcmp.eq.s32.totalorder %v878, %v247
          %vm882 = vcmp.eq.s32.totalorder %v878, %v248
          %vm883 = vcmp.eq.s32.totalorder %v878, %v249
          %vm884 = vcmp.eq.s32.totalorder %v878, %v250
          %vm885 = vcmp.eq.s32.totalorder %v878, %v251
          %vm886 = vcmp.eq.s32.totalorder %v878, %v252
          %887 = vset.pattern.permute.xlu0 20
          %888 = vperm.xlu0 %887, %v254
          %v889 = vpop.permute.xlu0 %888
          %v891 = vsel %vm879, %v889, 0.0
          %v892 = vsel %vm880, %v889, 0.0
          %v893 = vsel %vm881, %v889, 0.0
          %v894 = vsel %vm882, %v889, 0.0
          %v895 = vsel %vm883, %v889, 0.0
          %v896 = vsel %vm884, %v889, 0.0
          %v897 = vsel %vm885, %v889, 0.0
          %v898 = vsel %vm886, %v889, 0.0
          %v899 = vadd.f32 %v837, %v891
          %v900 = vadd.f32 %v838, %v892
          %v901 = vadd.f32 %v839, %v893
          %v902 = vadd.f32 %v840, %v894
          %v903 = vadd.f32 %v841, %v895
          %v904 = vadd.f32 %v842, %v896
          %v905 = vadd.f32 %v843, %v897
          %v906 = vadd.f32 %v844, %v898
          %907 = vset.pattern.permute.xlu0 21
          %908 = vperm.xlu0 %907, %v253
          %v909 = vpop.permute.xlu0 %908
          %vm910 = vcmp.eq.s32.totalorder %v909, %v245
          %vm911 = vcmp.eq.s32.totalorder %v909, %v246
          %vm912 = vcmp.eq.s32.totalorder %v909, %v247
          %vm913 = vcmp.eq.s32.totalorder %v909, %v248
          %vm914 = vcmp.eq.s32.totalorder %v909, %v249
          %vm915 = vcmp.eq.s32.totalorder %v909, %v250
          %vm916 = vcmp.eq.s32.totalorder %v909, %v251
          %vm917 = vcmp.eq.s32.totalorder %v909, %v252
          %918 = vset.pattern.permute.xlu0 21
          %919 = vperm.xlu0 %918, %v254
          %v920 = vpop.permute.xlu0 %919
          %v922 = vsel %vm910, %v920, 0.0
          %v923 = vsel %vm911, %v920, 0.0
          %v924 = vsel %vm912, %v920, 0.0
          %v925 = vsel %vm913, %v920, 0.0
          %v926 = vsel %vm914, %v920, 0.0
          %v927 = vsel %vm915, %v920, 0.0
          %v928 = vsel %vm916, %v920, 0.0
          %v929 = vsel %vm917, %v920, 0.0
          %v930 = vadd.f32 %v868, %v922
          %v931 = vadd.f32 %v869, %v923
          %v932 = vadd.f32 %v870, %v924
          %v933 = vadd.f32 %v871, %v925
          %v934 = vadd.f32 %v872, %v926
          %v935 = vadd.f32 %v873, %v927
          %v936 = vadd.f32 %v874, %v928
          %v937 = vadd.f32 %v875, %v929
          %938 = vset.pattern.permute.xlu0 22
          %939 = vperm.xlu0 %938, %v253
          %v940 = vpop.permute.xlu0 %939
          %vm941 = vcmp.eq.s32.totalorder %v940, %v245
          %vm942 = vcmp.eq.s32.totalorder %v940, %v246
          %vm943 = vcmp.eq.s32.totalorder %v940, %v247
          %vm944 = vcmp.eq.s32.totalorder %v940, %v248
          %vm945 = vcmp.eq.s32.totalorder %v940, %v249
          %vm946 = vcmp.eq.s32.totalorder %v940, %v250
          %vm947 = vcmp.eq.s32.totalorder %v940, %v251
          %vm948 = vcmp.eq.s32.totalorder %v940, %v252
          %949 = vset.pattern.permute.xlu0 22
          %950 = vperm.xlu0 %949, %v254
          %v951 = vpop.permute.xlu0 %950
          %v953 = vsel %vm941, %v951, 0.0
          %v954 = vsel %vm942, %v951, 0.0
          %v955 = vsel %vm943, %v951, 0.0
          %v956 = vsel %vm944, %v951, 0.0
          %v957 = vsel %vm945, %v951, 0.0
          %v958 = vsel %vm946, %v951, 0.0
          %v959 = vsel %vm947, %v951, 0.0
          %v960 = vsel %vm948, %v951, 0.0
          %v961 = vadd.f32 %v899, %v953
          %v962 = vadd.f32 %v900, %v954
          %v963 = vadd.f32 %v901, %v955
          %v964 = vadd.f32 %v902, %v956
          %v965 = vadd.f32 %v903, %v957
          %v966 = vadd.f32 %v904, %v958
          %v967 = vadd.f32 %v905, %v959
          %v968 = vadd.f32 %v906, %v960
          %969 = vset.pattern.permute.xlu0 23
          %970 = vperm.xlu0 %969, %v253
          %v971 = vpop.permute.xlu0 %970
          %vm972 = vcmp.eq.s32.totalorder %v971, %v245
          %vm973 = vcmp.eq.s32.totalorder %v971, %v246
          %vm974 = vcmp.eq.s32.totalorder %v971, %v247
          %vm975 = vcmp.eq.s32.totalorder %v971, %v248
          %vm976 = vcmp.eq.s32.totalorder %v971, %v249
          %vm977 = vcmp.eq.s32.totalorder %v971, %v250
          %vm978 = vcmp.eq.s32.totalorder %v971, %v251
          %vm979 = vcmp.eq.s32.totalorder %v971, %v252
          %980 = vset.pattern.permute.xlu0 23
          %981 = vperm.xlu0 %980, %v254
          %v982 = vpop.permute.xlu0 %981
          %v984 = vsel %vm972, %v982, 0.0
          %v985 = vsel %vm973, %v982, 0.0
          %v986 = vsel %vm974, %v982, 0.0
          %v987 = vsel %vm975, %v982, 0.0
          %v988 = vsel %vm976, %v982, 0.0
          %v989 = vsel %vm977, %v982, 0.0
          %v990 = vsel %vm978, %v982, 0.0
          %v991 = vsel %vm979, %v982, 0.0
          %v992 = vadd.f32 %v930, %v984
          %v993 = vadd.f32 %v931, %v985
          %v994 = vadd.f32 %v932, %v986
          %v995 = vadd.f32 %v933, %v987
          %v996 = vadd.f32 %v934, %v988
          %v997 = vadd.f32 %v935, %v989
          %v998 = vadd.f32 %v936, %v990
          %v999 = vadd.f32 %v937, %v991
          %1000 = vset.pattern.permute.xlu0 24
          %1001 = vperm.xlu0 %1000, %v253
          %v1002 = vpop.permute.xlu0 %1001
          %vm1003 = vcmp.eq.s32.totalorder %v1002, %v245
          %vm1004 = vcmp.eq.s32.totalorder %v1002, %v246
          %vm1005 = vcmp.eq.s32.totalorder %v1002, %v247
          %vm1006 = vcmp.eq.s32.totalorder %v1002, %v248
          %vm1007 = vcmp.eq.s32.totalorder %v1002, %v249
          %vm1008 = vcmp.eq.s32.totalorder %v1002, %v250
          %vm1009 = vcmp.eq.s32.totalorder %v1002, %v251
          %vm1010 = vcmp.eq.s32.totalorder %v1002, %v252
          %1011 = vset.pattern.permute.xlu0 24
          %1012 = vperm.xlu0 %1011, %v254
          %v1013 = vpop.permute.xlu0 %1012
          %v1015 = vsel %vm1003, %v1013, 0.0
          %v1016 = vsel %vm1004, %v1013, 0.0
          %v1017 = vsel %vm1005, %v1013, 0.0
          %v1018 = vsel %vm1006, %v1013, 0.0
          %v1019 = vsel %vm1007, %v1013, 0.0
          %v1020 = vsel %vm1008, %v1013, 0.0
          %v1021 = vsel %vm1009, %v1013, 0.0
          %v1022 = vsel %vm1010, %v1013, 0.0
          %v1023 = vadd.f32 %v961, %v1015
          %v1024 = vadd.f32 %v962, %v1016
          %v1025 = vadd.f32 %v963, %v1017
          %v1026 = vadd.f32 %v964, %v1018
          %v1027 = vadd.f32 %v965, %v1019
          %v1028 = vadd.f32 %v966, %v1020
          %v1029 = vadd.f32 %v967, %v1021
          %v1030 = vadd.f32 %v968, %v1022
          %1031 = vset.pattern.permute.xlu0 25
          %1032 = vperm.xlu0 %1031, %v253
          %v1033 = vpop.permute.xlu0 %1032
          %vm1034 = vcmp.eq.s32.totalorder %v1033, %v245
          %vm1035 = vcmp.eq.s32.totalorder %v1033, %v246
          %vm1036 = vcmp.eq.s32.totalorder %v1033, %v247
          %vm1037 = vcmp.eq.s32.totalorder %v1033, %v248
          %vm1038 = vcmp.eq.s32.totalorder %v1033, %v249
          %vm1039 = vcmp.eq.s32.totalorder %v1033, %v250
          %vm1040 = vcmp.eq.s32.totalorder %v1033, %v251
          %vm1041 = vcmp.eq.s32.totalorder %v1033, %v252
          %1042 = vset.pattern.permute.xlu0 25
          %1043 = vperm.xlu0 %1042, %v254
          %v1044 = vpop.permute.xlu0 %1043
          %v1046 = vsel %vm1034, %v1044, 0.0
          %v1047 = vsel %vm1035, %v1044, 0.0
          %v1048 = vsel %vm1036, %v1044, 0.0
          %v1049 = vsel %vm1037, %v1044, 0.0
          %v1050 = vsel %vm1038, %v1044, 0.0
          %v1051 = vsel %vm1039, %v1044, 0.0
          %v1052 = vsel %vm1040, %v1044, 0.0
          %v1053 = vsel %vm1041, %v1044, 0.0
          %v1054 = vadd.f32 %v992, %v1046
          %v1055 = vadd.f32 %v993, %v1047
          %v1056 = vadd.f32 %v994, %v1048
          %v1057 = vadd.f32 %v995, %v1049
          %v1058 = vadd.f32 %v996, %v1050
          %v1059 = vadd.f32 %v997, %v1051
          %v1060 = vadd.f32 %v998, %v1052
          %v1061 = vadd.f32 %v999, %v1053
          %1062 = vset.pattern.permute.xlu0 26
          %1063 = vperm.xlu0 %1062, %v253
          %v1064 = vpop.permute.xlu0 %1063
          %vm1065 = vcmp.eq.s32.totalorder %v1064, %v245
          %vm1066 = vcmp.eq.s32.totalorder %v1064, %v246
          %vm1067 = vcmp.eq.s32.totalorder %v1064, %v247
          %vm1068 = vcmp.eq.s32.totalorder %v1064, %v248
          %vm1069 = vcmp.eq.s32.totalorder %v1064, %v249
          %vm1070 = vcmp.eq.s32.totalorder %v1064, %v250
          %vm1071 = vcmp.eq.s32.totalorder %v1064, %v251
          %vm1072 = vcmp.eq.s32.totalorder %v1064, %v252
          %1073 = vset.pattern.permute.xlu0 26
          %1074 = vperm.xlu0 %1073, %v254
          %v1075 = vpop.permute.xlu0 %1074
          %v1077 = vsel %vm1065, %v1075, 0.0
          %v1078 = vsel %vm1066, %v1075, 0.0
          %v1079 = vsel %vm1067, %v1075, 0.0
          %v1080 = vsel %vm1068, %v1075, 0.0
          %v1081 = vsel %vm1069, %v1075, 0.0
          %v1082 = vsel %vm1070, %v1075, 0.0
          %v1083 = vsel %vm1071, %v1075, 0.0
          %v1084 = vsel %vm1072, %v1075, 0.0
          %v1085 = vadd.f32 %v1023, %v1077
          %v1086 = vadd.f32 %v1024, %v1078
          %v1087 = vadd.f32 %v1025, %v1079
          %v1088 = vadd.f32 %v1026, %v1080
          %v1089 = vadd.f32 %v1027, %v1081
          %v1090 = vadd.f32 %v1028, %v1082
          %v1091 = vadd.f32 %v1029, %v1083
          %v1092 = vadd.f32 %v1030, %v1084
          %1093 = vset.pattern.permute.xlu0 27
          %1094 = vperm.xlu0 %1093, %v253
          %v1095 = vpop.permute.xlu0 %1094
          %vm1096 = vcmp.eq.s32.totalorder %v1095, %v245
          %vm1097 = vcmp.eq.s32.totalorder %v1095, %v246
          %vm1098 = vcmp.eq.s32.totalorder %v1095, %v247
          %vm1099 = vcmp.eq.s32.totalorder %v1095, %v248
          %vm1100 = vcmp.eq.s32.totalorder %v1095, %v249
          %vm1101 = vcmp.eq.s32.totalorder %v1095, %v250
          %vm1102 = vcmp.eq.s32.totalorder %v1095, %v251
          %vm1103 = vcmp.eq.s32.totalorder %v1095, %v252
          %1104 = vset.pattern.permute.xlu0 27
          %1105 = vperm.xlu0 %1104, %v254
          %v1106 = vpop.permute.xlu0 %1105
          %v1108 = vsel %vm1096, %v1106, 0.0
          %v1109 = vsel %vm1097, %v1106, 0.0
          %v1110 = vsel %vm1098, %v1106, 0.0
          %v1111 = vsel %vm1099, %v1106, 0.0
          %v1112 = vsel %vm1100, %v1106, 0.0
          %v1113 = vsel %vm1101, %v1106, 0.0
          %v1114 = vsel %vm1102, %v1106, 0.0
          %v1115 = vsel %vm1103, %v1106, 0.0
          %v1116 = vadd.f32 %v1054, %v1108
          %v1117 = vadd.f32 %v1055, %v1109
          %v1118 = vadd.f32 %v1056, %v1110
          %v1119 = vadd.f32 %v1057, %v1111
          %v1120 = vadd.f32 %v1058, %v1112
          %v1121 = vadd.f32 %v1059, %v1113
          %v1122 = vadd.f32 %v1060, %v1114
          %v1123 = vadd.f32 %v1061, %v1115
          %1124 = vset.pattern.permute.xlu0 28
          %1125 = vperm.xlu0 %1124, %v253
          %v1126 = vpop.permute.xlu0 %1125
          %vm1127 = vcmp.eq.s32.totalorder %v1126, %v245
          %vm1128 = vcmp.eq.s32.totalorder %v1126, %v246
          %vm1129 = vcmp.eq.s32.totalorder %v1126, %v247
          %vm1130 = vcmp.eq.s32.totalorder %v1126, %v248
          %vm1131 = vcmp.eq.s32.totalorder %v1126, %v249
          %vm1132 = vcmp.eq.s32.totalorder %v1126, %v250
          %vm1133 = vcmp.eq.s32.totalorder %v1126, %v251
          %vm1134 = vcmp.eq.s32.totalorder %v1126, %v252
          %1135 = vset.pattern.permute.xlu0 28
          %1136 = vperm.xlu0 %1135, %v254
          %v1137 = vpop.permute.xlu0 %1136
          %v1139 = vsel %vm1127, %v1137, 0.0
          %v1140 = vsel %vm1128, %v1137, 0.0
          %v1141 = vsel %vm1129, %v1137, 0.0
          %v1142 = vsel %vm1130, %v1137, 0.0
          %v1143 = vsel %vm1131, %v1137, 0.0
          %v1144 = vsel %vm1132, %v1137, 0.0
          %v1145 = vsel %vm1133, %v1137, 0.0
          %v1146 = vsel %vm1134, %v1137, 0.0
          %v1147 = vadd.f32 %v1085, %v1139
          %v1148 = vadd.f32 %v1086, %v1140
          %v1149 = vadd.f32 %v1087, %v1141
          %v1150 = vadd.f32 %v1088, %v1142
          %v1151 = vadd.f32 %v1089, %v1143
          %v1152 = vadd.f32 %v1090, %v1144
          %v1153 = vadd.f32 %v1091, %v1145
          %v1154 = vadd.f32 %v1092, %v1146
          %1155 = vset.pattern.permute.xlu0 29
          %1156 = vperm.xlu0 %1155, %v253
          %v1157 = vpop.permute.xlu0 %1156
          %vm1158 = vcmp.eq.s32.totalorder %v1157, %v245
          %vm1159 = vcmp.eq.s32.totalorder %v1157, %v246
          %vm1160 = vcmp.eq.s32.totalorder %v1157, %v247
          %vm1161 = vcmp.eq.s32.totalorder %v1157, %v248
          %vm1162 = vcmp.eq.s32.totalorder %v1157, %v249
          %vm1163 = vcmp.eq.s32.totalorder %v1157, %v250
          %vm1164 = vcmp.eq.s32.totalorder %v1157, %v251
          %vm1165 = vcmp.eq.s32.totalorder %v1157, %v252
          %1166 = vset.pattern.permute.xlu0 29
          %1167 = vperm.xlu0 %1166, %v254
          %v1168 = vpop.permute.xlu0 %1167
          %v1170 = vsel %vm1158, %v1168, 0.0
          %v1171 = vsel %vm1159, %v1168, 0.0
          %v1172 = vsel %vm1160, %v1168, 0.0
          %v1173 = vsel %vm1161, %v1168, 0.0
          %v1174 = vsel %vm1162, %v1168, 0.0
          %v1175 = vsel %vm1163, %v1168, 0.0
          %v1176 = vsel %vm1164, %v1168, 0.0
          %v1177 = vsel %vm1165, %v1168, 0.0
          %v1178 = vadd.f32 %v1116, %v1170
          %v1179 = vadd.f32 %v1117, %v1171
          %v1180 = vadd.f32 %v1118, %v1172
          %v1181 = vadd.f32 %v1119, %v1173
          %v1182 = vadd.f32 %v1120, %v1174
          %v1183 = vadd.f32 %v1121, %v1175
          %v1184 = vadd.f32 %v1122, %v1176
          %v1185 = vadd.f32 %v1123, %v1177
          %1186 = vset.pattern.permute.xlu0 30
          %1187 = vperm.xlu0 %1186, %v253
          %v1188 = vpop.permute.xlu0 %1187
          %vm1189 = vcmp.eq.s32.totalorder %v1188, %v245
          %vm1190 = vcmp.eq.s32.totalorder %v1188, %v246
          %vm1191 = vcmp.eq.s32.totalorder %v1188, %v247
          %vm1192 = vcmp.eq.s32.totalorder %v1188, %v248
          %vm1193 = vcmp.eq.s32.totalorder %v1188, %v249
          %vm1194 = vcmp.eq.s32.totalorder %v1188, %v250
          %vm1195 = vcmp.eq.s32.totalorder %v1188, %v251
          %vm1196 = vcmp.eq.s32.totalorder %v1188, %v252
          %1197 = vset.pattern.permute.xlu0 30
          %1198 = vperm.xlu0 %1197, %v254
          %v1199 = vpop.permute.xlu0 %1198
          %v1201 = vsel %vm1189, %v1199, 0.0
          %v1202 = vsel %vm1190, %v1199, 0.0
          %v1203 = vsel %vm1191, %v1199, 0.0
          %v1204 = vsel %vm1192, %v1199, 0.0
          %v1205 = vsel %vm1193, %v1199, 0.0
          %v1206 = vsel %vm1194, %v1199, 0.0
          %v1207 = vsel %vm1195, %v1199, 0.0
          %v1208 = vsel %vm1196, %v1199, 0.0
          %v1209 = vadd.f32 %v1147, %v1201
          %v1210 = vadd.f32 %v1148, %v1202
          %v1211 = vadd.f32 %v1149, %v1203
          %v1212 = vadd.f32 %v1150, %v1204
          %v1213 = vadd.f32 %v1151, %v1205
          %v1214 = vadd.f32 %v1152, %v1206
          %v1215 = vadd.f32 %v1153, %v1207
          %v1216 = vadd.f32 %v1154, %v1208
          %1217 = vset.pattern.permute.xlu0 31
          %1218 = vperm.xlu0 %1217, %v253
          %v1219 = vpop.permute.xlu0 %1218
          %vm1220 = vcmp.eq.s32.totalorder %v1219, %v245
          %vm1221 = vcmp.eq.s32.totalorder %v1219, %v246
          %vm1222 = vcmp.eq.s32.totalorder %v1219, %v247
          %vm1223 = vcmp.eq.s32.totalorder %v1219, %v248
          %vm1224 = vcmp.eq.s32.totalorder %v1219, %v249
          %vm1225 = vcmp.eq.s32.totalorder %v1219, %v250
          %vm1226 = vcmp.eq.s32.totalorder %v1219, %v251
          %vm1227 = vcmp.eq.s32.totalorder %v1219, %v252
          %1228 = vset.pattern.permute.xlu0 31
          %1229 = vperm.xlu0 %1228, %v254
          %v1230 = vpop.permute.xlu0 %1229
          %v1232 = vsel %vm1220, %v1230, 0.0
          %v1233 = vsel %vm1221, %v1230, 0.0
          %v1234 = vsel %vm1222, %v1230, 0.0
          %v1235 = vsel %vm1223, %v1230, 0.0
          %v1236 = vsel %vm1224, %v1230, 0.0
          %v1237 = vsel %vm1225, %v1230, 0.0
          %v1238 = vsel %vm1226, %v1230, 0.0
          %v1239 = vsel %vm1227, %v1230, 0.0
          %v1240 = vadd.f32 %v1178, %v1232
          %v1241 = vadd.f32 %v1179, %v1233
          %v1242 = vadd.f32 %v1180, %v1234
          %v1243 = vadd.f32 %v1181, %v1235
          %v1244 = vadd.f32 %v1182, %v1236
          %v1245 = vadd.f32 %v1183, %v1237
          %v1246 = vadd.f32 %v1184, %v1238
          %v1247 = vadd.f32 %v1185, %v1239
          %1248 = vset.pattern.permute.xlu0 32
          %1249 = vperm.xlu0 %1248, %v253
          %v1250 = vpop.permute.xlu0 %1249
          %vm1251 = vcmp.eq.s32.totalorder %v1250, %v245
          %vm1252 = vcmp.eq.s32.totalorder %v1250, %v246
          %vm1253 = vcmp.eq.s32.totalorder %v1250, %v247
          %vm1254 = vcmp.eq.s32.totalorder %v1250, %v248
          %vm1255 = vcmp.eq.s32.totalorder %v1250, %v249
          %vm1256 = vcmp.eq.s32.totalorder %v1250, %v250
          %vm1257 = vcmp.eq.s32.totalorder %v1250, %v251
          %vm1258 = vcmp.eq.s32.totalorder %v1250, %v252
          %1259 = vset.pattern.permute.xlu0 32
          %1260 = vperm.xlu0 %1259, %v254
          %v1261 = vpop.permute.xlu0 %1260
          %v1263 = vsel %vm1251, %v1261, 0.0
          %v1264 = vsel %vm1252, %v1261, 0.0
          %v1265 = vsel %vm1253, %v1261, 0.0
          %v1266 = vsel %vm1254, %v1261, 0.0
          %v1267 = vsel %vm1255, %v1261, 0.0
          %v1268 = vsel %vm1256, %v1261, 0.0
          %v1269 = vsel %vm1257, %v1261, 0.0
          %v1270 = vsel %vm1258, %v1261, 0.0
          %v1271 = vadd.f32 %v1209, %v1263
          %v1272 = vadd.f32 %v1210, %v1264
          %v1273 = vadd.f32 %v1211, %v1265
          %v1274 = vadd.f32 %v1212, %v1266
          %v1275 = vadd.f32 %v1213, %v1267
          %v1276 = vadd.f32 %v1214, %v1268
          %v1277 = vadd.f32 %v1215, %v1269
          %v1278 = vadd.f32 %v1216, %v1270
          %1279 = vset.pattern.permute.xlu0 33
          %1280 = vperm.xlu0 %1279, %v253
          %v1281 = vpop.permute.xlu0 %1280
          %vm1282 = vcmp.eq.s32.totalorder %v1281, %v245
          %vm1283 = vcmp.eq.s32.totalorder %v1281, %v246
          %vm1284 = vcmp.eq.s32.totalorder %v1281, %v247
          %vm1285 = vcmp.eq.s32.totalorder %v1281, %v248
          %vm1286 = vcmp.eq.s32.totalorder %v1281, %v249
          %vm1287 = vcmp.eq.s32.totalorder %v1281, %v250
          %vm1288 = vcmp.eq.s32.totalorder %v1281, %v251
          %vm1289 = vcmp.eq.s32.totalorder %v1281, %v252
          %1290 = vset.pattern.permute.xlu0 33
          %1291 = vperm.xlu0 %1290, %v254
          %v1292 = vpop.permute.xlu0 %1291
          %v1294 = vsel %vm1282, %v1292, 0.0
          %v1295 = vsel %vm1283, %v1292, 0.0
          %v1296 = vsel %vm1284, %v1292, 0.0
          %v1297 = vsel %vm1285, %v1292, 0.0
          %v1298 = vsel %vm1286, %v1292, 0.0
          %v1299 = vsel %vm1287, %v1292, 0.0
          %v1300 = vsel %vm1288, %v1292, 0.0
          %v1301 = vsel %vm1289, %v1292, 0.0
          %v1302 = vadd.f32 %v1240, %v1294
          %v1303 = vadd.f32 %v1241, %v1295
          %v1304 = vadd.f32 %v1242, %v1296
          %v1305 = vadd.f32 %v1243, %v1297
          %v1306 = vadd.f32 %v1244, %v1298
          %v1307 = vadd.f32 %v1245, %v1299
          %v1308 = vadd.f32 %v1246, %v1300
          %v1309 = vadd.f32 %v1247, %v1301
          %1310 = vset.pattern.permute.xlu0 34
          %1311 = vperm.xlu0 %1310, %v253
          %v1312 = vpop.permute.xlu0 %1311
          %vm1313 = vcmp.eq.s32.totalorder %v1312, %v245
          %vm1314 = vcmp.eq.s32.totalorder %v1312, %v246
          %vm1315 = vcmp.eq.s32.totalorder %v1312, %v247
          %vm1316 = vcmp.eq.s32.totalorder %v1312, %v248
          %vm1317 = vcmp.eq.s32.totalorder %v1312, %v249
          %vm1318 = vcmp.eq.s32.totalorder %v1312, %v250
          %vm1319 = vcmp.eq.s32.totalorder %v1312, %v251
          %vm1320 = vcmp.eq.s32.totalorder %v1312, %v252
          %1321 = vset.pattern.permute.xlu0 34
          %1322 = vperm.xlu0 %1321, %v254
          %v1323 = vpop.permute.xlu0 %1322
          %v1325 = vsel %vm1313, %v1323, 0.0
          %v1326 = vsel %vm1314, %v1323, 0.0
          %v1327 = vsel %vm1315, %v1323, 0.0
          %v1328 = vsel %vm1316, %v1323, 0.0
          %v1329 = vsel %vm1317, %v1323, 0.0
          %v1330 = vsel %vm1318, %v1323, 0.0
          %v1331 = vsel %vm1319, %v1323, 0.0
          %v1332 = vsel %vm1320, %v1323, 0.0
          %v1333 = vadd.f32 %v1271, %v1325
          %v1334 = vadd.f32 %v1272, %v1326
          %v1335 = vadd.f32 %v1273, %v1327
          %v1336 = vadd.f32 %v1274, %v1328
          %v1337 = vadd.f32 %v1275, %v1329
          %v1338 = vadd.f32 %v1276, %v1330
          %v1339 = vadd.f32 %v1277, %v1331
          %v1340 = vadd.f32 %v1278, %v1332
          %1341 = vset.pattern.permute.xlu0 35
          %1342 = vperm.xlu0 %1341, %v253
          %v1343 = vpop.permute.xlu0 %1342
          %vm1344 = vcmp.eq.s32.totalorder %v1343, %v245
          %vm1345 = vcmp.eq.s32.totalorder %v1343, %v246
          %vm1346 = vcmp.eq.s32.totalorder %v1343, %v247
          %vm1347 = vcmp.eq.s32.totalorder %v1343, %v248
          %vm1348 = vcmp.eq.s32.totalorder %v1343, %v249
          %vm1349 = vcmp.eq.s32.totalorder %v1343, %v250
          %vm1350 = vcmp.eq.s32.totalorder %v1343, %v251
          %vm1351 = vcmp.eq.s32.totalorder %v1343, %v252
          %1352 = vset.pattern.permute.xlu0 35
          %1353 = vperm.xlu0 %1352, %v254
          %v1354 = vpop.permute.xlu0 %1353
          %v1356 = vsel %vm1344, %v1354, 0.0
          %v1357 = vsel %vm1345, %v1354, 0.0
          %v1358 = vsel %vm1346, %v1354, 0.0
          %v1359 = vsel %vm1347, %v1354, 0.0
          %v1360 = vsel %vm1348, %v1354, 0.0
          %v1361 = vsel %vm1349, %v1354, 0.0
          %v1362 = vsel %vm1350, %v1354, 0.0
          %v1363 = vsel %vm1351, %v1354, 0.0
          %v1364 = vadd.f32 %v1302, %v1356
          %v1365 = vadd.f32 %v1303, %v1357
          %v1366 = vadd.f32 %v1304, %v1358
          %v1367 = vadd.f32 %v1305, %v1359
          %v1368 = vadd.f32 %v1306, %v1360
          %v1369 = vadd.f32 %v1307, %v1361
          %v1370 = vadd.f32 %v1308, %v1362
          %v1371 = vadd.f32 %v1309, %v1363
          %1372 = vset.pattern.permute.xlu0 36
          %1373 = vperm.xlu0 %1372, %v253
          %v1374 = vpop.permute.xlu0 %1373
          %vm1375 = vcmp.eq.s32.totalorder %v1374, %v245
          %vm1376 = vcmp.eq.s32.totalorder %v1374, %v246
          %vm1377 = vcmp.eq.s32.totalorder %v1374, %v247
          %vm1378 = vcmp.eq.s32.totalorder %v1374, %v248
          %vm1379 = vcmp.eq.s32.totalorder %v1374, %v249
          %vm1380 = vcmp.eq.s32.totalorder %v1374, %v250
          %vm1381 = vcmp.eq.s32.totalorder %v1374, %v251
          %vm1382 = vcmp.eq.s32.totalorder %v1374, %v252
          %1383 = vset.pattern.permute.xlu0 36
          %1384 = vperm.xlu0 %1383, %v254
          %v1385 = vpop.permute.xlu0 %1384
          %v1387 = vsel %vm1375, %v1385, 0.0
          %v1388 = vsel %vm1376, %v1385, 0.0
          %v1389 = vsel %vm1377, %v1385, 0.0
          %v1390 = vsel %vm1378, %v1385, 0.0
          %v1391 = vsel %vm1379, %v1385, 0.0
          %v1392 = vsel %vm1380, %v1385, 0.0
          %v1393 = vsel %vm1381, %v1385, 0.0
          %v1394 = vsel %vm1382, %v1385, 0.0
          %v1395 = vadd.f32 %v1333, %v1387
          %v1396 = vadd.f32 %v1334, %v1388
          %v1397 = vadd.f32 %v1335, %v1389
          %v1398 = vadd.f32 %v1336, %v1390
          %v1399 = vadd.f32 %v1337, %v1391
          %v1400 = vadd.f32 %v1338, %v1392
          %v1401 = vadd.f32 %v1339, %v1393
          %v1402 = vadd.f32 %v1340, %v1394
          %1403 = vset.pattern.permute.xlu0 37
          %1404 = vperm.xlu0 %1403, %v253
          %v1405 = vpop.permute.xlu0 %1404
          %vm1406 = vcmp.eq.s32.totalorder %v1405, %v245
          %vm1407 = vcmp.eq.s32.totalorder %v1405, %v246
          %vm1408 = vcmp.eq.s32.totalorder %v1405, %v247
          %vm1409 = vcmp.eq.s32.totalorder %v1405, %v248
          %vm1410 = vcmp.eq.s32.totalorder %v1405, %v249
          %vm1411 = vcmp.eq.s32.totalorder %v1405, %v250
          %vm1412 = vcmp.eq.s32.totalorder %v1405, %v251
          %vm1413 = vcmp.eq.s32.totalorder %v1405, %v252
          %1414 = vset.pattern.permute.xlu0 37
          %1415 = vperm.xlu0 %1414, %v254
          %v1416 = vpop.permute.xlu0 %1415
          %v1418 = vsel %vm1406, %v1416, 0.0
          %v1419 = vsel %vm1407, %v1416, 0.0
          %v1420 = vsel %vm1408, %v1416, 0.0
          %v1421 = vsel %vm1409, %v1416, 0.0
          %v1422 = vsel %vm1410, %v1416, 0.0
          %v1423 = vsel %vm1411, %v1416, 0.0
          %v1424 = vsel %vm1412, %v1416, 0.0
          %v1425 = vsel %vm1413, %v1416, 0.0
          %v1426 = vadd.f32 %v1364, %v1418
          %v1427 = vadd.f32 %v1365, %v1419
          %v1428 = vadd.f32 %v1366, %v1420
          %v1429 = vadd.f32 %v1367, %v1421
          %v1430 = vadd.f32 %v1368, %v1422
          %v1431 = vadd.f32 %v1369, %v1423
          %v1432 = vadd.f32 %v1370, %v1424
          %v1433 = vadd.f32 %v1371, %v1425
          %1434 = vset.pattern.permute.xlu0 38
          %1435 = vperm.xlu0 %1434, %v253
          %v1436 = vpop.permute.xlu0 %1435
          %vm1437 = vcmp.eq.s32.totalorder %v1436, %v245
          %vm1438 = vcmp.eq.s32.totalorder %v1436, %v246
          %vm1439 = vcmp.eq.s32.totalorder %v1436, %v247
          %vm1440 = vcmp.eq.s32.totalorder %v1436, %v248
          %vm1441 = vcmp.eq.s32.totalorder %v1436, %v249
          %vm1442 = vcmp.eq.s32.totalorder %v1436, %v250
          %vm1443 = vcmp.eq.s32.totalorder %v1436, %v251
          %vm1444 = vcmp.eq.s32.totalorder %v1436, %v252
          %1445 = vset.pattern.permute.xlu0 38
          %1446 = vperm.xlu0 %1445, %v254
          %v1447 = vpop.permute.xlu0 %1446
          %v1449 = vsel %vm1437, %v1447, 0.0
          %v1450 = vsel %vm1438, %v1447, 0.0
          %v1451 = vsel %vm1439, %v1447, 0.0
          %v1452 = vsel %vm1440, %v1447, 0.0
          %v1453 = vsel %vm1441, %v1447, 0.0
          %v1454 = vsel %vm1442, %v1447, 0.0
          %v1455 = vsel %vm1443, %v1447, 0.0
          %v1456 = vsel %vm1444, %v1447, 0.0
          %v1457 = vadd.f32 %v1395, %v1449
          %v1458 = vadd.f32 %v1396, %v1450
          %v1459 = vadd.f32 %v1397, %v1451
          %v1460 = vadd.f32 %v1398, %v1452
          %v1461 = vadd.f32 %v1399, %v1453
          %v1462 = vadd.f32 %v1400, %v1454
          %v1463 = vadd.f32 %v1401, %v1455
          %v1464 = vadd.f32 %v1402, %v1456
          %1465 = vset.pattern.permute.xlu0 39
          %1466 = vperm.xlu0 %1465, %v253
          %v1467 = vpop.permute.xlu0 %1466
          %vm1468 = vcmp.eq.s32.totalorder %v1467, %v245
          %vm1469 = vcmp.eq.s32.totalorder %v1467, %v246
          %vm1470 = vcmp.eq.s32.totalorder %v1467, %v247
          %vm1471 = vcmp.eq.s32.totalorder %v1467, %v248
          %vm1472 = vcmp.eq.s32.totalorder %v1467, %v249
          %vm1473 = vcmp.eq.s32.totalorder %v1467, %v250
          %vm1474 = vcmp.eq.s32.totalorder %v1467, %v251
          %vm1475 = vcmp.eq.s32.totalorder %v1467, %v252
          %1476 = vset.pattern.permute.xlu0 39
          %1477 = vperm.xlu0 %1476, %v254
          %v1478 = vpop.permute.xlu0 %1477
          %v1480 = vsel %vm1468, %v1478, 0.0
          %v1481 = vsel %vm1469, %v1478, 0.0
          %v1482 = vsel %vm1470, %v1478, 0.0
          %v1483 = vsel %vm1471, %v1478, 0.0
          %v1484 = vsel %vm1472, %v1478, 0.0
          %v1485 = vsel %vm1473, %v1478, 0.0
          %v1486 = vsel %vm1474, %v1478, 0.0
          %v1487 = vsel %vm1475, %v1478, 0.0
          %v1488 = vadd.f32 %v1426, %v1480
          %v1489 = vadd.f32 %v1427, %v1481
          %v1490 = vadd.f32 %v1428, %v1482
          %v1491 = vadd.f32 %v1429, %v1483
          %v1492 = vadd.f32 %v1430, %v1484
          %v1493 = vadd.f32 %v1431, %v1485
          %v1494 = vadd.f32 %v1432, %v1486
          %v1495 = vadd.f32 %v1433, %v1487
          %1496 = vset.pattern.permute.xlu0 40
          %1497 = vperm.xlu0 %1496, %v253
          %v1498 = vpop.permute.xlu0 %1497
          %vm1499 = vcmp.eq.s32.totalorder %v1498, %v245
          %vm1500 = vcmp.eq.s32.totalorder %v1498, %v246
          %vm1501 = vcmp.eq.s32.totalorder %v1498, %v247
          %vm1502 = vcmp.eq.s32.totalorder %v1498, %v248
          %vm1503 = vcmp.eq.s32.totalorder %v1498, %v249
          %vm1504 = vcmp.eq.s32.totalorder %v1498, %v250
          %vm1505 = vcmp.eq.s32.totalorder %v1498, %v251
          %vm1506 = vcmp.eq.s32.totalorder %v1498, %v252
          %1507 = vset.pattern.permute.xlu0 40
          %1508 = vperm.xlu0 %1507, %v254
          %v1509 = vpop.permute.xlu0 %1508
          %v1511 = vsel %vm1499, %v1509, 0.0
          %v1512 = vsel %vm1500, %v1509, 0.0
          %v1513 = vsel %vm1501, %v1509, 0.0
          %v1514 = vsel %vm1502, %v1509, 0.0
          %v1515 = vsel %vm1503, %v1509, 0.0
          %v1516 = vsel %vm1504, %v1509, 0.0
          %v1517 = vsel %vm1505, %v1509, 0.0
          %v1518 = vsel %vm1506, %v1509, 0.0
          %v1519 = vadd.f32 %v1457, %v1511
          %v1520 = vadd.f32 %v1458, %v1512
          %v1521 = vadd.f32 %v1459, %v1513
          %v1522 = vadd.f32 %v1460, %v1514
          %v1523 = vadd.f32 %v1461, %v1515
          %v1524 = vadd.f32 %v1462, %v1516
          %v1525 = vadd.f32 %v1463, %v1517
          %v1526 = vadd.f32 %v1464, %v1518
          %1527 = vset.pattern.permute.xlu0 41
          %1528 = vperm.xlu0 %1527, %v253
          %v1529 = vpop.permute.xlu0 %1528
          %vm1530 = vcmp.eq.s32.totalorder %v1529, %v245
          %vm1531 = vcmp.eq.s32.totalorder %v1529, %v246
          %vm1532 = vcmp.eq.s32.totalorder %v1529, %v247
          %vm1533 = vcmp.eq.s32.totalorder %v1529, %v248
          %vm1534 = vcmp.eq.s32.totalorder %v1529, %v249
          %vm1535 = vcmp.eq.s32.totalorder %v1529, %v250
          %vm1536 = vcmp.eq.s32.totalorder %v1529, %v251
          %vm1537 = vcmp.eq.s32.totalorder %v1529, %v252
          %1538 = vset.pattern.permute.xlu0 41
          %1539 = vperm.xlu0 %1538, %v254
          %v1540 = vpop.permute.xlu0 %1539
          %v1542 = vsel %vm1530, %v1540, 0.0
          %v1543 = vsel %vm1531, %v1540, 0.0
          %v1544 = vsel %vm1532, %v1540, 0.0
          %v1545 = vsel %vm1533, %v1540, 0.0
          %v1546 = vsel %vm1534, %v1540, 0.0
          %v1547 = vsel %vm1535, %v1540, 0.0
          %v1548 = vsel %vm1536, %v1540, 0.0
          %v1549 = vsel %vm1537, %v1540, 0.0
          %v1550 = vadd.f32 %v1488, %v1542
          %v1551 = vadd.f32 %v1489, %v1543
          %v1552 = vadd.f32 %v1490, %v1544
          %v1553 = vadd.f32 %v1491, %v1545
          %v1554 = vadd.f32 %v1492, %v1546
          %v1555 = vadd.f32 %v1493, %v1547
          %v1556 = vadd.f32 %v1494, %v1548
          %v1557 = vadd.f32 %v1495, %v1549
          %1558 = vset.pattern.permute.xlu0 42
          %1559 = vperm.xlu0 %1558, %v253
          %v1560 = vpop.permute.xlu0 %1559
          %vm1561 = vcmp.eq.s32.totalorder %v1560, %v245
          %vm1562 = vcmp.eq.s32.totalorder %v1560, %v246
          %vm1563 = vcmp.eq.s32.totalorder %v1560, %v247
          %vm1564 = vcmp.eq.s32.totalorder %v1560, %v248
          %vm1565 = vcmp.eq.s32.totalorder %v1560, %v249
          %vm1566 = vcmp.eq.s32.totalorder %v1560, %v250
          %vm1567 = vcmp.eq.s32.totalorder %v1560, %v251
          %vm1568 = vcmp.eq.s32.totalorder %v1560, %v252
          %1569 = vset.pattern.permute.xlu0 42
          %1570 = vperm.xlu0 %1569, %v254
          %v1571 = vpop.permute.xlu0 %1570
          %v1573 = vsel %vm1561, %v1571, 0.0
          %v1574 = vsel %vm1562, %v1571, 0.0
          %v1575 = vsel %vm1563, %v1571, 0.0
          %v1576 = vsel %vm1564, %v1571, 0.0
          %v1577 = vsel %vm1565, %v1571, 0.0
          %v1578 = vsel %vm1566, %v1571, 0.0
          %v1579 = vsel %vm1567, %v1571, 0.0
          %v1580 = vsel %vm1568, %v1571, 0.0
          %v1581 = vadd.f32 %v1519, %v1573
          %v1582 = vadd.f32 %v1520, %v1574
          %v1583 = vadd.f32 %v1521, %v1575
          %v1584 = vadd.f32 %v1522, %v1576
          %v1585 = vadd.f32 %v1523, %v1577
          %v1586 = vadd.f32 %v1524, %v1578
          %v1587 = vadd.f32 %v1525, %v1579
          %v1588 = vadd.f32 %v1526, %v1580
          %1589 = vset.pattern.permute.xlu0 43
          %1590 = vperm.xlu0 %1589, %v253
          %v1591 = vpop.permute.xlu0 %1590
          %vm1592 = vcmp.eq.s32.totalorder %v1591, %v245
          %vm1593 = vcmp.eq.s32.totalorder %v1591, %v246
          %vm1594 = vcmp.eq.s32.totalorder %v1591, %v247
          %vm1595 = vcmp.eq.s32.totalorder %v1591, %v248
          %vm1596 = vcmp.eq.s32.totalorder %v1591, %v249
          %vm1597 = vcmp.eq.s32.totalorder %v1591, %v250
          %vm1598 = vcmp.eq.s32.totalorder %v1591, %v251
          %vm1599 = vcmp.eq.s32.totalorder %v1591, %v252
          %1600 = vset.pattern.permute.xlu0 43
          %1601 = vperm.xlu0 %1600, %v254
          %v1602 = vpop.permute.xlu0 %1601
          %v1604 = vsel %vm1592, %v1602, 0.0
          %v1605 = vsel %vm1593, %v1602, 0.0
          %v1606 = vsel %vm1594, %v1602, 0.0
          %v1607 = vsel %vm1595, %v1602, 0.0
          %v1608 = vsel %vm1596, %v1602, 0.0
          %v1609 = vsel %vm1597, %v1602, 0.0
          %v1610 = vsel %vm1598, %v1602, 0.0
          %v1611 = vsel %vm1599, %v1602, 0.0
          %v1612 = vadd.f32 %v1550, %v1604
          %v1613 = vadd.f32 %v1551, %v1605
          %v1614 = vadd.f32 %v1552, %v1606
          %v1615 = vadd.f32 %v1553, %v1607
          %v1616 = vadd.f32 %v1554, %v1608
          %v1617 = vadd.f32 %v1555, %v1609
          %v1618 = vadd.f32 %v1556, %v1610
          %v1619 = vadd.f32 %v1557, %v1611
          %1620 = vset.pattern.permute.xlu0 44
          %1621 = vperm.xlu0 %1620, %v253
          %v1622 = vpop.permute.xlu0 %1621
          %vm1623 = vcmp.eq.s32.totalorder %v1622, %v245
          %vm1624 = vcmp.eq.s32.totalorder %v1622, %v246
          %vm1625 = vcmp.eq.s32.totalorder %v1622, %v247
          %vm1626 = vcmp.eq.s32.totalorder %v1622, %v248
          %vm1627 = vcmp.eq.s32.totalorder %v1622, %v249
          %vm1628 = vcmp.eq.s32.totalorder %v1622, %v250
          %vm1629 = vcmp.eq.s32.totalorder %v1622, %v251
          %vm1630 = vcmp.eq.s32.totalorder %v1622, %v252
          %1631 = vset.pattern.permute.xlu0 44
          %1632 = vperm.xlu0 %1631, %v254
          %v1633 = vpop.permute.xlu0 %1632
          %v1635 = vsel %vm1623, %v1633, 0.0
          %v1636 = vsel %vm1624, %v1633, 0.0
          %v1637 = vsel %vm1625, %v1633, 0.0
          %v1638 = vsel %vm1626, %v1633, 0.0
          %v1639 = vsel %vm1627, %v1633, 0.0
          %v1640 = vsel %vm1628, %v1633, 0.0
          %v1641 = vsel %vm1629, %v1633, 0.0
          %v1642 = vsel %vm1630, %v1633, 0.0
          %v1643 = vadd.f32 %v1581, %v1635
          %v1644 = vadd.f32 %v1582, %v1636
          %v1645 = vadd.f32 %v1583, %v1637
          %v1646 = vadd.f32 %v1584, %v1638
          %v1647 = vadd.f32 %v1585, %v1639
          %v1648 = vadd.f32 %v1586, %v1640
          %v1649 = vadd.f32 %v1587, %v1641
          %v1650 = vadd.f32 %v1588, %v1642
          %1651 = vset.pattern.permute.xlu0 45
          %1652 = vperm.xlu0 %1651, %v253
          %v1653 = vpop.permute.xlu0 %1652
          %vm1654 = vcmp.eq.s32.totalorder %v1653, %v245
          %vm1655 = vcmp.eq.s32.totalorder %v1653, %v246
          %vm1656 = vcmp.eq.s32.totalorder %v1653, %v247
          %vm1657 = vcmp.eq.s32.totalorder %v1653, %v248
          %vm1658 = vcmp.eq.s32.totalorder %v1653, %v249
          %vm1659 = vcmp.eq.s32.totalorder %v1653, %v250
          %vm1660 = vcmp.eq.s32.totalorder %v1653, %v251
          %vm1661 = vcmp.eq.s32.totalorder %v1653, %v252
          %1662 = vset.pattern.permute.xlu0 45
          %1663 = vperm.xlu0 %1662, %v254
          %v1664 = vpop.permute.xlu0 %1663
          %v1666 = vsel %vm1654, %v1664, 0.0
          %v1667 = vsel %vm1655, %v1664, 0.0
          %v1668 = vsel %vm1656, %v1664, 0.0
          %v1669 = vsel %vm1657, %v1664, 0.0
          %v1670 = vsel %vm1658, %v1664, 0.0
          %v1671 = vsel %vm1659, %v1664, 0.0
          %v1672 = vsel %vm1660, %v1664, 0.0
          %v1673 = vsel %vm1661, %v1664, 0.0
          %v1674 = vadd.f32 %v1612, %v1666
          %v1675 = vadd.f32 %v1613, %v1667
          %v1676 = vadd.f32 %v1614, %v1668
          %v1677 = vadd.f32 %v1615, %v1669
          %v1678 = vadd.f32 %v1616, %v1670
          %v1679 = vadd.f32 %v1617, %v1671
          %v1680 = vadd.f32 %v1618, %v1672
          %v1681 = vadd.f32 %v1619, %v1673
          %1682 = vset.pattern.permute.xlu0 46
          %1683 = vperm.xlu0 %1682, %v253
          %v1684 = vpop.permute.xlu0 %1683
          %vm1685 = vcmp.eq.s32.totalorder %v1684, %v245
          %vm1686 = vcmp.eq.s32.totalorder %v1684, %v246
          %vm1687 = vcmp.eq.s32.totalorder %v1684, %v247
          %vm1688 = vcmp.eq.s32.totalorder %v1684, %v248
          %vm1689 = vcmp.eq.s32.totalorder %v1684, %v249
          %vm1690 = vcmp.eq.s32.totalorder %v1684, %v250
          %vm1691 = vcmp.eq.s32.totalorder %v1684, %v251
          %vm1692 = vcmp.eq.s32.totalorder %v1684, %v252
          %1693 = vset.pattern.permute.xlu0 46
          %1694 = vperm.xlu0 %1693, %v254
          %v1695 = vpop.permute.xlu0 %1694
          %v1697 = vsel %vm1685, %v1695, 0.0
          %v1698 = vsel %vm1686, %v1695, 0.0
          %v1699 = vsel %vm1687, %v1695, 0.0
          %v1700 = vsel %vm1688, %v1695, 0.0
          %v1701 = vsel %vm1689, %v1695, 0.0
          %v1702 = vsel %vm1690, %v1695, 0.0
          %v1703 = vsel %vm1691, %v1695, 0.0
          %v1704 = vsel %vm1692, %v1695, 0.0
          %v1705 = vadd.f32 %v1643, %v1697
          %v1706 = vadd.f32 %v1644, %v1698
          %v1707 = vadd.f32 %v1645, %v1699
          %v1708 = vadd.f32 %v1646, %v1700
          %v1709 = vadd.f32 %v1647, %v1701
          %v1710 = vadd.f32 %v1648, %v1702
          %v1711 = vadd.f32 %v1649, %v1703
          %v1712 = vadd.f32 %v1650, %v1704
          %1713 = vset.pattern.permute.xlu0 47
          %1714 = vperm.xlu0 %1713, %v253
          %v1715 = vpop.permute.xlu0 %1714
          %vm1716 = vcmp.eq.s32.totalorder %v1715, %v245
          %vm1717 = vcmp.eq.s32.totalorder %v1715, %v246
          %vm1718 = vcmp.eq.s32.totalorder %v1715, %v247
          %vm1719 = vcmp.eq.s32.totalorder %v1715, %v248
          %vm1720 = vcmp.eq.s32.totalorder %v1715, %v249
          %vm1721 = vcmp.eq.s32.totalorder %v1715, %v250
          %vm1722 = vcmp.eq.s32.totalorder %v1715, %v251
          %vm1723 = vcmp.eq.s32.totalorder %v1715, %v252
          %1724 = vset.pattern.permute.xlu0 47
          %1725 = vperm.xlu0 %1724, %v254
          %v1726 = vpop.permute.xlu0 %1725
          %v1728 = vsel %vm1716, %v1726, 0.0
          %v1729 = vsel %vm1717, %v1726, 0.0
          %v1730 = vsel %vm1718, %v1726, 0.0
          %v1731 = vsel %vm1719, %v1726, 0.0
          %v1732 = vsel %vm1720, %v1726, 0.0
          %v1733 = vsel %vm1721, %v1726, 0.0
          %v1734 = vsel %vm1722, %v1726, 0.0
          %v1735 = vsel %vm1723, %v1726, 0.0
          %v1736 = vadd.f32 %v1674, %v1728
          %v1737 = vadd.f32 %v1675, %v1729
          %v1738 = vadd.f32 %v1676, %v1730
          %v1739 = vadd.f32 %v1677, %v1731
          %v1740 = vadd.f32 %v1678, %v1732
          %v1741 = vadd.f32 %v1679, %v1733
          %v1742 = vadd.f32 %v1680, %v1734
          %v1743 = vadd.f32 %v1681, %v1735
          %1744 = vset.pattern.permute.xlu0 48
          %1745 = vperm.xlu0 %1744, %v253
          %v1746 = vpop.permute.xlu0 %1745
          %vm1747 = vcmp.eq.s32.totalorder %v1746, %v245
          %vm1748 = vcmp.eq.s32.totalorder %v1746, %v246
          %vm1749 = vcmp.eq.s32.totalorder %v1746, %v247
          %vm1750 = vcmp.eq.s32.totalorder %v1746, %v248
          %vm1751 = vcmp.eq.s32.totalorder %v1746, %v249
          %vm1752 = vcmp.eq.s32.totalorder %v1746, %v250
          %vm1753 = vcmp.eq.s32.totalorder %v1746, %v251
          %vm1754 = vcmp.eq.s32.totalorder %v1746, %v252
          %1755 = vset.pattern.permute.xlu0 48
          %1756 = vperm.xlu0 %1755, %v254
          %v1757 = vpop.permute.xlu0 %1756
          %v1759 = vsel %vm1747, %v1757, 0.0
          %v1760 = vsel %vm1748, %v1757, 0.0
          %v1761 = vsel %vm1749, %v1757, 0.0
          %v1762 = vsel %vm1750, %v1757, 0.0
          %v1763 = vsel %vm1751, %v1757, 0.0
          %v1764 = vsel %vm1752, %v1757, 0.0
          %v1765 = vsel %vm1753, %v1757, 0.0
          %v1766 = vsel %vm1754, %v1757, 0.0
          %v1767 = vadd.f32 %v1705, %v1759
          %v1768 = vadd.f32 %v1706, %v1760
          %v1769 = vadd.f32 %v1707, %v1761
          %v1770 = vadd.f32 %v1708, %v1762
          %v1771 = vadd.f32 %v1709, %v1763
          %v1772 = vadd.f32 %v1710, %v1764
          %v1773 = vadd.f32 %v1711, %v1765
          %v1774 = vadd.f32 %v1712, %v1766
          %1775 = vset.pattern.permute.xlu0 49
          %1776 = vperm.xlu0 %1775, %v253
          %v1777 = vpop.permute.xlu0 %1776
          %vm1778 = vcmp.eq.s32.totalorder %v1777, %v245
          %vm1779 = vcmp.eq.s32.totalorder %v1777, %v246
          %vm1780 = vcmp.eq.s32.totalorder %v1777, %v247
          %vm1781 = vcmp.eq.s32.totalorder %v1777, %v248
          %vm1782 = vcmp.eq.s32.totalorder %v1777, %v249
          %vm1783 = vcmp.eq.s32.totalorder %v1777, %v250
          %vm1784 = vcmp.eq.s32.totalorder %v1777, %v251
          %vm1785 = vcmp.eq.s32.totalorder %v1777, %v252
          %1786 = vset.pattern.permute.xlu0 49
          %1787 = vperm.xlu0 %1786, %v254
          %v1788 = vpop.permute.xlu0 %1787
          %v1790 = vsel %vm1778, %v1788, 0.0
          %v1791 = vsel %vm1779, %v1788, 0.0
          %v1792 = vsel %vm1780, %v1788, 0.0
          %v1793 = vsel %vm1781, %v1788, 0.0
          %v1794 = vsel %vm1782, %v1788, 0.0
          %v1795 = vsel %vm1783, %v1788, 0.0
          %v1796 = vsel %vm1784, %v1788, 0.0
          %v1797 = vsel %vm1785, %v1788, 0.0
          %v1798 = vadd.f32 %v1736, %v1790
          %v1799 = vadd.f32 %v1737, %v1791
          %v1800 = vadd.f32 %v1738, %v1792
          %v1801 = vadd.f32 %v1739, %v1793
          %v1802 = vadd.f32 %v1740, %v1794
          %v1803 = vadd.f32 %v1741, %v1795
          %v1804 = vadd.f32 %v1742, %v1796
          %v1805 = vadd.f32 %v1743, %v1797
          %1806 = vset.pattern.permute.xlu0 50
          %1807 = vperm.xlu0 %1806, %v253
          %v1808 = vpop.permute.xlu0 %1807
          %vm1809 = vcmp.eq.s32.totalorder %v1808, %v245
          %vm1810 = vcmp.eq.s32.totalorder %v1808, %v246
          %vm1811 = vcmp.eq.s32.totalorder %v1808, %v247
          %vm1812 = vcmp.eq.s32.totalorder %v1808, %v248
          %vm1813 = vcmp.eq.s32.totalorder %v1808, %v249
          %vm1814 = vcmp.eq.s32.totalorder %v1808, %v250
          %vm1815 = vcmp.eq.s32.totalorder %v1808, %v251
          %vm1816 = vcmp.eq.s32.totalorder %v1808, %v252
          %1817 = vset.pattern.permute.xlu0 50
          %1818 = vperm.xlu0 %1817, %v254
          %v1819 = vpop.permute.xlu0 %1818
          %v1821 = vsel %vm1809, %v1819, 0.0
          %v1822 = vsel %vm1810, %v1819, 0.0
          %v1823 = vsel %vm1811, %v1819, 0.0
          %v1824 = vsel %vm1812, %v1819, 0.0
          %v1825 = vsel %vm1813, %v1819, 0.0
          %v1826 = vsel %vm1814, %v1819, 0.0
          %v1827 = vsel %vm1815, %v1819, 0.0
          %v1828 = vsel %vm1816, %v1819, 0.0
          %v1829 = vadd.f32 %v1767, %v1821
          %v1830 = vadd.f32 %v1768, %v1822
          %v1831 = vadd.f32 %v1769, %v1823
          %v1832 = vadd.f32 %v1770, %v1824
          %v1833 = vadd.f32 %v1771, %v1825
          %v1834 = vadd.f32 %v1772, %v1826
          %v1835 = vadd.f32 %v1773, %v1827
          %v1836 = vadd.f32 %v1774, %v1828
          %1837 = vset.pattern.permute.xlu0 51
          %1838 = vperm.xlu0 %1837, %v253
          %v1839 = vpop.permute.xlu0 %1838
          %vm1840 = vcmp.eq.s32.totalorder %v1839, %v245
          %vm1841 = vcmp.eq.s32.totalorder %v1839, %v246
          %vm1842 = vcmp.eq.s32.totalorder %v1839, %v247
          %vm1843 = vcmp.eq.s32.totalorder %v1839, %v248
          %vm1844 = vcmp.eq.s32.totalorder %v1839, %v249
          %vm1845 = vcmp.eq.s32.totalorder %v1839, %v250
          %vm1846 = vcmp.eq.s32.totalorder %v1839, %v251
          %vm1847 = vcmp.eq.s32.totalorder %v1839, %v252
          %1848 = vset.pattern.permute.xlu0 51
          %1849 = vperm.xlu0 %1848, %v254
          %v1850 = vpop.permute.xlu0 %1849
          %v1852 = vsel %vm1840, %v1850, 0.0
          %v1853 = vsel %vm1841, %v1850, 0.0
          %v1854 = vsel %vm1842, %v1850, 0.0
          %v1855 = vsel %vm1843, %v1850, 0.0
          %v1856 = vsel %vm1844, %v1850, 0.0
          %v1857 = vsel %vm1845, %v1850, 0.0
          %v1858 = vsel %vm1846, %v1850, 0.0
          %v1859 = vsel %vm1847, %v1850, 0.0
          %v1860 = vadd.f32 %v1798, %v1852
          %v1861 = vadd.f32 %v1799, %v1853
          %v1862 = vadd.f32 %v1800, %v1854
          %v1863 = vadd.f32 %v1801, %v1855
          %v1864 = vadd.f32 %v1802, %v1856
          %v1865 = vadd.f32 %v1803, %v1857
          %v1866 = vadd.f32 %v1804, %v1858
          %v1867 = vadd.f32 %v1805, %v1859
          %1868 = vset.pattern.permute.xlu0 52
          %1869 = vperm.xlu0 %1868, %v253
          %v1870 = vpop.permute.xlu0 %1869
          %vm1871 = vcmp.eq.s32.totalorder %v1870, %v245
          %vm1872 = vcmp.eq.s32.totalorder %v1870, %v246
          %vm1873 = vcmp.eq.s32.totalorder %v1870, %v247
          %vm1874 = vcmp.eq.s32.totalorder %v1870, %v248
          %vm1875 = vcmp.eq.s32.totalorder %v1870, %v249
          %vm1876 = vcmp.eq.s32.totalorder %v1870, %v250
          %vm1877 = vcmp.eq.s32.totalorder %v1870, %v251
          %vm1878 = vcmp.eq.s32.totalorder %v1870, %v252
          %1879 = vset.pattern.permute.xlu0 52
          %1880 = vperm.xlu0 %1879, %v254
          %v1881 = vpop.permute.xlu0 %1880
          %v1883 = vsel %vm1871, %v1881, 0.0
          %v1884 = vsel %vm1872, %v1881, 0.0
          %v1885 = vsel %vm1873, %v1881, 0.0
          %v1886 = vsel %vm1874, %v1881, 0.0
          %v1887 = vsel %vm1875, %v1881, 0.0
          %v1888 = vsel %vm1876, %v1881, 0.0
          %v1889 = vsel %vm1877, %v1881, 0.0
          %v1890 = vsel %vm1878, %v1881, 0.0
          %v1891 = vadd.f32 %v1829, %v1883
          %v1892 = vadd.f32 %v1830, %v1884
          %v1893 = vadd.f32 %v1831, %v1885
          %v1894 = vadd.f32 %v1832, %v1886
          %v1895 = vadd.f32 %v1833, %v1887
          %v1896 = vadd.f32 %v1834, %v1888
          %v1897 = vadd.f32 %v1835, %v1889
          %v1898 = vadd.f32 %v1836, %v1890
          %1899 = vset.pattern.permute.xlu0 53
          %1900 = vperm.xlu0 %1899, %v253
          %v1901 = vpop.permute.xlu0 %1900
          %vm1902 = vcmp.eq.s32.totalorder %v1901, %v245
          %vm1903 = vcmp.eq.s32.totalorder %v1901, %v246
          %vm1904 = vcmp.eq.s32.totalorder %v1901, %v247
          %vm1905 = vcmp.eq.s32.totalorder %v1901, %v248
          %vm1906 = vcmp.eq.s32.totalorder %v1901, %v249
          %vm1907 = vcmp.eq.s32.totalorder %v1901, %v250
          %vm1908 = vcmp.eq.s32.totalorder %v1901, %v251
          %vm1909 = vcmp.eq.s32.totalorder %v1901, %v252
          %1910 = vset.pattern.permute.xlu0 53
          %1911 = vperm.xlu0 %1910, %v254
          %v1912 = vpop.permute.xlu0 %1911
          %v1914 = vsel %vm1902, %v1912, 0.0
          %v1915 = vsel %vm1903, %v1912, 0.0
          %v1916 = vsel %vm1904, %v1912, 0.0
          %v1917 = vsel %vm1905, %v1912, 0.0
          %v1918 = vsel %vm1906, %v1912, 0.0
          %v1919 = vsel %vm1907, %v1912, 0.0
          %v1920 = vsel %vm1908, %v1912, 0.0
          %v1921 = vsel %vm1909, %v1912, 0.0
          %v1922 = vadd.f32 %v1860, %v1914
          %v1923 = vadd.f32 %v1861, %v1915
          %v1924 = vadd.f32 %v1862, %v1916
          %v1925 = vadd.f32 %v1863, %v1917
          %v1926 = vadd.f32 %v1864, %v1918
          %v1927 = vadd.f32 %v1865, %v1919
          %v1928 = vadd.f32 %v1866, %v1920
          %v1929 = vadd.f32 %v1867, %v1921
          %1930 = vset.pattern.permute.xlu0 54
          %1931 = vperm.xlu0 %1930, %v253
          %v1932 = vpop.permute.xlu0 %1931
          %vm1933 = vcmp.eq.s32.totalorder %v1932, %v245
          %vm1934 = vcmp.eq.s32.totalorder %v1932, %v246
          %vm1935 = vcmp.eq.s32.totalorder %v1932, %v247
          %vm1936 = vcmp.eq.s32.totalorder %v1932, %v248
          %vm1937 = vcmp.eq.s32.totalorder %v1932, %v249
          %vm1938 = vcmp.eq.s32.totalorder %v1932, %v250
          %vm1939 = vcmp.eq.s32.totalorder %v1932, %v251
          %vm1940 = vcmp.eq.s32.totalorder %v1932, %v252
          %1941 = vset.pattern.permute.xlu0 54
          %1942 = vperm.xlu0 %1941, %v254
          %v1943 = vpop.permute.xlu0 %1942
          %v1945 = vsel %vm1933, %v1943, 0.0
          %v1946 = vsel %vm1934, %v1943, 0.0
          %v1947 = vsel %vm1935, %v1943, 0.0
          %v1948 = vsel %vm1936, %v1943, 0.0
          %v1949 = vsel %vm1937, %v1943, 0.0
          %v1950 = vsel %vm1938, %v1943, 0.0
          %v1951 = vsel %vm1939, %v1943, 0.0
          %v1952 = vsel %vm1940, %v1943, 0.0
          %v1953 = vadd.f32 %v1891, %v1945
          %v1954 = vadd.f32 %v1892, %v1946
          %v1955 = vadd.f32 %v1893, %v1947
          %v1956 = vadd.f32 %v1894, %v1948
          %v1957 = vadd.f32 %v1895, %v1949
          %v1958 = vadd.f32 %v1896, %v1950
          %v1959 = vadd.f32 %v1897, %v1951
          %v1960 = vadd.f32 %v1898, %v1952
          %1961 = vset.pattern.permute.xlu0 55
          %1962 = vperm.xlu0 %1961, %v253
          %v1963 = vpop.permute.xlu0 %1962
          %vm1964 = vcmp.eq.s32.totalorder %v1963, %v245
          %vm1965 = vcmp.eq.s32.totalorder %v1963, %v246
          %vm1966 = vcmp.eq.s32.totalorder %v1963, %v247
          %vm1967 = vcmp.eq.s32.totalorder %v1963, %v248
          %vm1968 = vcmp.eq.s32.totalorder %v1963, %v249
          %vm1969 = vcmp.eq.s32.totalorder %v1963, %v250
          %vm1970 = vcmp.eq.s32.totalorder %v1963, %v251
          %vm1971 = vcmp.eq.s32.totalorder %v1963, %v252
          %1972 = vset.pattern.permute.xlu0 55
          %1973 = vperm.xlu0 %1972, %v254
          %v1974 = vpop.permute.xlu0 %1973
          %v1976 = vsel %vm1964, %v1974, 0.0
          %v1977 = vsel %vm1965, %v1974, 0.0
          %v1978 = vsel %vm1966, %v1974, 0.0
          %v1979 = vsel %vm1967, %v1974, 0.0
          %v1980 = vsel %vm1968, %v1974, 0.0
          %v1981 = vsel %vm1969, %v1974, 0.0
          %v1982 = vsel %vm1970, %v1974, 0.0
          %v1983 = vsel %vm1971, %v1974, 0.0
          %v1984 = vadd.f32 %v1922, %v1976
          %v1985 = vadd.f32 %v1923, %v1977
          %v1986 = vadd.f32 %v1924, %v1978
          %v1987 = vadd.f32 %v1925, %v1979
          %v1988 = vadd.f32 %v1926, %v1980
          %v1989 = vadd.f32 %v1927, %v1981
          %v1990 = vadd.f32 %v1928, %v1982
          %v1991 = vadd.f32 %v1929, %v1983
          %1992 = vset.pattern.permute.xlu0 56
          %1993 = vperm.xlu0 %1992, %v253
          %v1994 = vpop.permute.xlu0 %1993
          %vm1995 = vcmp.eq.s32.totalorder %v1994, %v245
          %vm1996 = vcmp.eq.s32.totalorder %v1994, %v246
          %vm1997 = vcmp.eq.s32.totalorder %v1994, %v247
          %vm1998 = vcmp.eq.s32.totalorder %v1994, %v248
          %vm1999 = vcmp.eq.s32.totalorder %v1994, %v249
          %vm2000 = vcmp.eq.s32.totalorder %v1994, %v250
          %vm2001 = vcmp.eq.s32.totalorder %v1994, %v251
          %vm2002 = vcmp.eq.s32.totalorder %v1994, %v252
          %2003 = vset.pattern.permute.xlu0 56
          %2004 = vperm.xlu0 %2003, %v254
          %v2005 = vpop.permute.xlu0 %2004
          %v2007 = vsel %vm1995, %v2005, 0.0
          %v2008 = vsel %vm1996, %v2005, 0.0
          %v2009 = vsel %vm1997, %v2005, 0.0
          %v2010 = vsel %vm1998, %v2005, 0.0
          %v2011 = vsel %vm1999, %v2005, 0.0
          %v2012 = vsel %vm2000, %v2005, 0.0
          %v2013 = vsel %vm2001, %v2005, 0.0
          %v2014 = vsel %vm2002, %v2005, 0.0
          %v2015 = vadd.f32 %v1953, %v2007
          %v2016 = vadd.f32 %v1954, %v2008
          %v2017 = vadd.f32 %v1955, %v2009
          %v2018 = vadd.f32 %v1956, %v2010
          %v2019 = vadd.f32 %v1957, %v2011
          %v2020 = vadd.f32 %v1958, %v2012
          %v2021 = vadd.f32 %v1959, %v2013
          %v2022 = vadd.f32 %v1960, %v2014
          %2023 = vset.pattern.permute.xlu0 57
          %2024 = vperm.xlu0 %2023, %v253
          %v2025 = vpop.permute.xlu0 %2024
          %vm2026 = vcmp.eq.s32.totalorder %v2025, %v245
          %vm2027 = vcmp.eq.s32.totalorder %v2025, %v246
          %vm2028 = vcmp.eq.s32.totalorder %v2025, %v247
          %vm2029 = vcmp.eq.s32.totalorder %v2025, %v248
          %vm2030 = vcmp.eq.s32.totalorder %v2025, %v249
          %vm2031 = vcmp.eq.s32.totalorder %v2025, %v250
          %vm2032 = vcmp.eq.s32.totalorder %v2025, %v251
          %vm2033 = vcmp.eq.s32.totalorder %v2025, %v252
          %2034 = vset.pattern.permute.xlu0 57
          %2035 = vperm.xlu0 %2034, %v254
          %v2036 = vpop.permute.xlu0 %2035
          %v2038 = vsel %vm2026, %v2036, 0.0
          %v2039 = vsel %vm2027, %v2036, 0.0
          %v2040 = vsel %vm2028, %v2036, 0.0
          %v2041 = vsel %vm2029, %v2036, 0.0
          %v2042 = vsel %vm2030, %v2036, 0.0
          %v2043 = vsel %vm2031, %v2036, 0.0
          %v2044 = vsel %vm2032, %v2036, 0.0
          %v2045 = vsel %vm2033, %v2036, 0.0
          %v2046 = vadd.f32 %v1984, %v2038
          %v2047 = vadd.f32 %v1985, %v2039
          %v2048 = vadd.f32 %v1986, %v2040
          %v2049 = vadd.f32 %v1987, %v2041
          %v2050 = vadd.f32 %v1988, %v2042
          %v2051 = vadd.f32 %v1989, %v2043
          %v2052 = vadd.f32 %v1990, %v2044
          %v2053 = vadd.f32 %v1991, %v2045
          %2054 = vset.pattern.permute.xlu0 58
          %2055 = vperm.xlu0 %2054, %v253
          %v2056 = vpop.permute.xlu0 %2055
          %vm2057 = vcmp.eq.s32.totalorder %v2056, %v245
          %vm2058 = vcmp.eq.s32.totalorder %v2056, %v246
          %vm2059 = vcmp.eq.s32.totalorder %v2056, %v247
          %vm2060 = vcmp.eq.s32.totalorder %v2056, %v248
          %vm2061 = vcmp.eq.s32.totalorder %v2056, %v249
          %vm2062 = vcmp.eq.s32.totalorder %v2056, %v250
          %vm2063 = vcmp.eq.s32.totalorder %v2056, %v251
          %vm2064 = vcmp.eq.s32.totalorder %v2056, %v252
          %2065 = vset.pattern.permute.xlu0 58
          %2066 = vperm.xlu0 %2065, %v254
          %v2067 = vpop.permute.xlu0 %2066
          %v2069 = vsel %vm2057, %v2067, 0.0
          %v2070 = vsel %vm2058, %v2067, 0.0
          %v2071 = vsel %vm2059, %v2067, 0.0
          %v2072 = vsel %vm2060, %v2067, 0.0
          %v2073 = vsel %vm2061, %v2067, 0.0
          %v2074 = vsel %vm2062, %v2067, 0.0
          %v2075 = vsel %vm2063, %v2067, 0.0
          %v2076 = vsel %vm2064, %v2067, 0.0
          %v2077 = vadd.f32 %v2015, %v2069
          %v2078 = vadd.f32 %v2016, %v2070
          %v2079 = vadd.f32 %v2017, %v2071
          %v2080 = vadd.f32 %v2018, %v2072
          %v2081 = vadd.f32 %v2019, %v2073
          %v2082 = vadd.f32 %v2020, %v2074
          %v2083 = vadd.f32 %v2021, %v2075
          %v2084 = vadd.f32 %v2022, %v2076
          %2085 = vset.pattern.permute.xlu0 59
          %2086 = vperm.xlu0 %2085, %v253
          %v2087 = vpop.permute.xlu0 %2086
          %vm2088 = vcmp.eq.s32.totalorder %v2087, %v245
          %vm2089 = vcmp.eq.s32.totalorder %v2087, %v246
          %vm2090 = vcmp.eq.s32.totalorder %v2087, %v247
          %vm2091 = vcmp.eq.s32.totalorder %v2087, %v248
          %vm2092 = vcmp.eq.s32.totalorder %v2087, %v249
          %vm2093 = vcmp.eq.s32.totalorder %v2087, %v250
          %vm2094 = vcmp.eq.s32.totalorder %v2087, %v251
          %vm2095 = vcmp.eq.s32.totalorder %v2087, %v252
          %2096 = vset.pattern.permute.xlu0 59
          %2097 = vperm.xlu0 %2096, %v254
          %v2098 = vpop.permute.xlu0 %2097
          %v2100 = vsel %vm2088, %v2098, 0.0
          %v2101 = vsel %vm2089, %v2098, 0.0
          %v2102 = vsel %vm2090, %v2098, 0.0
          %v2103 = vsel %vm2091, %v2098, 0.0
          %v2104 = vsel %vm2092, %v2098, 0.0
          %v2105 = vsel %vm2093, %v2098, 0.0
          %v2106 = vsel %vm2094, %v2098, 0.0
          %v2107 = vsel %vm2095, %v2098, 0.0
          %v2108 = vadd.f32 %v2046, %v2100
          %v2109 = vadd.f32 %v2047, %v2101
          %v2110 = vadd.f32 %v2048, %v2102
          %v2111 = vadd.f32 %v2049, %v2103
          %v2112 = vadd.f32 %v2050, %v2104
          %v2113 = vadd.f32 %v2051, %v2105
          %v2114 = vadd.f32 %v2052, %v2106
          %v2115 = vadd.f32 %v2053, %v2107
          %2116 = vset.pattern.permute.xlu0 60
          %2117 = vperm.xlu0 %2116, %v253
          %v2118 = vpop.permute.xlu0 %2117
          %vm2119 = vcmp.eq.s32.totalorder %v2118, %v245
          %vm2120 = vcmp.eq.s32.totalorder %v2118, %v246
          %vm2121 = vcmp.eq.s32.totalorder %v2118, %v247
          %vm2122 = vcmp.eq.s32.totalorder %v2118, %v248
          %vm2123 = vcmp.eq.s32.totalorder %v2118, %v249
          %vm2124 = vcmp.eq.s32.totalorder %v2118, %v250
          %vm2125 = vcmp.eq.s32.totalorder %v2118, %v251
          %vm2126 = vcmp.eq.s32.totalorder %v2118, %v252
          %2127 = vset.pattern.permute.xlu0 60
          %2128 = vperm.xlu0 %2127, %v254
          %v2129 = vpop.permute.xlu0 %2128
          %v2131 = vsel %vm2119, %v2129, 0.0
          %v2132 = vsel %vm2120, %v2129, 0.0
          %v2133 = vsel %vm2121, %v2129, 0.0
          %v2134 = vsel %vm2122, %v2129, 0.0
          %v2135 = vsel %vm2123, %v2129, 0.0
          %v2136 = vsel %vm2124, %v2129, 0.0
          %v2137 = vsel %vm2125, %v2129, 0.0
          %v2138 = vsel %vm2126, %v2129, 0.0
          %v2139 = vadd.f32 %v2077, %v2131
          %v2140 = vadd.f32 %v2078, %v2132
          %v2141 = vadd.f32 %v2079, %v2133
          %v2142 = vadd.f32 %v2080, %v2134
          %v2143 = vadd.f32 %v2081, %v2135
          %v2144 = vadd.f32 %v2082, %v2136
          %v2145 = vadd.f32 %v2083, %v2137
          %v2146 = vadd.f32 %v2084, %v2138
          %2147 = vset.pattern.permute.xlu0 61
          %2148 = vperm.xlu0 %2147, %v253
          %v2149 = vpop.permute.xlu0 %2148
          %vm2150 = vcmp.eq.s32.totalorder %v2149, %v245
          %vm2151 = vcmp.eq.s32.totalorder %v2149, %v246
          %vm2152 = vcmp.eq.s32.totalorder %v2149, %v247
          %vm2153 = vcmp.eq.s32.totalorder %v2149, %v248
          %vm2154 = vcmp.eq.s32.totalorder %v2149, %v249
          %vm2155 = vcmp.eq.s32.totalorder %v2149, %v250
          %vm2156 = vcmp.eq.s32.totalorder %v2149, %v251
          %vm2157 = vcmp.eq.s32.totalorder %v2149, %v252
          %2158 = vset.pattern.permute.xlu0 61
          %2159 = vperm.xlu0 %2158, %v254
          %v2160 = vpop.permute.xlu0 %2159
          %v2162 = vsel %vm2150, %v2160, 0.0
          %v2163 = vsel %vm2151, %v2160, 0.0
          %v2164 = vsel %vm2152, %v2160, 0.0
          %v2165 = vsel %vm2153, %v2160, 0.0
          %v2166 = vsel %vm2154, %v2160, 0.0
          %v2167 = vsel %vm2155, %v2160, 0.0
          %v2168 = vsel %vm2156, %v2160, 0.0
          %v2169 = vsel %vm2157, %v2160, 0.0
          %v2170 = vadd.f32 %v2108, %v2162
          %v2171 = vadd.f32 %v2109, %v2163
          %v2172 = vadd.f32 %v2110, %v2164
          %v2173 = vadd.f32 %v2111, %v2165
          %v2174 = vadd.f32 %v2112, %v2166
          %v2175 = vadd.f32 %v2113, %v2167
          %v2176 = vadd.f32 %v2114, %v2168
          %v2177 = vadd.f32 %v2115, %v2169
          %2178 = vset.pattern.permute.xlu0 62
          %2179 = vperm.xlu0 %2178, %v253
          %v2180 = vpop.permute.xlu0 %2179
          %vm2181 = vcmp.eq.s32.totalorder %v2180, %v245
          %vm2182 = vcmp.eq.s32.totalorder %v2180, %v246
          %vm2183 = vcmp.eq.s32.totalorder %v2180, %v247
          %vm2184 = vcmp.eq.s32.totalorder %v2180, %v248
          %vm2185 = vcmp.eq.s32.totalorder %v2180, %v249
          %vm2186 = vcmp.eq.s32.totalorder %v2180, %v250
          %vm2187 = vcmp.eq.s32.totalorder %v2180, %v251
          %vm2188 = vcmp.eq.s32.totalorder %v2180, %v252
          %2189 = vset.pattern.permute.xlu0 62
          %2190 = vperm.xlu0 %2189, %v254
          %v2191 = vpop.permute.xlu0 %2190
          %v2193 = vsel %vm2181, %v2191, 0.0
          %v2194 = vsel %vm2182, %v2191, 0.0
          %v2195 = vsel %vm2183, %v2191, 0.0
          %v2196 = vsel %vm2184, %v2191, 0.0
          %v2197 = vsel %vm2185, %v2191, 0.0
          %v2198 = vsel %vm2186, %v2191, 0.0
          %v2199 = vsel %vm2187, %v2191, 0.0
          %v2200 = vsel %vm2188, %v2191, 0.0
          %v2201 = vadd.f32 %v2139, %v2193
          %v2202 = vadd.f32 %v2140, %v2194
          %v2203 = vadd.f32 %v2141, %v2195
          %v2204 = vadd.f32 %v2142, %v2196
          %v2205 = vadd.f32 %v2143, %v2197
          %v2206 = vadd.f32 %v2144, %v2198
          %v2207 = vadd.f32 %v2145, %v2199
          %v2208 = vadd.f32 %v2146, %v2200
          %2209 = vset.pattern.permute.xlu0 63
          %2210 = vperm.xlu0 %2209, %v253
          %v2211 = vpop.permute.xlu0 %2210
          %vm2212 = vcmp.eq.s32.totalorder %v2211, %v245
          %vm2213 = vcmp.eq.s32.totalorder %v2211, %v246
          %vm2214 = vcmp.eq.s32.totalorder %v2211, %v247
          %vm2215 = vcmp.eq.s32.totalorder %v2211, %v248
          %vm2216 = vcmp.eq.s32.totalorder %v2211, %v249
          %vm2217 = vcmp.eq.s32.totalorder %v2211, %v250
          %vm2218 = vcmp.eq.s32.totalorder %v2211, %v251
          %vm2219 = vcmp.eq.s32.totalorder %v2211, %v252
          %2220 = vset.pattern.permute.xlu0 63
          %2221 = vperm.xlu0 %2220, %v254
          %v2222 = vpop.permute.xlu0 %2221
          %v2224 = vsel %vm2212, %v2222, 0.0
          %v2225 = vsel %vm2213, %v2222, 0.0
          %v2226 = vsel %vm2214, %v2222, 0.0
          %v2227 = vsel %vm2215, %v2222, 0.0
          %v2228 = vsel %vm2216, %v2222, 0.0
          %v2229 = vsel %vm2217, %v2222, 0.0
          %v2230 = vsel %vm2218, %v2222, 0.0
          %v2231 = vsel %vm2219, %v2222, 0.0
          %v2232 = vadd.f32 %v2170, %v2224
          %v2233 = vadd.f32 %v2171, %v2225
          %v2234 = vadd.f32 %v2172, %v2226
          %v2235 = vadd.f32 %v2173, %v2227
          %v2236 = vadd.f32 %v2174, %v2228
          %v2237 = vadd.f32 %v2175, %v2229
          %v2238 = vadd.f32 %v2176, %v2230
          %v2239 = vadd.f32 %v2177, %v2231
          %2240 = vset.pattern.permute.xlu0 64
          %2241 = vperm.xlu0 %2240, %v253
          %v2242 = vpop.permute.xlu0 %2241
          %vm2243 = vcmp.eq.s32.totalorder %v2242, %v245
          %vm2244 = vcmp.eq.s32.totalorder %v2242, %v246
          %vm2245 = vcmp.eq.s32.totalorder %v2242, %v247
          %vm2246 = vcmp.eq.s32.totalorder %v2242, %v248
          %vm2247 = vcmp.eq.s32.totalorder %v2242, %v249
          %vm2248 = vcmp.eq.s32.totalorder %v2242, %v250
          %vm2249 = vcmp.eq.s32.totalorder %v2242, %v251
          %vm2250 = vcmp.eq.s32.totalorder %v2242, %v252
          %2251 = vset.pattern.permute.xlu0 64
          %2252 = vperm.xlu0 %2251, %v254
          %v2253 = vpop.permute.xlu0 %2252
          %v2255 = vsel %vm2243, %v2253, 0.0
          %v2256 = vsel %vm2244, %v2253, 0.0
          %v2257 = vsel %vm2245, %v2253, 0.0
          %v2258 = vsel %vm2246, %v2253, 0.0
          %v2259 = vsel %vm2247, %v2253, 0.0
          %v2260 = vsel %vm2248, %v2253, 0.0
          %v2261 = vsel %vm2249, %v2253, 0.0
          %v2262 = vsel %vm2250, %v2253, 0.0
          %v2263 = vadd.f32 %v2201, %v2255
          %v2264 = vadd.f32 %v2202, %v2256
          %v2265 = vadd.f32 %v2203, %v2257
          %v2266 = vadd.f32 %v2204, %v2258
          %v2267 = vadd.f32 %v2205, %v2259
          %v2268 = vadd.f32 %v2206, %v2260
          %v2269 = vadd.f32 %v2207, %v2261
          %v2270 = vadd.f32 %v2208, %v2262
          %2271 = vset.pattern.permute.xlu0 65
          %2272 = vperm.xlu0 %2271, %v253
          %v2273 = vpop.permute.xlu0 %2272
          %vm2274 = vcmp.eq.s32.totalorder %v2273, %v245
          %vm2275 = vcmp.eq.s32.totalorder %v2273, %v246
          %vm2276 = vcmp.eq.s32.totalorder %v2273, %v247
          %vm2277 = vcmp.eq.s32.totalorder %v2273, %v248
          %vm2278 = vcmp.eq.s32.totalorder %v2273, %v249
          %vm2279 = vcmp.eq.s32.totalorder %v2273, %v250
          %vm2280 = vcmp.eq.s32.totalorder %v2273, %v251
          %vm2281 = vcmp.eq.s32.totalorder %v2273, %v252
          %2282 = vset.pattern.permute.xlu0 65
          %2283 = vperm.xlu0 %2282, %v254
          %v2284 = vpop.permute.xlu0 %2283
          %v2286 = vsel %vm2274, %v2284, 0.0
          %v2287 = vsel %vm2275, %v2284, 0.0
          %v2288 = vsel %vm2276, %v2284, 0.0
          %v2289 = vsel %vm2277, %v2284, 0.0
          %v2290 = vsel %vm2278, %v2284, 0.0
          %v2291 = vsel %vm2279, %v2284, 0.0
          %v2292 = vsel %vm2280, %v2284, 0.0
          %v2293 = vsel %vm2281, %v2284, 0.0
          %v2294 = vadd.f32 %v2232, %v2286
          %v2295 = vadd.f32 %v2233, %v2287
          %v2296 = vadd.f32 %v2234, %v2288
          %v2297 = vadd.f32 %v2235, %v2289
          %v2298 = vadd.f32 %v2236, %v2290
          %v2299 = vadd.f32 %v2237, %v2291
          %v2300 = vadd.f32 %v2238, %v2292
          %v2301 = vadd.f32 %v2239, %v2293
          %2302 = vset.pattern.permute.xlu0 66
          %2303 = vperm.xlu0 %2302, %v253
          %v2304 = vpop.permute.xlu0 %2303
          %vm2305 = vcmp.eq.s32.totalorder %v2304, %v245
          %vm2306 = vcmp.eq.s32.totalorder %v2304, %v246
          %vm2307 = vcmp.eq.s32.totalorder %v2304, %v247
          %vm2308 = vcmp.eq.s32.totalorder %v2304, %v248
          %vm2309 = vcmp.eq.s32.totalorder %v2304, %v249
          %vm2310 = vcmp.eq.s32.totalorder %v2304, %v250
          %vm2311 = vcmp.eq.s32.totalorder %v2304, %v251
          %vm2312 = vcmp.eq.s32.totalorder %v2304, %v252
          %2313 = vset.pattern.permute.xlu0 66
          %2314 = vperm.xlu0 %2313, %v254
          %v2315 = vpop.permute.xlu0 %2314
          %v2317 = vsel %vm2305, %v2315, 0.0
          %v2318 = vsel %vm2306, %v2315, 0.0
          %v2319 = vsel %vm2307, %v2315, 0.0
          %v2320 = vsel %vm2308, %v2315, 0.0
          %v2321 = vsel %vm2309, %v2315, 0.0
          %v2322 = vsel %vm2310, %v2315, 0.0
          %v2323 = vsel %vm2311, %v2315, 0.0
          %v2324 = vsel %vm2312, %v2315, 0.0
          %v2325 = vadd.f32 %v2263, %v2317
          %v2326 = vadd.f32 %v2264, %v2318
          %v2327 = vadd.f32 %v2265, %v2319
          %v2328 = vadd.f32 %v2266, %v2320
          %v2329 = vadd.f32 %v2267, %v2321
          %v2330 = vadd.f32 %v2268, %v2322
          %v2331 = vadd.f32 %v2269, %v2323
          %v2332 = vadd.f32 %v2270, %v2324
          %2333 = vset.pattern.permute.xlu0 67
          %2334 = vperm.xlu0 %2333, %v253
          %v2335 = vpop.permute.xlu0 %2334
          %vm2336 = vcmp.eq.s32.totalorder %v2335, %v245
          %vm2337 = vcmp.eq.s32.totalorder %v2335, %v246
          %vm2338 = vcmp.eq.s32.totalorder %v2335, %v247
          %vm2339 = vcmp.eq.s32.totalorder %v2335, %v248
          %vm2340 = vcmp.eq.s32.totalorder %v2335, %v249
          %vm2341 = vcmp.eq.s32.totalorder %v2335, %v250
          %vm2342 = vcmp.eq.s32.totalorder %v2335, %v251
          %vm2343 = vcmp.eq.s32.totalorder %v2335, %v252
          %2344 = vset.pattern.permute.xlu0 67
          %2345 = vperm.xlu0 %2344, %v254
          %v2346 = vpop.permute.xlu0 %2345
          %v2348 = vsel %vm2336, %v2346, 0.0
          %v2349 = vsel %vm2337, %v2346, 0.0
          %v2350 = vsel %vm2338, %v2346, 0.0
          %v2351 = vsel %vm2339, %v2346, 0.0
          %v2352 = vsel %vm2340, %v2346, 0.0
          %v2353 = vsel %vm2341, %v2346, 0.0
          %v2354 = vsel %vm2342, %v2346, 0.0
          %v2355 = vsel %vm2343, %v2346, 0.0
          %v2356 = vadd.f32 %v2294, %v2348
          %v2357 = vadd.f32 %v2295, %v2349
          %v2358 = vadd.f32 %v2296, %v2350
          %v2359 = vadd.f32 %v2297, %v2351
          %v2360 = vadd.f32 %v2298, %v2352
          %v2361 = vadd.f32 %v2299, %v2353
          %v2362 = vadd.f32 %v2300, %v2354
          %v2363 = vadd.f32 %v2301, %v2355
          %2364 = vset.pattern.permute.xlu0 68
          %2365 = vperm.xlu0 %2364, %v253
          %v2366 = vpop.permute.xlu0 %2365
          %vm2367 = vcmp.eq.s32.totalorder %v2366, %v245
          %vm2368 = vcmp.eq.s32.totalorder %v2366, %v246
          %vm2369 = vcmp.eq.s32.totalorder %v2366, %v247
          %vm2370 = vcmp.eq.s32.totalorder %v2366, %v248
          %vm2371 = vcmp.eq.s32.totalorder %v2366, %v249
          %vm2372 = vcmp.eq.s32.totalorder %v2366, %v250
          %vm2373 = vcmp.eq.s32.totalorder %v2366, %v251
          %vm2374 = vcmp.eq.s32.totalorder %v2366, %v252
          %2375 = vset.pattern.permute.xlu0 68
          %2376 = vperm.xlu0 %2375, %v254
          %v2377 = vpop.permute.xlu0 %2376
          %v2379 = vsel %vm2367, %v2377, 0.0
          %v2380 = vsel %vm2368, %v2377, 0.0
          %v2381 = vsel %vm2369, %v2377, 0.0
          %v2382 = vsel %vm2370, %v2377, 0.0
          %v2383 = vsel %vm2371, %v2377, 0.0
          %v2384 = vsel %vm2372, %v2377, 0.0
          %v2385 = vsel %vm2373, %v2377, 0.0
          %v2386 = vsel %vm2374, %v2377, 0.0
          %v2387 = vadd.f32 %v2325, %v2379
          %v2388 = vadd.f32 %v2326, %v2380
          %v2389 = vadd.f32 %v2327, %v2381
          %v2390 = vadd.f32 %v2328, %v2382
          %v2391 = vadd.f32 %v2329, %v2383
          %v2392 = vadd.f32 %v2330, %v2384
          %v2393 = vadd.f32 %v2331, %v2385
          %v2394 = vadd.f32 %v2332, %v2386
          %2395 = vset.pattern.permute.xlu0 69
          %2396 = vperm.xlu0 %2395, %v253
          %v2397 = vpop.permute.xlu0 %2396
          %vm2398 = vcmp.eq.s32.totalorder %v2397, %v245
          %vm2399 = vcmp.eq.s32.totalorder %v2397, %v246
          %vm2400 = vcmp.eq.s32.totalorder %v2397, %v247
          %vm2401 = vcmp.eq.s32.totalorder %v2397, %v248
          %vm2402 = vcmp.eq.s32.totalorder %v2397, %v249
          %vm2403 = vcmp.eq.s32.totalorder %v2397, %v250
          %vm2404 = vcmp.eq.s32.totalorder %v2397, %v251
          %vm2405 = vcmp.eq.s32.totalorder %v2397, %v252
          %2406 = vset.pattern.permute.xlu0 69
          %2407 = vperm.xlu0 %2406, %v254
          %v2408 = vpop.permute.xlu0 %2407
          %v2410 = vsel %vm2398, %v2408, 0.0
          %v2411 = vsel %vm2399, %v2408, 0.0
          %v2412 = vsel %vm2400, %v2408, 0.0
          %v2413 = vsel %vm2401, %v2408, 0.0
          %v2414 = vsel %vm2402, %v2408, 0.0
          %v2415 = vsel %vm2403, %v2408, 0.0
          %v2416 = vsel %vm2404, %v2408, 0.0
          %v2417 = vsel %vm2405, %v2408, 0.0
          %v2418 = vadd.f32 %v2356, %v2410
          %v2419 = vadd.f32 %v2357, %v2411
          %v2420 = vadd.f32 %v2358, %v2412
          %v2421 = vadd.f32 %v2359, %v2413
          %v2422 = vadd.f32 %v2360, %v2414
          %v2423 = vadd.f32 %v2361, %v2415
          %v2424 = vadd.f32 %v2362, %v2416
          %v2425 = vadd.f32 %v2363, %v2417
          %2426 = vset.pattern.permute.xlu0 70
          %2427 = vperm.xlu0 %2426, %v253
          %v2428 = vpop.permute.xlu0 %2427
          %vm2429 = vcmp.eq.s32.totalorder %v2428, %v245
          %vm2430 = vcmp.eq.s32.totalorder %v2428, %v246
          %vm2431 = vcmp.eq.s32.totalorder %v2428, %v247
          %vm2432 = vcmp.eq.s32.totalorder %v2428, %v248
          %vm2433 = vcmp.eq.s32.totalorder %v2428, %v249
          %vm2434 = vcmp.eq.s32.totalorder %v2428, %v250
          %vm2435 = vcmp.eq.s32.totalorder %v2428, %v251
          %vm2436 = vcmp.eq.s32.totalorder %v2428, %v252
          %2437 = vset.pattern.permute.xlu0 70
          %2438 = vperm.xlu0 %2437, %v254
          %v2439 = vpop.permute.xlu0 %2438
          %v2441 = vsel %vm2429, %v2439, 0.0
          %v2442 = vsel %vm2430, %v2439, 0.0
          %v2443 = vsel %vm2431, %v2439, 0.0
          %v2444 = vsel %vm2432, %v2439, 0.0
          %v2445 = vsel %vm2433, %v2439, 0.0
          %v2446 = vsel %vm2434, %v2439, 0.0
          %v2447 = vsel %vm2435, %v2439, 0.0
          %v2448 = vsel %vm2436, %v2439, 0.0
          %v2449 = vadd.f32 %v2387, %v2441
          %v2450 = vadd.f32 %v2388, %v2442
          %v2451 = vadd.f32 %v2389, %v2443
          %v2452 = vadd.f32 %v2390, %v2444
          %v2453 = vadd.f32 %v2391, %v2445
          %v2454 = vadd.f32 %v2392, %v2446
          %v2455 = vadd.f32 %v2393, %v2447
          %v2456 = vadd.f32 %v2394, %v2448
          %2457 = vset.pattern.permute.xlu0 71
          %2458 = vperm.xlu0 %2457, %v253
          %v2459 = vpop.permute.xlu0 %2458
          %vm2460 = vcmp.eq.s32.totalorder %v2459, %v245
          %vm2461 = vcmp.eq.s32.totalorder %v2459, %v246
          %vm2462 = vcmp.eq.s32.totalorder %v2459, %v247
          %vm2463 = vcmp.eq.s32.totalorder %v2459, %v248
          %vm2464 = vcmp.eq.s32.totalorder %v2459, %v249
          %vm2465 = vcmp.eq.s32.totalorder %v2459, %v250
          %vm2466 = vcmp.eq.s32.totalorder %v2459, %v251
          %vm2467 = vcmp.eq.s32.totalorder %v2459, %v252
          %2468 = vset.pattern.permute.xlu0 71
          %2469 = vperm.xlu0 %2468, %v254
          %v2470 = vpop.permute.xlu0 %2469
          %v2472 = vsel %vm2460, %v2470, 0.0
          %v2473 = vsel %vm2461, %v2470, 0.0
          %v2474 = vsel %vm2462, %v2470, 0.0
          %v2475 = vsel %vm2463, %v2470, 0.0
          %v2476 = vsel %vm2464, %v2470, 0.0
          %v2477 = vsel %vm2465, %v2470, 0.0
          %v2478 = vsel %vm2466, %v2470, 0.0
          %v2479 = vsel %vm2467, %v2470, 0.0
          %v2480 = vadd.f32 %v2418, %v2472
          %v2481 = vadd.f32 %v2419, %v2473
          %v2482 = vadd.f32 %v2420, %v2474
          %v2483 = vadd.f32 %v2421, %v2475
          %v2484 = vadd.f32 %v2422, %v2476
          %v2485 = vadd.f32 %v2423, %v2477
          %v2486 = vadd.f32 %v2424, %v2478
          %v2487 = vadd.f32 %v2425, %v2479
          %2488 = vset.pattern.permute.xlu0 72
          %2489 = vperm.xlu0 %2488, %v253
          %v2490 = vpop.permute.xlu0 %2489
          %vm2491 = vcmp.eq.s32.totalorder %v2490, %v245
          %vm2492 = vcmp.eq.s32.totalorder %v2490, %v246
          %vm2493 = vcmp.eq.s32.totalorder %v2490, %v247
          %vm2494 = vcmp.eq.s32.totalorder %v2490, %v248
          %vm2495 = vcmp.eq.s32.totalorder %v2490, %v249
          %vm2496 = vcmp.eq.s32.totalorder %v2490, %v250
          %vm2497 = vcmp.eq.s32.totalorder %v2490, %v251
          %vm2498 = vcmp.eq.s32.totalorder %v2490, %v252
          %2499 = vset.pattern.permute.xlu0 72
          %2500 = vperm.xlu0 %2499, %v254
          %v2501 = vpop.permute.xlu0 %2500
          %v2503 = vsel %vm2491, %v2501, 0.0
          %v2504 = vsel %vm2492, %v2501, 0.0
          %v2505 = vsel %vm2493, %v2501, 0.0
          %v2506 = vsel %vm2494, %v2501, 0.0
          %v2507 = vsel %vm2495, %v2501, 0.0
          %v2508 = vsel %vm2496, %v2501, 0.0
          %v2509 = vsel %vm2497, %v2501, 0.0
          %v2510 = vsel %vm2498, %v2501, 0.0
          %v2511 = vadd.f32 %v2449, %v2503
          %v2512 = vadd.f32 %v2450, %v2504
          %v2513 = vadd.f32 %v2451, %v2505
          %v2514 = vadd.f32 %v2452, %v2506
          %v2515 = vadd.f32 %v2453, %v2507
          %v2516 = vadd.f32 %v2454, %v2508
          %v2517 = vadd.f32 %v2455, %v2509
          %v2518 = vadd.f32 %v2456, %v2510
          %2519 = vset.pattern.permute.xlu0 73
          %2520 = vperm.xlu0 %2519, %v253
          %v2521 = vpop.permute.xlu0 %2520
          %vm2522 = vcmp.eq.s32.totalorder %v2521, %v245
          %vm2523 = vcmp.eq.s32.totalorder %v2521, %v246
          %vm2524 = vcmp.eq.s32.totalorder %v2521, %v247
          %vm2525 = vcmp.eq.s32.totalorder %v2521, %v248
          %vm2526 = vcmp.eq.s32.totalorder %v2521, %v249
          %vm2527 = vcmp.eq.s32.totalorder %v2521, %v250
          %vm2528 = vcmp.eq.s32.totalorder %v2521, %v251
          %vm2529 = vcmp.eq.s32.totalorder %v2521, %v252
          %2530 = vset.pattern.permute.xlu0 73
          %2531 = vperm.xlu0 %2530, %v254
          %v2532 = vpop.permute.xlu0 %2531
          %v2534 = vsel %vm2522, %v2532, 0.0
          %v2535 = vsel %vm2523, %v2532, 0.0
          %v2536 = vsel %vm2524, %v2532, 0.0
          %v2537 = vsel %vm2525, %v2532, 0.0
          %v2538 = vsel %vm2526, %v2532, 0.0
          %v2539 = vsel %vm2527, %v2532, 0.0
          %v2540 = vsel %vm2528, %v2532, 0.0
          %v2541 = vsel %vm2529, %v2532, 0.0
          %v2542 = vadd.f32 %v2480, %v2534
          %v2543 = vadd.f32 %v2481, %v2535
          %v2544 = vadd.f32 %v2482, %v2536
          %v2545 = vadd.f32 %v2483, %v2537
          %v2546 = vadd.f32 %v2484, %v2538
          %v2547 = vadd.f32 %v2485, %v2539
          %v2548 = vadd.f32 %v2486, %v2540
          %v2549 = vadd.f32 %v2487, %v2541
          %2550 = vset.pattern.permute.xlu0 74
          %2551 = vperm.xlu0 %2550, %v253
          %v2552 = vpop.permute.xlu0 %2551
          %vm2553 = vcmp.eq.s32.totalorder %v2552, %v245
          %vm2554 = vcmp.eq.s32.totalorder %v2552, %v246
          %vm2555 = vcmp.eq.s32.totalorder %v2552, %v247
          %vm2556 = vcmp.eq.s32.totalorder %v2552, %v248
          %vm2557 = vcmp.eq.s32.totalorder %v2552, %v249
          %vm2558 = vcmp.eq.s32.totalorder %v2552, %v250
          %vm2559 = vcmp.eq.s32.totalorder %v2552, %v251
          %vm2560 = vcmp.eq.s32.totalorder %v2552, %v252
          %2561 = vset.pattern.permute.xlu0 74
          %2562 = vperm.xlu0 %2561, %v254
          %v2563 = vpop.permute.xlu0 %2562
          %v2565 = vsel %vm2553, %v2563, 0.0
          %v2566 = vsel %vm2554, %v2563, 0.0
          %v2567 = vsel %vm2555, %v2563, 0.0
          %v2568 = vsel %vm2556, %v2563, 0.0
          %v2569 = vsel %vm2557, %v2563, 0.0
          %v2570 = vsel %vm2558, %v2563, 0.0
          %v2571 = vsel %vm2559, %v2563, 0.0
          %v2572 = vsel %vm2560, %v2563, 0.0
          %v2573 = vadd.f32 %v2511, %v2565
          %v2574 = vadd.f32 %v2512, %v2566
          %v2575 = vadd.f32 %v2513, %v2567
          %v2576 = vadd.f32 %v2514, %v2568
          %v2577 = vadd.f32 %v2515, %v2569
          %v2578 = vadd.f32 %v2516, %v2570
          %v2579 = vadd.f32 %v2517, %v2571
          %v2580 = vadd.f32 %v2518, %v2572
          %2581 = vset.pattern.permute.xlu0 75
          %2582 = vperm.xlu0 %2581, %v253
          %v2583 = vpop.permute.xlu0 %2582
          %vm2584 = vcmp.eq.s32.totalorder %v2583, %v245
          %vm2585 = vcmp.eq.s32.totalorder %v2583, %v246
          %vm2586 = vcmp.eq.s32.totalorder %v2583, %v247
          %vm2587 = vcmp.eq.s32.totalorder %v2583, %v248
          %vm2588 = vcmp.eq.s32.totalorder %v2583, %v249
          %vm2589 = vcmp.eq.s32.totalorder %v2583, %v250
          %vm2590 = vcmp.eq.s32.totalorder %v2583, %v251
          %vm2591 = vcmp.eq.s32.totalorder %v2583, %v252
          %2592 = vset.pattern.permute.xlu0 75
          %2593 = vperm.xlu0 %2592, %v254
          %v2594 = vpop.permute.xlu0 %2593
          %v2596 = vsel %vm2584, %v2594, 0.0
          %v2597 = vsel %vm2585, %v2594, 0.0
          %v2598 = vsel %vm2586, %v2594, 0.0
          %v2599 = vsel %vm2587, %v2594, 0.0
          %v2600 = vsel %vm2588, %v2594, 0.0
          %v2601 = vsel %vm2589, %v2594, 0.0
          %v2602 = vsel %vm2590, %v2594, 0.0
          %v2603 = vsel %vm2591, %v2594, 0.0
          %v2604 = vadd.f32 %v2542, %v2596
          %v2605 = vadd.f32 %v2543, %v2597
          %v2606 = vadd.f32 %v2544, %v2598
          %v2607 = vadd.f32 %v2545, %v2599
          %v2608 = vadd.f32 %v2546, %v2600
          %v2609 = vadd.f32 %v2547, %v2601
          %v2610 = vadd.f32 %v2548, %v2602
          %v2611 = vadd.f32 %v2549, %v2603
          %2612 = vset.pattern.permute.xlu0 76
          %2613 = vperm.xlu0 %2612, %v253
          %v2614 = vpop.permute.xlu0 %2613
          %vm2615 = vcmp.eq.s32.totalorder %v2614, %v245
          %vm2616 = vcmp.eq.s32.totalorder %v2614, %v246
          %vm2617 = vcmp.eq.s32.totalorder %v2614, %v247
          %vm2618 = vcmp.eq.s32.totalorder %v2614, %v248
          %vm2619 = vcmp.eq.s32.totalorder %v2614, %v249
          %vm2620 = vcmp.eq.s32.totalorder %v2614, %v250
          %vm2621 = vcmp.eq.s32.totalorder %v2614, %v251
          %vm2622 = vcmp.eq.s32.totalorder %v2614, %v252
          %2623 = vset.pattern.permute.xlu0 76
          %2624 = vperm.xlu0 %2623, %v254
          %v2625 = vpop.permute.xlu0 %2624
          %v2627 = vsel %vm2615, %v2625, 0.0
          %v2628 = vsel %vm2616, %v2625, 0.0
          %v2629 = vsel %vm2617, %v2625, 0.0
          %v2630 = vsel %vm2618, %v2625, 0.0
          %v2631 = vsel %vm2619, %v2625, 0.0
          %v2632 = vsel %vm2620, %v2625, 0.0
          %v2633 = vsel %vm2621, %v2625, 0.0
          %v2634 = vsel %vm2622, %v2625, 0.0
          %v2635 = vadd.f32 %v2573, %v2627
          %v2636 = vadd.f32 %v2574, %v2628
          %v2637 = vadd.f32 %v2575, %v2629
          %v2638 = vadd.f32 %v2576, %v2630
          %v2639 = vadd.f32 %v2577, %v2631
          %v2640 = vadd.f32 %v2578, %v2632
          %v2641 = vadd.f32 %v2579, %v2633
          %v2642 = vadd.f32 %v2580, %v2634
          %2643 = vset.pattern.permute.xlu0 77
          %2644 = vperm.xlu0 %2643, %v253
          %v2645 = vpop.permute.xlu0 %2644
          %vm2646 = vcmp.eq.s32.totalorder %v2645, %v245
          %vm2647 = vcmp.eq.s32.totalorder %v2645, %v246
          %vm2648 = vcmp.eq.s32.totalorder %v2645, %v247
          %vm2649 = vcmp.eq.s32.totalorder %v2645, %v248
          %vm2650 = vcmp.eq.s32.totalorder %v2645, %v249
          %vm2651 = vcmp.eq.s32.totalorder %v2645, %v250
          %vm2652 = vcmp.eq.s32.totalorder %v2645, %v251
          %vm2653 = vcmp.eq.s32.totalorder %v2645, %v252
          %2654 = vset.pattern.permute.xlu0 77
          %2655 = vperm.xlu0 %2654, %v254
          %v2656 = vpop.permute.xlu0 %2655
          %v2658 = vsel %vm2646, %v2656, 0.0
          %v2659 = vsel %vm2647, %v2656, 0.0
          %v2660 = vsel %vm2648, %v2656, 0.0
          %v2661 = vsel %vm2649, %v2656, 0.0
          %v2662 = vsel %vm2650, %v2656, 0.0
          %v2663 = vsel %vm2651, %v2656, 0.0
          %v2664 = vsel %vm2652, %v2656, 0.0
          %v2665 = vsel %vm2653, %v2656, 0.0
          %v2666 = vadd.f32 %v2604, %v2658
          %v2667 = vadd.f32 %v2605, %v2659
          %v2668 = vadd.f32 %v2606, %v2660
          %v2669 = vadd.f32 %v2607, %v2661
          %v2670 = vadd.f32 %v2608, %v2662
          %v2671 = vadd.f32 %v2609, %v2663
          %v2672 = vadd.f32 %v2610, %v2664
          %v2673 = vadd.f32 %v2611, %v2665
          %2674 = vset.pattern.permute.xlu0 78
          %2675 = vperm.xlu0 %2674, %v253
          %v2676 = vpop.permute.xlu0 %2675
          %vm2677 = vcmp.eq.s32.totalorder %v2676, %v245
          %vm2678 = vcmp.eq.s32.totalorder %v2676, %v246
          %vm2679 = vcmp.eq.s32.totalorder %v2676, %v247
          %vm2680 = vcmp.eq.s32.totalorder %v2676, %v248
          %vm2681 = vcmp.eq.s32.totalorder %v2676, %v249
          %vm2682 = vcmp.eq.s32.totalorder %v2676, %v250
          %vm2683 = vcmp.eq.s32.totalorder %v2676, %v251
          %vm2684 = vcmp.eq.s32.totalorder %v2676, %v252
          %2685 = vset.pattern.permute.xlu0 78
          %2686 = vperm.xlu0 %2685, %v254
          %v2687 = vpop.permute.xlu0 %2686
          %v2689 = vsel %vm2677, %v2687, 0.0
          %v2690 = vsel %vm2678, %v2687, 0.0
          %v2691 = vsel %vm2679, %v2687, 0.0
          %v2692 = vsel %vm2680, %v2687, 0.0
          %v2693 = vsel %vm2681, %v2687, 0.0
          %v2694 = vsel %vm2682, %v2687, 0.0
          %v2695 = vsel %vm2683, %v2687, 0.0
          %v2696 = vsel %vm2684, %v2687, 0.0
          %v2697 = vadd.f32 %v2635, %v2689
          %v2698 = vadd.f32 %v2636, %v2690
          %v2699 = vadd.f32 %v2637, %v2691
          %v2700 = vadd.f32 %v2638, %v2692
          %v2701 = vadd.f32 %v2639, %v2693
          %v2702 = vadd.f32 %v2640, %v2694
          %v2703 = vadd.f32 %v2641, %v2695
          %v2704 = vadd.f32 %v2642, %v2696
          %2705 = vset.pattern.permute.xlu0 79
          %2706 = vperm.xlu0 %2705, %v253
          %v2707 = vpop.permute.xlu0 %2706
          %vm2708 = vcmp.eq.s32.totalorder %v2707, %v245
          %vm2709 = vcmp.eq.s32.totalorder %v2707, %v246
          %vm2710 = vcmp.eq.s32.totalorder %v2707, %v247
          %vm2711 = vcmp.eq.s32.totalorder %v2707, %v248
          %vm2712 = vcmp.eq.s32.totalorder %v2707, %v249
          %vm2713 = vcmp.eq.s32.totalorder %v2707, %v250
          %vm2714 = vcmp.eq.s32.totalorder %v2707, %v251
          %vm2715 = vcmp.eq.s32.totalorder %v2707, %v252
          %2716 = vset.pattern.permute.xlu0 79
          %2717 = vperm.xlu0 %2716, %v254
          %v2718 = vpop.permute.xlu0 %2717
          %v2720 = vsel %vm2708, %v2718, 0.0
          %v2721 = vsel %vm2709, %v2718, 0.0
          %v2722 = vsel %vm2710, %v2718, 0.0
          %v2723 = vsel %vm2711, %v2718, 0.0
          %v2724 = vsel %vm2712, %v2718, 0.0
          %v2725 = vsel %vm2713, %v2718, 0.0
          %v2726 = vsel %vm2714, %v2718, 0.0
          %v2727 = vsel %vm2715, %v2718, 0.0
          %v2728 = vadd.f32 %v2666, %v2720
          %v2729 = vadd.f32 %v2667, %v2721
          %v2730 = vadd.f32 %v2668, %v2722
          %v2731 = vadd.f32 %v2669, %v2723
          %v2732 = vadd.f32 %v2670, %v2724
          %v2733 = vadd.f32 %v2671, %v2725
          %v2734 = vadd.f32 %v2672, %v2726
          %v2735 = vadd.f32 %v2673, %v2727
          %2736 = vset.pattern.permute.xlu0 80
          %2737 = vperm.xlu0 %2736, %v253
          %v2738 = vpop.permute.xlu0 %2737
          %vm2739 = vcmp.eq.s32.totalorder %v2738, %v245
          %vm2740 = vcmp.eq.s32.totalorder %v2738, %v246
          %vm2741 = vcmp.eq.s32.totalorder %v2738, %v247
          %vm2742 = vcmp.eq.s32.totalorder %v2738, %v248
          %vm2743 = vcmp.eq.s32.totalorder %v2738, %v249
          %vm2744 = vcmp.eq.s32.totalorder %v2738, %v250
          %vm2745 = vcmp.eq.s32.totalorder %v2738, %v251
          %vm2746 = vcmp.eq.s32.totalorder %v2738, %v252
          %2747 = vset.pattern.permute.xlu0 80
          %2748 = vperm.xlu0 %2747, %v254
          %v2749 = vpop.permute.xlu0 %2748
          %v2751 = vsel %vm2739, %v2749, 0.0
          %v2752 = vsel %vm2740, %v2749, 0.0
          %v2753 = vsel %vm2741, %v2749, 0.0
          %v2754 = vsel %vm2742, %v2749, 0.0
          %v2755 = vsel %vm2743, %v2749, 0.0
          %v2756 = vsel %vm2744, %v2749, 0.0
          %v2757 = vsel %vm2745, %v2749, 0.0
          %v2758 = vsel %vm2746, %v2749, 0.0
          %v2759 = vadd.f32 %v2697, %v2751
          %v2760 = vadd.f32 %v2698, %v2752
          %v2761 = vadd.f32 %v2699, %v2753
          %v2762 = vadd.f32 %v2700, %v2754
          %v2763 = vadd.f32 %v2701, %v2755
          %v2764 = vadd.f32 %v2702, %v2756
          %v2765 = vadd.f32 %v2703, %v2757
          %v2766 = vadd.f32 %v2704, %v2758
          %2767 = vset.pattern.permute.xlu0 81
          %2768 = vperm.xlu0 %2767, %v253
          %v2769 = vpop.permute.xlu0 %2768
          %vm2770 = vcmp.eq.s32.totalorder %v2769, %v245
          %vm2771 = vcmp.eq.s32.totalorder %v2769, %v246
          %vm2772 = vcmp.eq.s32.totalorder %v2769, %v247
          %vm2773 = vcmp.eq.s32.totalorder %v2769, %v248
          %vm2774 = vcmp.eq.s32.totalorder %v2769, %v249
          %vm2775 = vcmp.eq.s32.totalorder %v2769, %v250
          %vm2776 = vcmp.eq.s32.totalorder %v2769, %v251
          %vm2777 = vcmp.eq.s32.totalorder %v2769, %v252
          %2778 = vset.pattern.permute.xlu0 81
          %2779 = vperm.xlu0 %2778, %v254
          %v2780 = vpop.permute.xlu0 %2779
          %v2782 = vsel %vm2770, %v2780, 0.0
          %v2783 = vsel %vm2771, %v2780, 0.0
          %v2784 = vsel %vm2772, %v2780, 0.0
          %v2785 = vsel %vm2773, %v2780, 0.0
          %v2786 = vsel %vm2774, %v2780, 0.0
          %v2787 = vsel %vm2775, %v2780, 0.0
          %v2788 = vsel %vm2776, %v2780, 0.0
          %v2789 = vsel %vm2777, %v2780, 0.0
          %v2790 = vadd.f32 %v2728, %v2782
          %v2791 = vadd.f32 %v2729, %v2783
          %v2792 = vadd.f32 %v2730, %v2784
          %v2793 = vadd.f32 %v2731, %v2785
          %v2794 = vadd.f32 %v2732, %v2786
          %v2795 = vadd.f32 %v2733, %v2787
          %v2796 = vadd.f32 %v2734, %v2788
          %v2797 = vadd.f32 %v2735, %v2789
          %2798 = vset.pattern.permute.xlu0 82
          %2799 = vperm.xlu0 %2798, %v253
          %v2800 = vpop.permute.xlu0 %2799
          %vm2801 = vcmp.eq.s32.totalorder %v2800, %v245
          %vm2802 = vcmp.eq.s32.totalorder %v2800, %v246
          %vm2803 = vcmp.eq.s32.totalorder %v2800, %v247
          %vm2804 = vcmp.eq.s32.totalorder %v2800, %v248
          %vm2805 = vcmp.eq.s32.totalorder %v2800, %v249
          %vm2806 = vcmp.eq.s32.totalorder %v2800, %v250
          %vm2807 = vcmp.eq.s32.totalorder %v2800, %v251
          %vm2808 = vcmp.eq.s32.totalorder %v2800, %v252
          %2809 = vset.pattern.permute.xlu0 82
          %2810 = vperm.xlu0 %2809, %v254
          %v2811 = vpop.permute.xlu0 %2810
          %v2813 = vsel %vm2801, %v2811, 0.0
          %v2814 = vsel %vm2802, %v2811, 0.0
          %v2815 = vsel %vm2803, %v2811, 0.0
          %v2816 = vsel %vm2804, %v2811, 0.0
          %v2817 = vsel %vm2805, %v2811, 0.0
          %v2818 = vsel %vm2806, %v2811, 0.0
          %v2819 = vsel %vm2807, %v2811, 0.0
          %v2820 = vsel %vm2808, %v2811, 0.0
          %v2821 = vadd.f32 %v2759, %v2813
          %v2822 = vadd.f32 %v2760, %v2814
          %v2823 = vadd.f32 %v2761, %v2815
          %v2824 = vadd.f32 %v2762, %v2816
          %v2825 = vadd.f32 %v2763, %v2817
          %v2826 = vadd.f32 %v2764, %v2818
          %v2827 = vadd.f32 %v2765, %v2819
          %v2828 = vadd.f32 %v2766, %v2820
          %2829 = vset.pattern.permute.xlu0 83
          %2830 = vperm.xlu0 %2829, %v253
          %v2831 = vpop.permute.xlu0 %2830
          %vm2832 = vcmp.eq.s32.totalorder %v2831, %v245
          %vm2833 = vcmp.eq.s32.totalorder %v2831, %v246
          %vm2834 = vcmp.eq.s32.totalorder %v2831, %v247
          %vm2835 = vcmp.eq.s32.totalorder %v2831, %v248
          %vm2836 = vcmp.eq.s32.totalorder %v2831, %v249
          %vm2837 = vcmp.eq.s32.totalorder %v2831, %v250
          %vm2838 = vcmp.eq.s32.totalorder %v2831, %v251
          %vm2839 = vcmp.eq.s32.totalorder %v2831, %v252
          %2840 = vset.pattern.permute.xlu0 83
          %2841 = vperm.xlu0 %2840, %v254
          %v2842 = vpop.permute.xlu0 %2841
          %v2844 = vsel %vm2832, %v2842, 0.0
          %v2845 = vsel %vm2833, %v2842, 0.0
          %v2846 = vsel %vm2834, %v2842, 0.0
          %v2847 = vsel %vm2835, %v2842, 0.0
          %v2848 = vsel %vm2836, %v2842, 0.0
          %v2849 = vsel %vm2837, %v2842, 0.0
          %v2850 = vsel %vm2838, %v2842, 0.0
          %v2851 = vsel %vm2839, %v2842, 0.0
          %v2852 = vadd.f32 %v2790, %v2844
          %v2853 = vadd.f32 %v2791, %v2845
          %v2854 = vadd.f32 %v2792, %v2846
          %v2855 = vadd.f32 %v2793, %v2847
          %v2856 = vadd.f32 %v2794, %v2848
          %v2857 = vadd.f32 %v2795, %v2849
          %v2858 = vadd.f32 %v2796, %v2850
          %v2859 = vadd.f32 %v2797, %v2851
          %2860 = vset.pattern.permute.xlu0 84
          %2861 = vperm.xlu0 %2860, %v253
          %v2862 = vpop.permute.xlu0 %2861
          %vm2863 = vcmp.eq.s32.totalorder %v2862, %v245
          %vm2864 = vcmp.eq.s32.totalorder %v2862, %v246
          %vm2865 = vcmp.eq.s32.totalorder %v2862, %v247
          %vm2866 = vcmp.eq.s32.totalorder %v2862, %v248
          %vm2867 = vcmp.eq.s32.totalorder %v2862, %v249
          %vm2868 = vcmp.eq.s32.totalorder %v2862, %v250
          %vm2869 = vcmp.eq.s32.totalorder %v2862, %v251
          %vm2870 = vcmp.eq.s32.totalorder %v2862, %v252
          %2871 = vset.pattern.permute.xlu0 84
          %2872 = vperm.xlu0 %2871, %v254
          %v2873 = vpop.permute.xlu0 %2872
          %v2875 = vsel %vm2863, %v2873, 0.0
          %v2876 = vsel %vm2864, %v2873, 0.0
          %v2877 = vsel %vm2865, %v2873, 0.0
          %v2878 = vsel %vm2866, %v2873, 0.0
          %v2879 = vsel %vm2867, %v2873, 0.0
          %v2880 = vsel %vm2868, %v2873, 0.0
          %v2881 = vsel %vm2869, %v2873, 0.0
          %v2882 = vsel %vm2870, %v2873, 0.0
          %v2883 = vadd.f32 %v2821, %v2875
          %v2884 = vadd.f32 %v2822, %v2876
          %v2885 = vadd.f32 %v2823, %v2877
          %v2886 = vadd.f32 %v2824, %v2878
          %v2887 = vadd.f32 %v2825, %v2879
          %v2888 = vadd.f32 %v2826, %v2880
          %v2889 = vadd.f32 %v2827, %v2881
          %v2890 = vadd.f32 %v2828, %v2882
          %2891 = vset.pattern.permute.xlu0 85
          %2892 = vperm.xlu0 %2891, %v253
          %v2893 = vpop.permute.xlu0 %2892
          %vm2894 = vcmp.eq.s32.totalorder %v2893, %v245
          %vm2895 = vcmp.eq.s32.totalorder %v2893, %v246
          %vm2896 = vcmp.eq.s32.totalorder %v2893, %v247
          %vm2897 = vcmp.eq.s32.totalorder %v2893, %v248
          %vm2898 = vcmp.eq.s32.totalorder %v2893, %v249
          %vm2899 = vcmp.eq.s32.totalorder %v2893, %v250
          %vm2900 = vcmp.eq.s32.totalorder %v2893, %v251
          %vm2901 = vcmp.eq.s32.totalorder %v2893, %v252
          %2902 = vset.pattern.permute.xlu0 85
          %2903 = vperm.xlu0 %2902, %v254
          %v2904 = vpop.permute.xlu0 %2903
          %v2906 = vsel %vm2894, %v2904, 0.0
          %v2907 = vsel %vm2895, %v2904, 0.0
          %v2908 = vsel %vm2896, %v2904, 0.0
          %v2909 = vsel %vm2897, %v2904, 0.0
          %v2910 = vsel %vm2898, %v2904, 0.0
          %v2911 = vsel %vm2899, %v2904, 0.0
          %v2912 = vsel %vm2900, %v2904, 0.0
          %v2913 = vsel %vm2901, %v2904, 0.0
          %v2914 = vadd.f32 %v2852, %v2906
          %v2915 = vadd.f32 %v2853, %v2907
          %v2916 = vadd.f32 %v2854, %v2908
          %v2917 = vadd.f32 %v2855, %v2909
          %v2918 = vadd.f32 %v2856, %v2910
          %v2919 = vadd.f32 %v2857, %v2911
          %v2920 = vadd.f32 %v2858, %v2912
          %v2921 = vadd.f32 %v2859, %v2913
          %2922 = vset.pattern.permute.xlu0 86
          %2923 = vperm.xlu0 %2922, %v253
          %v2924 = vpop.permute.xlu0 %2923
          %vm2925 = vcmp.eq.s32.totalorder %v2924, %v245
          %vm2926 = vcmp.eq.s32.totalorder %v2924, %v246
          %vm2927 = vcmp.eq.s32.totalorder %v2924, %v247
          %vm2928 = vcmp.eq.s32.totalorder %v2924, %v248
          %vm2929 = vcmp.eq.s32.totalorder %v2924, %v249
          %vm2930 = vcmp.eq.s32.totalorder %v2924, %v250
          %vm2931 = vcmp.eq.s32.totalorder %v2924, %v251
          %vm2932 = vcmp.eq.s32.totalorder %v2924, %v252
          %2933 = vset.pattern.permute.xlu0 86
          %2934 = vperm.xlu0 %2933, %v254
          %v2935 = vpop.permute.xlu0 %2934
          %v2937 = vsel %vm2925, %v2935, 0.0
          %v2938 = vsel %vm2926, %v2935, 0.0
          %v2939 = vsel %vm2927, %v2935, 0.0
          %v2940 = vsel %vm2928, %v2935, 0.0
          %v2941 = vsel %vm2929, %v2935, 0.0
          %v2942 = vsel %vm2930, %v2935, 0.0
          %v2943 = vsel %vm2931, %v2935, 0.0
          %v2944 = vsel %vm2932, %v2935, 0.0
          %v2945 = vadd.f32 %v2883, %v2937
          %v2946 = vadd.f32 %v2884, %v2938
          %v2947 = vadd.f32 %v2885, %v2939
          %v2948 = vadd.f32 %v2886, %v2940
          %v2949 = vadd.f32 %v2887, %v2941
          %v2950 = vadd.f32 %v2888, %v2942
          %v2951 = vadd.f32 %v2889, %v2943
          %v2952 = vadd.f32 %v2890, %v2944
          %2953 = vset.pattern.permute.xlu0 87
          %2954 = vperm.xlu0 %2953, %v253
          %v2955 = vpop.permute.xlu0 %2954
          %vm2956 = vcmp.eq.s32.totalorder %v2955, %v245
          %vm2957 = vcmp.eq.s32.totalorder %v2955, %v246
          %vm2958 = vcmp.eq.s32.totalorder %v2955, %v247
          %vm2959 = vcmp.eq.s32.totalorder %v2955, %v248
          %vm2960 = vcmp.eq.s32.totalorder %v2955, %v249
          %vm2961 = vcmp.eq.s32.totalorder %v2955, %v250
          %vm2962 = vcmp.eq.s32.totalorder %v2955, %v251
          %vm2963 = vcmp.eq.s32.totalorder %v2955, %v252
          %2964 = vset.pattern.permute.xlu0 87
          %2965 = vperm.xlu0 %2964, %v254
          %v2966 = vpop.permute.xlu0 %2965
          %v2968 = vsel %vm2956, %v2966, 0.0
          %v2969 = vsel %vm2957, %v2966, 0.0
          %v2970 = vsel %vm2958, %v2966, 0.0
          %v2971 = vsel %vm2959, %v2966, 0.0
          %v2972 = vsel %vm2960, %v2966, 0.0
          %v2973 = vsel %vm2961, %v2966, 0.0
          %v2974 = vsel %vm2962, %v2966, 0.0
          %v2975 = vsel %vm2963, %v2966, 0.0
          %v2976 = vadd.f32 %v2914, %v2968
          %v2977 = vadd.f32 %v2915, %v2969
          %v2978 = vadd.f32 %v2916, %v2970
          %v2979 = vadd.f32 %v2917, %v2971
          %v2980 = vadd.f32 %v2918, %v2972
          %v2981 = vadd.f32 %v2919, %v2973
          %v2982 = vadd.f32 %v2920, %v2974
          %v2983 = vadd.f32 %v2921, %v2975
          %2984 = vset.pattern.permute.xlu0 88
          %2985 = vperm.xlu0 %2984, %v253
          %v2986 = vpop.permute.xlu0 %2985
          %vm2987 = vcmp.eq.s32.totalorder %v2986, %v245
          %vm2988 = vcmp.eq.s32.totalorder %v2986, %v246
          %vm2989 = vcmp.eq.s32.totalorder %v2986, %v247
          %vm2990 = vcmp.eq.s32.totalorder %v2986, %v248
          %vm2991 = vcmp.eq.s32.totalorder %v2986, %v249
          %vm2992 = vcmp.eq.s32.totalorder %v2986, %v250
          %vm2993 = vcmp.eq.s32.totalorder %v2986, %v251
          %vm2994 = vcmp.eq.s32.totalorder %v2986, %v252
          %2995 = vset.pattern.permute.xlu0 88
          %2996 = vperm.xlu0 %2995, %v254
          %v2997 = vpop.permute.xlu0 %2996
          %v2999 = vsel %vm2987, %v2997, 0.0
          %v3000 = vsel %vm2988, %v2997, 0.0
          %v3001 = vsel %vm2989, %v2997, 0.0
          %v3002 = vsel %vm2990, %v2997, 0.0
          %v3003 = vsel %vm2991, %v2997, 0.0
          %v3004 = vsel %vm2992, %v2997, 0.0
          %v3005 = vsel %vm2993, %v2997, 0.0
          %v3006 = vsel %vm2994, %v2997, 0.0
          %v3007 = vadd.f32 %v2945, %v2999
          %v3008 = vadd.f32 %v2946, %v3000
          %v3009 = vadd.f32 %v2947, %v3001
          %v3010 = vadd.f32 %v2948, %v3002
          %v3011 = vadd.f32 %v2949, %v3003
          %v3012 = vadd.f32 %v2950, %v3004
          %v3013 = vadd.f32 %v2951, %v3005
          %v3014 = vadd.f32 %v2952, %v3006
          %3015 = vset.pattern.permute.xlu0 89
          %3016 = vperm.xlu0 %3015, %v253
          %v3017 = vpop.permute.xlu0 %3016
          %vm3018 = vcmp.eq.s32.totalorder %v3017, %v245
          %vm3019 = vcmp.eq.s32.totalorder %v3017, %v246
          %vm3020 = vcmp.eq.s32.totalorder %v3017, %v247
          %vm3021 = vcmp.eq.s32.totalorder %v3017, %v248
          %vm3022 = vcmp.eq.s32.totalorder %v3017, %v249
          %vm3023 = vcmp.eq.s32.totalorder %v3017, %v250
          %vm3024 = vcmp.eq.s32.totalorder %v3017, %v251
          %vm3025 = vcmp.eq.s32.totalorder %v3017, %v252
          %3026 = vset.pattern.permute.xlu0 89
          %3027 = vperm.xlu0 %3026, %v254
          %v3028 = vpop.permute.xlu0 %3027
          %v3030 = vsel %vm3018, %v3028, 0.0
          %v3031 = vsel %vm3019, %v3028, 0.0
          %v3032 = vsel %vm3020, %v3028, 0.0
          %v3033 = vsel %vm3021, %v3028, 0.0
          %v3034 = vsel %vm3022, %v3028, 0.0
          %v3035 = vsel %vm3023, %v3028, 0.0
          %v3036 = vsel %vm3024, %v3028, 0.0
          %v3037 = vsel %vm3025, %v3028, 0.0
          %v3038 = vadd.f32 %v2976, %v3030
          %v3039 = vadd.f32 %v2977, %v3031
          %v3040 = vadd.f32 %v2978, %v3032
          %v3041 = vadd.f32 %v2979, %v3033
          %v3042 = vadd.f32 %v2980, %v3034
          %v3043 = vadd.f32 %v2981, %v3035
          %v3044 = vadd.f32 %v2982, %v3036
          %v3045 = vadd.f32 %v2983, %v3037
          %3046 = vset.pattern.permute.xlu0 90
          %3047 = vperm.xlu0 %3046, %v253
          %v3048 = vpop.permute.xlu0 %3047
          %vm3049 = vcmp.eq.s32.totalorder %v3048, %v245
          %vm3050 = vcmp.eq.s32.totalorder %v3048, %v246
          %vm3051 = vcmp.eq.s32.totalorder %v3048, %v247
          %vm3052 = vcmp.eq.s32.totalorder %v3048, %v248
          %vm3053 = vcmp.eq.s32.totalorder %v3048, %v249
          %vm3054 = vcmp.eq.s32.totalorder %v3048, %v250
          %vm3055 = vcmp.eq.s32.totalorder %v3048, %v251
          %vm3056 = vcmp.eq.s32.totalorder %v3048, %v252
          %3057 = vset.pattern.permute.xlu0 90
          %3058 = vperm.xlu0 %3057, %v254
          %v3059 = vpop.permute.xlu0 %3058
          %v3061 = vsel %vm3049, %v3059, 0.0
          %v3062 = vsel %vm3050, %v3059, 0.0
          %v3063 = vsel %vm3051, %v3059, 0.0
          %v3064 = vsel %vm3052, %v3059, 0.0
          %v3065 = vsel %vm3053, %v3059, 0.0
          %v3066 = vsel %vm3054, %v3059, 0.0
          %v3067 = vsel %vm3055, %v3059, 0.0
          %v3068 = vsel %vm3056, %v3059, 0.0
          %v3069 = vadd.f32 %v3007, %v3061
          %v3070 = vadd.f32 %v3008, %v3062
          %v3071 = vadd.f32 %v3009, %v3063
          %v3072 = vadd.f32 %v3010, %v3064
          %v3073 = vadd.f32 %v3011, %v3065
          %v3074 = vadd.f32 %v3012, %v3066
          %v3075 = vadd.f32 %v3013, %v3067
          %v3076 = vadd.f32 %v3014, %v3068
          %3077 = vset.pattern.permute.xlu0 91
          %3078 = vperm.xlu0 %3077, %v253
          %v3079 = vpop.permute.xlu0 %3078
          %vm3080 = vcmp.eq.s32.totalorder %v3079, %v245
          %vm3081 = vcmp.eq.s32.totalorder %v3079, %v246
          %vm3082 = vcmp.eq.s32.totalorder %v3079, %v247
          %vm3083 = vcmp.eq.s32.totalorder %v3079, %v248
          %vm3084 = vcmp.eq.s32.totalorder %v3079, %v249
          %vm3085 = vcmp.eq.s32.totalorder %v3079, %v250
          %vm3086 = vcmp.eq.s32.totalorder %v3079, %v251
          %vm3087 = vcmp.eq.s32.totalorder %v3079, %v252
          %3088 = vset.pattern.permute.xlu0 91
          %3089 = vperm.xlu0 %3088, %v254
          %v3090 = vpop.permute.xlu0 %3089
          %v3092 = vsel %vm3080, %v3090, 0.0
          %v3093 = vsel %vm3081, %v3090, 0.0
          %v3094 = vsel %vm3082, %v3090, 0.0
          %v3095 = vsel %vm3083, %v3090, 0.0
          %v3096 = vsel %vm3084, %v3090, 0.0
          %v3097 = vsel %vm3085, %v3090, 0.0
          %v3098 = vsel %vm3086, %v3090, 0.0
          %v3099 = vsel %vm3087, %v3090, 0.0
          %v3100 = vadd.f32 %v3038, %v3092
          %v3101 = vadd.f32 %v3039, %v3093
          %v3102 = vadd.f32 %v3040, %v3094
          %v3103 = vadd.f32 %v3041, %v3095
          %v3104 = vadd.f32 %v3042, %v3096
          %v3105 = vadd.f32 %v3043, %v3097
          %v3106 = vadd.f32 %v3044, %v3098
          %v3107 = vadd.f32 %v3045, %v3099
          %3108 = vset.pattern.permute.xlu0 92
          %3109 = vperm.xlu0 %3108, %v253
          %v3110 = vpop.permute.xlu0 %3109
          %vm3111 = vcmp.eq.s32.totalorder %v3110, %v245
          %vm3112 = vcmp.eq.s32.totalorder %v3110, %v246
          %vm3113 = vcmp.eq.s32.totalorder %v3110, %v247
          %vm3114 = vcmp.eq.s32.totalorder %v3110, %v248
          %vm3115 = vcmp.eq.s32.totalorder %v3110, %v249
          %vm3116 = vcmp.eq.s32.totalorder %v3110, %v250
          %vm3117 = vcmp.eq.s32.totalorder %v3110, %v251
          %vm3118 = vcmp.eq.s32.totalorder %v3110, %v252
          %3119 = vset.pattern.permute.xlu0 92
          %3120 = vperm.xlu0 %3119, %v254
          %v3121 = vpop.permute.xlu0 %3120
          %v3123 = vsel %vm3111, %v3121, 0.0
          %v3124 = vsel %vm3112, %v3121, 0.0
          %v3125 = vsel %vm3113, %v3121, 0.0
          %v3126 = vsel %vm3114, %v3121, 0.0
          %v3127 = vsel %vm3115, %v3121, 0.0
          %v3128 = vsel %vm3116, %v3121, 0.0
          %v3129 = vsel %vm3117, %v3121, 0.0
          %v3130 = vsel %vm3118, %v3121, 0.0
          %v3131 = vadd.f32 %v3069, %v3123
          %v3132 = vadd.f32 %v3070, %v3124
          %v3133 = vadd.f32 %v3071, %v3125
          %v3134 = vadd.f32 %v3072, %v3126
          %v3135 = vadd.f32 %v3073, %v3127
          %v3136 = vadd.f32 %v3074, %v3128
          %v3137 = vadd.f32 %v3075, %v3129
          %v3138 = vadd.f32 %v3076, %v3130
          %3139 = vset.pattern.permute.xlu0 93
          %3140 = vperm.xlu0 %3139, %v253
          %v3141 = vpop.permute.xlu0 %3140
          %vm3142 = vcmp.eq.s32.totalorder %v3141, %v245
          %vm3143 = vcmp.eq.s32.totalorder %v3141, %v246
          %vm3144 = vcmp.eq.s32.totalorder %v3141, %v247
          %vm3145 = vcmp.eq.s32.totalorder %v3141, %v248
          %vm3146 = vcmp.eq.s32.totalorder %v3141, %v249
          %vm3147 = vcmp.eq.s32.totalorder %v3141, %v250
          %vm3148 = vcmp.eq.s32.totalorder %v3141, %v251
          %vm3149 = vcmp.eq.s32.totalorder %v3141, %v252
          %3150 = vset.pattern.permute.xlu0 93
          %3151 = vperm.xlu0 %3150, %v254
          %v3152 = vpop.permute.xlu0 %3151
          %v3154 = vsel %vm3142, %v3152, 0.0
          %v3155 = vsel %vm3143, %v3152, 0.0
          %v3156 = vsel %vm3144, %v3152, 0.0
          %v3157 = vsel %vm3145, %v3152, 0.0
          %v3158 = vsel %vm3146, %v3152, 0.0
          %v3159 = vsel %vm3147, %v3152, 0.0
          %v3160 = vsel %vm3148, %v3152, 0.0
          %v3161 = vsel %vm3149, %v3152, 0.0
          %v3162 = vadd.f32 %v3100, %v3154
          %v3163 = vadd.f32 %v3101, %v3155
          %v3164 = vadd.f32 %v3102, %v3156
          %v3165 = vadd.f32 %v3103, %v3157
          %v3166 = vadd.f32 %v3104, %v3158
          %v3167 = vadd.f32 %v3105, %v3159
          %v3168 = vadd.f32 %v3106, %v3160
          %v3169 = vadd.f32 %v3107, %v3161
          %3170 = vset.pattern.permute.xlu0 94
          %3171 = vperm.xlu0 %3170, %v253
          %v3172 = vpop.permute.xlu0 %3171
          %vm3173 = vcmp.eq.s32.totalorder %v3172, %v245
          %vm3174 = vcmp.eq.s32.totalorder %v3172, %v246
          %vm3175 = vcmp.eq.s32.totalorder %v3172, %v247
          %vm3176 = vcmp.eq.s32.totalorder %v3172, %v248
          %vm3177 = vcmp.eq.s32.totalorder %v3172, %v249
          %vm3178 = vcmp.eq.s32.totalorder %v3172, %v250
          %vm3179 = vcmp.eq.s32.totalorder %v3172, %v251
          %vm3180 = vcmp.eq.s32.totalorder %v3172, %v252
          %3181 = vset.pattern.permute.xlu0 94
          %3182 = vperm.xlu0 %3181, %v254
          %v3183 = vpop.permute.xlu0 %3182
          %v3185 = vsel %vm3173, %v3183, 0.0
          %v3186 = vsel %vm3174, %v3183, 0.0
          %v3187 = vsel %vm3175, %v3183, 0.0
          %v3188 = vsel %vm3176, %v3183, 0.0
          %v3189 = vsel %vm3177, %v3183, 0.0
          %v3190 = vsel %vm3178, %v3183, 0.0
          %v3191 = vsel %vm3179, %v3183, 0.0
          %v3192 = vsel %vm3180, %v3183, 0.0
          %v3193 = vadd.f32 %v3131, %v3185
          %v3194 = vadd.f32 %v3132, %v3186
          %v3195 = vadd.f32 %v3133, %v3187
          %v3196 = vadd.f32 %v3134, %v3188
          %v3197 = vadd.f32 %v3135, %v3189
          %v3198 = vadd.f32 %v3136, %v3190
          %v3199 = vadd.f32 %v3137, %v3191
          %v3200 = vadd.f32 %v3138, %v3192
          %3201 = vset.pattern.permute.xlu0 95
          %3202 = vperm.xlu0 %3201, %v253
          %v3203 = vpop.permute.xlu0 %3202
          %vm3204 = vcmp.eq.s32.totalorder %v3203, %v245
          %vm3205 = vcmp.eq.s32.totalorder %v3203, %v246
          %vm3206 = vcmp.eq.s32.totalorder %v3203, %v247
          %vm3207 = vcmp.eq.s32.totalorder %v3203, %v248
          %vm3208 = vcmp.eq.s32.totalorder %v3203, %v249
          %vm3209 = vcmp.eq.s32.totalorder %v3203, %v250
          %vm3210 = vcmp.eq.s32.totalorder %v3203, %v251
          %vm3211 = vcmp.eq.s32.totalorder %v3203, %v252
          %3212 = vset.pattern.permute.xlu0 95
          %3213 = vperm.xlu0 %3212, %v254
          %v3214 = vpop.permute.xlu0 %3213
          %v3216 = vsel %vm3204, %v3214, 0.0
          %v3217 = vsel %vm3205, %v3214, 0.0
          %v3218 = vsel %vm3206, %v3214, 0.0
          %v3219 = vsel %vm3207, %v3214, 0.0
          %v3220 = vsel %vm3208, %v3214, 0.0
          %v3221 = vsel %vm3209, %v3214, 0.0
          %v3222 = vsel %vm3210, %v3214, 0.0
          %v3223 = vsel %vm3211, %v3214, 0.0
          %v3224 = vadd.f32 %v3162, %v3216
          %v3225 = vadd.f32 %v3163, %v3217
          %v3226 = vadd.f32 %v3164, %v3218
          %v3227 = vadd.f32 %v3165, %v3219
          %v3228 = vadd.f32 %v3166, %v3220
          %v3229 = vadd.f32 %v3167, %v3221
          %v3230 = vadd.f32 %v3168, %v3222
          %v3231 = vadd.f32 %v3169, %v3223
          %3232 = vset.pattern.permute.xlu0 96
          %3233 = vperm.xlu0 %3232, %v253
          %v3234 = vpop.permute.xlu0 %3233
          %vm3235 = vcmp.eq.s32.totalorder %v3234, %v245
          %vm3236 = vcmp.eq.s32.totalorder %v3234, %v246
          %vm3237 = vcmp.eq.s32.totalorder %v3234, %v247
          %vm3238 = vcmp.eq.s32.totalorder %v3234, %v248
          %vm3239 = vcmp.eq.s32.totalorder %v3234, %v249
          %vm3240 = vcmp.eq.s32.totalorder %v3234, %v250
          %vm3241 = vcmp.eq.s32.totalorder %v3234, %v251
          %vm3242 = vcmp.eq.s32.totalorder %v3234, %v252
          %3243 = vset.pattern.permute.xlu0 96
          %3244 = vperm.xlu0 %3243, %v254
          %v3245 = vpop.permute.xlu0 %3244
          %v3247 = vsel %vm3235, %v3245, 0.0
          %v3248 = vsel %vm3236, %v3245, 0.0
          %v3249 = vsel %vm3237, %v3245, 0.0
          %v3250 = vsel %vm3238, %v3245, 0.0
          %v3251 = vsel %vm3239, %v3245, 0.0
          %v3252 = vsel %vm3240, %v3245, 0.0
          %v3253 = vsel %vm3241, %v3245, 0.0
          %v3254 = vsel %vm3242, %v3245, 0.0
          %v3255 = vadd.f32 %v3193, %v3247
          %v3256 = vadd.f32 %v3194, %v3248
          %v3257 = vadd.f32 %v3195, %v3249
          %v3258 = vadd.f32 %v3196, %v3250
          %v3259 = vadd.f32 %v3197, %v3251
          %v3260 = vadd.f32 %v3198, %v3252
          %v3261 = vadd.f32 %v3199, %v3253
          %v3262 = vadd.f32 %v3200, %v3254
          %3263 = vset.pattern.permute.xlu0 97
          %3264 = vperm.xlu0 %3263, %v253
          %v3265 = vpop.permute.xlu0 %3264
          %vm3266 = vcmp.eq.s32.totalorder %v3265, %v245
          %vm3267 = vcmp.eq.s32.totalorder %v3265, %v246
          %vm3268 = vcmp.eq.s32.totalorder %v3265, %v247
          %vm3269 = vcmp.eq.s32.totalorder %v3265, %v248
          %vm3270 = vcmp.eq.s32.totalorder %v3265, %v249
          %vm3271 = vcmp.eq.s32.totalorder %v3265, %v250
          %vm3272 = vcmp.eq.s32.totalorder %v3265, %v251
          %vm3273 = vcmp.eq.s32.totalorder %v3265, %v252
          %3274 = vset.pattern.permute.xlu0 97
          %3275 = vperm.xlu0 %3274, %v254
          %v3276 = vpop.permute.xlu0 %3275
          %v3278 = vsel %vm3266, %v3276, 0.0
          %v3279 = vsel %vm3267, %v3276, 0.0
          %v3280 = vsel %vm3268, %v3276, 0.0
          %v3281 = vsel %vm3269, %v3276, 0.0
          %v3282 = vsel %vm3270, %v3276, 0.0
          %v3283 = vsel %vm3271, %v3276, 0.0
          %v3284 = vsel %vm3272, %v3276, 0.0
          %v3285 = vsel %vm3273, %v3276, 0.0
          %v3286 = vadd.f32 %v3224, %v3278
          %v3287 = vadd.f32 %v3225, %v3279
          %v3288 = vadd.f32 %v3226, %v3280
          %v3289 = vadd.f32 %v3227, %v3281
          %v3290 = vadd.f32 %v3228, %v3282
          %v3291 = vadd.f32 %v3229, %v3283
          %v3292 = vadd.f32 %v3230, %v3284
          %v3293 = vadd.f32 %v3231, %v3285
          %3294 = vset.pattern.permute.xlu0 98
          %3295 = vperm.xlu0 %3294, %v253
          %v3296 = vpop.permute.xlu0 %3295
          %vm3297 = vcmp.eq.s32.totalorder %v3296, %v245
          %vm3298 = vcmp.eq.s32.totalorder %v3296, %v246
          %vm3299 = vcmp.eq.s32.totalorder %v3296, %v247
          %vm3300 = vcmp.eq.s32.totalorder %v3296, %v248
          %vm3301 = vcmp.eq.s32.totalorder %v3296, %v249
          %vm3302 = vcmp.eq.s32.totalorder %v3296, %v250
          %vm3303 = vcmp.eq.s32.totalorder %v3296, %v251
          %vm3304 = vcmp.eq.s32.totalorder %v3296, %v252
          %3305 = vset.pattern.permute.xlu0 98
          %3306 = vperm.xlu0 %3305, %v254
          %v3307 = vpop.permute.xlu0 %3306
          %v3309 = vsel %vm3297, %v3307, 0.0
          %v3310 = vsel %vm3298, %v3307, 0.0
          %v3311 = vsel %vm3299, %v3307, 0.0
          %v3312 = vsel %vm3300, %v3307, 0.0
          %v3313 = vsel %vm3301, %v3307, 0.0
          %v3314 = vsel %vm3302, %v3307, 0.0
          %v3315 = vsel %vm3303, %v3307, 0.0
          %v3316 = vsel %vm3304, %v3307, 0.0
          %v3317 = vadd.f32 %v3255, %v3309
          %v3318 = vadd.f32 %v3256, %v3310
          %v3319 = vadd.f32 %v3257, %v3311
          %v3320 = vadd.f32 %v3258, %v3312
          %v3321 = vadd.f32 %v3259, %v3313
          %v3322 = vadd.f32 %v3260, %v3314
          %v3323 = vadd.f32 %v3261, %v3315
          %v3324 = vadd.f32 %v3262, %v3316
          %3325 = vset.pattern.permute.xlu0 99
          %3326 = vperm.xlu0 %3325, %v253
          %v3327 = vpop.permute.xlu0 %3326
          %vm3328 = vcmp.eq.s32.totalorder %v3327, %v245
          %vm3329 = vcmp.eq.s32.totalorder %v3327, %v246
          %vm3330 = vcmp.eq.s32.totalorder %v3327, %v247
          %vm3331 = vcmp.eq.s32.totalorder %v3327, %v248
          %vm3332 = vcmp.eq.s32.totalorder %v3327, %v249
          %vm3333 = vcmp.eq.s32.totalorder %v3327, %v250
          %vm3334 = vcmp.eq.s32.totalorder %v3327, %v251
          %vm3335 = vcmp.eq.s32.totalorder %v3327, %v252
          %3336 = vset.pattern.permute.xlu0 99
          %3337 = vperm.xlu0 %3336, %v254
          %v3338 = vpop.permute.xlu0 %3337
          %v3340 = vsel %vm3328, %v3338, 0.0
          %v3341 = vsel %vm3329, %v3338, 0.0
          %v3342 = vsel %vm3330, %v3338, 0.0
          %v3343 = vsel %vm3331, %v3338, 0.0
          %v3344 = vsel %vm3332, %v3338, 0.0
          %v3345 = vsel %vm3333, %v3338, 0.0
          %v3346 = vsel %vm3334, %v3338, 0.0
          %v3347 = vsel %vm3335, %v3338, 0.0
          %v3348 = vadd.f32 %v3286, %v3340
          %v3349 = vadd.f32 %v3287, %v3341
          %v3350 = vadd.f32 %v3288, %v3342
          %v3351 = vadd.f32 %v3289, %v3343
          %v3352 = vadd.f32 %v3290, %v3344
          %v3353 = vadd.f32 %v3291, %v3345
          %v3354 = vadd.f32 %v3292, %v3346
          %v3355 = vadd.f32 %v3293, %v3347
          %3356 = vset.pattern.permute.xlu0 100
          %3357 = vperm.xlu0 %3356, %v253
          %v3358 = vpop.permute.xlu0 %3357
          %vm3359 = vcmp.eq.s32.totalorder %v3358, %v245
          %vm3360 = vcmp.eq.s32.totalorder %v3358, %v246
          %vm3361 = vcmp.eq.s32.totalorder %v3358, %v247
          %vm3362 = vcmp.eq.s32.totalorder %v3358, %v248
          %vm3363 = vcmp.eq.s32.totalorder %v3358, %v249
          %vm3364 = vcmp.eq.s32.totalorder %v3358, %v250
          %vm3365 = vcmp.eq.s32.totalorder %v3358, %v251
          %vm3366 = vcmp.eq.s32.totalorder %v3358, %v252
          %3367 = vset.pattern.permute.xlu0 100
          %3368 = vperm.xlu0 %3367, %v254
          %v3369 = vpop.permute.xlu0 %3368
          %v3371 = vsel %vm3359, %v3369, 0.0
          %v3372 = vsel %vm3360, %v3369, 0.0
          %v3373 = vsel %vm3361, %v3369, 0.0
          %v3374 = vsel %vm3362, %v3369, 0.0
          %v3375 = vsel %vm3363, %v3369, 0.0
          %v3376 = vsel %vm3364, %v3369, 0.0
          %v3377 = vsel %vm3365, %v3369, 0.0
          %v3378 = vsel %vm3366, %v3369, 0.0
          %v3379 = vadd.f32 %v3317, %v3371
          %v3380 = vadd.f32 %v3318, %v3372
          %v3381 = vadd.f32 %v3319, %v3373
          %v3382 = vadd.f32 %v3320, %v3374
          %v3383 = vadd.f32 %v3321, %v3375
          %v3384 = vadd.f32 %v3322, %v3376
          %v3385 = vadd.f32 %v3323, %v3377
          %v3386 = vadd.f32 %v3324, %v3378
          %3387 = vset.pattern.permute.xlu0 101
          %3388 = vperm.xlu0 %3387, %v253
          %v3389 = vpop.permute.xlu0 %3388
          %vm3390 = vcmp.eq.s32.totalorder %v3389, %v245
          %vm3391 = vcmp.eq.s32.totalorder %v3389, %v246
          %vm3392 = vcmp.eq.s32.totalorder %v3389, %v247
          %vm3393 = vcmp.eq.s32.totalorder %v3389, %v248
          %vm3394 = vcmp.eq.s32.totalorder %v3389, %v249
          %vm3395 = vcmp.eq.s32.totalorder %v3389, %v250
          %vm3396 = vcmp.eq.s32.totalorder %v3389, %v251
          %vm3397 = vcmp.eq.s32.totalorder %v3389, %v252
          %3398 = vset.pattern.permute.xlu0 101
          %3399 = vperm.xlu0 %3398, %v254
          %v3400 = vpop.permute.xlu0 %3399
          %v3402 = vsel %vm3390, %v3400, 0.0
          %v3403 = vsel %vm3391, %v3400, 0.0
          %v3404 = vsel %vm3392, %v3400, 0.0
          %v3405 = vsel %vm3393, %v3400, 0.0
          %v3406 = vsel %vm3394, %v3400, 0.0
          %v3407 = vsel %vm3395, %v3400, 0.0
          %v3408 = vsel %vm3396, %v3400, 0.0
          %v3409 = vsel %vm3397, %v3400, 0.0
          %v3410 = vadd.f32 %v3348, %v3402
          %v3411 = vadd.f32 %v3349, %v3403
          %v3412 = vadd.f32 %v3350, %v3404
          %v3413 = vadd.f32 %v3351, %v3405
          %v3414 = vadd.f32 %v3352, %v3406
          %v3415 = vadd.f32 %v3353, %v3407
          %v3416 = vadd.f32 %v3354, %v3408
          %v3417 = vadd.f32 %v3355, %v3409
          %3418 = vset.pattern.permute.xlu0 102
          %3419 = vperm.xlu0 %3418, %v253
          %v3420 = vpop.permute.xlu0 %3419
          %vm3421 = vcmp.eq.s32.totalorder %v3420, %v245
          %vm3422 = vcmp.eq.s32.totalorder %v3420, %v246
          %vm3423 = vcmp.eq.s32.totalorder %v3420, %v247
          %vm3424 = vcmp.eq.s32.totalorder %v3420, %v248
          %vm3425 = vcmp.eq.s32.totalorder %v3420, %v249
          %vm3426 = vcmp.eq.s32.totalorder %v3420, %v250
          %vm3427 = vcmp.eq.s32.totalorder %v3420, %v251
          %vm3428 = vcmp.eq.s32.totalorder %v3420, %v252
          %3429 = vset.pattern.permute.xlu0 102
          %3430 = vperm.xlu0 %3429, %v254
          %v3431 = vpop.permute.xlu0 %3430
          %v3433 = vsel %vm3421, %v3431, 0.0
          %v3434 = vsel %vm3422, %v3431, 0.0
          %v3435 = vsel %vm3423, %v3431, 0.0
          %v3436 = vsel %vm3424, %v3431, 0.0
          %v3437 = vsel %vm3425, %v3431, 0.0
          %v3438 = vsel %vm3426, %v3431, 0.0
          %v3439 = vsel %vm3427, %v3431, 0.0
          %v3440 = vsel %vm3428, %v3431, 0.0
          %v3441 = vadd.f32 %v3379, %v3433
          %v3442 = vadd.f32 %v3380, %v3434
          %v3443 = vadd.f32 %v3381, %v3435
          %v3444 = vadd.f32 %v3382, %v3436
          %v3445 = vadd.f32 %v3383, %v3437
          %v3446 = vadd.f32 %v3384, %v3438
          %v3447 = vadd.f32 %v3385, %v3439
          %v3448 = vadd.f32 %v3386, %v3440
          %3449 = vset.pattern.permute.xlu0 103
          %3450 = vperm.xlu0 %3449, %v253
          %v3451 = vpop.permute.xlu0 %3450
          %vm3452 = vcmp.eq.s32.totalorder %v3451, %v245
          %vm3453 = vcmp.eq.s32.totalorder %v3451, %v246
          %vm3454 = vcmp.eq.s32.totalorder %v3451, %v247
          %vm3455 = vcmp.eq.s32.totalorder %v3451, %v248
          %vm3456 = vcmp.eq.s32.totalorder %v3451, %v249
          %vm3457 = vcmp.eq.s32.totalorder %v3451, %v250
          %vm3458 = vcmp.eq.s32.totalorder %v3451, %v251
          %vm3459 = vcmp.eq.s32.totalorder %v3451, %v252
          %3460 = vset.pattern.permute.xlu0 103
          %3461 = vperm.xlu0 %3460, %v254
          %v3462 = vpop.permute.xlu0 %3461
          %v3464 = vsel %vm3452, %v3462, 0.0
          %v3465 = vsel %vm3453, %v3462, 0.0
          %v3466 = vsel %vm3454, %v3462, 0.0
          %v3467 = vsel %vm3455, %v3462, 0.0
          %v3468 = vsel %vm3456, %v3462, 0.0
          %v3469 = vsel %vm3457, %v3462, 0.0
          %v3470 = vsel %vm3458, %v3462, 0.0
          %v3471 = vsel %vm3459, %v3462, 0.0
          %v3472 = vadd.f32 %v3410, %v3464
          %v3473 = vadd.f32 %v3411, %v3465
          %v3474 = vadd.f32 %v3412, %v3466
          %v3475 = vadd.f32 %v3413, %v3467
          %v3476 = vadd.f32 %v3414, %v3468
          %v3477 = vadd.f32 %v3415, %v3469
          %v3478 = vadd.f32 %v3416, %v3470
          %v3479 = vadd.f32 %v3417, %v3471
          %3480 = vset.pattern.permute.xlu0 104
          %3481 = vperm.xlu0 %3480, %v253
          %v3482 = vpop.permute.xlu0 %3481
          %vm3483 = vcmp.eq.s32.totalorder %v3482, %v245
          %vm3484 = vcmp.eq.s32.totalorder %v3482, %v246
          %vm3485 = vcmp.eq.s32.totalorder %v3482, %v247
          %vm3486 = vcmp.eq.s32.totalorder %v3482, %v248
          %vm3487 = vcmp.eq.s32.totalorder %v3482, %v249
          %vm3488 = vcmp.eq.s32.totalorder %v3482, %v250
          %vm3489 = vcmp.eq.s32.totalorder %v3482, %v251
          %vm3490 = vcmp.eq.s32.totalorder %v3482, %v252
          %3491 = vset.pattern.permute.xlu0 104
          %3492 = vperm.xlu0 %3491, %v254
          %v3493 = vpop.permute.xlu0 %3492
          %v3495 = vsel %vm3483, %v3493, 0.0
          %v3496 = vsel %vm3484, %v3493, 0.0
          %v3497 = vsel %vm3485, %v3493, 0.0
          %v3498 = vsel %vm3486, %v3493, 0.0
          %v3499 = vsel %vm3487, %v3493, 0.0
          %v3500 = vsel %vm3488, %v3493, 0.0
          %v3501 = vsel %vm3489, %v3493, 0.0
          %v3502 = vsel %vm3490, %v3493, 0.0
          %v3503 = vadd.f32 %v3441, %v3495
          %v3504 = vadd.f32 %v3442, %v3496
          %v3505 = vadd.f32 %v3443, %v3497
          %v3506 = vadd.f32 %v3444, %v3498
          %v3507 = vadd.f32 %v3445, %v3499
          %v3508 = vadd.f32 %v3446, %v3500
          %v3509 = vadd.f32 %v3447, %v3501
          %v3510 = vadd.f32 %v3448, %v3502
          %3511 = vset.pattern.permute.xlu0 105
          %3512 = vperm.xlu0 %3511, %v253
          %v3513 = vpop.permute.xlu0 %3512
          %vm3514 = vcmp.eq.s32.totalorder %v3513, %v245
          %vm3515 = vcmp.eq.s32.totalorder %v3513, %v246
          %vm3516 = vcmp.eq.s32.totalorder %v3513, %v247
          %vm3517 = vcmp.eq.s32.totalorder %v3513, %v248
          %vm3518 = vcmp.eq.s32.totalorder %v3513, %v249
          %vm3519 = vcmp.eq.s32.totalorder %v3513, %v250
          %vm3520 = vcmp.eq.s32.totalorder %v3513, %v251
          %vm3521 = vcmp.eq.s32.totalorder %v3513, %v252
          %3522 = vset.pattern.permute.xlu0 105
          %3523 = vperm.xlu0 %3522, %v254
          %v3524 = vpop.permute.xlu0 %3523
          %v3526 = vsel %vm3514, %v3524, 0.0
          %v3527 = vsel %vm3515, %v3524, 0.0
          %v3528 = vsel %vm3516, %v3524, 0.0
          %v3529 = vsel %vm3517, %v3524, 0.0
          %v3530 = vsel %vm3518, %v3524, 0.0
          %v3531 = vsel %vm3519, %v3524, 0.0
          %v3532 = vsel %vm3520, %v3524, 0.0
          %v3533 = vsel %vm3521, %v3524, 0.0
          %v3534 = vadd.f32 %v3472, %v3526
          %v3535 = vadd.f32 %v3473, %v3527
          %v3536 = vadd.f32 %v3474, %v3528
          %v3537 = vadd.f32 %v3475, %v3529
          %v3538 = vadd.f32 %v3476, %v3530
          %v3539 = vadd.f32 %v3477, %v3531
          %v3540 = vadd.f32 %v3478, %v3532
          %v3541 = vadd.f32 %v3479, %v3533
          %3542 = vset.pattern.permute.xlu0 106
          %3543 = vperm.xlu0 %3542, %v253
          %v3544 = vpop.permute.xlu0 %3543
          %vm3545 = vcmp.eq.s32.totalorder %v3544, %v245
          %vm3546 = vcmp.eq.s32.totalorder %v3544, %v246
          %vm3547 = vcmp.eq.s32.totalorder %v3544, %v247
          %vm3548 = vcmp.eq.s32.totalorder %v3544, %v248
          %vm3549 = vcmp.eq.s32.totalorder %v3544, %v249
          %vm3550 = vcmp.eq.s32.totalorder %v3544, %v250
          %vm3551 = vcmp.eq.s32.totalorder %v3544, %v251
          %vm3552 = vcmp.eq.s32.totalorder %v3544, %v252
          %3553 = vset.pattern.permute.xlu0 106
          %3554 = vperm.xlu0 %3553, %v254
          %v3555 = vpop.permute.xlu0 %3554
          %v3557 = vsel %vm3545, %v3555, 0.0
          %v3558 = vsel %vm3546, %v3555, 0.0
          %v3559 = vsel %vm3547, %v3555, 0.0
          %v3560 = vsel %vm3548, %v3555, 0.0
          %v3561 = vsel %vm3549, %v3555, 0.0
          %v3562 = vsel %vm3550, %v3555, 0.0
          %v3563 = vsel %vm3551, %v3555, 0.0
          %v3564 = vsel %vm3552, %v3555, 0.0
          %v3565 = vadd.f32 %v3503, %v3557
          %v3566 = vadd.f32 %v3504, %v3558
          %v3567 = vadd.f32 %v3505, %v3559
          %v3568 = vadd.f32 %v3506, %v3560
          %v3569 = vadd.f32 %v3507, %v3561
          %v3570 = vadd.f32 %v3508, %v3562
          %v3571 = vadd.f32 %v3509, %v3563
          %v3572 = vadd.f32 %v3510, %v3564
          %3573 = vset.pattern.permute.xlu0 107
          %3574 = vperm.xlu0 %3573, %v253
          %v3575 = vpop.permute.xlu0 %3574
          %vm3576 = vcmp.eq.s32.totalorder %v3575, %v245
          %vm3577 = vcmp.eq.s32.totalorder %v3575, %v246
          %vm3578 = vcmp.eq.s32.totalorder %v3575, %v247
          %vm3579 = vcmp.eq.s32.totalorder %v3575, %v248
          %vm3580 = vcmp.eq.s32.totalorder %v3575, %v249
          %vm3581 = vcmp.eq.s32.totalorder %v3575, %v250
          %vm3582 = vcmp.eq.s32.totalorder %v3575, %v251
          %vm3583 = vcmp.eq.s32.totalorder %v3575, %v252
          %3584 = vset.pattern.permute.xlu0 107
          %3585 = vperm.xlu0 %3584, %v254
          %v3586 = vpop.permute.xlu0 %3585
          %v3588 = vsel %vm3576, %v3586, 0.0
          %v3589 = vsel %vm3577, %v3586, 0.0
          %v3590 = vsel %vm3578, %v3586, 0.0
          %v3591 = vsel %vm3579, %v3586, 0.0
          %v3592 = vsel %vm3580, %v3586, 0.0
          %v3593 = vsel %vm3581, %v3586, 0.0
          %v3594 = vsel %vm3582, %v3586, 0.0
          %v3595 = vsel %vm3583, %v3586, 0.0
          %v3596 = vadd.f32 %v3534, %v3588
          %v3597 = vadd.f32 %v3535, %v3589
          %v3598 = vadd.f32 %v3536, %v3590
          %v3599 = vadd.f32 %v3537, %v3591
          %v3600 = vadd.f32 %v3538, %v3592
          %v3601 = vadd.f32 %v3539, %v3593
          %v3602 = vadd.f32 %v3540, %v3594
          %v3603 = vadd.f32 %v3541, %v3595
          %3604 = vset.pattern.permute.xlu0 108
          %3605 = vperm.xlu0 %3604, %v253
          %v3606 = vpop.permute.xlu0 %3605
          %vm3607 = vcmp.eq.s32.totalorder %v3606, %v245
          %vm3608 = vcmp.eq.s32.totalorder %v3606, %v246
          %vm3609 = vcmp.eq.s32.totalorder %v3606, %v247
          %vm3610 = vcmp.eq.s32.totalorder %v3606, %v248
          %vm3611 = vcmp.eq.s32.totalorder %v3606, %v249
          %vm3612 = vcmp.eq.s32.totalorder %v3606, %v250
          %vm3613 = vcmp.eq.s32.totalorder %v3606, %v251
          %vm3614 = vcmp.eq.s32.totalorder %v3606, %v252
          %3615 = vset.pattern.permute.xlu0 108
          %3616 = vperm.xlu0 %3615, %v254
          %v3617 = vpop.permute.xlu0 %3616
          %v3619 = vsel %vm3607, %v3617, 0.0
          %v3620 = vsel %vm3608, %v3617, 0.0
          %v3621 = vsel %vm3609, %v3617, 0.0
          %v3622 = vsel %vm3610, %v3617, 0.0
          %v3623 = vsel %vm3611, %v3617, 0.0
          %v3624 = vsel %vm3612, %v3617, 0.0
          %v3625 = vsel %vm3613, %v3617, 0.0
          %v3626 = vsel %vm3614, %v3617, 0.0
          %v3627 = vadd.f32 %v3565, %v3619
          %v3628 = vadd.f32 %v3566, %v3620
          %v3629 = vadd.f32 %v3567, %v3621
          %v3630 = vadd.f32 %v3568, %v3622
          %v3631 = vadd.f32 %v3569, %v3623
          %v3632 = vadd.f32 %v3570, %v3624
          %v3633 = vadd.f32 %v3571, %v3625
          %v3634 = vadd.f32 %v3572, %v3626
          %3635 = vset.pattern.permute.xlu0 109
          %3636 = vperm.xlu0 %3635, %v253
          %v3637 = vpop.permute.xlu0 %3636
          %vm3638 = vcmp.eq.s32.totalorder %v3637, %v245
          %vm3639 = vcmp.eq.s32.totalorder %v3637, %v246
          %vm3640 = vcmp.eq.s32.totalorder %v3637, %v247
          %vm3641 = vcmp.eq.s32.totalorder %v3637, %v248
          %vm3642 = vcmp.eq.s32.totalorder %v3637, %v249
          %vm3643 = vcmp.eq.s32.totalorder %v3637, %v250
          %vm3644 = vcmp.eq.s32.totalorder %v3637, %v251
          %vm3645 = vcmp.eq.s32.totalorder %v3637, %v252
          %3646 = vset.pattern.permute.xlu0 109
          %3647 = vperm.xlu0 %3646, %v254
          %v3648 = vpop.permute.xlu0 %3647
          %v3650 = vsel %vm3638, %v3648, 0.0
          %v3651 = vsel %vm3639, %v3648, 0.0
          %v3652 = vsel %vm3640, %v3648, 0.0
          %v3653 = vsel %vm3641, %v3648, 0.0
          %v3654 = vsel %vm3642, %v3648, 0.0
          %v3655 = vsel %vm3643, %v3648, 0.0
          %v3656 = vsel %vm3644, %v3648, 0.0
          %v3657 = vsel %vm3645, %v3648, 0.0
          %v3658 = vadd.f32 %v3596, %v3650
          %v3659 = vadd.f32 %v3597, %v3651
          %v3660 = vadd.f32 %v3598, %v3652
          %v3661 = vadd.f32 %v3599, %v3653
          %v3662 = vadd.f32 %v3600, %v3654
          %v3663 = vadd.f32 %v3601, %v3655
          %v3664 = vadd.f32 %v3602, %v3656
          %v3665 = vadd.f32 %v3603, %v3657
          %3666 = vset.pattern.permute.xlu0 110
          %3667 = vperm.xlu0 %3666, %v253
          %v3668 = vpop.permute.xlu0 %3667
          %vm3669 = vcmp.eq.s32.totalorder %v3668, %v245
          %vm3670 = vcmp.eq.s32.totalorder %v3668, %v246
          %vm3671 = vcmp.eq.s32.totalorder %v3668, %v247
          %vm3672 = vcmp.eq.s32.totalorder %v3668, %v248
          %vm3673 = vcmp.eq.s32.totalorder %v3668, %v249
          %vm3674 = vcmp.eq.s32.totalorder %v3668, %v250
          %vm3675 = vcmp.eq.s32.totalorder %v3668, %v251
          %vm3676 = vcmp.eq.s32.totalorder %v3668, %v252
          %3677 = vset.pattern.permute.xlu0 110
          %3678 = vperm.xlu0 %3677, %v254
          %v3679 = vpop.permute.xlu0 %3678
          %v3681 = vsel %vm3669, %v3679, 0.0
          %v3682 = vsel %vm3670, %v3679, 0.0
          %v3683 = vsel %vm3671, %v3679, 0.0
          %v3684 = vsel %vm3672, %v3679, 0.0
          %v3685 = vsel %vm3673, %v3679, 0.0
          %v3686 = vsel %vm3674, %v3679, 0.0
          %v3687 = vsel %vm3675, %v3679, 0.0
          %v3688 = vsel %vm3676, %v3679, 0.0
          %v3689 = vadd.f32 %v3627, %v3681
          %v3690 = vadd.f32 %v3628, %v3682
          %v3691 = vadd.f32 %v3629, %v3683
          %v3692 = vadd.f32 %v3630, %v3684
          %v3693 = vadd.f32 %v3631, %v3685
          %v3694 = vadd.f32 %v3632, %v3686
          %v3695 = vadd.f32 %v3633, %v3687
          %v3696 = vadd.f32 %v3634, %v3688
          %3697 = vset.pattern.permute.xlu0 111
          %3698 = vperm.xlu0 %3697, %v253
          %v3699 = vpop.permute.xlu0 %3698
          %vm3700 = vcmp.eq.s32.totalorder %v3699, %v245
          %vm3701 = vcmp.eq.s32.totalorder %v3699, %v246
          %vm3702 = vcmp.eq.s32.totalorder %v3699, %v247
          %vm3703 = vcmp.eq.s32.totalorder %v3699, %v248
          %vm3704 = vcmp.eq.s32.totalorder %v3699, %v249
          %vm3705 = vcmp.eq.s32.totalorder %v3699, %v250
          %vm3706 = vcmp.eq.s32.totalorder %v3699, %v251
          %vm3707 = vcmp.eq.s32.totalorder %v3699, %v252
          %3708 = vset.pattern.permute.xlu0 111
          %3709 = vperm.xlu0 %3708, %v254
          %v3710 = vpop.permute.xlu0 %3709
          %v3712 = vsel %vm3700, %v3710, 0.0
          %v3713 = vsel %vm3701, %v3710, 0.0
          %v3714 = vsel %vm3702, %v3710, 0.0
          %v3715 = vsel %vm3703, %v3710, 0.0
          %v3716 = vsel %vm3704, %v3710, 0.0
          %v3717 = vsel %vm3705, %v3710, 0.0
          %v3718 = vsel %vm3706, %v3710, 0.0
          %v3719 = vsel %vm3707, %v3710, 0.0
          %v3720 = vadd.f32 %v3658, %v3712
          %v3721 = vadd.f32 %v3659, %v3713
          %v3722 = vadd.f32 %v3660, %v3714
          %v3723 = vadd.f32 %v3661, %v3715
          %v3724 = vadd.f32 %v3662, %v3716
          %v3725 = vadd.f32 %v3663, %v3717
          %v3726 = vadd.f32 %v3664, %v3718
          %v3727 = vadd.f32 %v3665, %v3719
          %3728 = vset.pattern.permute.xlu0 112
          %3729 = vperm.xlu0 %3728, %v253
          %v3730 = vpop.permute.xlu0 %3729
          %vm3731 = vcmp.eq.s32.totalorder %v3730, %v245
          %vm3732 = vcmp.eq.s32.totalorder %v3730, %v246
          %vm3733 = vcmp.eq.s32.totalorder %v3730, %v247
          %vm3734 = vcmp.eq.s32.totalorder %v3730, %v248
          %vm3735 = vcmp.eq.s32.totalorder %v3730, %v249
          %vm3736 = vcmp.eq.s32.totalorder %v3730, %v250
          %vm3737 = vcmp.eq.s32.totalorder %v3730, %v251
          %vm3738 = vcmp.eq.s32.totalorder %v3730, %v252
          %3739 = vset.pattern.permute.xlu0 112
          %3740 = vperm.xlu0 %3739, %v254
          %v3741 = vpop.permute.xlu0 %3740
          %v3743 = vsel %vm3731, %v3741, 0.0
          %v3744 = vsel %vm3732, %v3741, 0.0
          %v3745 = vsel %vm3733, %v3741, 0.0
          %v3746 = vsel %vm3734, %v3741, 0.0
          %v3747 = vsel %vm3735, %v3741, 0.0
          %v3748 = vsel %vm3736, %v3741, 0.0
          %v3749 = vsel %vm3737, %v3741, 0.0
          %v3750 = vsel %vm3738, %v3741, 0.0
          %v3751 = vadd.f32 %v3689, %v3743
          %v3752 = vadd.f32 %v3690, %v3744
          %v3753 = vadd.f32 %v3691, %v3745
          %v3754 = vadd.f32 %v3692, %v3746
          %v3755 = vadd.f32 %v3693, %v3747
          %v3756 = vadd.f32 %v3694, %v3748
          %v3757 = vadd.f32 %v3695, %v3749
          %v3758 = vadd.f32 %v3696, %v3750
          %3759 = vset.pattern.permute.xlu0 113
          %3760 = vperm.xlu0 %3759, %v253
          %v3761 = vpop.permute.xlu0 %3760
          %vm3762 = vcmp.eq.s32.totalorder %v3761, %v245
          %vm3763 = vcmp.eq.s32.totalorder %v3761, %v246
          %vm3764 = vcmp.eq.s32.totalorder %v3761, %v247
          %vm3765 = vcmp.eq.s32.totalorder %v3761, %v248
          %vm3766 = vcmp.eq.s32.totalorder %v3761, %v249
          %vm3767 = vcmp.eq.s32.totalorder %v3761, %v250
          %vm3768 = vcmp.eq.s32.totalorder %v3761, %v251
          %vm3769 = vcmp.eq.s32.totalorder %v3761, %v252
          %3770 = vset.pattern.permute.xlu0 113
          %3771 = vperm.xlu0 %3770, %v254
          %v3772 = vpop.permute.xlu0 %3771
          %v3774 = vsel %vm3762, %v3772, 0.0
          %v3775 = vsel %vm3763, %v3772, 0.0
          %v3776 = vsel %vm3764, %v3772, 0.0
          %v3777 = vsel %vm3765, %v3772, 0.0
          %v3778 = vsel %vm3766, %v3772, 0.0
          %v3779 = vsel %vm3767, %v3772, 0.0
          %v3780 = vsel %vm3768, %v3772, 0.0
          %v3781 = vsel %vm3769, %v3772, 0.0
          %v3782 = vadd.f32 %v3720, %v3774
          %v3783 = vadd.f32 %v3721, %v3775
          %v3784 = vadd.f32 %v3722, %v3776
          %v3785 = vadd.f32 %v3723, %v3777
          %v3786 = vadd.f32 %v3724, %v3778
          %v3787 = vadd.f32 %v3725, %v3779
          %v3788 = vadd.f32 %v3726, %v3780
          %v3789 = vadd.f32 %v3727, %v3781
          %3790 = vset.pattern.permute.xlu0 114
          %3791 = vperm.xlu0 %3790, %v253
          %v3792 = vpop.permute.xlu0 %3791
          %vm3793 = vcmp.eq.s32.totalorder %v3792, %v245
          %vm3794 = vcmp.eq.s32.totalorder %v3792, %v246
          %vm3795 = vcmp.eq.s32.totalorder %v3792, %v247
          %vm3796 = vcmp.eq.s32.totalorder %v3792, %v248
          %vm3797 = vcmp.eq.s32.totalorder %v3792, %v249
          %vm3798 = vcmp.eq.s32.totalorder %v3792, %v250
          %vm3799 = vcmp.eq.s32.totalorder %v3792, %v251
          %vm3800 = vcmp.eq.s32.totalorder %v3792, %v252
          %3801 = vset.pattern.permute.xlu0 114
          %3802 = vperm.xlu0 %3801, %v254
          %v3803 = vpop.permute.xlu0 %3802
          %v3805 = vsel %vm3793, %v3803, 0.0
          %v3806 = vsel %vm3794, %v3803, 0.0
          %v3807 = vsel %vm3795, %v3803, 0.0
          %v3808 = vsel %vm3796, %v3803, 0.0
          %v3809 = vsel %vm3797, %v3803, 0.0
          %v3810 = vsel %vm3798, %v3803, 0.0
          %v3811 = vsel %vm3799, %v3803, 0.0
          %v3812 = vsel %vm3800, %v3803, 0.0
          %v3813 = vadd.f32 %v3751, %v3805
          %v3814 = vadd.f32 %v3752, %v3806
          %v3815 = vadd.f32 %v3753, %v3807
          %v3816 = vadd.f32 %v3754, %v3808
          %v3817 = vadd.f32 %v3755, %v3809
          %v3818 = vadd.f32 %v3756, %v3810
          %v3819 = vadd.f32 %v3757, %v3811
          %v3820 = vadd.f32 %v3758, %v3812
          %3821 = vset.pattern.permute.xlu0 115
          %3822 = vperm.xlu0 %3821, %v253
          %v3823 = vpop.permute.xlu0 %3822
          %vm3824 = vcmp.eq.s32.totalorder %v3823, %v245
          %vm3825 = vcmp.eq.s32.totalorder %v3823, %v246
          %vm3826 = vcmp.eq.s32.totalorder %v3823, %v247
          %vm3827 = vcmp.eq.s32.totalorder %v3823, %v248
          %vm3828 = vcmp.eq.s32.totalorder %v3823, %v249
          %vm3829 = vcmp.eq.s32.totalorder %v3823, %v250
          %vm3830 = vcmp.eq.s32.totalorder %v3823, %v251
          %vm3831 = vcmp.eq.s32.totalorder %v3823, %v252
          %3832 = vset.pattern.permute.xlu0 115
          %3833 = vperm.xlu0 %3832, %v254
          %v3834 = vpop.permute.xlu0 %3833
          %v3836 = vsel %vm3824, %v3834, 0.0
          %v3837 = vsel %vm3825, %v3834, 0.0
          %v3838 = vsel %vm3826, %v3834, 0.0
          %v3839 = vsel %vm3827, %v3834, 0.0
          %v3840 = vsel %vm3828, %v3834, 0.0
          %v3841 = vsel %vm3829, %v3834, 0.0
          %v3842 = vsel %vm3830, %v3834, 0.0
          %v3843 = vsel %vm3831, %v3834, 0.0
          %v3844 = vadd.f32 %v3782, %v3836
          %v3845 = vadd.f32 %v3783, %v3837
          %v3846 = vadd.f32 %v3784, %v3838
          %v3847 = vadd.f32 %v3785, %v3839
          %v3848 = vadd.f32 %v3786, %v3840
          %v3849 = vadd.f32 %v3787, %v3841
          %v3850 = vadd.f32 %v3788, %v3842
          %v3851 = vadd.f32 %v3789, %v3843
          %3852 = vset.pattern.permute.xlu0 116
          %3853 = vperm.xlu0 %3852, %v253
          %v3854 = vpop.permute.xlu0 %3853
          %vm3855 = vcmp.eq.s32.totalorder %v3854, %v245
          %vm3856 = vcmp.eq.s32.totalorder %v3854, %v246
          %vm3857 = vcmp.eq.s32.totalorder %v3854, %v247
          %vm3858 = vcmp.eq.s32.totalorder %v3854, %v248
          %vm3859 = vcmp.eq.s32.totalorder %v3854, %v249
          %vm3860 = vcmp.eq.s32.totalorder %v3854, %v250
          %vm3861 = vcmp.eq.s32.totalorder %v3854, %v251
          %vm3862 = vcmp.eq.s32.totalorder %v3854, %v252
          %3863 = vset.pattern.permute.xlu0 116
          %3864 = vperm.xlu0 %3863, %v254
          %v3865 = vpop.permute.xlu0 %3864
          %v3867 = vsel %vm3855, %v3865, 0.0
          %v3868 = vsel %vm3856, %v3865, 0.0
          %v3869 = vsel %vm3857, %v3865, 0.0
          %v3870 = vsel %vm3858, %v3865, 0.0
          %v3871 = vsel %vm3859, %v3865, 0.0
          %v3872 = vsel %vm3860, %v3865, 0.0
          %v3873 = vsel %vm3861, %v3865, 0.0
          %v3874 = vsel %vm3862, %v3865, 0.0
          %v3875 = vadd.f32 %v3813, %v3867
          %v3876 = vadd.f32 %v3814, %v3868
          %v3877 = vadd.f32 %v3815, %v3869
          %v3878 = vadd.f32 %v3816, %v3870
          %v3879 = vadd.f32 %v3817, %v3871
          %v3880 = vadd.f32 %v3818, %v3872
          %v3881 = vadd.f32 %v3819, %v3873
          %v3882 = vadd.f32 %v3820, %v3874
          %3883 = vset.pattern.permute.xlu0 117
          %3884 = vperm.xlu0 %3883, %v253
          %v3885 = vpop.permute.xlu0 %3884
          %vm3886 = vcmp.eq.s32.totalorder %v3885, %v245
          %vm3887 = vcmp.eq.s32.totalorder %v3885, %v246
          %vm3888 = vcmp.eq.s32.totalorder %v3885, %v247
          %vm3889 = vcmp.eq.s32.totalorder %v3885, %v248
          %vm3890 = vcmp.eq.s32.totalorder %v3885, %v249
          %vm3891 = vcmp.eq.s32.totalorder %v3885, %v250
          %vm3892 = vcmp.eq.s32.totalorder %v3885, %v251
          %vm3893 = vcmp.eq.s32.totalorder %v3885, %v252
          %3894 = vset.pattern.permute.xlu0 117
          %3895 = vperm.xlu0 %3894, %v254
          %v3896 = vpop.permute.xlu0 %3895
          %v3898 = vsel %vm3886, %v3896, 0.0
          %v3899 = vsel %vm3887, %v3896, 0.0
          %v3900 = vsel %vm3888, %v3896, 0.0
          %v3901 = vsel %vm3889, %v3896, 0.0
          %v3902 = vsel %vm3890, %v3896, 0.0
          %v3903 = vsel %vm3891, %v3896, 0.0
          %v3904 = vsel %vm3892, %v3896, 0.0
          %v3905 = vsel %vm3893, %v3896, 0.0
          %v3906 = vadd.f32 %v3844, %v3898
          %v3907 = vadd.f32 %v3845, %v3899
          %v3908 = vadd.f32 %v3846, %v3900
          %v3909 = vadd.f32 %v3847, %v3901
          %v3910 = vadd.f32 %v3848, %v3902
          %v3911 = vadd.f32 %v3849, %v3903
          %v3912 = vadd.f32 %v3850, %v3904
          %v3913 = vadd.f32 %v3851, %v3905
          %3914 = vset.pattern.permute.xlu0 118
          %3915 = vperm.xlu0 %3914, %v253
          %v3916 = vpop.permute.xlu0 %3915
          %vm3917 = vcmp.eq.s32.totalorder %v3916, %v245
          %vm3918 = vcmp.eq.s32.totalorder %v3916, %v246
          %vm3919 = vcmp.eq.s32.totalorder %v3916, %v247
          %vm3920 = vcmp.eq.s32.totalorder %v3916, %v248
          %vm3921 = vcmp.eq.s32.totalorder %v3916, %v249
          %vm3922 = vcmp.eq.s32.totalorder %v3916, %v250
          %vm3923 = vcmp.eq.s32.totalorder %v3916, %v251
          %vm3924 = vcmp.eq.s32.totalorder %v3916, %v252
          %3925 = vset.pattern.permute.xlu0 118
          %3926 = vperm.xlu0 %3925, %v254
          %v3927 = vpop.permute.xlu0 %3926
          %v3929 = vsel %vm3917, %v3927, 0.0
          %v3930 = vsel %vm3918, %v3927, 0.0
          %v3931 = vsel %vm3919, %v3927, 0.0
          %v3932 = vsel %vm3920, %v3927, 0.0
          %v3933 = vsel %vm3921, %v3927, 0.0
          %v3934 = vsel %vm3922, %v3927, 0.0
          %v3935 = vsel %vm3923, %v3927, 0.0
          %v3936 = vsel %vm3924, %v3927, 0.0
          %v3937 = vadd.f32 %v3875, %v3929
          %v3938 = vadd.f32 %v3876, %v3930
          %v3939 = vadd.f32 %v3877, %v3931
          %v3940 = vadd.f32 %v3878, %v3932
          %v3941 = vadd.f32 %v3879, %v3933
          %v3942 = vadd.f32 %v3880, %v3934
          %v3943 = vadd.f32 %v3881, %v3935
          %v3944 = vadd.f32 %v3882, %v3936
          %3945 = vset.pattern.permute.xlu0 119
          %3946 = vperm.xlu0 %3945, %v253
          %v3947 = vpop.permute.xlu0 %3946
          %vm3948 = vcmp.eq.s32.totalorder %v3947, %v245
          %vm3949 = vcmp.eq.s32.totalorder %v3947, %v246
          %vm3950 = vcmp.eq.s32.totalorder %v3947, %v247
          %vm3951 = vcmp.eq.s32.totalorder %v3947, %v248
          %vm3952 = vcmp.eq.s32.totalorder %v3947, %v249
          %vm3953 = vcmp.eq.s32.totalorder %v3947, %v250
          %vm3954 = vcmp.eq.s32.totalorder %v3947, %v251
          %vm3955 = vcmp.eq.s32.totalorder %v3947, %v252
          %3956 = vset.pattern.permute.xlu0 119
          %3957 = vperm.xlu0 %3956, %v254
          %v3958 = vpop.permute.xlu0 %3957
          %v3960 = vsel %vm3948, %v3958, 0.0
          %v3961 = vsel %vm3949, %v3958, 0.0
          %v3962 = vsel %vm3950, %v3958, 0.0
          %v3963 = vsel %vm3951, %v3958, 0.0
          %v3964 = vsel %vm3952, %v3958, 0.0
          %v3965 = vsel %vm3953, %v3958, 0.0
          %v3966 = vsel %vm3954, %v3958, 0.0
          %v3967 = vsel %vm3955, %v3958, 0.0
          %v3968 = vadd.f32 %v3906, %v3960
          %v3969 = vadd.f32 %v3907, %v3961
          %v3970 = vadd.f32 %v3908, %v3962
          %v3971 = vadd.f32 %v3909, %v3963
          %v3972 = vadd.f32 %v3910, %v3964
          %v3973 = vadd.f32 %v3911, %v3965
          %v3974 = vadd.f32 %v3912, %v3966
          %v3975 = vadd.f32 %v3913, %v3967
          %3976 = vset.pattern.permute.xlu0 120
          %3977 = vperm.xlu0 %3976, %v253
          %v3978 = vpop.permute.xlu0 %3977
          %vm3979 = vcmp.eq.s32.totalorder %v3978, %v245
          %vm3980 = vcmp.eq.s32.totalorder %v3978, %v246
          %vm3981 = vcmp.eq.s32.totalorder %v3978, %v247
          %vm3982 = vcmp.eq.s32.totalorder %v3978, %v248
          %vm3983 = vcmp.eq.s32.totalorder %v3978, %v249
          %vm3984 = vcmp.eq.s32.totalorder %v3978, %v250
          %vm3985 = vcmp.eq.s32.totalorder %v3978, %v251
          %vm3986 = vcmp.eq.s32.totalorder %v3978, %v252
          %3987 = vset.pattern.permute.xlu0 120
          %3988 = vperm.xlu0 %3987, %v254
          %v3989 = vpop.permute.xlu0 %3988
          %v3991 = vsel %vm3979, %v3989, 0.0
          %v3992 = vsel %vm3980, %v3989, 0.0
          %v3993 = vsel %vm3981, %v3989, 0.0
          %v3994 = vsel %vm3982, %v3989, 0.0
          %v3995 = vsel %vm3983, %v3989, 0.0
          %v3996 = vsel %vm3984, %v3989, 0.0
          %v3997 = vsel %vm3985, %v3989, 0.0
          %v3998 = vsel %vm3986, %v3989, 0.0
          %v3999 = vadd.f32 %v3937, %v3991
          %v4000 = vadd.f32 %v3938, %v3992
          %v4001 = vadd.f32 %v3939, %v3993
          %v4002 = vadd.f32 %v3940, %v3994
          %v4003 = vadd.f32 %v3941, %v3995
          %v4004 = vadd.f32 %v3942, %v3996
          %v4005 = vadd.f32 %v3943, %v3997
          %v4006 = vadd.f32 %v3944, %v3998
          %4007 = vset.pattern.permute.xlu0 121
          %4008 = vperm.xlu0 %4007, %v253
          %v4009 = vpop.permute.xlu0 %4008
          %vm4010 = vcmp.eq.s32.totalorder %v4009, %v245
          %vm4011 = vcmp.eq.s32.totalorder %v4009, %v246
          %vm4012 = vcmp.eq.s32.totalorder %v4009, %v247
          %vm4013 = vcmp.eq.s32.totalorder %v4009, %v248
          %vm4014 = vcmp.eq.s32.totalorder %v4009, %v249
          %vm4015 = vcmp.eq.s32.totalorder %v4009, %v250
          %vm4016 = vcmp.eq.s32.totalorder %v4009, %v251
          %vm4017 = vcmp.eq.s32.totalorder %v4009, %v252
          %4018 = vset.pattern.permute.xlu0 121
          %4019 = vperm.xlu0 %4018, %v254
          %v4020 = vpop.permute.xlu0 %4019
          %v4022 = vsel %vm4010, %v4020, 0.0
          %v4023 = vsel %vm4011, %v4020, 0.0
          %v4024 = vsel %vm4012, %v4020, 0.0
          %v4025 = vsel %vm4013, %v4020, 0.0
          %v4026 = vsel %vm4014, %v4020, 0.0
          %v4027 = vsel %vm4015, %v4020, 0.0
          %v4028 = vsel %vm4016, %v4020, 0.0
          %v4029 = vsel %vm4017, %v4020, 0.0
          %v4030 = vadd.f32 %v3968, %v4022
          %v4031 = vadd.f32 %v3969, %v4023
          %v4032 = vadd.f32 %v3970, %v4024
          %v4033 = vadd.f32 %v3971, %v4025
          %v4034 = vadd.f32 %v3972, %v4026
          %v4035 = vadd.f32 %v3973, %v4027
          %v4036 = vadd.f32 %v3974, %v4028
          %v4037 = vadd.f32 %v3975, %v4029
          %4038 = vset.pattern.permute.xlu0 122
          %4039 = vperm.xlu0 %4038, %v253
          %v4040 = vpop.permute.xlu0 %4039
          %vm4041 = vcmp.eq.s32.totalorder %v4040, %v245
          %vm4042 = vcmp.eq.s32.totalorder %v4040, %v246
          %vm4043 = vcmp.eq.s32.totalorder %v4040, %v247
          %vm4044 = vcmp.eq.s32.totalorder %v4040, %v248
          %vm4045 = vcmp.eq.s32.totalorder %v4040, %v249
          %vm4046 = vcmp.eq.s32.totalorder %v4040, %v250
          %vm4047 = vcmp.eq.s32.totalorder %v4040, %v251
          %vm4048 = vcmp.eq.s32.totalorder %v4040, %v252
          %4049 = vset.pattern.permute.xlu0 122
          %4050 = vperm.xlu0 %4049, %v254
          %v4051 = vpop.permute.xlu0 %4050
          %v4053 = vsel %vm4041, %v4051, 0.0
          %v4054 = vsel %vm4042, %v4051, 0.0
          %v4055 = vsel %vm4043, %v4051, 0.0
          %v4056 = vsel %vm4044, %v4051, 0.0
          %v4057 = vsel %vm4045, %v4051, 0.0
          %v4058 = vsel %vm4046, %v4051, 0.0
          %v4059 = vsel %vm4047, %v4051, 0.0
          %v4060 = vsel %vm4048, %v4051, 0.0
          %v4061 = vadd.f32 %v3999, %v4053
          %v4062 = vadd.f32 %v4000, %v4054
          %v4063 = vadd.f32 %v4001, %v4055
          %v4064 = vadd.f32 %v4002, %v4056
          %v4065 = vadd.f32 %v4003, %v4057
          %v4066 = vadd.f32 %v4004, %v4058
          %v4067 = vadd.f32 %v4005, %v4059
          %v4068 = vadd.f32 %v4006, %v4060
          %4069 = vset.pattern.permute.xlu0 123
          %4070 = vperm.xlu0 %4069, %v253
          %v4071 = vpop.permute.xlu0 %4070
          %vm4072 = vcmp.eq.s32.totalorder %v4071, %v245
          %vm4073 = vcmp.eq.s32.totalorder %v4071, %v246
          %vm4074 = vcmp.eq.s32.totalorder %v4071, %v247
          %vm4075 = vcmp.eq.s32.totalorder %v4071, %v248
          %vm4076 = vcmp.eq.s32.totalorder %v4071, %v249
          %vm4077 = vcmp.eq.s32.totalorder %v4071, %v250
          %vm4078 = vcmp.eq.s32.totalorder %v4071, %v251
          %vm4079 = vcmp.eq.s32.totalorder %v4071, %v252
          %4080 = vset.pattern.permute.xlu0 123
          %4081 = vperm.xlu0 %4080, %v254
          %v4082 = vpop.permute.xlu0 %4081
          %v4084 = vsel %vm4072, %v4082, 0.0
          %v4085 = vsel %vm4073, %v4082, 0.0
          %v4086 = vsel %vm4074, %v4082, 0.0
          %v4087 = vsel %vm4075, %v4082, 0.0
          %v4088 = vsel %vm4076, %v4082, 0.0
          %v4089 = vsel %vm4077, %v4082, 0.0
          %v4090 = vsel %vm4078, %v4082, 0.0
          %v4091 = vsel %vm4079, %v4082, 0.0
          %v4092 = vadd.f32 %v4030, %v4084
          %v4093 = vadd.f32 %v4031, %v4085
          %v4094 = vadd.f32 %v4032, %v4086
          %v4095 = vadd.f32 %v4033, %v4087
          %v4096 = vadd.f32 %v4034, %v4088
          %v4097 = vadd.f32 %v4035, %v4089
          %v4098 = vadd.f32 %v4036, %v4090
          %v4099 = vadd.f32 %v4037, %v4091
          %4100 = vset.pattern.permute.xlu0 124
          %4101 = vperm.xlu0 %4100, %v253
          %v4102 = vpop.permute.xlu0 %4101
          %vm4103 = vcmp.eq.s32.totalorder %v4102, %v245
          %vm4104 = vcmp.eq.s32.totalorder %v4102, %v246
          %vm4105 = vcmp.eq.s32.totalorder %v4102, %v247
          %vm4106 = vcmp.eq.s32.totalorder %v4102, %v248
          %vm4107 = vcmp.eq.s32.totalorder %v4102, %v249
          %vm4108 = vcmp.eq.s32.totalorder %v4102, %v250
          %vm4109 = vcmp.eq.s32.totalorder %v4102, %v251
          %vm4110 = vcmp.eq.s32.totalorder %v4102, %v252
          %4111 = vset.pattern.permute.xlu0 124
          %4112 = vperm.xlu0 %4111, %v254
          %v4113 = vpop.permute.xlu0 %4112
          %v4115 = vsel %vm4103, %v4113, 0.0
          %v4116 = vsel %vm4104, %v4113, 0.0
          %v4117 = vsel %vm4105, %v4113, 0.0
          %v4118 = vsel %vm4106, %v4113, 0.0
          %v4119 = vsel %vm4107, %v4113, 0.0
          %v4120 = vsel %vm4108, %v4113, 0.0
          %v4121 = vsel %vm4109, %v4113, 0.0
          %v4122 = vsel %vm4110, %v4113, 0.0
          %v4123 = vadd.f32 %v4061, %v4115
          %v4124 = vadd.f32 %v4062, %v4116
          %v4125 = vadd.f32 %v4063, %v4117
          %v4126 = vadd.f32 %v4064, %v4118
          %v4127 = vadd.f32 %v4065, %v4119
          %v4128 = vadd.f32 %v4066, %v4120
          %v4129 = vadd.f32 %v4067, %v4121
          %v4130 = vadd.f32 %v4068, %v4122
          %4131 = vset.pattern.permute.xlu0 125
          %4132 = vperm.xlu0 %4131, %v253
          %v4133 = vpop.permute.xlu0 %4132
          %vm4134 = vcmp.eq.s32.totalorder %v4133, %v245
          %vm4135 = vcmp.eq.s32.totalorder %v4133, %v246
          %vm4136 = vcmp.eq.s32.totalorder %v4133, %v247
          %vm4137 = vcmp.eq.s32.totalorder %v4133, %v248
          %vm4138 = vcmp.eq.s32.totalorder %v4133, %v249
          %vm4139 = vcmp.eq.s32.totalorder %v4133, %v250
          %vm4140 = vcmp.eq.s32.totalorder %v4133, %v251
          %vm4141 = vcmp.eq.s32.totalorder %v4133, %v252
          %4142 = vset.pattern.permute.xlu0 125
          %4143 = vperm.xlu0 %4142, %v254
          %v4144 = vpop.permute.xlu0 %4143
          %v4146 = vsel %vm4134, %v4144, 0.0
          %v4147 = vsel %vm4135, %v4144, 0.0
          %v4148 = vsel %vm4136, %v4144, 0.0
          %v4149 = vsel %vm4137, %v4144, 0.0
          %v4150 = vsel %vm4138, %v4144, 0.0
          %v4151 = vsel %vm4139, %v4144, 0.0
          %v4152 = vsel %vm4140, %v4144, 0.0
          %v4153 = vsel %vm4141, %v4144, 0.0
          %v4154 = vadd.f32 %v4092, %v4146
          %v4155 = vadd.f32 %v4093, %v4147
          %v4156 = vadd.f32 %v4094, %v4148
          %v4157 = vadd.f32 %v4095, %v4149
          %v4158 = vadd.f32 %v4096, %v4150
          %v4159 = vadd.f32 %v4097, %v4151
          %v4160 = vadd.f32 %v4098, %v4152
          %v4161 = vadd.f32 %v4099, %v4153
          %4162 = vset.pattern.permute.xlu0 126
          %4163 = vperm.xlu0 %4162, %v253
          %v4164 = vpop.permute.xlu0 %4163
          %vm4165 = vcmp.eq.s32.totalorder %v4164, %v245
          %vm4166 = vcmp.eq.s32.totalorder %v4164, %v246
          %vm4167 = vcmp.eq.s32.totalorder %v4164, %v247
          %vm4168 = vcmp.eq.s32.totalorder %v4164, %v248
          %vm4169 = vcmp.eq.s32.totalorder %v4164, %v249
          %vm4170 = vcmp.eq.s32.totalorder %v4164, %v250
          %vm4171 = vcmp.eq.s32.totalorder %v4164, %v251
          %vm4172 = vcmp.eq.s32.totalorder %v4164, %v252
          %4173 = vset.pattern.permute.xlu0 126
          %4174 = vperm.xlu0 %4173, %v254
          %v4175 = vpop.permute.xlu0 %4174
          %v4177 = vsel %vm4165, %v4175, 0.0
          %v4178 = vsel %vm4166, %v4175, 0.0
          %v4179 = vsel %vm4167, %v4175, 0.0
          %v4180 = vsel %vm4168, %v4175, 0.0
          %v4181 = vsel %vm4169, %v4175, 0.0
          %v4182 = vsel %vm4170, %v4175, 0.0
          %v4183 = vsel %vm4171, %v4175, 0.0
          %v4184 = vsel %vm4172, %v4175, 0.0
          %v4185 = vadd.f32 %v4123, %v4177
          %v4186 = vadd.f32 %v4124, %v4178
          %v4187 = vadd.f32 %v4125, %v4179
          %v4188 = vadd.f32 %v4126, %v4180
          %v4189 = vadd.f32 %v4127, %v4181
          %v4190 = vadd.f32 %v4128, %v4182
          %v4191 = vadd.f32 %v4129, %v4183
          %v4192 = vadd.f32 %v4130, %v4184
          %4193 = vset.pattern.permute.xlu0 127
          %4194 = vperm.xlu0 %4193, %v253
          %v4195 = vpop.permute.xlu0 %4194
          %vm4196 = vcmp.eq.s32.totalorder %v4195, %v245
          %vm4197 = vcmp.eq.s32.totalorder %v4195, %v246
          %vm4198 = vcmp.eq.s32.totalorder %v4195, %v247
          %vm4199 = vcmp.eq.s32.totalorder %v4195, %v248
          %vm4200 = vcmp.eq.s32.totalorder %v4195, %v249
          %vm4201 = vcmp.eq.s32.totalorder %v4195, %v250
          %vm4202 = vcmp.eq.s32.totalorder %v4195, %v251
          %vm4203 = vcmp.eq.s32.totalorder %v4195, %v252
          %4204 = vset.pattern.permute.xlu0 127
          %4205 = vperm.xlu0 %4204, %v254
          %v4206 = vpop.permute.xlu0 %4205
          %v4208 = vsel %vm4196, %v4206, 0.0
          %v4209 = vsel %vm4197, %v4206, 0.0
          %v4210 = vsel %vm4198, %v4206, 0.0
          %v4211 = vsel %vm4199, %v4206, 0.0
          %v4212 = vsel %vm4200, %v4206, 0.0
          %v4213 = vsel %vm4201, %v4206, 0.0
          %v4214 = vsel %vm4202, %v4206, 0.0
          %v4215 = vsel %vm4203, %v4206, 0.0
          %v4216 = vadd.f32 %v4154, %v4208
          %v4217 = vadd.f32 %v4155, %v4209
          %v4218 = vadd.f32 %v4156, %v4210
          %v4219 = vadd.f32 %v4157, %v4211
          %v4220 = vadd.f32 %v4158, %v4212
          %v4221 = vadd.f32 %v4159, %v4213
          %v4222 = vadd.f32 %v4160, %v4214
          %v4223 = vadd.f32 %v4161, %v4215
          %v4224 = vld [vmem:[%s195] sm:$0xff]
          %v4225 = vld [vmem:[%s195 + $0x8] sm:$0xff]
          %v4226 = vld [vmem:[%s195 + $0x10] sm:$0xff]
          %v4227 = vld [vmem:[%s195 + $0x18] sm:$0xff]
          %v4228 = vld [vmem:[%s195 + $0x20] sm:$0xff]
          %v4229 = vld [vmem:[%s195 + $0x28] sm:$0xff]
          %v4230 = vld [vmem:[%s195 + $0x30] sm:$0xff]
          %v4231 = vld [vmem:[%s195 + $0x38] sm:$0xff]
          %v4232 = vadd.f32 %v4185, %v4216
          %v4233 = vadd.f32 %v4186, %v4217
          %v4234 = vadd.f32 %v4187, %v4218
          %v4235 = vadd.f32 %v4188, %v4219
          %v4236 = vadd.f32 %v4189, %v4220
          %v4237 = vadd.f32 %v4190, %v4221
          %v4238 = vadd.f32 %v4191, %v4222
          %v4239 = vadd.f32 %v4192, %v4223
          %v4240 = vadd.f32 %v4224, %v4232
          %v4241 = vadd.f32 %v4225, %v4233
          %v4242 = vadd.f32 %v4226, %v4234
          %v4243 = vadd.f32 %v4227, %v4235
          %v4244 = vadd.f32 %v4228, %v4236
          %v4245 = vadd.f32 %v4229, %v4237
          %v4246 = vadd.f32 %v4230, %v4238
          %v4247 = vadd.f32 %v4231, %v4239
          %4248 = vst [vmem:[%s195] sm:$0xff] %v4240
          %4249 = vst [vmem:[%s195 + $0x8] sm:$0xff] %v4241
          %4250 = vst [vmem:[%s195 + $0x10] sm:$0xff] %v4242
          %4251 = vst [vmem:[%s195 + $0x18] sm:$0xff] %v4243
          %4252 = vst [vmem:[%s195 + $0x20] sm:$0xff] %v4244
          %4253 = vst [vmem:[%s195 + $0x28] sm:$0xff] %v4245
          %4254 = vst [vmem:[%s195 + $0x30] sm:$0xff] %v4246
          %4255 = vst [vmem:[%s195 + $0x38] sm:$0xff] %v4247
        $region36: #{pointer_generator_distribution.1} parent=27 // pred_fallthru
          _
        %s4256 = sand.u32 %s108, 1
        %s4257 = scalar_lea.sflag [#allocation5], %s4256
        %s4258 = sand.u32 %s108, 1
        %s4259 = smul.addr %s4258, 64
        %s4260 = scalar_lea.vmem [#allocation4], %s4259
        // Predicated region
        $region37: #{pointer_generator_distribution.1} parent=27 // pred_check
          %p4261 = pneg %p118
        $region38: #{pointer_generator_distribution.1} parent=27 // pred_check_branch
          %4263 = sbr.rel (%p4261) target = $region40
        $region39: #{pointer_generator_distribution.1} parent=27 // pred_region
          %s4264 = smul.u32 8, %s29
          %s4266 = ssub.s32 1024, 1024
          %4267 = vsyncadd %s4257, %s4266
          %s4268 = smul.addr %s28, 16
          %s4269 = sadd.s32 %s4264, %s4268
          %s4270 = smul.addr %s4269, 128
          %s4271 = scalar_lea.hbm %s3, %s4270
          %s4273 = sshll.u32 %s4260, 4
          %s4274 = int_to_ptr.vmem [resolvable:$true] %s4273
          %4276 = dma.vmem_to_hbm [thread:$0]  %s4274, 1024, %s4271, %s4257
        $region40: #{pointer_generator_distribution.1} parent=27 // pred_fallthru
          _
      $region28: #{pointer_generator_distribution.1} parent=5 // pred_fallthru
        _
      %p4277 = scmp.le.s32.totalorder 2, %s18
      // Predicated region
      $region41: #{pointer_generator_distribution.1} parent=5 // pred_check
        %p4278 = pneg %p4277
      $region42: #{pointer_generator_distribution.1} parent=5 // pred_check_branch
        %4280 = sbr.rel (%p4278) target = $region44
      $region43: #{pointer_generator_distribution.1} parent=5 // pred_region
        %s4281 = ssub.s32 %s18, 2
        // Predicated region
        $region45: #{pointer_generator_distribution.1} parent=43 // pred_check
          %p4282 = pneg %p124
        $region46: #{pointer_generator_distribution.1} parent=43 // pred_check_branch
          %4284 = sbr.rel (%p4282) target = $region48
        $region47: #{pointer_generator_distribution.1} parent=43 // pred_region
          %s4285 = sand.u32 %s109, 1
          %s4286 = scalar_lea.sflag [#allocation5], %s4285
          %s4287 = sand.u32 %s109, 1
          %s4288 = smul.addr %s4287, 64
          %s4289 = scalar_lea.vmem [#allocation4], %s4288
          %4290 = dma.done %s4286, 1024
        $region48: #{pointer_generator_distribution.1} parent=43 // pred_fallthru
          _
      $region44: #{pointer_generator_distribution.1} parent=5 // pred_fallthru
        _
    $region6: #{pointer_generator_distribution.1} parent=1 // loop_footer
      %s22 = sadd.s32 1, %s18
    $region7: #{pointer_generator_distribution.1} parent=1 // loop_footer_branch
      %17 = sbr.rel target = $region3
    $region8: #{pointer_generator_distribution.1} parent=1 // loop_exit
      _
    %4291 = vsyncpa [#allocation5], 1
    %s4292 = scalar_lea.sflag [#allocation5], 1
    %4293 = vsyncpa %s4292, 1

</llo_original>
